<compile_context>
chip_gen: v7x
topology: tpu7x:2x2x1
jax: 0.10.0
libtpu: 0.0.40
codegen_flags: <defaults>
</compile_context>

<pallas_src>
import functools

import jax
import jax.numpy as jnp
from jax.experimental import pallas as pl
from jax.experimental.pallas import tpu as pltpu


# ----------------------------------------------------------------------------
# Helpers
# ----------------------------------------------------------------------------

def _pick_tile_m(m):
    """Largest row tile (multiple of 8) that divides m; fall back to full m."""
    for t in (512, 256, 128, 64, 32, 16, 8):
        if m % t == 0:
            return t
    return m


# ----------------------------------------------------------------------------
# Pallas kernels
# ----------------------------------------------------------------------------

def _conv_pool_kernel(p_ref, w_ref, scale_ref, shift_ref, o_ref, *, n_taps):
    """Fused conv-as-GEMM + per-channel affine (bias/BN) + max-pool + ReLU.

    p_ref:     (P, TM, K)  im2col patches, one slab per pooling tap
    w_ref:     (K, N)      GEMM weights
    scale_ref: (1, N)      folded BN scale (or ones)
    shift_ref: (1, N)      folded BN shift / conv bias
    o_ref:     (TM, N)     pooled + activated output rows
    """
    w = w_ref[...]
    scale = scale_ref[...]
    shift = shift_ref[...]
    acc = None
    for p in range(n_taps):
        t = jnp.dot(p_ref[p], w, preferred_element_type=jnp.float32)
        t = t * scale + shift                     # affine BEFORE max (BN-safe)
        acc = t if acc is None else jnp.maximum(acc, t)
    o_ref[...] = jnp.maximum(acc, 0.0).astype(o_ref.dtype)


def _gemm_bias_kernel(x_ref, w_ref, b_ref, o_ref):
    """o = x @ w + b (bias broadcast over rows), f32 accumulate on MXU."""
    acc = jnp.dot(x_ref[...], w_ref[...], preferred_element_type=jnp.float32)
    o_ref[...] = (acc + b_ref[...]).astype(o_ref.dtype)


def _bilstm_kernel(pre_f_ref, pre_b_ref, whh_ref, of_ref, ob_ref, h_scr, c_scr):
    """One bidirectional LSTM layer, both directions per sequential grid step.

    Grid step t processes time t for the forward direction and time T-1-t for
    the backward direction (the reversed indexing lives in the BlockSpecs).
    Gates are fused: one (B, 2H) @ (2H, 8H) matmul against a block-diagonal
    W_hh; gate column layout is [fwd: i f g o | bwd: i f g o], each H wide.
    """
    t = pl.program_id(0)

    @pl.when(t == 0)
    def _():
        h_scr[...] = jnp.zeros_like(h_scr)
        c_scr[...] = jnp.zeros_like(c_scr)

    H = of_ref.shape[-1]
    g_pre = jnp.concatenate([pre_f_ref[0], pre_b_ref[0]], axis=-1)   # (B, 8H)
    gates = g_pre + jnp.dot(h_scr[...], whh_ref[...],
                            preferred_element_type=jnp.float32)      # (B, 8H)
    c_prev = c_scr[...]                                              # (B, 2H)

    def update(off, c_p):
        i = jax.nn.sigmoid(gates[:, off + 0 * H: off + 1 * H])
        f = jax.nn.sigmoid(gates[:, off + 1 * H: off + 2 * H])
        g = jnp.tanh(gates[:, off + 2 * H: off + 3 * H])
        o = jax.nn.sigmoid(gates[:, off + 3 * H: off + 4 * H])
        c = f * c_p + i * g
        h = o * jnp.tanh(c)
        return h, c

    h_f, c_f = update(0, c_prev[:, :H])
    h_b, c_b = update(4 * H, c_prev[:, H:])

    h_scr[...] = jnp.concatenate([h_f, h_b], axis=-1)
    c_scr[...] = jnp.concatenate([c_f, c_b], axis=-1)
    of_ref[0] = h_f.astype(of_ref.dtype)
    ob_ref[0] = h_b.astype(ob_ref.dtype)


# ----------------------------------------------------------------------------
# Pallas wrappers
# ----------------------------------------------------------------------------

def conv_pool_gemm(patches, w, scale, shift):
    """patches:(P,M,K) @ w:(K,N) with affine epilogue, max over P, ReLU."""
    P, M, K = patches.shape
    N = w.shape[1]
    TM = _pick_tile_m(M)
    kernel = functools.partial(_conv_pool_kernel, n_taps=P)
    return pl.pallas_call(
        kernel,
        out_shape=jax.ShapeDtypeStruct((M, N), jnp.float32),
        grid=(M // TM,),
        in_specs=[
            pl.BlockSpec((P, TM, K), lambda i: (0, i, 0)),
            pl.BlockSpec((K, N), lambda i: (0, 0)),
            pl.BlockSpec((1, N), lambda i: (0, 0)),
            pl.BlockSpec((1, N), lambda i: (0, 0)),
        ],
        out_specs=pl.BlockSpec((TM, N), lambda i: (i, 0)),
        compiler_params=pltpu.CompilerParams(dimension_semantics=("parallel",)),
    )(patches, w, scale, shift)


def gemm_bias(x, w, b):
    """x:(M,K) @ w:(K,N) + b:(1,N), tiled over M."""
    M, K = x.shape
    N = w.shape[1]
    TM = _pick_tile_m(M)
    return pl.pallas_call(
        _gemm_bias_kernel,
        out_shape=jax.ShapeDtypeStruct((M, N), jnp.float32),
        grid=(M // TM,),
        in_specs=[
            pl.BlockSpec((TM, K), lambda i: (i, 0)),
            pl.BlockSpec((K, N), lambda i: (0, 0)),
            pl.BlockSpec((1, N), lambda i: (0, 0)),
        ],
        out_specs=pl.BlockSpec((TM, N), lambda i: (i, 0)),
        compiler_params=pltpu.CompilerParams(dimension_semantics=("parallel",)),
    )(x, w, b)


def bilstm_layer(pre_f, pre_b, whh):
    """pre_f/pre_b:(T,B,4H) pre-projected gates per direction, whh:(2H,8H).

    Returns (out_f, out_b), each (T,B,H), in natural time order (the backward
    direction is reversed via index_maps, not data copies)."""
    T, B, G = pre_f.shape
    H = G // 4
    return pl.pallas_call(
        _bilstm_kernel,
        out_shape=(jax.ShapeDtypeStruct((T, B, H), jnp.float32),
                   jax.ShapeDtypeStruct((T, B, H), jnp.float32)),
        grid=(T,),
        in_specs=[
            pl.BlockSpec((1, B, G), lambda t: (t, 0, 0)),
            pl.BlockSpec((1, B, G), lambda t: (T - 1 - t, 0, 0)),
            pl.BlockSpec((2 * H, 2 * G), lambda t: (0, 0)),
        ],
        out_specs=(pl.BlockSpec((1, B, H), lambda t: (t, 0, 0)),
                   pl.BlockSpec((1, B, H), lambda t: (T - 1 - t, 0, 0))),
        scratch_shapes=[pltpu.VMEM((B, 2 * H), jnp.float32),
                        pltpu.VMEM((B, 2 * H), jnp.float32)],
        compiler_params=pltpu.CompilerParams(dimension_semantics=("arbitrary",)),
    )(pre_f, pre_b, whh)


# ----------------------------------------------------------------------------
# JAX glue: per-tap im2col, parameter init, full forward
# ----------------------------------------------------------------------------

def conv3x3_bn_relu_pool(x_nhwc, w_gemm, scale, shift, ph, pw):
    """3x3 'same' conv + affine + ReLU + (ph,pw) max-pool, fused in one kernel.

    im2col is built once per pooling tap; the kernel maxes the P=ph*pw affine
    conv results so only the pooled activation ever touches HBM."""
    N, H, W, C = x_nhwc.shape
    assert H % ph == 0 and W % pw == 0, "pool window must divide spatial dims"
    Ho, Wo = H // ph, W // pw
    cout = w_gemm.shape[1]
    xp = jnp.pad(x_nhwc, ((0, 0), (1, 1), (1, 1), (0, 0)))
    taps = []
    for py in range(ph):
        for px in range(pw):
            cols = []
            for ky in range(3):
                for kx in range(3):
                    h0 = py + ky
                    w0 = px + kx
                    sl = xp[:, h0:h0 + ph * (Ho - 1) + 1:ph,
                            w0:w0 + pw * (Wo - 1) + 1:pw, :]      # (N,Ho,Wo,C)
                    cols.append(sl)
            # column index = (ky*3+kx)*C + c  (matches w_gemm row layout)
            taps.append(jnp.concatenate(cols, axis=-1).reshape(N * Ho * Wo, 9 * C))
    patches = jnp.stack(taps, axis=0)                             # (P, M, 9C)
    y = conv_pool_gemm(patches, w_gemm, scale, shift)             # (M, cout)
    return y.reshape(N, Ho, Wo, cout)


def init_params(key, input_channels, hidden_size, num_classes):
    keys = iter(jax.random.split(key, 64))

    def rnd(shape, scale=0.05):
        return scale * jax.random.normal(next(keys), shape, dtype=jnp.float32)

    params = {}
    chans = [(input_channels, 64), (64, 128), (128, 256), (256, 512)]
    eps = 1e-5
    for li, (cin, cout) in enumerate(chans):
        w = rnd((cout, cin, 3, 3))                 # PyTorch Conv2d weight layout
        b = rnd((cout,))
        # GEMM weight row index = (ky*3+kx)*cin + c
        params[f"conv{li}_w"] = jnp.transpose(w, (2, 3, 1, 0)).reshape(9 * cin, cout)
        if li in (2, 3):
            # BatchNorm2d (inference): gamma=1, beta=0, mean=0, var=1
            gamma = jnp.ones((cout,), jnp.float32)
            beta = jnp.zeros((cout,), jnp.float32)
            mean = jnp.zeros((cout,), jnp.float32)
            var = jnp.ones((cout,), jnp.float32)
            s = gamma / jnp.sqrt(var + eps)
            params[f"conv{li}_scale"] = s[None, :]
            params[f"conv{li}_shift"] = ((b - mean) * s + beta)[None, :]
        else:
            params[f"conv{li}_scale"] = jnp.ones((1, cout), jnp.float32)
            params[f"conv{li}_shift"] = b[None, :]

    # LSTM: 2 layers, bidirectional.  Fused layout:
    #   wih: (D, 8H) columns [fwd i f g o | bwd i f g o]
    #   b:   (1, 8H) = b_ih + b_hh per direction
    #   whh: (2H, 8H) block-diagonal (fwd hidden -> fwd gates, bwd -> bwd gates)
    H = hidden_size
    D0 = 512 * 2
    for layer in range(2):
        D = D0 if layer == 0 else 2 * H
        wih_cols, b_cols = [], []
        whh = jnp.zeros((2 * H, 8 * H), jnp.float32)
        for d in range(2):                         # 0 = fwd, 1 = bwd
            w_ih = rnd((4 * H, D))                 # PyTorch weight_ih_l{k}(_reverse)
            w_hh = rnd((4 * H, H))
            b_ih = rnd((4 * H,))
            b_hh = rnd((4 * H,))
            wih_cols.append(w_ih.T)                # (D, 4H), cols i f g o
            b_cols.append(b_ih + b_hh)
            whh = whh.at[d * H:(d + 1) * H, d * 4 * H:(d + 1) * 4 * H].set(w_hh.T)
        params[f"lstm{layer}_wih"] = jnp.concatenate(wih_cols, axis=1)
        params[f"lstm{layer}_b"] = jnp.concatenate(b_cols)[None, :]
        params[f"lstm{layer}_whh"] = whh

    # Classifier, padded to a lane-dense 128-multiple width.
    ncp = ((num_classes + 127) // 128) * 128
    fc_w = rnd((num_classes, 2 * H))               # PyTorch (out, in)
    fc_b = rnd((num_classes,))
    params["fc_w"] = jnp.zeros((2 * H, ncp), jnp.float32).at[:, :num_classes].set(fc_w.T)
    params["fc_b"] = jnp.zeros((1, ncp), jnp.float32).at[:, :num_classes].set(fc_b)
    return params


def crnn_forward(params, x_nchw, *, num_classes):
    x = jnp.transpose(x_nchw, (0, 2, 3, 1)).astype(jnp.float32)     # NCHW -> NHWC

    pools = [(2, 2), (2, 2), (2, 1), (2, 1)]
    for li, (ph, pw) in enumerate(pools):
        x = conv3x3_bn_relu_pool(
            x, params[f"conv{li}_w"], params[f"conv{li}_scale"],
            params[f"conv{li}_shift"], ph, pw)

    # PyTorch: conv.permute(0,3,1,2).reshape(B, W, C*H)  (feature index = c*H + h)
    N, Hc, Wc, C = x.shape
    feat = jnp.transpose(x, (0, 2, 3, 1)).reshape(N, Wc, C * Hc)    # (B, T, 1024)
    x_tbd = jnp.transpose(feat, (1, 0, 2))                          # (T, B, D)
    T, B, _ = x_tbd.shape
    H = params["lstm0_whh"].shape[0] // 2

    for layer in range(2):
        wih = params[f"lstm{layer}_wih"]
        bias = params[f"lstm{layer}_b"]
        whh = params[f"lstm{layer}_whh"]
        d_l = wih.shape[0]
        # Hoisted input projection for both directions: one 8H-wide GEMM.
        pre = gemm_bias(x_tbd.reshape(T * B, d_l), wih, bias).reshape(T, B, 8 * H)
        out_f, out_b = bilstm_layer(pre[..., :4 * H], pre[..., 4 * H:], whh)
        x_tbd = jnp.concatenate([out_f, out_b], axis=-1)            # (T, B, 2H)

    logits = gemm_bias(x_tbd.reshape(T * B, 2 * H), params["fc_w"], params["fc_b"])
    logits = logits[:, :num_classes].reshape(T, B, num_classes)
    return jnp.transpose(logits, (1, 0, 2))                         # (B, T, classes)


# ----------------------------------------------------------------------------

if __name__ == "__main__":
    key = jax.random.PRNGKey(0)
    input_channels, hidden_size, num_classes = 3, 32, 11
    # Input height must be 32 so the CNN collapses it to 2 (matches 512*2 LSTM input).
    B, Hin, Win = 2, 32, 16

    pkey, xkey = jax.random.split(key)
    params = init_params(pkey, input_channels, hidden_size, num_classes)
    x = jax.random.normal(xkey, (B, input_channels, Hin, Win), dtype=jnp.float32)

    fwd = jax.jit(functools.partial(crnn_forward, num_classes=num_classes))
    out = jax.block_until_ready(fwd(params, x))
    assert out.shape == (B, Win // 4, num_classes), out.shape
    assert bool(jnp.all(jnp.isfinite(out)))
    print("KERNEL_OK")
</pallas_src>

<mosaic_0001>
module attributes {stable_mosaic.version = 11 : i64} {
  func.func @_conv_pool_kernel(%arg0: i32, %arg1: memref<4x256x27xf32, #tpu.memory_space<vmem>>, %arg2: memref<27x64xf32, #tpu.memory_space<vmem>>, %arg3: memref<1x64xf32, #tpu.memory_space<vmem>>, %arg4: memref<1x64xf32, #tpu.memory_space<vmem>>, %arg5: memref<256x64xf32, #tpu.memory_space<vmem>>) attributes {dimension_semantics = [#tpu.dimension_semantics<parallel>], iteration_bounds = array<i64: 1>, scalar_prefetch = 0 : i64, scratch_operands = 0 : i64, tpu.core_type = #tpu.core_type<tc>, window_params = [{transform_indices = @transform_0, window_bounds = array<i64: 4, 256, 27>}, {pipeline_mode = #tpu.pipeline_mode<synchronous>, transform_indices = @transform_1, window_bounds = array<i64: 27, 64>}, {pipeline_mode = #tpu.pipeline_mode<synchronous>, transform_indices = @transform_2, window_bounds = array<i64: 1, 64>}, {pipeline_mode = #tpu.pipeline_mode<synchronous>, transform_indices = @transform_3, window_bounds = array<i64: 1, 64>}, {transform_indices = @transform_4, window_bounds = array<i64: 256, 64>}]} {
    %c0 = arith.constant 0 : index
    %c0_0 = arith.constant 0 : index
    %0 = vector.load %arg2[%c0, %c0_0] : memref<27x64xf32, #tpu.memory_space<vmem>>, vector<27x64xf32>
    %c0_1 = arith.constant 0 : index
    %c0_2 = arith.constant 0 : index
    %1 = vector.load %arg3[%c0_1, %c0_2] : memref<1x64xf32, #tpu.memory_space<vmem>>, vector<1x64xf32>
    %c0_3 = arith.constant 0 : index
    %c0_4 = arith.constant 0 : index
    %2 = vector.load %arg4[%c0_3, %c0_4] : memref<1x64xf32, #tpu.memory_space<vmem>>, vector<1x64xf32>
    %c0_5 = arith.constant 0 : index
    %c0_6 = arith.constant 0 : index
    %c0_7 = arith.constant 0 : index
    %3 = vector.load %arg1[%c0_5, %c0_6, %c0_7] : memref<4x256x27xf32, #tpu.memory_space<vmem>>, vector<1x256x27xf32>
    %4 = vector.shape_cast %3 : vector<1x256x27xf32> to vector<256x27xf32>
    %cst = arith.constant dense<0.000000e+00> : vector<256x64xf32>
    %5 = tpu.matmul %4, %0, %cst {dimension_numbers = #tpu.dot_dimension_numbers<[1], [0], [0], [1], [0, 0, 1, 1], [], []>} : vector<256x27xf32>, vector<27x64xf32>, vector<256x64xf32> -> vector<256x64xf32>
    %6 = vector.broadcast %1 : vector<1x64xf32> to vector<256x64xf32>
    %7 = arith.mulf %5, %6 : vector<256x64xf32>
    %8 = vector.broadcast %2 : vector<1x64xf32> to vector<256x64xf32>
    %9 = arith.addf %7, %8 : vector<256x64xf32>
    %c1 = arith.constant 1 : index
    %c0_8 = arith.constant 0 : index
    %c0_9 = arith.constant 0 : index
    %10 = vector.load %arg1[%c1, %c0_8, %c0_9] : memref<4x256x27xf32, #tpu.memory_space<vmem>>, vector<1x256x27xf32>
    %11 = vector.shape_cast %10 : vector<1x256x27xf32> to vector<256x27xf32>
    %cst_10 = arith.constant dense<0.000000e+00> : vector<256x64xf32>
    %12 = tpu.matmul %11, %0, %cst_10 {dimension_numbers = #tpu.dot_dimension_numbers<[1], [0], [0], [1], [0, 0, 1, 1], [], []>} : vector<256x27xf32>, vector<27x64xf32>, vector<256x64xf32> -> vector<256x64xf32>
    %13 = vector.broadcast %1 : vector<1x64xf32> to vector<256x64xf32>
    %14 = arith.mulf %12, %13 : vector<256x64xf32>
    %15 = vector.broadcast %2 : vector<1x64xf32> to vector<256x64xf32>
    %16 = arith.addf %14, %15 : vector<256x64xf32>
    %17 = arith.maximumf %9, %16 : vector<256x64xf32>
    %c2 = arith.constant 2 : index
    %c0_11 = arith.constant 0 : index
    %c0_12 = arith.constant 0 : index
    %18 = vector.load %arg1[%c2, %c0_11, %c0_12] : memref<4x256x27xf32, #tpu.memory_space<vmem>>, vector<1x256x27xf32>
    %19 = vector.shape_cast %18 : vector<1x256x27xf32> to vector<256x27xf32>
    %cst_13 = arith.constant dense<0.000000e+00> : vector<256x64xf32>
    %20 = tpu.matmul %19, %0, %cst_13 {dimension_numbers = #tpu.dot_dimension_numbers<[1], [0], [0], [1], [0, 0, 1, 1], [], []>} : vector<256x27xf32>, vector<27x64xf32>, vector<256x64xf32> -> vector<256x64xf32>
    %21 = vector.broadcast %1 : vector<1x64xf32> to vector<256x64xf32>
    %22 = arith.mulf %20, %21 : vector<256x64xf32>
    %23 = vector.broadcast %2 : vector<1x64xf32> to vector<256x64xf32>
    %24 = arith.addf %22, %23 : vector<256x64xf32>
    %25 = arith.maximumf %17, %24 : vector<256x64xf32>
    %c3 = arith.constant 3 : index
    %c0_14 = arith.constant 0 : index
    %c0_15 = arith.constant 0 : index
    %26 = vector.load %arg1[%c3, %c0_14, %c0_15] : memref<4x256x27xf32, #tpu.memory_space<vmem>>, vector<1x256x27xf32>
    %27 = vector.shape_cast %26 : vector<1x256x27xf32> to vector<256x27xf32>
    %cst_16 = arith.constant dense<0.000000e+00> : vector<256x64xf32>
    %28 = tpu.matmul %27, %0, %cst_16 {dimension_numbers = #tpu.dot_dimension_numbers<[1], [0], [0], [1], [0, 0, 1, 1], [], []>} : vector<256x27xf32>, vector<27x64xf32>, vector<256x64xf32> -> vector<256x64xf32>
    %29 = vector.broadcast %1 : vector<1x64xf32> to vector<256x64xf32>
    %30 = arith.mulf %28, %29 : vector<256x64xf32>
    %31 = vector.broadcast %2 : vector<1x64xf32> to vector<256x64xf32>
    %32 = arith.addf %30, %31 : vector<256x64xf32>
    %33 = arith.maximumf %25, %32 : vector<256x64xf32>
    %cst_17 = arith.constant 0.000000e+00 : f32
    %34 = vector.broadcast %cst_17 : f32 to vector<256x64xf32>
    %35 = arith.maximumf %33, %34 : vector<256x64xf32>
    %c0_18 = arith.constant 0 : index
    %c0_19 = arith.constant 0 : index
    %36 = vector.load %arg5[%c0_18, %c0_19] : memref<256x64xf32, #tpu.memory_space<vmem>>, vector<256x64xf32>
    tpu.vector_store %arg5[%c0_18, %c0_19], %35 {strides = array<i32>} : memref<256x64xf32, #tpu.memory_space<vmem>>, vector<256x64xf32>,
    return
  }
  func.func @transform_0(%arg0: i32) -> (i32, i32, i32) {
    %c0_i32 = arith.constant 0 : i32
    %c0_i32_0 = arith.constant 0 : i32
    %c0_i32_1 = arith.constant 0 : i32
    return %c0_i32, %arg0, %c0_i32_0 : i32, i32, i32
  }
  func.func @transform_1(%arg0: i32) -> (i32, i32) {
    %c0_i32 = arith.constant 0 : i32
    %c0_i32_0 = arith.constant 0 : i32
    %c0_i32_1 = arith.constant 0 : i32
    return %c0_i32, %c0_i32_0 : i32, i32
  }
  func.func @transform_2(%arg0: i32) -> (i32, i32) {
    %c0_i32 = arith.constant 0 : i32
    %c0_i32_0 = arith.constant 0 : i32
    %c0_i32_1 = arith.constant 0 : i32
    return %c0_i32, %c0_i32_0 : i32, i32
  }
  func.func @transform_3(%arg0: i32) -> (i32, i32) {
    %c0_i32 = arith.constant 0 : i32
    %c0_i32_0 = arith.constant 0 : i32
    %c0_i32_1 = arith.constant 0 : i32
    return %c0_i32, %c0_i32_0 : i32, i32
  }
  func.func @transform_4(%arg0: i32) -> (i32, i32) {
    %c0_i32 = arith.constant 0 : i32
    %c0_i32_0 = arith.constant 0 : i32
    return %arg0, %c0_i32 : i32, i32
  }
}

module attributes {stable_mosaic.version = 11 : i64} {
  func.func @_conv_pool_kernel(%arg0: i32, %arg1: memref<4x64x576xf32, #tpu.memory_space<vmem>>, %arg2: memref<576x128xf32, #tpu.memory_space<vmem>>, %arg3: memref<1x128xf32, #tpu.memory_space<vmem>>, %arg4: memref<1x128xf32, #tpu.memory_space<vmem>>, %arg5: memref<64x128xf32, #tpu.memory_space<vmem>>) attributes {dimension_semantics = [#tpu.dimension_semantics<parallel>], iteration_bounds = array<i64: 1>, scalar_prefetch = 0 : i64, scratch_operands = 0 : i64, tpu.core_type = #tpu.core_type<tc>, window_params = [{transform_indices = @transform_0, window_bounds = array<i64: 4, 64, 576>}, {pipeline_mode = #tpu.pipeline_mode<synchronous>, transform_indices = @transform_1, window_bounds = array<i64: 576, 128>}, {pipeline_mode = #tpu.pipeline_mode<synchronous>, transform_indices = @transform_2, window_bounds = array<i64: 1, 128>}, {pipeline_mode = #tpu.pipeline_mode<synchronous>, transform_indices = @transform_3, window_bounds = array<i64: 1, 128>}, {transform_indices = @transform_4, window_bounds = array<i64: 64, 128>}]} {
    %c0 = arith.constant 0 : index
    %c0_0 = arith.constant 0 : index
    %0 = vector.load %arg2[%c0, %c0_0] : memref<576x128xf32, #tpu.memory_space<vmem>>, vector<576x128xf32>
    %c0_1 = arith.constant 0 : index
    %c0_2 = arith.constant 0 : index
    %1 = vector.load %arg3[%c0_1, %c0_2] : memref<1x128xf32, #tpu.memory_space<vmem>>, vector<1x128xf32>
    %c0_3 = arith.constant 0 : index
    %c0_4 = arith.constant 0 : index
    %2 = vector.load %arg4[%c0_3, %c0_4] : memref<1x128xf32, #tpu.memory_space<vmem>>, vector<1x128xf32>
    %c0_5 = arith.constant 0 : index
    %c0_6 = arith.constant 0 : index
    %c0_7 = arith.constant 0 : index
    %3 = vector.load %arg1[%c0_5, %c0_6, %c0_7] : memref<4x64x576xf32, #tpu.memory_space<vmem>>, vector<1x64x576xf32>
    %4 = vector.shape_cast %3 : vector<1x64x576xf32> to vector<64x576xf32>
    %cst = arith.constant dense<0.000000e+00> : vector<64x128xf32>
    %5 = tpu.matmul %4, %0, %cst {dimension_numbers = #tpu.dot_dimension_numbers<[1], [0], [0], [1], [0, 0, 1, 1], [], []>} : vector<64x576xf32>, vector<576x128xf32>, vector<64x128xf32> -> vector<64x128xf32>
    %6 = vector.broadcast %1 : vector<1x128xf32> to vector<64x128xf32>
    %7 = arith.mulf %5, %6 : vector<64x128xf32>
    %8 = vector.broadcast %2 : vector<1x128xf32> to vector<64x128xf32>
    %9 = arith.addf %7, %8 : vector<64x128xf32>
    %c1 = arith.constant 1 : index
    %c0_8 = arith.constant 0 : index
    %c0_9 = arith.constant 0 : index
    %10 = vector.load %arg1[%c1, %c0_8, %c0_9] : memref<4x64x576xf32, #tpu.memory_space<vmem>>, vector<1x64x576xf32>
    %11 = vector.shape_cast %10 : vector<1x64x576xf32> to vector<64x576xf32>
    %cst_10 = arith.constant dense<0.000000e+00> : vector<64x128xf32>
    %12 = tpu.matmul %11, %0, %cst_10 {dimension_numbers = #tpu.dot_dimension_numbers<[1], [0], [0], [1], [0, 0, 1, 1], [], []>} : vector<64x576xf32>, vector<576x128xf32>, vector<64x128xf32> -> vector<64x128xf32>
    %13 = vector.broadcast %1 : vector<1x128xf32> to vector<64x128xf32>
    %14 = arith.mulf %12, %13 : vector<64x128xf32>
    %15 = vector.broadcast %2 : vector<1x128xf32> to vector<64x128xf32>
    %16 = arith.addf %14, %15 : vector<64x128xf32>
    %17 = arith.maximumf %9, %16 : vector<64x128xf32>
    %c2 = arith.constant 2 : index
    %c0_11 = arith.constant 0 : index
    %c0_12 = arith.constant 0 : index
    %18 = vector.load %arg1[%c2, %c0_11, %c0_12] : memref<4x64x576xf32, #tpu.memory_space<vmem>>, vector<1x64x576xf32>
    %19 = vector.shape_cast %18 : vector<1x64x576xf32> to vector<64x576xf32>
    %cst_13 = arith.constant dense<0.000000e+00> : vector<64x128xf32>
    %20 = tpu.matmul %19, %0, %cst_13 {dimension_numbers = #tpu.dot_dimension_numbers<[1], [0], [0], [1], [0, 0, 1, 1], [], []>} : vector<64x576xf32>, vector<576x128xf32>, vector<64x128xf32> -> vector<64x128xf32>
    %21 = vector.broadcast %1 : vector<1x128xf32> to vector<64x128xf32>
    %22 = arith.mulf %20, %21 : vector<64x128xf32>
    %23 = vector.broadcast %2 : vector<1x128xf32> to vector<64x128xf32>
    %24 = arith.addf %22, %23 : vector<64x128xf32>
    %25 = arith.maximumf %17, %24 : vector<64x128xf32>
    %c3 = arith.constant 3 : index
    %c0_14 = arith.constant 0 : index
    %c0_15 = arith.constant 0 : index
    %26 = vector.load %arg1[%c3, %c0_14, %c0_15] : memref<4x64x576xf32, #tpu.memory_space<vmem>>, vector<1x64x576xf32>
    %27 = vector.shape_cast %26 : vector<1x64x576xf32> to vector<64x576xf32>
    %cst_16 = arith.constant dense<0.000000e+00> : vector<64x128xf32>
    %28 = tpu.matmul %27, %0, %cst_16 {dimension_numbers = #tpu.dot_dimension_numbers<[1], [0], [0], [1], [0, 0, 1, 1], [], []>} : vector<64x576xf32>, vector<576x128xf32>, vector<64x128xf32> -> vector<64x128xf32>
    %29 = vector.broadcast %1 : vector<1x128xf32> to vector<64x128xf32>
    %30 = arith.mulf %28, %29 : vector<64x128xf32>
    %31 = vector.broadcast %2 : vector<1x128xf32> to vector<64x128xf32>
    %32 = arith.addf %30, %31 : vector<64x128xf32>
    %33 = arith.maximumf %25, %32 : vector<64x128xf32>
    %cst_17 = arith.constant 0.000000e+00 : f32
    %34 = vector.broadcast %cst_17 : f32 to vector<64x128xf32>
    %35 = arith.maximumf %33, %34 : vector<64x128xf32>
    %c0_18 = arith.constant 0 : index
    %c0_19 = arith.constant 0 : index
    %36 = vector.load %arg5[%c0_18, %c0_19] : memref<64x128xf32, #tpu.memory_space<vmem>>, vector<64x128xf32>
    tpu.vector_store %arg5[%c0_18, %c0_19], %35 {strides = array<i32>} : memref<64x128xf32, #tpu.memory_space<vmem>>, vector<64x128xf32>,
    return
  }
  func.func @transform_0(%arg0: i32) -> (i32, i32, i32) {
    %c0_i32 = arith.constant 0 : i32
    %c0_i32_0 = arith.constant 0 : i32
    %c0_i32_1 = arith.constant 0 : i32
    return %c0_i32, %arg0, %c0_i32_0 : i32, i32, i32
  }
  func.func @transform_1(%arg0: i32) -> (i32, i32) {
    %c0_i32 = arith.constant 0 : i32
    %c0_i32_0 = arith.constant 0 : i32
    %c0_i32_1 = arith.constant 0 : i32
    return %c0_i32, %c0_i32_0 : i32, i32
  }
  func.func @transform_2(%arg0: i32) -> (i32, i32) {
    %c0_i32 = arith.constant 0 : i32
    %c0_i32_0 = arith.constant 0 : i32
    %c0_i32_1 = arith.constant 0 : i32
    return %c0_i32, %c0_i32_0 : i32, i32
  }
  func.func @transform_3(%arg0: i32) -> (i32, i32) {
    %c0_i32 = arith.constant 0 : i32
    %c0_i32_0 = arith.constant 0 : i32
    %c0_i32_1 = arith.constant 0 : i32
    return %c0_i32, %c0_i32_0 : i32, i32
  }
  func.func @transform_4(%arg0: i32) -> (i32, i32) {
    %c0_i32 = arith.constant 0 : i32
    %c0_i32_0 = arith.constant 0 : i32
    return %arg0, %c0_i32 : i32, i32
  }
}

module attributes {stable_mosaic.version = 11 : i64} {
  func.func @_conv_pool_kernel(%arg0: i32, %arg1: memref<2x32x1152xf32, #tpu.memory_space<vmem>>, %arg2: memref<1152x256xf32, #tpu.memory_space<vmem>>, %arg3: memref<1x256xf32, #tpu.memory_space<vmem>>, %arg4: memref<1x256xf32, #tpu.memory_space<vmem>>, %arg5: memref<32x256xf32, #tpu.memory_space<vmem>>) attributes {dimension_semantics = [#tpu.dimension_semantics<parallel>], iteration_bounds = array<i64: 1>, scalar_prefetch = 0 : i64, scratch_operands = 0 : i64, tpu.core_type = #tpu.core_type<tc>, window_params = [{transform_indices = @transform_0, window_bounds = array<i64: 2, 32, 1152>}, {pipeline_mode = #tpu.pipeline_mode<synchronous>, transform_indices = @transform_1, window_bounds = array<i64: 1152, 256>}, {pipeline_mode = #tpu.pipeline_mode<synchronous>, transform_indices = @transform_2, window_bounds = array<i64: 1, 256>}, {pipeline_mode = #tpu.pipeline_mode<synchronous>, transform_indices = @transform_3, window_bounds = array<i64: 1, 256>}, {transform_indices = @transform_4, window_bounds = array<i64: 32, 256>}]} {
    %c0 = arith.constant 0 : index
    %c0_0 = arith.constant 0 : index
    %0 = vector.load %arg2[%c0, %c0_0] : memref<1152x256xf32, #tpu.memory_space<vmem>>, vector<1152x256xf32>
    %c0_1 = arith.constant 0 : index
    %c0_2 = arith.constant 0 : index
    %1 = vector.load %arg3[%c0_1, %c0_2] : memref<1x256xf32, #tpu.memory_space<vmem>>, vector<1x256xf32>
    %c0_3 = arith.constant 0 : index
    %c0_4 = arith.constant 0 : index
    %2 = vector.load %arg4[%c0_3, %c0_4] : memref<1x256xf32, #tpu.memory_space<vmem>>, vector<1x256xf32>
    %c0_5 = arith.constant 0 : index
    %c0_6 = arith.constant 0 : index
    %c0_7 = arith.constant 0 : index
    %3 = vector.load %arg1[%c0_5, %c0_6, %c0_7] : memref<2x32x1152xf32, #tpu.memory_space<vmem>>, vector<1x32x1152xf32>
    %4 = vector.shape_cast %3 : vector<1x32x1152xf32> to vector<32x1152xf32>
    %cst = arith.constant dense<0.000000e+00> : vector<32x256xf32>
    %5 = tpu.matmul %4, %0, %cst {dimension_numbers = #tpu.dot_dimension_numbers<[1], [0], [0], [1], [0, 0, 1, 1], [], []>} : vector<32x1152xf32>, vector<1152x256xf32>, vector<32x256xf32> -> vector<32x256xf32>
    %6 = vector.broadcast %1 : vector<1x256xf32> to vector<32x256xf32>
    %7 = arith.mulf %5, %6 : vector<32x256xf32>
    %8 = vector.broadcast %2 : vector<1x256xf32> to vector<32x256xf32>
    %9 = arith.addf %7, %8 : vector<32x256xf32>
    %c1 = arith.constant 1 : index
    %c0_8 = arith.constant 0 : index
    %c0_9 = arith.constant 0 : index
    %10 = vector.load %arg1[%c1, %c0_8, %c0_9] : memref<2x32x1152xf32, #tpu.memory_space<vmem>>, vector<1x32x1152xf32>
    %11 = vector.shape_cast %10 : vector<1x32x1152xf32> to vector<32x1152xf32>
    %cst_10 = arith.constant dense<0.000000e+00> : vector<32x256xf32>
    %12 = tpu.matmul %11, %0, %cst_10 {dimension_numbers = #tpu.dot_dimension_numbers<[1], [0], [0], [1], [0, 0, 1, 1], [], []>} : vector<32x1152xf32>, vector<1152x256xf32>, vector<32x256xf32> -> vector<32x256xf32>
    %13 = vector.broadcast %1 : vector<1x256xf32> to vector<32x256xf32>
    %14 = arith.mulf %12, %13 : vector<32x256xf32>
    %15 = vector.broadcast %2 : vector<1x256xf32> to vector<32x256xf32>
    %16 = arith.addf %14, %15 : vector<32x256xf32>
    %17 = arith.maximumf %9, %16 : vector<32x256xf32>
    %cst_11 = arith.constant 0.000000e+00 : f32
    %18 = vector.broadcast %cst_11 : f32 to vector<32x256xf32>
    %19 = arith.maximumf %17, %18 : vector<32x256xf32>
    %c0_12 = arith.constant 0 : index
    %c0_13 = arith.constant 0 : index
    %20 = vector.load %arg5[%c0_12, %c0_13] : memref<32x256xf32, #tpu.memory_space<vmem>>, vector<32x256xf32>
    tpu.vector_store %arg5[%c0_12, %c0_13], %19 {strides = array<i32>} : memref<32x256xf32, #tpu.memory_space<vmem>>, vector<32x256xf32>,
    return
  }
  func.func @transform_0(%arg0: i32) -> (i32, i32, i32) {
    %c0_i32 = arith.constant 0 : i32
    %c0_i32_0 = arith.constant 0 : i32
    %c0_i32_1 = arith.constant 0 : i32
    return %c0_i32, %arg0, %c0_i32_0 : i32, i32, i32
  }
  func.func @transform_1(%arg0: i32) -> (i32, i32) {
    %c0_i32 = arith.constant 0 : i32
    %c0_i32_0 = arith.constant 0 : i32
    %c0_i32_1 = arith.constant 0 : i32
    return %c0_i32, %c0_i32_0 : i32, i32
  }
  func.func @transform_2(%arg0: i32) -> (i32, i32) {
    %c0_i32 = arith.constant 0 : i32
    %c0_i32_0 = arith.constant 0 : i32
    %c0_i32_1 = arith.constant 0 : i32
    return %c0_i32, %c0_i32_0 : i32, i32
  }
  func.func @transform_3(%arg0: i32) -> (i32, i32) {
    %c0_i32 = arith.constant 0 : i32
    %c0_i32_0 = arith.constant 0 : i32
    %c0_i32_1 = arith.constant 0 : i32
    return %c0_i32, %c0_i32_0 : i32, i32
  }
  func.func @transform_4(%arg0: i32) -> (i32, i32) {
    %c0_i32 = arith.constant 0 : i32
    %c0_i32_0 = arith.constant 0 : i32
    return %arg0, %c0_i32 : i32, i32
  }
}

module attributes {stable_mosaic.version = 11 : i64} {
  func.func @_conv_pool_kernel(%arg0: i32, %arg1: memref<2x16x2304xf32, #tpu.memory_space<vmem>>, %arg2: memref<2304x512xf32, #tpu.memory_space<vmem>>, %arg3: memref<1x512xf32, #tpu.memory_space<vmem>>, %arg4: memref<1x512xf32, #tpu.memory_space<vmem>>, %arg5: memref<16x512xf32, #tpu.memory_space<vmem>>) attributes {dimension_semantics = [#tpu.dimension_semantics<parallel>], iteration_bounds = array<i64: 1>, scalar_prefetch = 0 : i64, scratch_operands = 0 : i64, tpu.core_type = #tpu.core_type<tc>, window_params = [{transform_indices = @transform_0, window_bounds = array<i64: 2, 16, 2304>}, {pipeline_mode = #tpu.pipeline_mode<synchronous>, transform_indices = @transform_1, window_bounds = array<i64: 2304, 512>}, {pipeline_mode = #tpu.pipeline_mode<synchronous>, transform_indices = @transform_2, window_bounds = array<i64: 1, 512>}, {pipeline_mode = #tpu.pipeline_mode<synchronous>, transform_indices = @transform_3, window_bounds = array<i64: 1, 512>}, {transform_indices = @transform_4, window_bounds = array<i64: 16, 512>}]} {
    %c0 = arith.constant 0 : index
    %c0_0 = arith.constant 0 : index
    %0 = vector.load %arg2[%c0, %c0_0] : memref<2304x512xf32, #tpu.memory_space<vmem>>, vector<2304x512xf32>
    %c0_1 = arith.constant 0 : index
    %c0_2 = arith.constant 0 : index
    %1 = vector.load %arg3[%c0_1, %c0_2] : memref<1x512xf32, #tpu.memory_space<vmem>>, vector<1x512xf32>
    %c0_3 = arith.constant 0 : index
    %c0_4 = arith.constant 0 : index
    %2 = vector.load %arg4[%c0_3, %c0_4] : memref<1x512xf32, #tpu.memory_space<vmem>>, vector<1x512xf32>
    %c0_5 = arith.constant 0 : index
    %c0_6 = arith.constant 0 : index
    %c0_7 = arith.constant 0 : index
    %3 = vector.load %arg1[%c0_5, %c0_6, %c0_7] : memref<2x16x2304xf32, #tpu.memory_space<vmem>>, vector<1x16x2304xf32>
    %4 = vector.shape_cast %3 : vector<1x16x2304xf32> to vector<16x2304xf32>
    %cst = arith.constant dense<0.000000e+00> : vector<16x512xf32>
    %5 = tpu.matmul %4, %0, %cst {dimension_numbers = #tpu.dot_dimension_numbers<[1], [0], [0], [1], [0, 0, 1, 1], [], []>} : vector<16x2304xf32>, vector<2304x512xf32>, vector<16x512xf32> -> vector<16x512xf32>
    %6 = vector.broadcast %1 : vector<1x512xf32> to vector<16x512xf32>
    %7 = arith.mulf %5, %6 : vector<16x512xf32>
    %8 = vector.broadcast %2 : vector<1x512xf32> to vector<16x512xf32>
    %9 = arith.addf %7, %8 : vector<16x512xf32>
    %c1 = arith.constant 1 : index
    %c0_8 = arith.constant 0 : index
    %c0_9 = arith.constant 0 : index
    %10 = vector.load %arg1[%c1, %c0_8, %c0_9] : memref<2x16x2304xf32, #tpu.memory_space<vmem>>, vector<1x16x2304xf32>
    %11 = vector.shape_cast %10 : vector<1x16x2304xf32> to vector<16x2304xf32>
    %cst_10 = arith.constant dense<0.000000e+00> : vector<16x512xf32>
    %12 = tpu.matmul %11, %0, %cst_10 {dimension_numbers = #tpu.dot_dimension_numbers<[1], [0], [0], [1], [0, 0, 1, 1], [], []>} : vector<16x2304xf32>, vector<2304x512xf32>, vector<16x512xf32> -> vector<16x512xf32>
    %13 = vector.broadcast %1 : vector<1x512xf32> to vector<16x512xf32>
    %14 = arith.mulf %12, %13 : vector<16x512xf32>
    %15 = vector.broadcast %2 : vector<1x512xf32> to vector<16x512xf32>
    %16 = arith.addf %14, %15 : vector<16x512xf32>
    %17 = arith.maximumf %9, %16 : vector<16x512xf32>
    %cst_11 = arith.constant 0.000000e+00 : f32
    %18 = vector.broadcast %cst_11 : f32 to vector<16x512xf32>
    %19 = arith.maximumf %17, %18 : vector<16x512xf32>
    %c0_12 = arith.constant 0 : index
    %c0_13 = arith.constant 0 : index
    %20 = vector.load %arg5[%c0_12, %c0_13] : memref<16x512xf32, #tpu.memory_space<vmem>>, vector<16x512xf32>
    tpu.vector_store %arg5[%c0_12, %c0_13], %19 {strides = array<i32>} : memref<16x512xf32, #tpu.memory_space<vmem>>, vector<16x512xf32>,
    return
  }
  func.func @transform_0(%arg0: i32) -> (i32, i32, i32) {
    %c0_i32 = arith.constant 0 : i32
    %c0_i32_0 = arith.constant 0 : i32
    %c0_i32_1 = arith.constant 0 : i32
    return %c0_i32, %arg0, %c0_i32_0 : i32, i32, i32
  }
  func.func @transform_1(%arg0: i32) -> (i32, i32) {
    %c0_i32 = arith.constant 0 : i32
    %c0_i32_0 = arith.constant 0 : i32
    %c0_i32_1 = arith.constant 0 : i32
    return %c0_i32, %c0_i32_0 : i32, i32
  }
  func.func @transform_2(%arg0: i32) -> (i32, i32) {
    %c0_i32 = arith.constant 0 : i32
    %c0_i32_0 = arith.constant 0 : i32
    %c0_i32_1 = arith.constant 0 : i32
    return %c0_i32, %c0_i32_0 : i32, i32
  }
  func.func @transform_3(%arg0: i32) -> (i32, i32) {
    %c0_i32 = arith.constant 0 : i32
    %c0_i32_0 = arith.constant 0 : i32
    %c0_i32_1 = arith.constant 0 : i32
    return %c0_i32, %c0_i32_0 : i32, i32
  }
  func.func @transform_4(%arg0: i32) -> (i32, i32) {
    %c0_i32 = arith.constant 0 : i32
    %c0_i32_0 = arith.constant 0 : i32
    return %arg0, %c0_i32 : i32, i32
  }
}

module attributes {stable_mosaic.version = 11 : i64} {
  func.func @_gemm_bias_kernel(%arg0: i32, %arg1: memref<8x1024xf32, #tpu.memory_space<vmem>>, %arg2: memref<1024x256xf32, #tpu.memory_space<vmem>>, %arg3: memref<1x256xf32, #tpu.memory_space<vmem>>, %arg4: memref<8x256xf32, #tpu.memory_space<vmem>>) attributes {dimension_semantics = [#tpu.dimension_semantics<parallel>], iteration_bounds = array<i64: 1>, scalar_prefetch = 0 : i64, scratch_operands = 0 : i64, tpu.core_type = #tpu.core_type<tc>, window_params = [{transform_indices = @transform_0, window_bounds = array<i64: 8, 1024>}, {pipeline_mode = #tpu.pipeline_mode<synchronous>, transform_indices = @transform_1, window_bounds = array<i64: 1024, 256>}, {pipeline_mode = #tpu.pipeline_mode<synchronous>, transform_indices = @transform_2, window_bounds = array<i64: 1, 256>}, {transform_indices = @transform_3, window_bounds = array<i64: 8, 256>}]} {
    %c0 = arith.constant 0 : index
    %c0_0 = arith.constant 0 : index
    %0 = vector.load %arg1[%c0, %c0_0] : memref<8x1024xf32, #tpu.memory_space<vmem>>, vector<8x1024xf32>
    %c0_1 = arith.constant 0 : index
    %c0_2 = arith.constant 0 : index
    %1 = vector.load %arg2[%c0_1, %c0_2] : memref<1024x256xf32, #tpu.memory_space<vmem>>, vector<1024x256xf32>
    %cst = arith.constant dense<0.000000e+00> : vector<8x256xf32>
    %2 = tpu.matmul %0, %1, %cst {dimension_numbers = #tpu.dot_dimension_numbers<[1], [0], [0], [1], [0, 0, 1, 1], [], []>} : vector<8x1024xf32>, vector<1024x256xf32>, vector<8x256xf32> -> vector<8x256xf32>
    %c0_3 = arith.constant 0 : index
    %c0_4 = arith.constant 0 : index
    %3 = vector.load %arg3[%c0_3, %c0_4] : memref<1x256xf32, #tpu.memory_space<vmem>>, vector<1x256xf32>
    %4 = vector.broadcast %3 : vector<1x256xf32> to vector<8x256xf32>
    %5 = arith.addf %2, %4 : vector<8x256xf32>
    %c0_5 = arith.constant 0 : index
    %c0_6 = arith.constant 0 : index
    %6 = vector.load %arg4[%c0_5, %c0_6] : memref<8x256xf32, #tpu.memory_space<vmem>>, vector<8x256xf32>
    tpu.vector_store %arg4[%c0_5, %c0_6], %5 {strides = array<i32>} : memref<8x256xf32, #tpu.memory_space<vmem>>, vector<8x256xf32>,
    return
  }
  func.func @transform_0(%arg0: i32) -> (i32, i32) {
    %c0_i32 = arith.constant 0 : i32
    %c0_i32_0 = arith.constant 0 : i32
    return %arg0, %c0_i32 : i32, i32
  }
  func.func @transform_1(%arg0: i32) -> (i32, i32) {
    %c0_i32 = arith.constant 0 : i32
    %c0_i32_0 = arith.constant 0 : i32
    %c0_i32_1 = arith.constant 0 : i32
    return %c0_i32, %c0_i32_0 : i32, i32
  }
  func.func @transform_2(%arg0: i32) -> (i32, i32) {
    %c0_i32 = arith.constant 0 : i32
    %c0_i32_0 = arith.constant 0 : i32
    %c0_i32_1 = arith.constant 0 : i32
    return %c0_i32, %c0_i32_0 : i32, i32
  }
  func.func @transform_3(%arg0: i32) -> (i32, i32) {
    %c0_i32 = arith.constant 0 : i32
    %c0_i32_0 = arith.constant 0 : i32
    return %arg0, %c0_i32 : i32, i32
  }
}

module attributes {stable_mosaic.version = 11 : i64} {
  func.func @_bilstm_kernel(%arg0: i32, %arg1: memref<1x2x128xf32, #tpu.memory_space<vmem>>, %arg2: memref<1x2x128xf32, #tpu.memory_space<vmem>>, %arg3: memref<64x256xf32, #tpu.memory_space<vmem>>, %arg4: memref<1x2x32xf32, #tpu.memory_space<vmem>>, %arg5: memref<1x2x32xf32, #tpu.memory_space<vmem>>, %arg6: memref<2x64xf32, #tpu.memory_space<vmem>>, %arg7: memref<2x64xf32, #tpu.memory_space<vmem>>) attributes {dimension_semantics = [#tpu.dimension_semantics<arbitrary>], iteration_bounds = array<i64: 4>, scalar_prefetch = 0 : i64, scratch_operands = 2 : i64, tpu.core_type = #tpu.core_type<tc>, window_params = [{transform_indices = @transform_0, window_bounds = array<i64: 1, 2, 128>}, {transform_indices = @transform_1, window_bounds = array<i64: 1, 2, 128>}, {pipeline_mode = #tpu.pipeline_mode<synchronous>, transform_indices = @transform_2, window_bounds = array<i64: 64, 256>}, {transform_indices = @transform_3, window_bounds = array<i64: 1, 2, 32>}, {transform_indices = @transform_4, window_bounds = array<i64: 1, 2, 32>}]} {
    %c0_i32 = arith.constant 0 : i32
    %0 = arith.cmpi eq, %arg0, %c0_i32 : i32
    %1 = arith.extui %0 : i1 to i32
    %c0_i32_0 = arith.constant 0 : i32
    %2 = arith.cmpi ne, %1, %c0_i32_0 : i32
    scf.if %2 {
      %cst_28 = arith.constant 0.000000e+00 : f32
      %75 = vector.broadcast %cst_28 : f32 to vector<2x64xf32>
      %c0_29 = arith.constant 0 : index
      %c0_30 = arith.constant 0 : index
      %76 = vector.load %arg6[%c0_29, %c0_30] : memref<2x64xf32, #tpu.memory_space<vmem>>, vector<2x64xf32>
      tpu.vector_store %arg6[%c0_29, %c0_30], %75 {strides = array<i32>} : memref<2x64xf32, #tpu.memory_space<vmem>>, vector<2x64xf32>,
      %cst_31 = arith.constant 0.000000e+00 : f32
      %77 = vector.broadcast %cst_31 : f32 to vector<2x64xf32>
      %c0_32 = arith.constant 0 : index
      %c0_33 = arith.constant 0 : index
      %78 = vector.load %arg7[%c0_32, %c0_33] : memref<2x64xf32, #tpu.memory_space<vmem>>, vector<2x64xf32>
      tpu.vector_store %arg7[%c0_32, %c0_33], %77 {strides = array<i32>} : memref<2x64xf32, #tpu.memory_space<vmem>>, vector<2x64xf32>,
    } else {
    }
    %c0 = arith.constant 0 : index
    %c0_1 = arith.constant 0 : index
    %c0_2 = arith.constant 0 : index
    %3 = vector.load %arg1[%c0, %c0_1, %c0_2] : memref<1x2x128xf32, #tpu.memory_space<vmem>>, vector<1x2x128xf32>
    %4 = vector.shape_cast %3 : vector<1x2x128xf32> to vector<2x128xf32>
    %c0_3 = arith.constant 0 : index
    %c0_4 = arith.constant 0 : index
    %c0_5 = arith.constant 0 : index
    %5 = vector.load %arg2[%c0_3, %c0_4, %c0_5] : memref<1x2x128xf32, #tpu.memory_space<vmem>>, vector<1x2x128xf32>
    %6 = vector.shape_cast %5 : vector<1x2x128xf32> to vector<2x128xf32>
    %7 = tpu.concatenate %4, %6 in 1 : vector<2x128xf32>, vector<2x128xf32> -> vector<2x256xf32>
    %c0_6 = arith.constant 0 : index
    %c0_7 = arith.constant 0 : index
    %8 = vector.load %arg6[%c0_6, %c0_7] : memref<2x64xf32, #tpu.memory_space<vmem>>, vector<2x64xf32>
    %c0_8 = arith.constant 0 : index
    %c0_9 = arith.constant 0 : index
    %9 = vector.load %arg3[%c0_8, %c0_9] : memref<64x256xf32, #tpu.memory_space<vmem>>, vector<64x256xf32>
    %cst = arith.constant dense<0.000000e+00> : vector<2x256xf32>
    %10 = tpu.matmul %8, %9, %cst {dimension_numbers = #tpu.dot_dimension_numbers<[1], [0], [0], [1], [0, 0, 1, 1], [], []>} : vector<2x64xf32>, vector<64x256xf32>, vector<2x256xf32> -> vector<2x256xf32>
    %11 = arith.addf %7, %10 : vector<2x256xf32>
    %c0_10 = arith.constant 0 : index
    %c0_11 = arith.constant 0 : index
    %12 = vector.load %arg7[%c0_10, %c0_11] : memref<2x64xf32, #tpu.memory_space<vmem>>, vector<2x64xf32>
    %13 = vector.extract_strided_slice %12 {offsets = [0, 0], sizes = [2, 32], strides = [1, 1]} : vector<2x64xf32> to vector<2x32xf32>
    %14 = vector.extract_strided_slice %11 {offsets = [0, 0], sizes = [2, 32], strides = [1, 1]} : vector<2x256xf32> to vector<2x32xf32>
    %15 = arith.negf %14 : vector<2x32xf32>
    %16 = math.exp %15 : vector<2x32xf32>
    %cst_12 = arith.constant 1.000000e+00 : f32
    %17 = vector.broadcast %cst_12 : f32 to vector<2x32xf32>
    %18 = arith.addf %17, %16 : vector<2x32xf32>
    %19 = arith.divf %17, %18 : vector<2x32xf32>
    %20 = vector.extract_strided_slice %11 {offsets = [0, 32], sizes = [2, 32], strides = [1, 1]} : vector<2x256xf32> to vector<2x32xf32>
    %21 = arith.negf %20 : vector<2x32xf32>
    %22 = math.exp %21 : vector<2x32xf32>
    %cst_13 = arith.constant 1.000000e+00 : f32
    %23 = vector.broadcast %cst_13 : f32 to vector<2x32xf32>
    %24 = arith.addf %23, %22 : vector<2x32xf32>
    %25 = arith.divf %23, %24 : vector<2x32xf32>
    %26 = vector.extract_strided_slice %11 {offsets = [0, 64], sizes = [2, 32], strides = [1, 1]} : vector<2x256xf32> to vector<2x32xf32>
    %27 = math.tanh %26 : vector<2x32xf32>
    %28 = vector.extract_strided_slice %11 {offsets = [0, 96], sizes = [2, 32], strides = [1, 1]} : vector<2x256xf32> to vector<2x32xf32>
    %29 = arith.negf %28 : vector<2x32xf32>
    %30 = math.exp %29 : vector<2x32xf32>
    %cst_14 = arith.constant 1.000000e+00 : f32
    %31 = vector.broadcast %cst_14 : f32 to vector<2x32xf32>
    %32 = arith.addf %31, %30 : vector<2x32xf32>
    %33 = arith.divf %31, %32 : vector<2x32xf32>
    %34 = arith.mulf %25, %13 : vector<2x32xf32>
    %35 = arith.mulf %19, %27 : vector<2x32xf32>
    %36 = arith.addf %34, %35 : vector<2x32xf32>
    %37 = math.tanh %36 : vector<2x32xf32>
    %38 = arith.mulf %33, %37 : vector<2x32xf32>
    %39 = vector.extract_strided_slice %12 {offsets = [0, 32], sizes = [2, 32], strides = [1, 1]} : vector<2x64xf32> to vector<2x32xf32>
    %40 = vector.extract_strided_slice %11 {offsets = [0, 128], sizes = [2, 32], strides = [1, 1]} : vector<2x256xf32> to vector<2x32xf32>
    %41 = arith.negf %40 : vector<2x32xf32>
    %42 = math.exp %41 : vector<2x32xf32>
    %cst_15 = arith.constant 1.000000e+00 : f32
    %43 = vector.broadcast %cst_15 : f32 to vector<2x32xf32>
    %44 = arith.addf %43, %42 : vector<2x32xf32>
    %45 = arith.divf %43, %44 : vector<2x32xf32>
    %46 = vector.extract_strided_slice %11 {offsets = [0, 160], sizes = [2, 32], strides = [1, 1]} : vector<2x256xf32> to vector<2x32xf32>
    %47 = arith.negf %46 : vector<2x32xf32>
    %48 = math.exp %47 : vector<2x32xf32>
    %cst_16 = arith.constant 1.000000e+00 : f32
    %49 = vector.broadcast %cst_16 : f32 to vector<2x32xf32>
    %50 = arith.addf %49, %48 : vector<2x32xf32>
    %51 = arith.divf %49, %50 : vector<2x32xf32>
    %52 = vector.extract_strided_slice %11 {offsets = [0, 192], sizes = [2, 32], strides = [1, 1]} : vector<2x256xf32> to vector<2x32xf32>
    %53 = math.tanh %52 : vector<2x32xf32>
    %54 = vector.extract_strided_slice %11 {offsets = [0, 224], sizes = [2, 32], strides = [1, 1]} : vector<2x256xf32> to vector<2x32xf32>
    %55 = arith.negf %54 : vector<2x32xf32>
    %56 = math.exp %55 : vector<2x32xf32>
    %cst_17 = arith.constant 1.000000e+00 : f32
    %57 = vector.broadcast %cst_17 : f32 to vector<2x32xf32>
    %58 = arith.addf %57, %56 : vector<2x32xf32>
    %59 = arith.divf %57, %58 : vector<2x32xf32>
    %60 = arith.mulf %51, %39 : vector<2x32xf32>
    %61 = arith.mulf %45, %53 : vector<2x32xf32>
    %62 = arith.addf %60, %61 : vector<2x32xf32>
    %63 = math.tanh %62 : vector<2x32xf32>
    %64 = arith.mulf %59, %63 : vector<2x32xf32>
    %65 = tpu.concatenate %38, %64 in 1 : vector<2x32xf32>, vector<2x32xf32> -> vector<2x64xf32>
    %c0_18 = arith.constant 0 : index
    %c0_19 = arith.constant 0 : index
    %66 = vector.load %arg6[%c0_18, %c0_19] : memref<2x64xf32, #tpu.memory_space<vmem>>, vector<2x64xf32>
    tpu.vector_store %arg6[%c0_18, %c0_19], %65 {strides = array<i32>} : memref<2x64xf32, #tpu.memory_space<vmem>>, vector<2x64xf32>,
    %67 = tpu.concatenate %36, %62 in 1 : vector<2x32xf32>, vector<2x32xf32> -> vector<2x64xf32>
    %c0_20 = arith.constant 0 : index
    %c0_21 = arith.constant 0 : index
    %68 = vector.load %arg7[%c0_20, %c0_21] : memref<2x64xf32, #tpu.memory_space<vmem>>, vector<2x64xf32>
    tpu.vector_store %arg7[%c0_20, %c0_21], %67 {strides = array<i32>} : memref<2x64xf32, #tpu.memory_space<vmem>>, vector<2x64xf32>,
    %c0_22 = arith.constant 0 : index
    %c0_23 = arith.constant 0 : index
    %c0_24 = arith.constant 0 : index
    %69 = vector.load %arg4[%c0_22, %c0_23, %c0_24] : memref<1x2x32xf32, #tpu.memory_space<vmem>>, vector<1x2x32xf32>
    %70 = vector.shape_cast %69 : vector<1x2x32xf32> to vector<2x32xf32>
    %71 = vector.shape_cast %38 : vector<2x32xf32> to vector<1x2x32xf32>
    tpu.vector_store %arg4[%c0_22, %c0_23, %c0_24], %71 {strides = array<i32>} : memref<1x2x32xf32, #tpu.memory_space<vmem>>, vector<1x2x32xf32>,
    %c0_25 = arith.constant 0 : index
    %c0_26 = arith.constant 0 : index
    %c0_27 = arith.constant 0 : index
    %72 = vector.load %arg5[%c0_25, %c0_26, %c0_27] : memref<1x2x32xf32, #tpu.memory_space<vmem>>, vector<1x2x32xf32>
    %73 = vector.shape_cast %72 : vector<1x2x32xf32> to vector<2x32xf32>
    %74 = vector.shape_cast %64 : vector<2x32xf32> to vector<1x2x32xf32>
    tpu.vector_store %arg5[%c0_25, %c0_26, %c0_27], %74 {strides = array<i32>} : memref<1x2x32xf32, #tpu.memory_space<vmem>>, vector<1x2x32xf32>,
    return
  }
  func.func @transform_0(%arg0: i32) -> (i32, i32, i32) {
    %c0_i32 = arith.constant 0 : i32
    %c0_i32_0 = arith.constant 0 : i32
    %c0_i32_1 = arith.constant 0 : i32
    return %arg0, %c0_i32, %c0_i32_0 : i32, i32, i32
  }
  func.func @transform_1(%arg0: i32) -> (i32, i32, i32) {
    %c3_i32 = arith.constant 3 : i32
    %0 = arith.subi %c3_i32, %arg0 : i32
    %c0_i32 = arith.constant 0 : i32
    %c0_i32_0 = arith.constant 0 : i32
    %c0_i32_1 = arith.constant 0 : i32
    return %0, %c0_i32, %c0_i32_0 : i32, i32, i32
  }
  func.func @transform_2(%arg0: i32) -> (i32, i32) {
    %c0_i32 = arith.constant 0 : i32
    %c0_i32_0 = arith.constant 0 : i32
    %c0_i32_1 = arith.constant 0 : i32
    return %c0_i32, %c0_i32_0 : i32, i32
  }
  func.func @transform_3(%arg0: i32) -> (i32, i32, i32) {
    %c0_i32 = arith.constant 0 : i32
    %c0_i32_0 = arith.constant 0 : i32
    %c0_i32_1 = arith.constant 0 : i32
    return %arg0, %c0_i32, %c0_i32_0 : i32, i32, i32
  }
  func.func @transform_4(%arg0: i32) -> (i32, i32, i32) {
    %c3_i32 = arith.constant 3 : i32
    %0 = arith.subi %c3_i32, %arg0 : i32
    %c0_i32 = arith.constant 0 : i32
    %c0_i32_0 = arith.constant 0 : i32
    %c0_i32_1 = arith.constant 0 : i32
    return %0, %c0_i32, %c0_i32_0 : i32, i32, i32
  }
}

module attributes {stable_mosaic.version = 11 : i64} {
  func.func @_gemm_bias_kernel(%arg0: i32, %arg1: memref<8x64xf32, #tpu.memory_space<vmem>>, %arg2: memref<64x256xf32, #tpu.memory_space<vmem>>, %arg3: memref<1x256xf32, #tpu.memory_space<vmem>>, %arg4: memref<8x256xf32, #tpu.memory_space<vmem>>) attributes {dimension_semantics = [#tpu.dimension_semantics<parallel>], iteration_bounds = array<i64: 1>, scalar_prefetch = 0 : i64, scratch_operands = 0 : i64, tpu.core_type = #tpu.core_type<tc>, window_params = [{transform_indices = @transform_0, window_bounds = array<i64: 8, 64>}, {pipeline_mode = #tpu.pipeline_mode<synchronous>, transform_indices = @transform_1, window_bounds = array<i64: 64, 256>}, {pipeline_mode = #tpu.pipeline_mode<synchronous>, transform_indices = @transform_2, window_bounds = array<i64: 1, 256>}, {transform_indices = @transform_3, window_bounds = array<i64: 8, 256>}]} {
    %c0 = arith.constant 0 : index
    %c0_0 = arith.constant 0 : index
    %0 = vector.load %arg1[%c0, %c0_0] : memref<8x64xf32, #tpu.memory_space<vmem>>, vector<8x64xf32>
    %c0_1 = arith.constant 0 : index
    %c0_2 = arith.constant 0 : index
    %1 = vector.load %arg2[%c0_1, %c0_2] : memref<64x256xf32, #tpu.memory_space<vmem>>, vector<64x256xf32>
    %cst = arith.constant dense<0.000000e+00> : vector<8x256xf32>
    %2 = tpu.matmul %0, %1, %cst {dimension_numbers = #tpu.dot_dimension_numbers<[1], [0], [0], [1], [0, 0, 1, 1], [], []>} : vector<8x64xf32>, vector<64x256xf32>, vector<8x256xf32> -> vector<8x256xf32>
    %c0_3 = arith.constant 0 : index
    %c0_4 = arith.constant 0 : index
    %3 = vector.load %arg3[%c0_3, %c0_4] : memref<1x256xf32, #tpu.memory_space<vmem>>, vector<1x256xf32>
    %4 = vector.broadcast %3 : vector<1x256xf32> to vector<8x256xf32>
    %5 = arith.addf %2, %4 : vector<8x256xf32>
    %c0_5 = arith.constant 0 : index
    %c0_6 = arith.constant 0 : index
    %6 = vector.load %arg4[%c0_5, %c0_6] : memref<8x256xf32, #tpu.memory_space<vmem>>, vector<8x256xf32>
    tpu.vector_store %arg4[%c0_5, %c0_6], %5 {strides = array<i32>} : memref<8x256xf32, #tpu.memory_space<vmem>>, vector<8x256xf32>,
    return
  }
  func.func @transform_0(%arg0: i32) -> (i32, i32) {
    %c0_i32 = arith.constant 0 : i32
    %c0_i32_0 = arith.constant 0 : i32
    return %arg0, %c0_i32 : i32, i32
  }
  func.func @transform_1(%arg0: i32) -> (i32, i32) {
    %c0_i32 = arith.constant 0 : i32
    %c0_i32_0 = arith.constant 0 : i32
    %c0_i32_1 = arith.constant 0 : i32
    return %c0_i32, %c0_i32_0 : i32, i32
  }
  func.func @transform_2(%arg0: i32) -> (i32, i32) {
    %c0_i32 = arith.constant 0 : i32
    %c0_i32_0 = arith.constant 0 : i32
    %c0_i32_1 = arith.constant 0 : i32
    return %c0_i32, %c0_i32_0 : i32, i32
  }
  func.func @transform_3(%arg0: i32) -> (i32, i32) {
    %c0_i32 = arith.constant 0 : i32
    %c0_i32_0 = arith.constant 0 : i32
    return %arg0, %c0_i32 : i32, i32
  }
}

module attributes {stable_mosaic.version = 11 : i64} {
  func.func @_gemm_bias_kernel(%arg0: i32, %arg1: memref<8x64xf32, #tpu.memory_space<vmem>>, %arg2: memref<64x128xf32, #tpu.memory_space<vmem>>, %arg3: memref<1x128xf32, #tpu.memory_space<vmem>>, %arg4: memref<8x128xf32, #tpu.memory_space<vmem>>) attributes {dimension_semantics = [#tpu.dimension_semantics<parallel>], iteration_bounds = array<i64: 1>, scalar_prefetch = 0 : i64, scratch_operands = 0 : i64, tpu.core_type = #tpu.core_type<tc>, window_params = [{transform_indices = @transform_0, window_bounds = array<i64: 8, 64>}, {pipeline_mode = #tpu.pipeline_mode<synchronous>, transform_indices = @transform_1, window_bounds = array<i64: 64, 128>}, {pipeline_mode = #tpu.pipeline_mode<synchronous>, transform_indices = @transform_2, window_bounds = array<i64: 1, 128>}, {transform_indices = @transform_3, window_bounds = array<i64: 8, 128>}]} {
    %c0 = arith.constant 0 : index
    %c0_0 = arith.constant 0 : index
    %0 = vector.load %arg1[%c0, %c0_0] : memref<8x64xf32, #tpu.memory_space<vmem>>, vector<8x64xf32>
    %c0_1 = arith.constant 0 : index
    %c0_2 = arith.constant 0 : index
    %1 = vector.load %arg2[%c0_1, %c0_2] : memref<64x128xf32, #tpu.memory_space<vmem>>, vector<64x128xf32>
    %cst = arith.constant dense<0.000000e+00> : vector<8x128xf32>
    %2 = tpu.matmul %0, %1, %cst {dimension_numbers = #tpu.dot_dimension_numbers<[1], [0], [0], [1], [0, 0, 1, 1], [], []>} : vector<8x64xf32>, vector<64x128xf32>, vector<8x128xf32> -> vector<8x128xf32>
    %c0_3 = arith.constant 0 : index
    %c0_4 = arith.constant 0 : index
    %3 = vector.load %arg3[%c0_3, %c0_4] : memref<1x128xf32, #tpu.memory_space<vmem>>, vector<1x128xf32>
    %4 = vector.broadcast %3 : vector<1x128xf32> to vector<8x128xf32>
    %5 = arith.addf %2, %4 : vector<8x128xf32>
    %c0_5 = arith.constant 0 : index
    %c0_6 = arith.constant 0 : index
    %6 = vector.load %arg4[%c0_5, %c0_6] : memref<8x128xf32, #tpu.memory_space<vmem>>, vector<8x128xf32>
    tpu.vector_store %arg4[%c0_5, %c0_6], %5 {strides = array<i32>} : memref<8x128xf32, #tpu.memory_space<vmem>>, vector<8x128xf32>,
    return
  }
  func.func @transform_0(%arg0: i32) -> (i32, i32) {
    %c0_i32 = arith.constant 0 : i32
    %c0_i32_0 = arith.constant 0 : i32
    return %arg0, %c0_i32 : i32, i32
  }
  func.func @transform_1(%arg0: i32) -> (i32, i32) {
    %c0_i32 = arith.constant 0 : i32
    %c0_i32_0 = arith.constant 0 : i32
    %c0_i32_1 = arith.constant 0 : i32
    return %c0_i32, %c0_i32_0 : i32, i32
  }
  func.func @transform_2(%arg0: i32) -> (i32, i32) {
    %c0_i32 = arith.constant 0 : i32
    %c0_i32_0 = arith.constant 0 : i32
    %c0_i32_1 = arith.constant 0 : i32
    return %c0_i32, %c0_i32_0 : i32, i32
  }
  func.func @transform_3(%arg0: i32) -> (i32, i32) {
    %c0_i32 = arith.constant 0 : i32
    %c0_i32_0 = arith.constant 0 : i32
    return %arg0, %c0_i32 : i32, i32
  }
}

</mosaic_0001>

<llo_original>
// kernel: crnn_forward.9
$region0: #{crnn_forward.9}
  #allocation0 [shape = 'u32[]', space=smem, size = 0x4, offset = 0x4, fixed_abs, tag = 'smem constant byte address 0x4 - core index']
  #allocation1 [shape = 'u32[144,128]{1,0:T(1,128)}', space=vmem, size = 0x12000, scoped, tag = 'internal scratch']
  %s0 = inlined_call_operand.vmem [shape: f32[4,256,27], index: 0, kind: input, shape index: {}]
  %s1 = inlined_call_operand.vmem [shape: f32[27,64], index: 1, kind: input, shape index: {}]
  %s2 = inlined_call_operand.vmem [shape: f32[1,64], index: 2, kind: input, shape index: {}]
  %s3 = inlined_call_operand.vmem [shape: f32[1,64], index: 3, kind: input, shape index: {}]
  %s4 = inlined_call_operand.vmem [shape: f32[256,64], index: 4, kind: output, shape index: {}]
  %s5 = sld [smem:[#allocation0]]
  $region26: #{crnn_forward.9} parent=0
    _
  %s7 = ssub.s32 1, %s5
  %s8 = scalar_select 0, %s7, %s5
  // Predicated region
  $region2: #{crnn_forward.9} parent=0 // pred_check
    _
  $region3: #{crnn_forward.9} parent=0 // pred_check_branch
    %10 = sbr.rel (0) target = $region5
  $region4: #{crnn_forward.9} parent=0 // pred_region
    _
  $region5: #{crnn_forward.9} parent=0 // pred_fallthru
    _
  // Predicated region
  $region6: #{crnn_forward.9} parent=0 // pred_check
    _
  $region7: #{crnn_forward.9} parent=0 // pred_check_branch
    %12 = sbr.rel (0) target = $region9
  $region8: #{crnn_forward.9} parent=0 // pred_region
    _
  $region9: #{crnn_forward.9} parent=0 // pred_fallthru
    _
  // Predicated region
  $region10: #{crnn_forward.9} parent=0 // pred_check
    _
  $region11: #{crnn_forward.9} parent=0 // pred_check_branch
    %14 = sbr.rel (0) target = $region13
  $region12: #{crnn_forward.9} parent=0 // pred_region
    _
  $region13: #{crnn_forward.9} parent=0 // pred_fallthru
    _
  // Predicated region
  $region14: #{crnn_forward.9} parent=0 // pred_check
    _
  $region15: #{crnn_forward.9} parent=0 // pred_check_branch
    %16 = sbr.rel (0) target = $region17
  $region16: #{crnn_forward.9} parent=0 // pred_region
    _
  $region17: #{crnn_forward.9} parent=0 // pred_fallthru
    _
  %v17 = vld [vmem:[%s1] sm:$0xff]
  %v18 = vld [vmem:[%s1 + $0x8] sm:$0xff]
  %v19 = vld [vmem:[%s1 + $0x10] sm:$0xff]
  %v20 = vld [vmem:[%s1 + $0x18] sm:$0x7]
  %v21 = vld [vmem:[%s2] sm:$0x1]
  %v22 = vld [vmem:[%s3] sm:$0x1]
  %v23 = vld [vmem:[%s0] sm:$0xff]
  %v24 = vld [vmem:[%s0 + $0x8] sm:$0xff]
  %v25 = vld [vmem:[%s0 + $0x10] sm:$0xff]
  %v26 = vld [vmem:[%s0 + $0x18] sm:$0xff]
  %v27 = vld [vmem:[%s0 + $0x20] sm:$0xff]
  %v28 = vld [vmem:[%s0 + $0x28] sm:$0xff]
  %v29 = vld [vmem:[%s0 + $0x30] sm:$0xff]
  %v30 = vld [vmem:[%s0 + $0x38] sm:$0xff]
  %v31 = vld [vmem:[%s0 + $0x40] sm:$0xff]
  %v32 = vld [vmem:[%s0 + $0x48] sm:$0xff]
  %v33 = vld [vmem:[%s0 + $0x50] sm:$0xff]
  %v34 = vld [vmem:[%s0 + $0x58] sm:$0xff]
  %v35 = vld [vmem:[%s0 + $0x60] sm:$0xff]
  %v36 = vld [vmem:[%s0 + $0x68] sm:$0xff]
  %v37 = vld [vmem:[%s0 + $0x70] sm:$0xff]
  %v38 = vld [vmem:[%s0 + $0x78] sm:$0xff]
  %v39 = vld [vmem:[%s0 + $0x80] sm:$0xff]
  %v40 = vld [vmem:[%s0 + $0x88] sm:$0xff]
  %v41 = vld [vmem:[%s0 + $0x90] sm:$0xff]
  %v42 = vld [vmem:[%s0 + $0x98] sm:$0xff]
  %v43 = vld [vmem:[%s0 + $0xa0] sm:$0xff]
  %v44 = vld [vmem:[%s0 + $0xa8] sm:$0xff]
  %v45 = vld [vmem:[%s0 + $0xb0] sm:$0xff]
  %v46 = vld [vmem:[%s0 + $0xb8] sm:$0xff]
  %v47 = vld [vmem:[%s0 + $0xc0] sm:$0xff]
  %v48 = vld [vmem:[%s0 + $0xc8] sm:$0xff]
  %v49 = vld [vmem:[%s0 + $0xd0] sm:$0xff]
  %v50 = vld [vmem:[%s0 + $0xd8] sm:$0xff]
  %v51 = vld [vmem:[%s0 + $0xe0] sm:$0xff]
  %v52 = vld [vmem:[%s0 + $0xe8] sm:$0xff]
  %v53 = vld [vmem:[%s0 + $0xf0] sm:$0xff]
  %v54 = vld [vmem:[%s0 + $0xf8] sm:$0xff]
  %vm55 = vcmask 220160
  %v57 = vsel %vm55, %v23, 0
  %v60 = vsel %vm55, %v24, 0
  %v63 = vsel %vm55, %v25, 0
  %v66 = vsel %vm55, %v26, 0
  %v69 = vsel %vm55, %v27, 0
  %v72 = vsel %vm55, %v28, 0
  %v75 = vsel %vm55, %v29, 0
  %v78 = vsel %vm55, %v30, 0
  %v81 = vsel %vm55, %v31, 0
  %v84 = vsel %vm55, %v32, 0
  %v87 = vsel %vm55, %v33, 0
  %v90 = vsel %vm55, %v34, 0
  %v93 = vsel %vm55, %v35, 0
  %v96 = vsel %vm55, %v36, 0
  %v99 = vsel %vm55, %v37, 0
  %v102 = vsel %vm55, %v38, 0
  %v105 = vsel %vm55, %v39, 0
  %v108 = vsel %vm55, %v40, 0
  %v111 = vsel %vm55, %v41, 0
  %v114 = vsel %vm55, %v42, 0
  %v117 = vsel %vm55, %v43, 0
  %v120 = vsel %vm55, %v44, 0
  %v123 = vsel %vm55, %v45, 0
  %v126 = vsel %vm55, %v46, 0
  %v129 = vsel %vm55, %v47, 0
  %v132 = vsel %vm55, %v48, 0
  %v135 = vsel %vm55, %v49, 0
  %v138 = vsel %vm55, %v50, 0
  %v141 = vsel %vm55, %v51, 0
  %v144 = vsel %vm55, %v52, 0
  %v147 = vsel %vm55, %v53, 0
  %v150 = vsel %vm55, %v54, 0
  %vm152 = vcmask 1042432
  %v154 = vsel %vm152, %v20, 0
  %156 = vmatprep.subr.mxu0 0.0
  %157 = vmatpush1.msra.mxu0 %v17
  %158 = vmatprep.subr.mxu0 0.0
  %159 = vmatpush1.msra.mxu0 %v18
  %160 = vmatprep.subr.mxu0 0.0
  %161 = vmatpush1.msra.mxu0 %v19
  %162 = vmatprep.subr.mxu0 0.0
  %163 = vmatpush1.msra.mxu0 %v154
  %164 = vmatprep.subr.mxu0 0.0
  %165 = vmatpush1.msra.mxu0 0.0
  %166 = vmatprep.subr.mxu0 0.0
  %167 = vmatpush1.msra.mxu0 0.0
  %168 = vmatprep.subr.mxu0 0.0
  %169 = vmatpush1.msra.mxu0 0.0
  %170 = vmatprep.subr.mxu0 0.0
  %171 = vmatpush1.msra.mxu0 0.0
  %172 = vmatprep.subr.mxu0 0.0
  %173 = vmatpush1.msra.mxu0 0.0
  %174 = vmatprep.subr.mxu0 0.0
  %175 = vmatpush1.msra.mxu0 0.0
  %176 = vmatprep.subr.mxu0 0.0
  %177 = vmatpush1.msra.mxu0 0.0
  %178 = vmatprep.subr.mxu0 0.0
  %179 = vmatpush1.msra.mxu0 0.0
  %180 = vmatprep.subr.mxu0 0.0
  %181 = vmatpush1.msra.mxu0 0.0
  %182 = vmatprep.subr.mxu0 0.0
  %183 = vmatpush1.msra.mxu0 0.0
  %184 = vmatprep.subr.mxu0 0.0
  %185 = vmatpush1.msra.mxu0 0.0
  %186 = vmatprep.subr.mxu0 0.0
  %187 = vmatpush1.msra.mxu0 0.0
  %188 = vmatprep.subr.mxu0 0.0
  %189 = vmatpush1.msra.mxu0 0.0
  %190 = vmatprep.subr.mxu0 0.0
  %191 = vmatpush1.msra.mxu0 0.0
  %192 = vmatprep.subr.mxu0 0.0
  %193 = vmatpush1.msra.mxu0 0.0
  %194 = vmatprep.subr.mxu0 0.0
  %195 = vmatpush1.msra.mxu0 0.0
  %196 = vmatprep.subr.mxu0 0.0
  %197 = vmatpush1.msra.mxu0 0.0
  %198 = vmatprep.subr.mxu0 0.0
  %199 = vmatpush1.msra.mxu0 0.0
  %200 = vmatprep.subr.mxu0 0.0
  %201 = vmatpush1.msra.mxu0 0.0
  %202 = vmatprep.subr.mxu0 0.0
  %203 = vmatpush1.msra.mxu0 0.0
  %204 = vmatprep.subr.mxu0 0.0
  %205 = vmatpush1.msra.mxu0 0.0
  %206 = vmatprep.subr.mxu0 0.0
  %207 = vmatpush1.msra.mxu0 0.0
  %208 = vmatprep.subr.mxu0 0.0
  %209 = vmatpush1.msra.mxu0 0.0
  %210 = vmatprep.subr.mxu0 0.0
  %211 = vmatpush1.msra.mxu0 0.0
  %212 = vmatprep.subr.mxu0 0.0
  %213 = vmatpush1.msra.mxu0 0.0
  %214 = vmatprep.subr.mxu0 0.0
  %215 = vmatpush1.msra.mxu0 0.0
  %216 = vmatprep.subr.mxu0 0.0
  %217 = vmatpush1.msra.mxu0 0.0
  %218 = vmatprep.subr.mxu0 0.0
  %219 = vmatpush1.msra.mxu0 0.0
  %220 = vmatprep.mubr.f32.mxu0 0.0
  %221 = vmatmul.mubr.f32.gmra.mrb[0].mxu0 %v57
  %v222 = vpop.f32.mrb[0].mxu0
  %v223 = vadd.f32 0.0, %v222
  %v224 = vpop.f32.mrb[0].mxu0
  %225 = vmatprep.mubr.f32.mxu0 0.0
  %226 = vmatmul.mubr.f32.gmra.mrb[0].mxu0 %v60
  %v227 = vpop.f32.mrb[0].mxu0
  %v228 = vadd.f32 0.0, %v227
  %v229 = vpop.f32.mrb[0].mxu0
  %230 = vmatprep.mubr.f32.mxu0 0.0
  %231 = vmatmul.mubr.f32.gmra.mrb[0].mxu0 %v63
  %v232 = vpop.f32.mrb[0].mxu0
  %v233 = vadd.f32 0.0, %v232
  %v234 = vpop.f32.mrb[0].mxu0
  %235 = vmatprep.mubr.f32.mxu0 0.0
  %236 = vmatmul.mubr.f32.gmra.mrb[0].mxu0 %v66
  %v237 = vpop.f32.mrb[0].mxu0
  %v238 = vadd.f32 0.0, %v237
  %v239 = vpop.f32.mrb[0].mxu0
  %240 = vmatprep.mubr.f32.mxu0 0.0
  %241 = vmatmul.mubr.f32.gmra.mrb[0].mxu0 %v69
  %v242 = vpop.f32.mrb[0].mxu0
  %v243 = vadd.f32 0.0, %v242
  %v244 = vpop.f32.mrb[0].mxu0
  %245 = vmatprep.mubr.f32.mxu0 0.0
  %246 = vmatmul.mubr.f32.gmra.mrb[0].mxu0 %v72
  %v247 = vpop.f32.mrb[0].mxu0
  %v248 = vadd.f32 0.0, %v247
  %v249 = vpop.f32.mrb[0].mxu0
  %250 = vmatprep.mubr.f32.mxu0 0.0
  %251 = vmatmul.mubr.f32.gmra.mrb[0].mxu0 %v75
  %v252 = vpop.f32.mrb[0].mxu0
  %v253 = vadd.f32 0.0, %v252
  %v254 = vpop.f32.mrb[0].mxu0
  %255 = vmatprep.mubr.f32.mxu0 0.0
  %256 = vmatmul.mubr.f32.gmra.mrb[0].mxu0 %v78
  %v257 = vpop.f32.mrb[0].mxu0
  %v258 = vadd.f32 0.0, %v257
  %v259 = vpop.f32.mrb[0].mxu0
  %260 = vmatprep.mubr.f32.mxu0 0.0
  %261 = vmatmul.mubr.f32.gmra.mrb[0].mxu0 %v81
  %v262 = vpop.f32.mrb[0].mxu0
  %v263 = vadd.f32 0.0, %v262
  %v264 = vpop.f32.mrb[0].mxu0
  %265 = vmatprep.mubr.f32.mxu0 0.0
  %266 = vmatmul.mubr.f32.gmra.mrb[0].mxu0 %v84
  %v267 = vpop.f32.mrb[0].mxu0
  %v268 = vadd.f32 0.0, %v267
  %v269 = vpop.f32.mrb[0].mxu0
  %270 = vmatprep.mubr.f32.mxu0 0.0
  %271 = vmatmul.mubr.f32.gmra.mrb[0].mxu0 %v87
  %v272 = vpop.f32.mrb[0].mxu0
  %v273 = vadd.f32 0.0, %v272
  %v274 = vpop.f32.mrb[0].mxu0
  %275 = vmatprep.mubr.f32.mxu0 0.0
  %276 = vmatmul.mubr.f32.gmra.mrb[0].mxu0 %v90
  %v277 = vpop.f32.mrb[0].mxu0
  %v278 = vadd.f32 0.0, %v277
  %v279 = vpop.f32.mrb[0].mxu0
  %280 = vmatprep.mubr.f32.mxu0 0.0
  %281 = vmatmul.mubr.f32.gmra.mrb[0].mxu0 %v93
  %v282 = vpop.f32.mrb[0].mxu0
  %v283 = vadd.f32 0.0, %v282
  %v284 = vpop.f32.mrb[0].mxu0
  %285 = vmatprep.mubr.f32.mxu0 0.0
  %286 = vmatmul.mubr.f32.gmra.mrb[0].mxu0 %v96
  %v287 = vpop.f32.mrb[0].mxu0
  %v288 = vadd.f32 0.0, %v287
  %v289 = vpop.f32.mrb[0].mxu0
  %290 = vmatprep.mubr.f32.mxu0 0.0
  %291 = vmatmul.mubr.f32.gmra.mrb[0].mxu0 %v99
  %v292 = vpop.f32.mrb[0].mxu0
  %v293 = vadd.f32 0.0, %v292
  %v294 = vpop.f32.mrb[0].mxu0
  %295 = vmatprep.mubr.f32.mxu0 0.0
  %296 = vmatmul.mubr.f32.gmra.mrb[0].mxu0 %v102
  %v297 = vpop.f32.mrb[0].mxu0
  %v298 = vadd.f32 0.0, %v297
  %v299 = vpop.f32.mrb[0].mxu0
  %300 = vmatprep.mubr.f32.mxu0 0.0
  %301 = vmatmul.mubr.f32.gmra.mrb[0].mxu0 %v105
  %v302 = vpop.f32.mrb[0].mxu0
  %v303 = vadd.f32 0.0, %v302
  %v304 = vpop.f32.mrb[0].mxu0
  %305 = vmatprep.mubr.f32.mxu0 0.0
  %306 = vmatmul.mubr.f32.gmra.mrb[0].mxu0 %v108
  %v307 = vpop.f32.mrb[0].mxu0
  %v308 = vadd.f32 0.0, %v307
  %v309 = vpop.f32.mrb[0].mxu0
  %310 = vmatprep.mubr.f32.mxu0 0.0
  %311 = vmatmul.mubr.f32.gmra.mrb[0].mxu0 %v111
  %v312 = vpop.f32.mrb[0].mxu0
  %v313 = vadd.f32 0.0, %v312
  %v314 = vpop.f32.mrb[0].mxu0
  %315 = vmatprep.mubr.f32.mxu0 0.0
  %316 = vmatmul.mubr.f32.gmra.mrb[0].mxu0 %v114
  %v317 = vpop.f32.mrb[0].mxu0
  %v318 = vadd.f32 0.0, %v317
  %v319 = vpop.f32.mrb[0].mxu0
  %320 = vmatprep.mubr.f32.mxu0 0.0
  %321 = vmatmul.mubr.f32.gmra.mrb[0].mxu0 %v117
  %v322 = vpop.f32.mrb[0].mxu0
  %v323 = vadd.f32 0.0, %v322
  %v324 = vpop.f32.mrb[0].mxu0
  %325 = vmatprep.mubr.f32.mxu0 0.0
  %326 = vmatmul.mubr.f32.gmra.mrb[0].mxu0 %v120
  %v327 = vpop.f32.mrb[0].mxu0
  %v328 = vadd.f32 0.0, %v327
  %v329 = vpop.f32.mrb[0].mxu0
  %330 = vmatprep.mubr.f32.mxu0 0.0
  %331 = vmatmul.mubr.f32.gmra.mrb[0].mxu0 %v123
  %v332 = vpop.f32.mrb[0].mxu0
  %v333 = vadd.f32 0.0, %v332
  %v334 = vpop.f32.mrb[0].mxu0
  %335 = vmatprep.mubr.f32.mxu0 0.0
  %336 = vmatmul.mubr.f32.gmra.mrb[0].mxu0 %v126
  %v337 = vpop.f32.mrb[0].mxu0
  %v338 = vadd.f32 0.0, %v337
  %v339 = vpop.f32.mrb[0].mxu0
  %340 = vmatprep.mubr.f32.mxu0 0.0
  %341 = vmatmul.mubr.f32.gmra.mrb[0].mxu0 %v129
  %v342 = vpop.f32.mrb[0].mxu0
  %v343 = vadd.f32 0.0, %v342
  %v344 = vpop.f32.mrb[0].mxu0
  %345 = vmatprep.mubr.f32.mxu0 0.0
  %346 = vmatmul.mubr.f32.gmra.mrb[0].mxu0 %v132
  %v347 = vpop.f32.mrb[0].mxu0
  %v348 = vadd.f32 0.0, %v347
  %v349 = vpop.f32.mrb[0].mxu0
  %350 = vmatprep.mubr.f32.mxu0 0.0
  %351 = vmatmul.mubr.f32.gmra.mrb[0].mxu0 %v135
  %v352 = vpop.f32.mrb[0].mxu0
  %v353 = vadd.f32 0.0, %v352
  %v354 = vpop.f32.mrb[0].mxu0
  %355 = vmatprep.mubr.f32.mxu0 0.0
  %356 = vmatmul.mubr.f32.gmra.mrb[0].mxu0 %v138
  %v357 = vpop.f32.mrb[0].mxu0
  %v358 = vadd.f32 0.0, %v357
  %v359 = vpop.f32.mrb[0].mxu0
  %360 = vmatprep.mubr.f32.mxu0 0.0
  %361 = vmatmul.mubr.f32.gmra.mrb[0].mxu0 %v141
  %v362 = vpop.f32.mrb[0].mxu0
  %v363 = vadd.f32 0.0, %v362
  %v364 = vpop.f32.mrb[0].mxu0
  %365 = vmatprep.mubr.f32.mxu0 0.0
  %366 = vmatmul.mubr.f32.gmra.mrb[0].mxu0 %v144
  %v367 = vpop.f32.mrb[0].mxu0
  %v368 = vadd.f32 0.0, %v367
  %v369 = vpop.f32.mrb[0].mxu0
  %370 = vmatprep.mubr.f32.mxu0 0.0
  %371 = vmatmul.mubr.f32.gmra.mrb[0].mxu0 %v147
  %v372 = vpop.f32.mrb[0].mxu0
  %v373 = vadd.f32 0.0, %v372
  %v374 = vpop.f32.mrb[0].mxu0
  %375 = vmatprep.mubr.f32.mxu0 0.0
  %376 = vmatmul.mubr.f32.gmra.mrb[0].mxu0 %v150
  %v377 = vpop.f32.mrb[0].mxu0
  %v378 = vadd.f32 0.0, %v377
  %v379 = vpop.f32.mrb[0].mxu0
  %380 = vdwg.mxu0
  %v382 = vlaneseq
  %v383 = vshrl.u32 %v382, 7
  %v384 = vsub.s32 0, %v383
  %v385 = vrot.slane %v21, %v384
  %v387 = vmul.f32 %v223, %v385
  %v388 = vmul.f32 %v228, %v385
  %v389 = vmul.f32 %v233, %v385
  %v390 = vmul.f32 %v238, %v385
  %v391 = vmul.f32 %v243, %v385
  %v392 = vmul.f32 %v248, %v385
  %v393 = vmul.f32 %v253, %v385
  %v394 = vmul.f32 %v258, %v385
  %v395 = vmul.f32 %v263, %v385
  %v396 = vmul.f32 %v268, %v385
  %v397 = vmul.f32 %v273, %v385
  %v398 = vmul.f32 %v278, %v385
  %v399 = vmul.f32 %v283, %v385
  %v400 = vmul.f32 %v288, %v385
  %v401 = vmul.f32 %v293, %v385
  %v402 = vmul.f32 %v298, %v385
  %v403 = vmul.f32 %v303, %v385
  %v404 = vmul.f32 %v308, %v385
  %v405 = vmul.f32 %v313, %v385
  %v406 = vmul.f32 %v318, %v385
  %v407 = vmul.f32 %v323, %v385
  %v408 = vmul.f32 %v328, %v385
  %v409 = vmul.f32 %v333, %v385
  %v410 = vmul.f32 %v338, %v385
  %v411 = vmul.f32 %v343, %v385
  %v412 = vmul.f32 %v348, %v385
  %v413 = vmul.f32 %v353, %v385
  %v414 = vmul.f32 %v358, %v385
  %v415 = vmul.f32 %v363, %v385
  %v416 = vmul.f32 %v368, %v385
  %v417 = vmul.f32 %v373, %v385
  %v418 = vmul.f32 %v378, %v385
  %v420 = vlaneseq
  %v421 = vshrl.u32 %v420, 7
  %v422 = vsub.s32 0, %v421
  %v423 = vrot.slane %v22, %v422
  %v425 = vadd.f32 %v387, %v423
  %v426 = vadd.f32 %v388, %v423
  %v427 = vadd.f32 %v389, %v423
  %v428 = vadd.f32 %v390, %v423
  %v429 = vadd.f32 %v391, %v423
  %v430 = vadd.f32 %v392, %v423
  %v431 = vadd.f32 %v393, %v423
  %v432 = vadd.f32 %v394, %v423
  %v433 = vadd.f32 %v395, %v423
  %v434 = vadd.f32 %v396, %v423
  %v435 = vadd.f32 %v397, %v423
  %v436 = vadd.f32 %v398, %v423
  %v437 = vadd.f32 %v399, %v423
  %v438 = vadd.f32 %v400, %v423
  %v439 = vadd.f32 %v401, %v423
  %v440 = vadd.f32 %v402, %v423
  %v441 = vadd.f32 %v403, %v423
  %v442 = vadd.f32 %v404, %v423
  %v443 = vadd.f32 %v405, %v423
  %v444 = vadd.f32 %v406, %v423
  %v445 = vadd.f32 %v407, %v423
  %v446 = vadd.f32 %v408, %v423
  %v447 = vadd.f32 %v409, %v423
  %v448 = vadd.f32 %v410, %v423
  %v449 = vadd.f32 %v411, %v423
  %v450 = vadd.f32 %v412, %v423
  %v451 = vadd.f32 %v413, %v423
  %v452 = vadd.f32 %v414, %v423
  %v453 = vadd.f32 %v415, %v423
  %v454 = vadd.f32 %v416, %v423
  %v455 = vadd.f32 %v417, %v423
  %v456 = vadd.f32 %v418, %v423
  %s457 = scalar_lea.vmem %s0, 256
  %v458 = vld [vmem:[%s457] sm:$0xff]
  %v459 = vld [vmem:[%s457 + $0x8] sm:$0xff]
  %v460 = vld [vmem:[%s457 + $0x10] sm:$0xff]
  %v461 = vld [vmem:[%s457 + $0x18] sm:$0xff]
  %v462 = vld [vmem:[%s457 + $0x20] sm:$0xff]
  %v463 = vld [vmem:[%s457 + $0x28] sm:$0xff]
  %v464 = vld [vmem:[%s457 + $0x30] sm:$0xff]
  %v465 = vld [vmem:[%s457 + $0x38] sm:$0xff]
  %v466 = vld [vmem:[%s457 + $0x40] sm:$0xff]
  %v467 = vld [vmem:[%s457 + $0x48] sm:$0xff]
  %v468 = vld [vmem:[%s457 + $0x50] sm:$0xff]
  %v469 = vld [vmem:[%s457 + $0x58] sm:$0xff]
  %v470 = vld [vmem:[%s457 + $0x60] sm:$0xff]
  %v471 = vld [vmem:[%s457 + $0x68] sm:$0xff]
  %v472 = vld [vmem:[%s457 + $0x70] sm:$0xff]
  %v473 = vld [vmem:[%s457 + $0x78] sm:$0xff]
  %v474 = vld [vmem:[%s457 + $0x80] sm:$0xff]
  %v475 = vld [vmem:[%s457 + $0x88] sm:$0xff]
  %v476 = vld [vmem:[%s457 + $0x90] sm:$0xff]
  %v477 = vld [vmem:[%s457 + $0x98] sm:$0xff]
  %v478 = vld [vmem:[%s457 + $0xa0] sm:$0xff]
  %v479 = vld [vmem:[%s457 + $0xa8] sm:$0xff]
  %v480 = vld [vmem:[%s457 + $0xb0] sm:$0xff]
  %v481 = vld [vmem:[%s457 + $0xb8] sm:$0xff]
  %v482 = vld [vmem:[%s457 + $0xc0] sm:$0xff]
  %v483 = vld [vmem:[%s457 + $0xc8] sm:$0xff]
  %v484 = vld [vmem:[%s457 + $0xd0] sm:$0xff]
  %v485 = vld [vmem:[%s457 + $0xd8] sm:$0xff]
  %v486 = vld [vmem:[%s457 + $0xe0] sm:$0xff]
  %v487 = vld [vmem:[%s457 + $0xe8] sm:$0xff]
  %v488 = vld [vmem:[%s457 + $0xf0] sm:$0xff]
  %v489 = vld [vmem:[%s457 + $0xf8] sm:$0xff]
  %v491 = vsel %vm55, %v458, 0
  %v494 = vsel %vm55, %v459, 0
  %v497 = vsel %vm55, %v460, 0
  %v500 = vsel %vm55, %v461, 0
  %v503 = vsel %vm55, %v462, 0
  %v506 = vsel %vm55, %v463, 0
  %v509 = vsel %vm55, %v464, 0
  %v512 = vsel %vm55, %v465, 0
  %v515 = vsel %vm55, %v466, 0
  %v518 = vsel %vm55, %v467, 0
  %v521 = vsel %vm55, %v468, 0
  %v524 = vsel %vm55, %v469, 0
  %v527 = vsel %vm55, %v470, 0
  %v530 = vsel %vm55, %v471, 0
  %v533 = vsel %vm55, %v472, 0
  %v536 = vsel %vm55, %v473, 0
  %v539 = vsel %vm55, %v474, 0
  %v542 = vsel %vm55, %v475, 0
  %v545 = vsel %vm55, %v476, 0
  %v548 = vsel %vm55, %v477, 0
  %v551 = vsel %vm55, %v478, 0
  %v554 = vsel %vm55, %v479, 0
  %v557 = vsel %vm55, %v480, 0
  %v560 = vsel %vm55, %v481, 0
  %v563 = vsel %vm55, %v482, 0
  %v566 = vsel %vm55, %v483, 0
  %v569 = vsel %vm55, %v484, 0
  %v572 = vsel %vm55, %v485, 0
  %v575 = vsel %vm55, %v486, 0
  %v578 = vsel %vm55, %v487, 0
  %v581 = vsel %vm55, %v488, 0
  %v584 = vsel %vm55, %v489, 0
  %586 = vmatprep.subr.mxu0 0.0
  %587 = vmatpush1.msra.mxu0 %v17
  %588 = vmatprep.subr.mxu0 0.0
  %589 = vmatpush1.msra.mxu0 %v18
  %590 = vmatprep.subr.mxu0 0.0
  %591 = vmatpush1.msra.mxu0 %v19
  %592 = vmatprep.subr.mxu0 0.0
  %593 = vmatpush1.msra.mxu0 %v154
  %594 = vmatprep.subr.mxu0 0.0
  %595 = vmatpush1.msra.mxu0 0.0
  %596 = vmatprep.subr.mxu0 0.0
  %597 = vmatpush1.msra.mxu0 0.0
  %598 = vmatprep.subr.mxu0 0.0
  %599 = vmatpush1.msra.mxu0 0.0
  %600 = vmatprep.subr.mxu0 0.0
  %601 = vmatpush1.msra.mxu0 0.0
  %602 = vmatprep.subr.mxu0 0.0
  %603 = vmatpush1.msra.mxu0 0.0
  %604 = vmatprep.subr.mxu0 0.0
  %605 = vmatpush1.msra.mxu0 0.0
  %606 = vmatprep.subr.mxu0 0.0
  %607 = vmatpush1.msra.mxu0 0.0
  %608 = vmatprep.subr.mxu0 0.0
  %609 = vmatpush1.msra.mxu0 0.0
  %610 = vmatprep.subr.mxu0 0.0
  %611 = vmatpush1.msra.mxu0 0.0
  %612 = vmatprep.subr.mxu0 0.0
  %613 = vmatpush1.msra.mxu0 0.0
  %614 = vmatprep.subr.mxu0 0.0
  %615 = vmatpush1.msra.mxu0 0.0
  %616 = vmatprep.subr.mxu0 0.0
  %617 = vmatpush1.msra.mxu0 0.0
  %618 = vmatprep.subr.mxu0 0.0
  %619 = vmatpush1.msra.mxu0 0.0
  %620 = vmatprep.subr.mxu0 0.0
  %621 = vmatpush1.msra.mxu0 0.0
  %622 = vmatprep.subr.mxu0 0.0
  %623 = vmatpush1.msra.mxu0 0.0
  %624 = vmatprep.subr.mxu0 0.0
  %625 = vmatpush1.msra.mxu0 0.0
  %626 = vmatprep.subr.mxu0 0.0
  %627 = vmatpush1.msra.mxu0 0.0
  %628 = vmatprep.subr.mxu0 0.0
  %629 = vmatpush1.msra.mxu0 0.0
  %630 = vmatprep.subr.mxu0 0.0
  %631 = vmatpush1.msra.mxu0 0.0
  %632 = vmatprep.subr.mxu0 0.0
  %633 = vmatpush1.msra.mxu0 0.0
  %634 = vmatprep.subr.mxu0 0.0
  %635 = vmatpush1.msra.mxu0 0.0
  %636 = vmatprep.subr.mxu0 0.0
  %637 = vmatpush1.msra.mxu0 0.0
  %638 = vmatprep.subr.mxu0 0.0
  %639 = vmatpush1.msra.mxu0 0.0
  %640 = vmatprep.subr.mxu0 0.0
  %641 = vmatpush1.msra.mxu0 0.0
  %642 = vmatprep.subr.mxu0 0.0
  %643 = vmatpush1.msra.mxu0 0.0
  %644 = vmatprep.subr.mxu0 0.0
  %645 = vmatpush1.msra.mxu0 0.0
  %646 = vmatprep.subr.mxu0 0.0
  %647 = vmatpush1.msra.mxu0 0.0
  %648 = vmatprep.subr.mxu0 0.0
  %649 = vmatpush1.msra.mxu0 0.0
  %650 = vmatprep.mubr.f32.mxu0 0.0
  %651 = vmatmul.mubr.f32.gmra.mrb[0].mxu0 %v491
  %v652 = vpop.f32.mrb[0].mxu0
  %v653 = vadd.f32 0.0, %v652
  %v654 = vpop.f32.mrb[0].mxu0
  %655 = vmatprep.mubr.f32.mxu0 0.0
  %656 = vmatmul.mubr.f32.gmra.mrb[0].mxu0 %v494
  %v657 = vpop.f32.mrb[0].mxu0
  %v658 = vadd.f32 0.0, %v657
  %v659 = vpop.f32.mrb[0].mxu0
  %660 = vmatprep.mubr.f32.mxu0 0.0
  %661 = vmatmul.mubr.f32.gmra.mrb[0].mxu0 %v497
  %v662 = vpop.f32.mrb[0].mxu0
  %v663 = vadd.f32 0.0, %v662
  %v664 = vpop.f32.mrb[0].mxu0
  %665 = vmatprep.mubr.f32.mxu0 0.0
  %666 = vmatmul.mubr.f32.gmra.mrb[0].mxu0 %v500
  %v667 = vpop.f32.mrb[0].mxu0
  %v668 = vadd.f32 0.0, %v667
  %v669 = vpop.f32.mrb[0].mxu0
  %670 = vmatprep.mubr.f32.mxu0 0.0
  %671 = vmatmul.mubr.f32.gmra.mrb[0].mxu0 %v503
  %v672 = vpop.f32.mrb[0].mxu0
  %v673 = vadd.f32 0.0, %v672
  %v674 = vpop.f32.mrb[0].mxu0
  %675 = vmatprep.mubr.f32.mxu0 0.0
  %676 = vmatmul.mubr.f32.gmra.mrb[0].mxu0 %v506
  %v677 = vpop.f32.mrb[0].mxu0
  %v678 = vadd.f32 0.0, %v677
  %v679 = vpop.f32.mrb[0].mxu0
  %680 = vmatprep.mubr.f32.mxu0 0.0
  %681 = vmatmul.mubr.f32.gmra.mrb[0].mxu0 %v509
  %v682 = vpop.f32.mrb[0].mxu0
  %v683 = vadd.f32 0.0, %v682
  %v684 = vpop.f32.mrb[0].mxu0
  %685 = vmatprep.mubr.f32.mxu0 0.0
  %686 = vmatmul.mubr.f32.gmra.mrb[0].mxu0 %v512
  %v687 = vpop.f32.mrb[0].mxu0
  %v688 = vadd.f32 0.0, %v687
  %v689 = vpop.f32.mrb[0].mxu0
  %690 = vmatprep.mubr.f32.mxu0 0.0
  %691 = vmatmul.mubr.f32.gmra.mrb[0].mxu0 %v515
  %v692 = vpop.f32.mrb[0].mxu0
  %v693 = vadd.f32 0.0, %v692
  %v694 = vpop.f32.mrb[0].mxu0
  %695 = vmatprep.mubr.f32.mxu0 0.0
  %696 = vmatmul.mubr.f32.gmra.mrb[0].mxu0 %v518
  %v697 = vpop.f32.mrb[0].mxu0
  %v698 = vadd.f32 0.0, %v697
  %v699 = vpop.f32.mrb[0].mxu0
  %700 = vmatprep.mubr.f32.mxu0 0.0
  %701 = vmatmul.mubr.f32.gmra.mrb[0].mxu0 %v521
  %v702 = vpop.f32.mrb[0].mxu0
  %v703 = vadd.f32 0.0, %v702
  %v704 = vpop.f32.mrb[0].mxu0
  %705 = vmatprep.mubr.f32.mxu0 0.0
  %706 = vmatmul.mubr.f32.gmra.mrb[0].mxu0 %v524
  %v707 = vpop.f32.mrb[0].mxu0
  %v708 = vadd.f32 0.0, %v707
  %v709 = vpop.f32.mrb[0].mxu0
  %710 = vmatprep.mubr.f32.mxu0 0.0
  %711 = vmatmul.mubr.f32.gmra.mrb[0].mxu0 %v527
  %v712 = vpop.f32.mrb[0].mxu0
  %v713 = vadd.f32 0.0, %v712
  %v714 = vpop.f32.mrb[0].mxu0
  %715 = vmatprep.mubr.f32.mxu0 0.0
  %716 = vmatmul.mubr.f32.gmra.mrb[0].mxu0 %v530
  %v717 = vpop.f32.mrb[0].mxu0
  %v718 = vadd.f32 0.0, %v717
  %v719 = vpop.f32.mrb[0].mxu0
  %720 = vmatprep.mubr.f32.mxu0 0.0
  %721 = vmatmul.mubr.f32.gmra.mrb[0].mxu0 %v533
  %v722 = vpop.f32.mrb[0].mxu0
  %v723 = vadd.f32 0.0, %v722
  %v724 = vpop.f32.mrb[0].mxu0
  %725 = vmatprep.mubr.f32.mxu0 0.0
  %726 = vmatmul.mubr.f32.gmra.mrb[0].mxu0 %v536
  %v727 = vpop.f32.mrb[0].mxu0
  %v728 = vadd.f32 0.0, %v727
  %v729 = vpop.f32.mrb[0].mxu0
  %730 = vmatprep.mubr.f32.mxu0 0.0
  %731 = vmatmul.mubr.f32.gmra.mrb[0].mxu0 %v539
  %v732 = vpop.f32.mrb[0].mxu0
  %v733 = vadd.f32 0.0, %v732
  %v734 = vpop.f32.mrb[0].mxu0
  %735 = vmatprep.mubr.f32.mxu0 0.0
  %736 = vmatmul.mubr.f32.gmra.mrb[0].mxu0 %v542
  %v737 = vpop.f32.mrb[0].mxu0
  %v738 = vadd.f32 0.0, %v737
  %v739 = vpop.f32.mrb[0].mxu0
  %740 = vmatprep.mubr.f32.mxu0 0.0
  %741 = vmatmul.mubr.f32.gmra.mrb[0].mxu0 %v545
  %v742 = vpop.f32.mrb[0].mxu0
  %v743 = vadd.f32 0.0, %v742
  %v744 = vpop.f32.mrb[0].mxu0
  %745 = vmatprep.mubr.f32.mxu0 0.0
  %746 = vmatmul.mubr.f32.gmra.mrb[0].mxu0 %v548
  %v747 = vpop.f32.mrb[0].mxu0
  %v748 = vadd.f32 0.0, %v747
  %v749 = vpop.f32.mrb[0].mxu0
  %750 = vmatprep.mubr.f32.mxu0 0.0
  %751 = vmatmul.mubr.f32.gmra.mrb[0].mxu0 %v551
  %v752 = vpop.f32.mrb[0].mxu0
  %v753 = vadd.f32 0.0, %v752
  %v754 = vpop.f32.mrb[0].mxu0
  %755 = vmatprep.mubr.f32.mxu0 0.0
  %756 = vmatmul.mubr.f32.gmra.mrb[0].mxu0 %v554
  %v757 = vpop.f32.mrb[0].mxu0
  %v758 = vadd.f32 0.0, %v757
  %v759 = vpop.f32.mrb[0].mxu0
  %760 = vmatprep.mubr.f32.mxu0 0.0
  %761 = vmatmul.mubr.f32.gmra.mrb[0].mxu0 %v557
  %v762 = vpop.f32.mrb[0].mxu0
  %v763 = vadd.f32 0.0, %v762
  %v764 = vpop.f32.mrb[0].mxu0
  %765 = vmatprep.mubr.f32.mxu0 0.0
  %766 = vmatmul.mubr.f32.gmra.mrb[0].mxu0 %v560
  %v767 = vpop.f32.mrb[0].mxu0
  %v768 = vadd.f32 0.0, %v767
  %v769 = vpop.f32.mrb[0].mxu0
  %770 = vmatprep.mubr.f32.mxu0 0.0
  %771 = vmatmul.mubr.f32.gmra.mrb[0].mxu0 %v563
  %v772 = vpop.f32.mrb[0].mxu0
  %v773 = vadd.f32 0.0, %v772
  %v774 = vpop.f32.mrb[0].mxu0
  %775 = vmatprep.mubr.f32.mxu0 0.0
  %776 = vmatmul.mubr.f32.gmra.mrb[0].mxu0 %v566
  %v777 = vpop.f32.mrb[0].mxu0
  %v778 = vadd.f32 0.0, %v777
  %v779 = vpop.f32.mrb[0].mxu0
  %780 = vmatprep.mubr.f32.mxu0 0.0
  %781 = vmatmul.mubr.f32.gmra.mrb[0].mxu0 %v569
  %v782 = vpop.f32.mrb[0].mxu0
  %v783 = vadd.f32 0.0, %v782
  %v784 = vpop.f32.mrb[0].mxu0
  %785 = vmatprep.mubr.f32.mxu0 0.0
  %786 = vmatmul.mubr.f32.gmra.mrb[0].mxu0 %v572
  %v787 = vpop.f32.mrb[0].mxu0
  %v788 = vadd.f32 0.0, %v787
  %v789 = vpop.f32.mrb[0].mxu0
  %790 = vmatprep.mubr.f32.mxu0 0.0
  %791 = vmatmul.mubr.f32.gmra.mrb[0].mxu0 %v575
  %v792 = vpop.f32.mrb[0].mxu0
  %v793 = vadd.f32 0.0, %v792
  %v794 = vpop.f32.mrb[0].mxu0
  %795 = vmatprep.mubr.f32.mxu0 0.0
  %796 = vmatmul.mubr.f32.gmra.mrb[0].mxu0 %v578
  %v797 = vpop.f32.mrb[0].mxu0
  %v798 = vadd.f32 0.0, %v797
  %v799 = vpop.f32.mrb[0].mxu0
  %800 = vmatprep.mubr.f32.mxu0 0.0
  %801 = vmatmul.mubr.f32.gmra.mrb[0].mxu0 %v581
  %v802 = vpop.f32.mrb[0].mxu0
  %v803 = vadd.f32 0.0, %v802
  %v804 = vpop.f32.mrb[0].mxu0
  %805 = vmatprep.mubr.f32.mxu0 0.0
  %806 = vmatmul.mubr.f32.gmra.mrb[0].mxu0 %v584
  %v807 = vpop.f32.mrb[0].mxu0
  %v808 = vadd.f32 0.0, %v807
  %v809 = vpop.f32.mrb[0].mxu0
  %810 = vdwg.mxu0
  %v811 = vmul.f32 %v653, %v385
  %v812 = vmul.f32 %v658, %v385
  %v813 = vmul.f32 %v663, %v385
  %v814 = vmul.f32 %v668, %v385
  %v815 = vmul.f32 %v673, %v385
  %v816 = vmul.f32 %v678, %v385
  %v817 = vmul.f32 %v683, %v385
  %v818 = vmul.f32 %v688, %v385
  %v819 = vmul.f32 %v693, %v385
  %v820 = vmul.f32 %v698, %v385
  %v821 = vmul.f32 %v703, %v385
  %v822 = vmul.f32 %v708, %v385
  %v823 = vmul.f32 %v713, %v385
  %v824 = vmul.f32 %v718, %v385
  %v825 = vmul.f32 %v723, %v385
  %v826 = vmul.f32 %v728, %v385
  %v827 = vmul.f32 %v733, %v385
  %v828 = vmul.f32 %v738, %v385
  %v829 = vmul.f32 %v743, %v385
  %v830 = vmul.f32 %v748, %v385
  %v831 = vmul.f32 %v753, %v385
  %v832 = vmul.f32 %v758, %v385
  %v833 = vmul.f32 %v763, %v385
  %v834 = vmul.f32 %v768, %v385
  %v835 = vmul.f32 %v773, %v385
  %v836 = vmul.f32 %v778, %v385
  %v837 = vmul.f32 %v783, %v385
  %v838 = vmul.f32 %v788, %v385
  %v839 = vmul.f32 %v793, %v385
  %v840 = vmul.f32 %v798, %v385
  %v841 = vmul.f32 %v803, %v385
  %v842 = vmul.f32 %v808, %v385
  %v843 = vadd.f32 %v811, %v423
  %v844 = vadd.f32 %v812, %v423
  %v845 = vadd.f32 %v813, %v423
  %v846 = vadd.f32 %v814, %v423
  %v847 = vadd.f32 %v815, %v423
  %v848 = vadd.f32 %v816, %v423
  %v849 = vadd.f32 %v817, %v423
  %v850 = vadd.f32 %v818, %v423
  %v851 = vadd.f32 %v819, %v423
  %v852 = vadd.f32 %v820, %v423
  %v853 = vadd.f32 %v821, %v423
  %v854 = vadd.f32 %v822, %v423
  %v855 = vadd.f32 %v823, %v423
  %v856 = vadd.f32 %v824, %v423
  %v857 = vadd.f32 %v825, %v423
  %v858 = vadd.f32 %v826, %v423
  %v859 = vadd.f32 %v827, %v423
  %v860 = vadd.f32 %v828, %v423
  %v861 = vadd.f32 %v829, %v423
  %v862 = vadd.f32 %v830, %v423
  %v863 = vadd.f32 %v831, %v423
  %v864 = vadd.f32 %v832, %v423
  %v865 = vadd.f32 %v833, %v423
  %v866 = vadd.f32 %v834, %v423
  %v867 = vadd.f32 %v835, %v423
  %v868 = vadd.f32 %v836, %v423
  %v869 = vadd.f32 %v837, %v423
  %v870 = vadd.f32 %v838, %v423
  %v871 = vadd.f32 %v839, %v423
  %v872 = vadd.f32 %v840, %v423
  %v873 = vadd.f32 %v841, %v423
  %v874 = vadd.f32 %v842, %v423
  %v875 = vmax.f32 %v425, %v843
  %v876 = vmax.f32 %v426, %v844
  %v877 = vmax.f32 %v427, %v845
  %v878 = vmax.f32 %v428, %v846
  %v879 = vmax.f32 %v429, %v847
  %v880 = vmax.f32 %v430, %v848
  %v881 = vmax.f32 %v431, %v849
  %v882 = vmax.f32 %v432, %v850
  %v883 = vmax.f32 %v433, %v851
  %v884 = vmax.f32 %v434, %v852
  %v885 = vmax.f32 %v435, %v853
  %v886 = vmax.f32 %v436, %v854
  %v887 = vmax.f32 %v437, %v855
  %v888 = vmax.f32 %v438, %v856
  %v889 = vmax.f32 %v439, %v857
  %v890 = vmax.f32 %v440, %v858
  %v891 = vmax.f32 %v441, %v859
  %v892 = vmax.f32 %v442, %v860
  %v893 = vmax.f32 %v443, %v861
  %v894 = vmax.f32 %v444, %v862
  %v895 = vmax.f32 %v445, %v863
  %v896 = vmax.f32 %v446, %v864
  %v897 = vmax.f32 %v447, %v865
  %v898 = vmax.f32 %v448, %v866
  %v899 = vmax.f32 %v449, %v867
  %v900 = vmax.f32 %v450, %v868
  %v901 = vmax.f32 %v451, %v869
  %v902 = vmax.f32 %v452, %v870
  %v903 = vmax.f32 %v453, %v871
  %v904 = vmax.f32 %v454, %v872
  %v905 = vmax.f32 %v455, %v873
  %v906 = vmax.f32 %v456, %v874
  %s907 = scalar_lea.vmem %s0, 512
  %v908 = vld [vmem:[%s907] sm:$0xff]
  %v909 = vld [vmem:[%s907 + $0x8] sm:$0xff]
  %v910 = vld [vmem:[%s907 + $0x10] sm:$0xff]
  %v911 = vld [vmem:[%s907 + $0x18] sm:$0xff]
  %v912 = vld [vmem:[%s907 + $0x20] sm:$0xff]
  %v913 = vld [vmem:[%s907 + $0x28] sm:$0xff]
  %v914 = vld [vmem:[%s907 + $0x30] sm:$0xff]
  %v915 = vld [vmem:[%s907 + $0x38] sm:$0xff]
  %v916 = vld [vmem:[%s907 + $0x40] sm:$0xff]
  %v917 = vld [vmem:[%s907 + $0x48] sm:$0xff]
  %v918 = vld [vmem:[%s907 + $0x50] sm:$0xff]
  %v919 = vld [vmem:[%s907 + $0x58] sm:$0xff]
  %v920 = vld [vmem:[%s907 + $0x60] sm:$0xff]
  %v921 = vld [vmem:[%s907 + $0x68] sm:$0xff]
  %v922 = vld [vmem:[%s907 + $0x70] sm:$0xff]
  %v923 = vld [vmem:[%s907 + $0x78] sm:$0xff]
  %v924 = vld [vmem:[%s907 + $0x80] sm:$0xff]
  %v925 = vld [vmem:[%s907 + $0x88] sm:$0xff]
  %v926 = vld [vmem:[%s907 + $0x90] sm:$0xff]
  %v927 = vld [vmem:[%s907 + $0x98] sm:$0xff]
  %v928 = vld [vmem:[%s907 + $0xa0] sm:$0xff]
  %v929 = vld [vmem:[%s907 + $0xa8] sm:$0xff]
  %v930 = vld [vmem:[%s907 + $0xb0] sm:$0xff]
  %v931 = vld [vmem:[%s907 + $0xb8] sm:$0xff]
  %v932 = vld [vmem:[%s907 + $0xc0] sm:$0xff]
  %v933 = vld [vmem:[%s907 + $0xc8] sm:$0xff]
  %v934 = vld [vmem:[%s907 + $0xd0] sm:$0xff]
  %v935 = vld [vmem:[%s907 + $0xd8] sm:$0xff]
  %v936 = vld [vmem:[%s907 + $0xe0] sm:$0xff]
  %v937 = vld [vmem:[%s907 + $0xe8] sm:$0xff]
  %v938 = vld [vmem:[%s907 + $0xf0] sm:$0xff]
  %v939 = vld [vmem:[%s907 + $0xf8] sm:$0xff]
  %v941 = vsel %vm55, %v908, 0
  %v944 = vsel %vm55, %v909, 0
  %v947 = vsel %vm55, %v910, 0
  %v950 = vsel %vm55, %v911, 0
  %v953 = vsel %vm55, %v912, 0
  %v956 = vsel %vm55, %v913, 0
  %v959 = vsel %vm55, %v914, 0
  %v962 = vsel %vm55, %v915, 0
  %v965 = vsel %vm55, %v916, 0
  %v968 = vsel %vm55, %v917, 0
  %v971 = vsel %vm55, %v918, 0
  %v974 = vsel %vm55, %v919, 0
  %v977 = vsel %vm55, %v920, 0
  %v980 = vsel %vm55, %v921, 0
  %v983 = vsel %vm55, %v922, 0
  %v986 = vsel %vm55, %v923, 0
  %v989 = vsel %vm55, %v924, 0
  %v992 = vsel %vm55, %v925, 0
  %v995 = vsel %vm55, %v926, 0
  %v998 = vsel %vm55, %v927, 0
  %v1001 = vsel %vm55, %v928, 0
  %v1004 = vsel %vm55, %v929, 0
  %v1007 = vsel %vm55, %v930, 0
  %v1010 = vsel %vm55, %v931, 0
  %v1013 = vsel %vm55, %v932, 0
  %v1016 = vsel %vm55, %v933, 0
  %v1019 = vsel %vm55, %v934, 0
  %v1022 = vsel %vm55, %v935, 0
  %v1025 = vsel %vm55, %v936, 0
  %v1028 = vsel %vm55, %v937, 0
  %v1031 = vsel %vm55, %v938, 0
  %v1034 = vsel %vm55, %v939, 0
  %1036 = vmatprep.subr.mxu0 0.0
  %1037 = vmatpush1.msra.mxu0 %v17
  %1038 = vmatprep.subr.mxu0 0.0
  %1039 = vmatpush1.msra.mxu0 %v18
  %1040 = vmatprep.subr.mxu0 0.0
  %1041 = vmatpush1.msra.mxu0 %v19
  %1042 = vmatprep.subr.mxu0 0.0
  %1043 = vmatpush1.msra.mxu0 %v154
  %1044 = vmatprep.subr.mxu0 0.0
  %1045 = vmatpush1.msra.mxu0 0.0
  %1046 = vmatprep.subr.mxu0 0.0
  %1047 = vmatpush1.msra.mxu0 0.0
  %1048 = vmatprep.subr.mxu0 0.0
  %1049 = vmatpush1.msra.mxu0 0.0
  %1050 = vmatprep.subr.mxu0 0.0
  %1051 = vmatpush1.msra.mxu0 0.0
  %1052 = vmatprep.subr.mxu0 0.0
  %1053 = vmatpush1.msra.mxu0 0.0
  %1054 = vmatprep.subr.mxu0 0.0
  %1055 = vmatpush1.msra.mxu0 0.0
  %1056 = vmatprep.subr.mxu0 0.0
  %1057 = vmatpush1.msra.mxu0 0.0
  %1058 = vmatprep.subr.mxu0 0.0
  %1059 = vmatpush1.msra.mxu0 0.0
  %1060 = vmatprep.subr.mxu0 0.0
  %1061 = vmatpush1.msra.mxu0 0.0
  %1062 = vmatprep.subr.mxu0 0.0
  %1063 = vmatpush1.msra.mxu0 0.0
  %1064 = vmatprep.subr.mxu0 0.0
  %1065 = vmatpush1.msra.mxu0 0.0
  %1066 = vmatprep.subr.mxu0 0.0
  %1067 = vmatpush1.msra.mxu0 0.0
  %1068 = vmatprep.subr.mxu0 0.0
  %1069 = vmatpush1.msra.mxu0 0.0
  %1070 = vmatprep.subr.mxu0 0.0
  %1071 = vmatpush1.msra.mxu0 0.0
  %1072 = vmatprep.subr.mxu0 0.0
  %1073 = vmatpush1.msra.mxu0 0.0
  %1074 = vmatprep.subr.mxu0 0.0
  %1075 = vmatpush1.msra.mxu0 0.0
  %1076 = vmatprep.subr.mxu0 0.0
  %1077 = vmatpush1.msra.mxu0 0.0
  %1078 = vmatprep.subr.mxu0 0.0
  %1079 = vmatpush1.msra.mxu0 0.0
  %1080 = vmatprep.subr.mxu0 0.0
  %1081 = vmatpush1.msra.mxu0 0.0
  %1082 = vmatprep.subr.mxu0 0.0
  %1083 = vmatpush1.msra.mxu0 0.0
  %1084 = vmatprep.subr.mxu0 0.0
  %1085 = vmatpush1.msra.mxu0 0.0
  %1086 = vmatprep.subr.mxu0 0.0
  %1087 = vmatpush1.msra.mxu0 0.0
  %1088 = vmatprep.subr.mxu0 0.0
  %1089 = vmatpush1.msra.mxu0 0.0
  %1090 = vmatprep.subr.mxu0 0.0
  %1091 = vmatpush1.msra.mxu0 0.0
  %1092 = vmatprep.subr.mxu0 0.0
  %1093 = vmatpush1.msra.mxu0 0.0
  %1094 = vmatprep.subr.mxu0 0.0
  %1095 = vmatpush1.msra.mxu0 0.0
  %1096 = vmatprep.subr.mxu0 0.0
  %1097 = vmatpush1.msra.mxu0 0.0
  %1098 = vmatprep.subr.mxu0 0.0
  %1099 = vmatpush1.msra.mxu0 0.0
  %1100 = vmatprep.mubr.f32.mxu0 0.0
  %1101 = vmatmul.mubr.f32.gmra.mrb[0].mxu0 %v941
  %v1102 = vpop.f32.mrb[0].mxu0
  %v1103 = vadd.f32 0.0, %v1102
  %v1104 = vpop.f32.mrb[0].mxu0
  %1105 = vmatprep.mubr.f32.mxu0 0.0
  %1106 = vmatmul.mubr.f32.gmra.mrb[0].mxu0 %v944
  %v1107 = vpop.f32.mrb[0].mxu0
  %v1108 = vadd.f32 0.0, %v1107
  %v1109 = vpop.f32.mrb[0].mxu0
  %1110 = vmatprep.mubr.f32.mxu0 0.0
  %1111 = vmatmul.mubr.f32.gmra.mrb[0].mxu0 %v947
  %v1112 = vpop.f32.mrb[0].mxu0
  %v1113 = vadd.f32 0.0, %v1112
  %v1114 = vpop.f32.mrb[0].mxu0
  %1115 = vmatprep.mubr.f32.mxu0 0.0
  %1116 = vmatmul.mubr.f32.gmra.mrb[0].mxu0 %v950
  %v1117 = vpop.f32.mrb[0].mxu0
  %v1118 = vadd.f32 0.0, %v1117
  %v1119 = vpop.f32.mrb[0].mxu0
  %1120 = vmatprep.mubr.f32.mxu0 0.0
  %1121 = vmatmul.mubr.f32.gmra.mrb[0].mxu0 %v953
  %v1122 = vpop.f32.mrb[0].mxu0
  %v1123 = vadd.f32 0.0, %v1122
  %v1124 = vpop.f32.mrb[0].mxu0
  %1125 = vmatprep.mubr.f32.mxu0 0.0
  %1126 = vmatmul.mubr.f32.gmra.mrb[0].mxu0 %v956
  %v1127 = vpop.f32.mrb[0].mxu0
  %v1128 = vadd.f32 0.0, %v1127
  %v1129 = vpop.f32.mrb[0].mxu0
  %1130 = vmatprep.mubr.f32.mxu0 0.0
  %1131 = vmatmul.mubr.f32.gmra.mrb[0].mxu0 %v959
  %v1132 = vpop.f32.mrb[0].mxu0
  %v1133 = vadd.f32 0.0, %v1132
  %v1134 = vpop.f32.mrb[0].mxu0
  %1135 = vmatprep.mubr.f32.mxu0 0.0
  %1136 = vmatmul.mubr.f32.gmra.mrb[0].mxu0 %v962
  %v1137 = vpop.f32.mrb[0].mxu0
  %v1138 = vadd.f32 0.0, %v1137
  %v1139 = vpop.f32.mrb[0].mxu0
  %1140 = vmatprep.mubr.f32.mxu0 0.0
  %1141 = vmatmul.mubr.f32.gmra.mrb[0].mxu0 %v965
  %v1142 = vpop.f32.mrb[0].mxu0
  %v1143 = vadd.f32 0.0, %v1142
  %v1144 = vpop.f32.mrb[0].mxu0
  %1145 = vmatprep.mubr.f32.mxu0 0.0
  %1146 = vmatmul.mubr.f32.gmra.mrb[0].mxu0 %v968
  %v1147 = vpop.f32.mrb[0].mxu0
  %v1148 = vadd.f32 0.0, %v1147
  %v1149 = vpop.f32.mrb[0].mxu0
  %1150 = vmatprep.mubr.f32.mxu0 0.0
  %1151 = vmatmul.mubr.f32.gmra.mrb[0].mxu0 %v971
  %v1152 = vpop.f32.mrb[0].mxu0
  %v1153 = vadd.f32 0.0, %v1152
  %v1154 = vpop.f32.mrb[0].mxu0
  %1155 = vmatprep.mubr.f32.mxu0 0.0
  %1156 = vmatmul.mubr.f32.gmra.mrb[0].mxu0 %v974
  %v1157 = vpop.f32.mrb[0].mxu0
  %v1158 = vadd.f32 0.0, %v1157
  %v1159 = vpop.f32.mrb[0].mxu0
  %1160 = vmatprep.mubr.f32.mxu0 0.0
  %1161 = vmatmul.mubr.f32.gmra.mrb[0].mxu0 %v977
  %v1162 = vpop.f32.mrb[0].mxu0
  %v1163 = vadd.f32 0.0, %v1162
  %v1164 = vpop.f32.mrb[0].mxu0
  %1165 = vmatprep.mubr.f32.mxu0 0.0
  %1166 = vmatmul.mubr.f32.gmra.mrb[0].mxu0 %v980
  %v1167 = vpop.f32.mrb[0].mxu0
  %v1168 = vadd.f32 0.0, %v1167
  %v1169 = vpop.f32.mrb[0].mxu0
  %1170 = vmatprep.mubr.f32.mxu0 0.0
  %1171 = vmatmul.mubr.f32.gmra.mrb[0].mxu0 %v983
  %v1172 = vpop.f32.mrb[0].mxu0
  %v1173 = vadd.f32 0.0, %v1172
  %v1174 = vpop.f32.mrb[0].mxu0
  %1175 = vmatprep.mubr.f32.mxu0 0.0
  %1176 = vmatmul.mubr.f32.gmra.mrb[0].mxu0 %v986
  %v1177 = vpop.f32.mrb[0].mxu0
  %v1178 = vadd.f32 0.0, %v1177
  %v1179 = vpop.f32.mrb[0].mxu0
  %1180 = vmatprep.mubr.f32.mxu0 0.0
  %1181 = vmatmul.mubr.f32.gmra.mrb[0].mxu0 %v989
  %v1182 = vpop.f32.mrb[0].mxu0
  %v1183 = vadd.f32 0.0, %v1182
  %v1184 = vpop.f32.mrb[0].mxu0
  %1185 = vmatprep.mubr.f32.mxu0 0.0
  %1186 = vmatmul.mubr.f32.gmra.mrb[0].mxu0 %v992
  %v1187 = vpop.f32.mrb[0].mxu0
  %v1188 = vadd.f32 0.0, %v1187
  %v1189 = vpop.f32.mrb[0].mxu0
  %1190 = vmatprep.mubr.f32.mxu0 0.0
  %1191 = vmatmul.mubr.f32.gmra.mrb[0].mxu0 %v995
  %v1192 = vpop.f32.mrb[0].mxu0
  %v1193 = vadd.f32 0.0, %v1192
  %v1194 = vpop.f32.mrb[0].mxu0
  %1195 = vmatprep.mubr.f32.mxu0 0.0
  %1196 = vmatmul.mubr.f32.gmra.mrb[0].mxu0 %v998
  %v1197 = vpop.f32.mrb[0].mxu0
  %v1198 = vadd.f32 0.0, %v1197
  %v1199 = vpop.f32.mrb[0].mxu0
  %1200 = vmatprep.mubr.f32.mxu0 0.0
  %1201 = vmatmul.mubr.f32.gmra.mrb[0].mxu0 %v1001
  %v1202 = vpop.f32.mrb[0].mxu0
  %v1203 = vadd.f32 0.0, %v1202
  %v1204 = vpop.f32.mrb[0].mxu0
  %1205 = vmatprep.mubr.f32.mxu0 0.0
  %1206 = vmatmul.mubr.f32.gmra.mrb[0].mxu0 %v1004
  %v1207 = vpop.f32.mrb[0].mxu0
  %v1208 = vadd.f32 0.0, %v1207
  %v1209 = vpop.f32.mrb[0].mxu0
  %1210 = vmatprep.mubr.f32.mxu0 0.0
  %1211 = vmatmul.mubr.f32.gmra.mrb[0].mxu0 %v1007
  %v1212 = vpop.f32.mrb[0].mxu0
  %v1213 = vadd.f32 0.0, %v1212
  %v1214 = vpop.f32.mrb[0].mxu0
  %1215 = vmatprep.mubr.f32.mxu0 0.0
  %1216 = vmatmul.mubr.f32.gmra.mrb[0].mxu0 %v1010
  %v1217 = vpop.f32.mrb[0].mxu0
  %v1218 = vadd.f32 0.0, %v1217
  %v1219 = vpop.f32.mrb[0].mxu0
  %1220 = vmatprep.mubr.f32.mxu0 0.0
  %1221 = vmatmul.mubr.f32.gmra.mrb[0].mxu0 %v1013
  %v1222 = vpop.f32.mrb[0].mxu0
  %v1223 = vadd.f32 0.0, %v1222
  %v1224 = vpop.f32.mrb[0].mxu0
  %1225 = vmatprep.mubr.f32.mxu0 0.0
  %1226 = vmatmul.mubr.f32.gmra.mrb[0].mxu0 %v1016
  %v1227 = vpop.f32.mrb[0].mxu0
  %v1228 = vadd.f32 0.0, %v1227
  %v1229 = vpop.f32.mrb[0].mxu0
  %1230 = vmatprep.mubr.f32.mxu0 0.0
  %1231 = vmatmul.mubr.f32.gmra.mrb[0].mxu0 %v1019
  %v1232 = vpop.f32.mrb[0].mxu0
  %v1233 = vadd.f32 0.0, %v1232
  %v1234 = vpop.f32.mrb[0].mxu0
  %1235 = vmatprep.mubr.f32.mxu0 0.0
  %1236 = vmatmul.mubr.f32.gmra.mrb[0].mxu0 %v1022
  %v1237 = vpop.f32.mrb[0].mxu0
  %v1238 = vadd.f32 0.0, %v1237
  %v1239 = vpop.f32.mrb[0].mxu0
  %1240 = vmatprep.mubr.f32.mxu0 0.0
  %1241 = vmatmul.mubr.f32.gmra.mrb[0].mxu0 %v1025
  %v1242 = vpop.f32.mrb[0].mxu0
  %v1243 = vadd.f32 0.0, %v1242
  %v1244 = vpop.f32.mrb[0].mxu0
  %1245 = vmatprep.mubr.f32.mxu0 0.0
  %1246 = vmatmul.mubr.f32.gmra.mrb[0].mxu0 %v1028
  %v1247 = vpop.f32.mrb[0].mxu0
  %v1248 = vadd.f32 0.0, %v1247
  %v1249 = vpop.f32.mrb[0].mxu0
  %1250 = vmatprep.mubr.f32.mxu0 0.0
  %1251 = vmatmul.mubr.f32.gmra.mrb[0].mxu0 %v1031
  %v1252 = vpop.f32.mrb[0].mxu0
  %v1253 = vadd.f32 0.0, %v1252
  %v1254 = vpop.f32.mrb[0].mxu0
  %1255 = vmatprep.mubr.f32.mxu0 0.0
  %1256 = vmatmul.mubr.f32.gmra.mrb[0].mxu0 %v1034
  %v1257 = vpop.f32.mrb[0].mxu0
  %v1258 = vadd.f32 0.0, %v1257
  %v1259 = vpop.f32.mrb[0].mxu0
  %1260 = vdwg.mxu0
  %v1261 = vmul.f32 %v1103, %v385
  %v1262 = vmul.f32 %v1108, %v385
  %v1263 = vmul.f32 %v1113, %v385
  %v1264 = vmul.f32 %v1118, %v385
  %v1265 = vmul.f32 %v1123, %v385
  %v1266 = vmul.f32 %v1128, %v385
  %v1267 = vmul.f32 %v1133, %v385
  %v1268 = vmul.f32 %v1138, %v385
  %v1269 = vmul.f32 %v1143, %v385
  %v1270 = vmul.f32 %v1148, %v385
  %v1271 = vmul.f32 %v1153, %v385
  %v1272 = vmul.f32 %v1158, %v385
  %v1273 = vmul.f32 %v1163, %v385
  %v1274 = vmul.f32 %v1168, %v385
  %v1275 = vmul.f32 %v1173, %v385
  %v1276 = vmul.f32 %v1178, %v385
  %v1277 = vmul.f32 %v1183, %v385
  %v1278 = vmul.f32 %v1188, %v385
  %v1279 = vmul.f32 %v1193, %v385
  %v1280 = vmul.f32 %v1198, %v385
  %v1281 = vmul.f32 %v1203, %v385
  %v1282 = vmul.f32 %v1208, %v385
  %v1283 = vmul.f32 %v1213, %v385
  %v1284 = vmul.f32 %v1218, %v385
  %v1285 = vmul.f32 %v1223, %v385
  %v1286 = vmul.f32 %v1228, %v385
  %v1287 = vmul.f32 %v1233, %v385
  %v1288 = vmul.f32 %v1238, %v385
  %v1289 = vmul.f32 %v1243, %v385
  %v1290 = vmul.f32 %v1248, %v385
  %v1291 = vmul.f32 %v1253, %v385
  %v1292 = vmul.f32 %v1258, %v385
  %v1293 = vadd.f32 %v1261, %v423
  %v1294 = vadd.f32 %v1262, %v423
  %v1295 = vadd.f32 %v1263, %v423
  %v1296 = vadd.f32 %v1264, %v423
  %v1297 = vadd.f32 %v1265, %v423
  %v1298 = vadd.f32 %v1266, %v423
  %v1299 = vadd.f32 %v1267, %v423
  %v1300 = vadd.f32 %v1268, %v423
  %v1301 = vadd.f32 %v1269, %v423
  %v1302 = vadd.f32 %v1270, %v423
  %v1303 = vadd.f32 %v1271, %v423
  %v1304 = vadd.f32 %v1272, %v423
  %v1305 = vadd.f32 %v1273, %v423
  %v1306 = vadd.f32 %v1274, %v423
  %v1307 = vadd.f32 %v1275, %v423
  %v1308 = vadd.f32 %v1276, %v423
  %v1309 = vadd.f32 %v1277, %v423
  %v1310 = vadd.f32 %v1278, %v423
  %v1311 = vadd.f32 %v1279, %v423
  %v1312 = vadd.f32 %v1280, %v423
  %v1313 = vadd.f32 %v1281, %v423
  %v1314 = vadd.f32 %v1282, %v423
  %v1315 = vadd.f32 %v1283, %v423
  %v1316 = vadd.f32 %v1284, %v423
  %v1317 = vadd.f32 %v1285, %v423
  %v1318 = vadd.f32 %v1286, %v423
  %v1319 = vadd.f32 %v1287, %v423
  %v1320 = vadd.f32 %v1288, %v423
  %v1321 = vadd.f32 %v1289, %v423
  %v1322 = vadd.f32 %v1290, %v423
  %v1323 = vadd.f32 %v1291, %v423
  %v1324 = vadd.f32 %v1292, %v423
  %v1325 = vmax.f32 %v875, %v1293
  %v1326 = vmax.f32 %v876, %v1294
  %v1327 = vmax.f32 %v877, %v1295
  %v1328 = vmax.f32 %v878, %v1296
  %v1329 = vmax.f32 %v879, %v1297
  %v1330 = vmax.f32 %v880, %v1298
  %v1331 = vmax.f32 %v881, %v1299
  %v1332 = vmax.f32 %v882, %v1300
  %v1333 = vmax.f32 %v883, %v1301
  %v1334 = vmax.f32 %v884, %v1302
  %v1335 = vmax.f32 %v885, %v1303
  %v1336 = vmax.f32 %v886, %v1304
  %v1337 = vmax.f32 %v887, %v1305
  %v1338 = vmax.f32 %v888, %v1306
  %v1339 = vmax.f32 %v889, %v1307
  %v1340 = vmax.f32 %v890, %v1308
  %v1341 = vmax.f32 %v891, %v1309
  %v1342 = vmax.f32 %v892, %v1310
  %v1343 = vmax.f32 %v893, %v1311
  %v1344 = vmax.f32 %v894, %v1312
  %v1345 = vmax.f32 %v895, %v1313
  %v1346 = vmax.f32 %v896, %v1314
  %v1347 = vmax.f32 %v897, %v1315
  %v1348 = vmax.f32 %v898, %v1316
  %v1349 = vmax.f32 %v899, %v1317
  %v1350 = vmax.f32 %v900, %v1318
  %v1351 = vmax.f32 %v901, %v1319
  %v1352 = vmax.f32 %v902, %v1320
  %v1353 = vmax.f32 %v903, %v1321
  %v1354 = vmax.f32 %v904, %v1322
  %v1355 = vmax.f32 %v905, %v1323
  %v1356 = vmax.f32 %v906, %v1324
  %s1357 = scalar_lea.vmem %s0, 768
  %v1358 = vld [vmem:[%s1357] sm:$0xff]
  %v1359 = vld [vmem:[%s1357 + $0x8] sm:$0xff]
  %v1360 = vld [vmem:[%s1357 + $0x10] sm:$0xff]
  %v1361 = vld [vmem:[%s1357 + $0x18] sm:$0xff]
  %v1362 = vld [vmem:[%s1357 + $0x20] sm:$0xff]
  %v1363 = vld [vmem:[%s1357 + $0x28] sm:$0xff]
  %v1364 = vld [vmem:[%s1357 + $0x30] sm:$0xff]
  %v1365 = vld [vmem:[%s1357 + $0x38] sm:$0xff]
  %v1366 = vld [vmem:[%s1357 + $0x40] sm:$0xff]
  %v1367 = vld [vmem:[%s1357 + $0x48] sm:$0xff]
  %v1368 = vld [vmem:[%s1357 + $0x50] sm:$0xff]
  %v1369 = vld [vmem:[%s1357 + $0x58] sm:$0xff]
  %v1370 = vld [vmem:[%s1357 + $0x60] sm:$0xff]
  %v1371 = vld [vmem:[%s1357 + $0x68] sm:$0xff]
  %v1372 = vld [vmem:[%s1357 + $0x70] sm:$0xff]
  %v1373 = vld [vmem:[%s1357 + $0x78] sm:$0xff]
  %v1374 = vld [vmem:[%s1357 + $0x80] sm:$0xff]
  %v1375 = vld [vmem:[%s1357 + $0x88] sm:$0xff]
  %v1376 = vld [vmem:[%s1357 + $0x90] sm:$0xff]
  %v1377 = vld [vmem:[%s1357 + $0x98] sm:$0xff]
  %v1378 = vld [vmem:[%s1357 + $0xa0] sm:$0xff]
  %v1379 = vld [vmem:[%s1357 + $0xa8] sm:$0xff]
  %v1380 = vld [vmem:[%s1357 + $0xb0] sm:$0xff]
  %v1381 = vld [vmem:[%s1357 + $0xb8] sm:$0xff]
  %v1382 = vld [vmem:[%s1357 + $0xc0] sm:$0xff]
  %v1383 = vld [vmem:[%s1357 + $0xc8] sm:$0xff]
  %v1384 = vld [vmem:[%s1357 + $0xd0] sm:$0xff]
  %v1385 = vld [vmem:[%s1357 + $0xd8] sm:$0xff]
  %v1386 = vld [vmem:[%s1357 + $0xe0] sm:$0xff]
  %v1387 = vld [vmem:[%s1357 + $0xe8] sm:$0xff]
  %v1388 = vld [vmem:[%s1357 + $0xf0] sm:$0xff]
  %v1389 = vld [vmem:[%s1357 + $0xf8] sm:$0xff]
  %v1391 = vsel %vm55, %v1358, 0
  %v1394 = vsel %vm55, %v1359, 0
  %v1397 = vsel %vm55, %v1360, 0
  %v1400 = vsel %vm55, %v1361, 0
  %v1403 = vsel %vm55, %v1362, 0
  %v1406 = vsel %vm55, %v1363, 0
  %v1409 = vsel %vm55, %v1364, 0
  %v1412 = vsel %vm55, %v1365, 0
  %v1415 = vsel %vm55, %v1366, 0
  %v1418 = vsel %vm55, %v1367, 0
  %v1421 = vsel %vm55, %v1368, 0
  %v1424 = vsel %vm55, %v1369, 0
  %v1427 = vsel %vm55, %v1370, 0
  %v1430 = vsel %vm55, %v1371, 0
  %v1433 = vsel %vm55, %v1372, 0
  %v1436 = vsel %vm55, %v1373, 0
  %v1439 = vsel %vm55, %v1374, 0
  %v1442 = vsel %vm55, %v1375, 0
  %v1445 = vsel %vm55, %v1376, 0
  %v1448 = vsel %vm55, %v1377, 0
  %v1451 = vsel %vm55, %v1378, 0
  %v1454 = vsel %vm55, %v1379, 0
  %v1457 = vsel %vm55, %v1380, 0
  %v1460 = vsel %vm55, %v1381, 0
  %v1463 = vsel %vm55, %v1382, 0
  %v1466 = vsel %vm55, %v1383, 0
  %v1469 = vsel %vm55, %v1384, 0
  %v1472 = vsel %vm55, %v1385, 0
  %v1475 = vsel %vm55, %v1386, 0
  %v1478 = vsel %vm55, %v1387, 0
  %v1481 = vsel %vm55, %v1388, 0
  %v1484 = vsel %vm55, %v1389, 0
  %1486 = vmatprep.subr.mxu0 0.0
  %1487 = vmatpush1.msra.mxu0 %v17
  %1488 = vmatprep.subr.mxu0 0.0
  %1489 = vmatpush1.msra.mxu0 %v18
  %1490 = vmatprep.subr.mxu0 0.0
  %1491 = vmatpush1.msra.mxu0 %v19
  %1492 = vmatprep.subr.mxu0 0.0
  %1493 = vmatpush1.msra.mxu0 %v154
  %1494 = vmatprep.subr.mxu0 0.0
  %1495 = vmatpush1.msra.mxu0 0.0
  %1496 = vmatprep.subr.mxu0 0.0
  %1497 = vmatpush1.msra.mxu0 0.0
  %1498 = vmatprep.subr.mxu0 0.0
  %1499 = vmatpush1.msra.mxu0 0.0
  %1500 = vmatprep.subr.mxu0 0.0
  %1501 = vmatpush1.msra.mxu0 0.0
  %1502 = vmatprep.subr.mxu0 0.0
  %1503 = vmatpush1.msra.mxu0 0.0
  %1504 = vmatprep.subr.mxu0 0.0
  %1505 = vmatpush1.msra.mxu0 0.0
  %1506 = vmatprep.subr.mxu0 0.0
  %1507 = vmatpush1.msra.mxu0 0.0
  %1508 = vmatprep.subr.mxu0 0.0
  %1509 = vmatpush1.msra.mxu0 0.0
  %1510 = vmatprep.subr.mxu0 0.0
  %1511 = vmatpush1.msra.mxu0 0.0
  %1512 = vmatprep.subr.mxu0 0.0
  %1513 = vmatpush1.msra.mxu0 0.0
  %1514 = vmatprep.subr.mxu0 0.0
  %1515 = vmatpush1.msra.mxu0 0.0
  %1516 = vmatprep.subr.mxu0 0.0
  %1517 = vmatpush1.msra.mxu0 0.0
  %1518 = vmatprep.subr.mxu0 0.0
  %1519 = vmatpush1.msra.mxu0 0.0
  %1520 = vmatprep.subr.mxu0 0.0
  %1521 = vmatpush1.msra.mxu0 0.0
  %1522 = vmatprep.subr.mxu0 0.0
  %1523 = vmatpush1.msra.mxu0 0.0
  %1524 = vmatprep.subr.mxu0 0.0
  %1525 = vmatpush1.msra.mxu0 0.0
  %1526 = vmatprep.subr.mxu0 0.0
  %1527 = vmatpush1.msra.mxu0 0.0
  %1528 = vmatprep.subr.mxu0 0.0
  %1529 = vmatpush1.msra.mxu0 0.0
  %1530 = vmatprep.subr.mxu0 0.0
  %1531 = vmatpush1.msra.mxu0 0.0
  %1532 = vmatprep.subr.mxu0 0.0
  %1533 = vmatpush1.msra.mxu0 0.0
  %1534 = vmatprep.subr.mxu0 0.0
  %1535 = vmatpush1.msra.mxu0 0.0
  %1536 = vmatprep.subr.mxu0 0.0
  %1537 = vmatpush1.msra.mxu0 0.0
  %1538 = vmatprep.subr.mxu0 0.0
  %1539 = vmatpush1.msra.mxu0 0.0
  %1540 = vmatprep.subr.mxu0 0.0
  %1541 = vmatpush1.msra.mxu0 0.0
  %1542 = vmatprep.subr.mxu0 0.0
  %1543 = vmatpush1.msra.mxu0 0.0
  %1544 = vmatprep.subr.mxu0 0.0
  %1545 = vmatpush1.msra.mxu0 0.0
  %1546 = vmatprep.subr.mxu0 0.0
  %1547 = vmatpush1.msra.mxu0 0.0
  %1548 = vmatprep.subr.mxu0 0.0
  %1549 = vmatpush1.msra.mxu0 0.0
  %1550 = vmatprep.mubr.f32.mxu0 0.0
  %1551 = vmatmul.mubr.f32.gmra.mrb[0].mxu0 %v1391
  %v1552 = vpop.f32.mrb[0].mxu0
  %v1553 = vadd.f32 0.0, %v1552
  %v1554 = vpop.f32.mrb[0].mxu0
  %1555 = vmatprep.mubr.f32.mxu0 0.0
  %1556 = vmatmul.mubr.f32.gmra.mrb[0].mxu0 %v1394
  %v1557 = vpop.f32.mrb[0].mxu0
  %v1558 = vadd.f32 0.0, %v1557
  %v1559 = vpop.f32.mrb[0].mxu0
  %1560 = vmatprep.mubr.f32.mxu0 0.0
  %1561 = vmatmul.mubr.f32.gmra.mrb[0].mxu0 %v1397
  %v1562 = vpop.f32.mrb[0].mxu0
  %v1563 = vadd.f32 0.0, %v1562
  %v1564 = vpop.f32.mrb[0].mxu0
  %1565 = vmatprep.mubr.f32.mxu0 0.0
  %1566 = vmatmul.mubr.f32.gmra.mrb[0].mxu0 %v1400
  %v1567 = vpop.f32.mrb[0].mxu0
  %v1568 = vadd.f32 0.0, %v1567
  %v1569 = vpop.f32.mrb[0].mxu0
  %1570 = vmatprep.mubr.f32.mxu0 0.0
  %1571 = vmatmul.mubr.f32.gmra.mrb[0].mxu0 %v1403
  %v1572 = vpop.f32.mrb[0].mxu0
  %v1573 = vadd.f32 0.0, %v1572
  %v1574 = vpop.f32.mrb[0].mxu0
  %1575 = vmatprep.mubr.f32.mxu0 0.0
  %1576 = vmatmul.mubr.f32.gmra.mrb[0].mxu0 %v1406
  %v1577 = vpop.f32.mrb[0].mxu0
  %v1578 = vadd.f32 0.0, %v1577
  %v1579 = vpop.f32.mrb[0].mxu0
  %1580 = vmatprep.mubr.f32.mxu0 0.0
  %1581 = vmatmul.mubr.f32.gmra.mrb[0].mxu0 %v1409
  %v1582 = vpop.f32.mrb[0].mxu0
  %v1583 = vadd.f32 0.0, %v1582
  %v1584 = vpop.f32.mrb[0].mxu0
  %1585 = vmatprep.mubr.f32.mxu0 0.0
  %1586 = vmatmul.mubr.f32.gmra.mrb[0].mxu0 %v1412
  %v1587 = vpop.f32.mrb[0].mxu0
  %v1588 = vadd.f32 0.0, %v1587
  %v1589 = vpop.f32.mrb[0].mxu0
  %1590 = vmatprep.mubr.f32.mxu0 0.0
  %1591 = vmatmul.mubr.f32.gmra.mrb[0].mxu0 %v1415
  %v1592 = vpop.f32.mrb[0].mxu0
  %v1593 = vadd.f32 0.0, %v1592
  %v1594 = vpop.f32.mrb[0].mxu0
  %1595 = vmatprep.mubr.f32.mxu0 0.0
  %1596 = vmatmul.mubr.f32.gmra.mrb[0].mxu0 %v1418
  %v1597 = vpop.f32.mrb[0].mxu0
  %v1598 = vadd.f32 0.0, %v1597
  %v1599 = vpop.f32.mrb[0].mxu0
  %1600 = vmatprep.mubr.f32.mxu0 0.0
  %1601 = vmatmul.mubr.f32.gmra.mrb[0].mxu0 %v1421
  %v1602 = vpop.f32.mrb[0].mxu0
  %v1603 = vadd.f32 0.0, %v1602
  %v1604 = vpop.f32.mrb[0].mxu0
  %1605 = vmatprep.mubr.f32.mxu0 0.0
  %1606 = vmatmul.mubr.f32.gmra.mrb[0].mxu0 %v1424
  %v1607 = vpop.f32.mrb[0].mxu0
  %v1608 = vadd.f32 0.0, %v1607
  %v1609 = vpop.f32.mrb[0].mxu0
  %1610 = vmatprep.mubr.f32.mxu0 0.0
  %1611 = vmatmul.mubr.f32.gmra.mrb[0].mxu0 %v1427
  %v1612 = vpop.f32.mrb[0].mxu0
  %v1613 = vadd.f32 0.0, %v1612
  %v1614 = vpop.f32.mrb[0].mxu0
  %1615 = vmatprep.mubr.f32.mxu0 0.0
  %1616 = vmatmul.mubr.f32.gmra.mrb[0].mxu0 %v1430
  %v1617 = vpop.f32.mrb[0].mxu0
  %v1618 = vadd.f32 0.0, %v1617
  %v1619 = vpop.f32.mrb[0].mxu0
  %1620 = vmatprep.mubr.f32.mxu0 0.0
  %1621 = vmatmul.mubr.f32.gmra.mrb[0].mxu0 %v1433
  %v1622 = vpop.f32.mrb[0].mxu0
  %v1623 = vadd.f32 0.0, %v1622
  %v1624 = vpop.f32.mrb[0].mxu0
  %1625 = vmatprep.mubr.f32.mxu0 0.0
  %1626 = vmatmul.mubr.f32.gmra.mrb[0].mxu0 %v1436
  %v1627 = vpop.f32.mrb[0].mxu0
  %v1628 = vadd.f32 0.0, %v1627
  %v1629 = vpop.f32.mrb[0].mxu0
  %1630 = vmatprep.mubr.f32.mxu0 0.0
  %1631 = vmatmul.mubr.f32.gmra.mrb[0].mxu0 %v1439
  %v1632 = vpop.f32.mrb[0].mxu0
  %v1633 = vadd.f32 0.0, %v1632
  %v1634 = vpop.f32.mrb[0].mxu0
  %1635 = vmatprep.mubr.f32.mxu0 0.0
  %1636 = vmatmul.mubr.f32.gmra.mrb[0].mxu0 %v1442
  %v1637 = vpop.f32.mrb[0].mxu0
  %v1638 = vadd.f32 0.0, %v1637
  %v1639 = vpop.f32.mrb[0].mxu0
  %1640 = vmatprep.mubr.f32.mxu0 0.0
  %1641 = vmatmul.mubr.f32.gmra.mrb[0].mxu0 %v1445
  %v1642 = vpop.f32.mrb[0].mxu0
  %v1643 = vadd.f32 0.0, %v1642
  %v1644 = vpop.f32.mrb[0].mxu0
  %1645 = vmatprep.mubr.f32.mxu0 0.0
  %1646 = vmatmul.mubr.f32.gmra.mrb[0].mxu0 %v1448
  %v1647 = vpop.f32.mrb[0].mxu0
  %v1648 = vadd.f32 0.0, %v1647
  %v1649 = vpop.f32.mrb[0].mxu0
  %1650 = vmatprep.mubr.f32.mxu0 0.0
  %1651 = vmatmul.mubr.f32.gmra.mrb[0].mxu0 %v1451
  %v1652 = vpop.f32.mrb[0].mxu0
  %v1653 = vadd.f32 0.0, %v1652
  %v1654 = vpop.f32.mrb[0].mxu0
  %1655 = vmatprep.mubr.f32.mxu0 0.0
  %1656 = vmatmul.mubr.f32.gmra.mrb[0].mxu0 %v1454
  %v1657 = vpop.f32.mrb[0].mxu0
  %v1658 = vadd.f32 0.0, %v1657
  %v1659 = vpop.f32.mrb[0].mxu0
  %1660 = vmatprep.mubr.f32.mxu0 0.0
  %1661 = vmatmul.mubr.f32.gmra.mrb[0].mxu0 %v1457
  %v1662 = vpop.f32.mrb[0].mxu0
  %v1663 = vadd.f32 0.0, %v1662
  %v1664 = vpop.f32.mrb[0].mxu0
  %1665 = vmatprep.mubr.f32.mxu0 0.0
  %1666 = vmatmul.mubr.f32.gmra.mrb[0].mxu0 %v1460
  %v1667 = vpop.f32.mrb[0].mxu0
  %v1668 = vadd.f32 0.0, %v1667
  %v1669 = vpop.f32.mrb[0].mxu0
  %1670 = vmatprep.mubr.f32.mxu0 0.0
  %1671 = vmatmul.mubr.f32.gmra.mrb[0].mxu0 %v1463
  %v1672 = vpop.f32.mrb[0].mxu0
  %v1673 = vadd.f32 0.0, %v1672
  %v1674 = vpop.f32.mrb[0].mxu0
  %1675 = vmatprep.mubr.f32.mxu0 0.0
  %1676 = vmatmul.mubr.f32.gmra.mrb[0].mxu0 %v1466
  %v1677 = vpop.f32.mrb[0].mxu0
  %v1678 = vadd.f32 0.0, %v1677
  %v1679 = vpop.f32.mrb[0].mxu0
  %1680 = vmatprep.mubr.f32.mxu0 0.0
  %1681 = vmatmul.mubr.f32.gmra.mrb[0].mxu0 %v1469
  %v1682 = vpop.f32.mrb[0].mxu0
  %v1683 = vadd.f32 0.0, %v1682
  %v1684 = vpop.f32.mrb[0].mxu0
  %1685 = vmatprep.mubr.f32.mxu0 0.0
  %1686 = vmatmul.mubr.f32.gmra.mrb[0].mxu0 %v1472
  %v1687 = vpop.f32.mrb[0].mxu0
  %v1688 = vadd.f32 0.0, %v1687
  %v1689 = vpop.f32.mrb[0].mxu0
  %1690 = vmatprep.mubr.f32.mxu0 0.0
  %1691 = vmatmul.mubr.f32.gmra.mrb[0].mxu0 %v1475
  %v1692 = vpop.f32.mrb[0].mxu0
  %v1693 = vadd.f32 0.0, %v1692
  %v1694 = vpop.f32.mrb[0].mxu0
  %1695 = vmatprep.mubr.f32.mxu0 0.0
  %1696 = vmatmul.mubr.f32.gmra.mrb[0].mxu0 %v1478
  %v1697 = vpop.f32.mrb[0].mxu0
  %v1698 = vadd.f32 0.0, %v1697
  %v1699 = vpop.f32.mrb[0].mxu0
  %1700 = vmatprep.mubr.f32.mxu0 0.0
  %1701 = vmatmul.mubr.f32.gmra.mrb[0].mxu0 %v1481
  %v1702 = vpop.f32.mrb[0].mxu0
  %v1703 = vadd.f32 0.0, %v1702
  %v1704 = vpop.f32.mrb[0].mxu0
  %1705 = vmatprep.mubr.f32.mxu0 0.0
  %1706 = vmatmul.mubr.f32.gmra.mrb[0].mxu0 %v1484
  %v1707 = vpop.f32.mrb[0].mxu0
  %v1708 = vadd.f32 0.0, %v1707
  %v1709 = vpop.f32.mrb[0].mxu0
  %1710 = vdwg.mxu0
  %v1711 = vmul.f32 %v1553, %v385
  %v1712 = vmul.f32 %v1558, %v385
  %v1713 = vmul.f32 %v1563, %v385
  %v1714 = vmul.f32 %v1568, %v385
  %v1715 = vmul.f32 %v1573, %v385
  %v1716 = vmul.f32 %v1578, %v385
  %v1717 = vmul.f32 %v1583, %v385
  %v1718 = vmul.f32 %v1588, %v385
  %v1719 = vmul.f32 %v1593, %v385
  %v1720 = vmul.f32 %v1598, %v385
  %v1721 = vmul.f32 %v1603, %v385
  %v1722 = vmul.f32 %v1608, %v385
  %v1723 = vmul.f32 %v1613, %v385
  %v1724 = vmul.f32 %v1618, %v385
  %v1725 = vmul.f32 %v1623, %v385
  %v1726 = vmul.f32 %v1628, %v385
  %v1727 = vmul.f32 %v1633, %v385
  %v1728 = vmul.f32 %v1638, %v385
  %v1729 = vmul.f32 %v1643, %v385
  %v1730 = vmul.f32 %v1648, %v385
  %v1731 = vmul.f32 %v1653, %v385
  %v1732 = vmul.f32 %v1658, %v385
  %v1733 = vmul.f32 %v1663, %v385
  %v1734 = vmul.f32 %v1668, %v385
  %v1735 = vmul.f32 %v1673, %v385
  %v1736 = vmul.f32 %v1678, %v385
  %v1737 = vmul.f32 %v1683, %v385
  %v1738 = vmul.f32 %v1688, %v385
  %v1739 = vmul.f32 %v1693, %v385
  %v1740 = vmul.f32 %v1698, %v385
  %v1741 = vmul.f32 %v1703, %v385
  %v1742 = vmul.f32 %v1708, %v385
  %v1743 = vadd.f32 %v1711, %v423
  %v1744 = vadd.f32 %v1712, %v423
  %v1745 = vadd.f32 %v1713, %v423
  %v1746 = vadd.f32 %v1714, %v423
  %v1747 = vadd.f32 %v1715, %v423
  %v1748 = vadd.f32 %v1716, %v423
  %v1749 = vadd.f32 %v1717, %v423
  %v1750 = vadd.f32 %v1718, %v423
  %v1751 = vadd.f32 %v1719, %v423
  %v1752 = vadd.f32 %v1720, %v423
  %v1753 = vadd.f32 %v1721, %v423
  %v1754 = vadd.f32 %v1722, %v423
  %v1755 = vadd.f32 %v1723, %v423
  %v1756 = vadd.f32 %v1724, %v423
  %v1757 = vadd.f32 %v1725, %v423
  %v1758 = vadd.f32 %v1726, %v423
  %v1759 = vadd.f32 %v1727, %v423
  %v1760 = vadd.f32 %v1728, %v423
  %v1761 = vadd.f32 %v1729, %v423
  %v1762 = vadd.f32 %v1730, %v423
  %v1763 = vadd.f32 %v1731, %v423
  %v1764 = vadd.f32 %v1732, %v423
  %v1765 = vadd.f32 %v1733, %v423
  %v1766 = vadd.f32 %v1734, %v423
  %v1767 = vadd.f32 %v1735, %v423
  %v1768 = vadd.f32 %v1736, %v423
  %v1769 = vadd.f32 %v1737, %v423
  %v1770 = vadd.f32 %v1738, %v423
  %v1771 = vadd.f32 %v1739, %v423
  %v1772 = vadd.f32 %v1740, %v423
  %v1773 = vadd.f32 %v1741, %v423
  %v1774 = vadd.f32 %v1742, %v423
  %v1775 = vmax.f32 %v1325, %v1743
  %v1776 = vmax.f32 %v1326, %v1744
  %v1777 = vmax.f32 %v1327, %v1745
  %v1778 = vmax.f32 %v1328, %v1746
  %v1779 = vmax.f32 %v1329, %v1747
  %v1780 = vmax.f32 %v1330, %v1748
  %v1781 = vmax.f32 %v1331, %v1749
  %v1782 = vmax.f32 %v1332, %v1750
  %v1783 = vmax.f32 %v1333, %v1751
  %v1784 = vmax.f32 %v1334, %v1752
  %v1785 = vmax.f32 %v1335, %v1753
  %v1786 = vmax.f32 %v1336, %v1754
  %v1787 = vmax.f32 %v1337, %v1755
  %v1788 = vmax.f32 %v1338, %v1756
  %v1789 = vmax.f32 %v1339, %v1757
  %v1790 = vmax.f32 %v1340, %v1758
  %v1791 = vmax.f32 %v1341, %v1759
  %v1792 = vmax.f32 %v1342, %v1760
  %v1793 = vmax.f32 %v1343, %v1761
  %v1794 = vmax.f32 %v1344, %v1762
  %v1795 = vmax.f32 %v1345, %v1763
  %v1796 = vmax.f32 %v1346, %v1764
  %v1797 = vmax.f32 %v1347, %v1765
  %v1798 = vmax.f32 %v1348, %v1766
  %v1799 = vmax.f32 %v1349, %v1767
  %v1800 = vmax.f32 %v1350, %v1768
  %v1801 = vmax.f32 %v1351, %v1769
  %v1802 = vmax.f32 %v1352, %v1770
  %v1803 = vmax.f32 %v1353, %v1771
  %v1804 = vmax.f32 %v1354, %v1772
  %v1805 = vmax.f32 %v1355, %v1773
  %v1806 = vmax.f32 %v1356, %v1774
  %v1807 = vmax.f32 %v1775, 0.0
  %v1808 = vmax.f32 %v1776, 0.0
  %v1809 = vmax.f32 %v1777, 0.0
  %v1810 = vmax.f32 %v1778, 0.0
  %v1811 = vmax.f32 %v1779, 0.0
  %v1812 = vmax.f32 %v1780, 0.0
  %v1813 = vmax.f32 %v1781, 0.0
  %v1814 = vmax.f32 %v1782, 0.0
  %v1815 = vmax.f32 %v1783, 0.0
  %v1816 = vmax.f32 %v1784, 0.0
  %v1817 = vmax.f32 %v1785, 0.0
  %v1818 = vmax.f32 %v1786, 0.0
  %v1819 = vmax.f32 %v1787, 0.0
  %v1820 = vmax.f32 %v1788, 0.0
  %v1821 = vmax.f32 %v1789, 0.0
  %v1822 = vmax.f32 %v1790, 0.0
  %v1823 = vmax.f32 %v1791, 0.0
  %v1824 = vmax.f32 %v1792, 0.0
  %v1825 = vmax.f32 %v1793, 0.0
  %v1826 = vmax.f32 %v1794, 0.0
  %v1827 = vmax.f32 %v1795, 0.0
  %v1828 = vmax.f32 %v1796, 0.0
  %v1829 = vmax.f32 %v1797, 0.0
  %v1830 = vmax.f32 %v1798, 0.0
  %v1831 = vmax.f32 %v1799, 0.0
  %v1832 = vmax.f32 %v1800, 0.0
  %v1833 = vmax.f32 %v1801, 0.0
  %v1834 = vmax.f32 %v1802, 0.0
  %v1835 = vmax.f32 %v1803, 0.0
  %v1836 = vmax.f32 %v1804, 0.0
  %v1837 = vmax.f32 %v1805, 0.0
  %v1838 = vmax.f32 %v1806, 0.0
  %vm1839 = vcmask 523264
  %1840 = vst.msk [vmem:[%s4] sm:$0xff] %vm1839, %v1807
  %1841 = vst.msk [vmem:[%s4 + $0x8] sm:$0xff] %vm1839, %v1808
  %1842 = vst.msk [vmem:[%s4 + $0x10] sm:$0xff] %vm1839, %v1809
  %1843 = vst.msk [vmem:[%s4 + $0x18] sm:$0xff] %vm1839, %v1810
  %1844 = vst.msk [vmem:[%s4 + $0x20] sm:$0xff] %vm1839, %v1811
  %1845 = vst.msk [vmem:[%s4 + $0x28] sm:$0xff] %vm1839, %v1812
  %1846 = vst.msk [vmem:[%s4 + $0x30] sm:$0xff] %vm1839, %v1813
  %1847 = vst.msk [vmem:[%s4 + $0x38] sm:$0xff] %vm1839, %v1814
  %1848 = vst.msk [vmem:[%s4 + $0x40] sm:$0xff] %vm1839, %v1815
  %1849 = vst.msk [vmem:[%s4 + $0x48] sm:$0xff] %vm1839, %v1816
  %1850 = vst.msk [vmem:[%s4 + $0x50] sm:$0xff] %vm1839, %v1817
  %1851 = vst.msk [vmem:[%s4 + $0x58] sm:$0xff] %vm1839, %v1818
  %1852 = vst.msk [vmem:[%s4 + $0x60] sm:$0xff] %vm1839, %v1819
  %1853 = vst.msk [vmem:[%s4 + $0x68] sm:$0xff] %vm1839, %v1820
  %1854 = vst.msk [vmem:[%s4 + $0x70] sm:$0xff] %vm1839, %v1821
  %1855 = vst.msk [vmem:[%s4 + $0x78] sm:$0xff] %vm1839, %v1822
  %1856 = vst.msk [vmem:[%s4 + $0x80] sm:$0xff] %vm1839, %v1823
  %1857 = vst.msk [vmem:[%s4 + $0x88] sm:$0xff] %vm1839, %v1824
  %1858 = vst.msk [vmem:[%s4 + $0x90] sm:$0xff] %vm1839, %v1825
  %1859 = vst.msk [vmem:[%s4 + $0x98] sm:$0xff] %vm1839, %v1826
  %1860 = vst.msk [vmem:[%s4 + $0xa0] sm:$0xff] %vm1839, %v1827
  %1861 = vst.msk [vmem:[%s4 + $0xa8] sm:$0xff] %vm1839, %v1828
  %1862 = vst.msk [vmem:[%s4 + $0xb0] sm:$0xff] %vm1839, %v1829
  %1863 = vst.msk [vmem:[%s4 + $0xb8] sm:$0xff] %vm1839, %v1830
  %1864 = vst.msk [vmem:[%s4 + $0xc0] sm:$0xff] %vm1839, %v1831
  %1865 = vst.msk [vmem:[%s4 + $0xc8] sm:$0xff] %vm1839, %v1832
  %1866 = vst.msk [vmem:[%s4 + $0xd0] sm:$0xff] %vm1839, %v1833
  %1867 = vst.msk [vmem:[%s4 + $0xd8] sm:$0xff] %vm1839, %v1834
  %1868 = vst.msk [vmem:[%s4 + $0xe0] sm:$0xff] %vm1839, %v1835
  %1869 = vst.msk [vmem:[%s4 + $0xe8] sm:$0xff] %vm1839, %v1836
  %1870 = vst.msk [vmem:[%s4 + $0xf0] sm:$0xff] %vm1839, %v1837
  %1871 = vst.msk [vmem:[%s4 + $0xf8] sm:$0xff] %vm1839, %v1838
  // Predicated region
  $region18: #{crnn_forward.9} parent=0 // pred_check
    _
  $region19: #{crnn_forward.9} parent=0 // pred_check_branch
    %1873 = sbr.rel (0) target = $region21
  $region20: #{crnn_forward.9} parent=0 // pred_region
    _
  $region21: #{crnn_forward.9} parent=0 // pred_fallthru
    _
  // Predicated region
  $region22: #{crnn_forward.9} parent=0 // pred_check
    _
  $region23: #{crnn_forward.9} parent=0 // pred_check_branch
    %1875 = sbr.rel (0) target = $region25
  $region24: #{crnn_forward.9} parent=0 // pred_region
    _
  $region25: #{crnn_forward.9} parent=0 // pred_fallthru
    _

// kernel: crnn_forward.10
$region0: #{crnn_forward.10}
  #allocation0 [shape = 'u32[]', space=smem, size = 0x4, offset = 0x4, fixed_abs, tag = 'smem constant byte address 0x4 - core index']
  #allocation1 [shape = 'u32[144,128]{1,0:T(1,128)}', space=vmem, size = 0x12000, scoped, tag = 'internal scratch']
  %s0 = inlined_call_operand.vmem [shape: f32[4,64,576], index: 0, kind: input, shape index: {}]
  %s1 = inlined_call_operand.vmem [shape: f32[576,128], index: 1, kind: input, shape index: {}]
  %s2 = inlined_call_operand.vmem [shape: f32[1,128], index: 2, kind: input, shape index: {}]
  %s3 = inlined_call_operand.vmem [shape: f32[1,128], index: 3, kind: input, shape index: {}]
  %s4 = inlined_call_operand.vmem [shape: f32[64,128], index: 4, kind: output, shape index: {}]
  %s5 = sld [smem:[#allocation0]]
  $region26: #{crnn_forward.10} parent=0
    _
  %s7 = ssub.s32 1, %s5
  %s8 = scalar_select 0, %s7, %s5
  // Predicated region
  $region2: #{crnn_forward.10} parent=0 // pred_check
    _
  $region3: #{crnn_forward.10} parent=0 // pred_check_branch
    %10 = sbr.rel (0) target = $region5
  $region4: #{crnn_forward.10} parent=0 // pred_region
    _
  $region5: #{crnn_forward.10} parent=0 // pred_fallthru
    _
  // Predicated region
  $region6: #{crnn_forward.10} parent=0 // pred_check
    _
  $region7: #{crnn_forward.10} parent=0 // pred_check_branch
    %12 = sbr.rel (0) target = $region9
  $region8: #{crnn_forward.10} parent=0 // pred_region
    _
  $region9: #{crnn_forward.10} parent=0 // pred_fallthru
    _
  // Predicated region
  $region10: #{crnn_forward.10} parent=0 // pred_check
    _
  $region11: #{crnn_forward.10} parent=0 // pred_check_branch
    %14 = sbr.rel (0) target = $region13
  $region12: #{crnn_forward.10} parent=0 // pred_region
    _
  $region13: #{crnn_forward.10} parent=0 // pred_fallthru
    _
  // Predicated region
  $region14: #{crnn_forward.10} parent=0 // pred_check
    _
  $region15: #{crnn_forward.10} parent=0 // pred_check_branch
    %16 = sbr.rel (0) target = $region17
  $region16: #{crnn_forward.10} parent=0 // pred_region
    _
  $region17: #{crnn_forward.10} parent=0 // pred_fallthru
    _
  %v17 = vld [vmem:[%s1] sm:$0xff]
  %v18 = vld [vmem:[%s1 + $0x8] sm:$0xff]
  %v19 = vld [vmem:[%s1 + $0x10] sm:$0xff]
  %v20 = vld [vmem:[%s1 + $0x18] sm:$0xff]
  %v21 = vld [vmem:[%s1 + $0x20] sm:$0xff]
  %v22 = vld [vmem:[%s1 + $0x28] sm:$0xff]
  %v23 = vld [vmem:[%s1 + $0x30] sm:$0xff]
  %v24 = vld [vmem:[%s1 + $0x38] sm:$0xff]
  %v25 = vld [vmem:[%s1 + $0x40] sm:$0xff]
  %v26 = vld [vmem:[%s1 + $0x48] sm:$0xff]
  %v27 = vld [vmem:[%s1 + $0x50] sm:$0xff]
  %v28 = vld [vmem:[%s1 + $0x58] sm:$0xff]
  %v29 = vld [vmem:[%s1 + $0x60] sm:$0xff]
  %v30 = vld [vmem:[%s1 + $0x68] sm:$0xff]
  %v31 = vld [vmem:[%s1 + $0x70] sm:$0xff]
  %v32 = vld [vmem:[%s1 + $0x78] sm:$0xff]
  %v33 = vld [vmem:[%s1 + $0x80] sm:$0xff]
  %v34 = vld [vmem:[%s1 + $0x88] sm:$0xff]
  %v35 = vld [vmem:[%s1 + $0x90] sm:$0xff]
  %v36 = vld [vmem:[%s1 + $0x98] sm:$0xff]
  %v37 = vld [vmem:[%s1 + $0xa0] sm:$0xff]
  %v38 = vld [vmem:[%s1 + $0xa8] sm:$0xff]
  %v39 = vld [vmem:[%s1 + $0xb0] sm:$0xff]
  %v40 = vld [vmem:[%s1 + $0xb8] sm:$0xff]
  %v41 = vld [vmem:[%s1 + $0xc0] sm:$0xff]
  %v42 = vld [vmem:[%s1 + $0xc8] sm:$0xff]
  %v43 = vld [vmem:[%s1 + $0xd0] sm:$0xff]
  %v44 = vld [vmem:[%s1 + $0xd8] sm:$0xff]
  %v45 = vld [vmem:[%s1 + $0xe0] sm:$0xff]
  %v46 = vld [vmem:[%s1 + $0xe8] sm:$0xff]
  %v47 = vld [vmem:[%s1 + $0xf0] sm:$0xff]
  %v48 = vld [vmem:[%s1 + $0xf8] sm:$0xff]
  %v49 = vld [vmem:[%s1 + $0x100] sm:$0xff]
  %v50 = vld [vmem:[%s1 + $0x108] sm:$0xff]
  %v51 = vld [vmem:[%s1 + $0x110] sm:$0xff]
  %v52 = vld [vmem:[%s1 + $0x118] sm:$0xff]
  %v53 = vld [vmem:[%s1 + $0x120] sm:$0xff]
  %v54 = vld [vmem:[%s1 + $0x128] sm:$0xff]
  %v55 = vld [vmem:[%s1 + $0x130] sm:$0xff]
  %v56 = vld [vmem:[%s1 + $0x138] sm:$0xff]
  %v57 = vld [vmem:[%s1 + $0x140] sm:$0xff]
  %v58 = vld [vmem:[%s1 + $0x148] sm:$0xff]
  %v59 = vld [vmem:[%s1 + $0x150] sm:$0xff]
  %v60 = vld [vmem:[%s1 + $0x158] sm:$0xff]
  %v61 = vld [vmem:[%s1 + $0x160] sm:$0xff]
  %v62 = vld [vmem:[%s1 + $0x168] sm:$0xff]
  %v63 = vld [vmem:[%s1 + $0x170] sm:$0xff]
  %v64 = vld [vmem:[%s1 + $0x178] sm:$0xff]
  %v65 = vld [vmem:[%s1 + $0x180] sm:$0xff]
  %v66 = vld [vmem:[%s1 + $0x188] sm:$0xff]
  %v67 = vld [vmem:[%s1 + $0x190] sm:$0xff]
  %v68 = vld [vmem:[%s1 + $0x198] sm:$0xff]
  %v69 = vld [vmem:[%s1 + $0x1a0] sm:$0xff]
  %v70 = vld [vmem:[%s1 + $0x1a8] sm:$0xff]
  %v71 = vld [vmem:[%s1 + $0x1b0] sm:$0xff]
  %v72 = vld [vmem:[%s1 + $0x1b8] sm:$0xff]
  %v73 = vld [vmem:[%s1 + $0x1c0] sm:$0xff]
  %v74 = vld [vmem:[%s1 + $0x1c8] sm:$0xff]
  %v75 = vld [vmem:[%s1 + $0x1d0] sm:$0xff]
  %v76 = vld [vmem:[%s1 + $0x1d8] sm:$0xff]
  %v77 = vld [vmem:[%s1 + $0x1e0] sm:$0xff]
  %v78 = vld [vmem:[%s1 + $0x1e8] sm:$0xff]
  %v79 = vld [vmem:[%s1 + $0x1f0] sm:$0xff]
  %v80 = vld [vmem:[%s1 + $0x1f8] sm:$0xff]
  %v81 = vld [vmem:[%s1 + $0x200] sm:$0xff]
  %v82 = vld [vmem:[%s1 + $0x208] sm:$0xff]
  %v83 = vld [vmem:[%s1 + $0x210] sm:$0xff]
  %v84 = vld [vmem:[%s1 + $0x218] sm:$0xff]
  %v85 = vld [vmem:[%s1 + $0x220] sm:$0xff]
  %v86 = vld [vmem:[%s1 + $0x228] sm:$0xff]
  %v87 = vld [vmem:[%s1 + $0x230] sm:$0xff]
  %v88 = vld [vmem:[%s1 + $0x238] sm:$0xff]
  %v89 = vld [vmem:[%s2] sm:$0x1]
  %v90 = vld [vmem:[%s3] sm:$0x1]
  %v91 = vld [vmem:[%s0] sm:$0xff]
  %v92 = vld [vmem:[%s0 + $0x8] sm:$0xff]
  %v93 = vld [vmem:[%s0 + $0x10] sm:$0xff]
  %v94 = vld [vmem:[%s0 + $0x18] sm:$0xff]
  %v95 = vld [vmem:[%s0 + $0x20] sm:$0xff]
  %v96 = vld [vmem:[%s0 + $0x28] sm:$0xff]
  %v97 = vld [vmem:[%s0 + $0x30] sm:$0xff]
  %v98 = vld [vmem:[%s0 + $0x38] sm:$0xff]
  %v99 = vld [vmem:[%s0 + $0x40] sm:$0xff]
  %v100 = vld [vmem:[%s0 + $0x48] sm:$0xff]
  %v101 = vld [vmem:[%s0 + $0x50] sm:$0xff]
  %v102 = vld [vmem:[%s0 + $0x58] sm:$0xff]
  %v103 = vld [vmem:[%s0 + $0x60] sm:$0xff]
  %v104 = vld [vmem:[%s0 + $0x68] sm:$0xff]
  %v105 = vld [vmem:[%s0 + $0x70] sm:$0xff]
  %v106 = vld [vmem:[%s0 + $0x78] sm:$0xff]
  %v107 = vld [vmem:[%s0 + $0x80] sm:$0xff]
  %v108 = vld [vmem:[%s0 + $0x88] sm:$0xff]
  %v109 = vld [vmem:[%s0 + $0x90] sm:$0xff]
  %v110 = vld [vmem:[%s0 + $0x98] sm:$0xff]
  %v111 = vld [vmem:[%s0 + $0xa0] sm:$0xff]
  %v112 = vld [vmem:[%s0 + $0xa8] sm:$0xff]
  %v113 = vld [vmem:[%s0 + $0xb0] sm:$0xff]
  %v114 = vld [vmem:[%s0 + $0xb8] sm:$0xff]
  %v115 = vld [vmem:[%s0 + $0xc0] sm:$0xff]
  %v116 = vld [vmem:[%s0 + $0xc8] sm:$0xff]
  %v117 = vld [vmem:[%s0 + $0xd0] sm:$0xff]
  %v118 = vld [vmem:[%s0 + $0xd8] sm:$0xff]
  %v119 = vld [vmem:[%s0 + $0xe0] sm:$0xff]
  %v120 = vld [vmem:[%s0 + $0xe8] sm:$0xff]
  %v121 = vld [vmem:[%s0 + $0xf0] sm:$0xff]
  %v122 = vld [vmem:[%s0 + $0xf8] sm:$0xff]
  %v123 = vld [vmem:[%s0 + $0x100] sm:$0xff]
  %v124 = vld [vmem:[%s0 + $0x108] sm:$0xff]
  %v125 = vld [vmem:[%s0 + $0x110] sm:$0xff]
  %v126 = vld [vmem:[%s0 + $0x118] sm:$0xff]
  %v127 = vld [vmem:[%s0 + $0x120] sm:$0xff]
  %v128 = vld [vmem:[%s0 + $0x128] sm:$0xff]
  %v129 = vld [vmem:[%s0 + $0x130] sm:$0xff]
  %v130 = vld [vmem:[%s0 + $0x138] sm:$0xff]
  %vm131 = vcmask 523264
  %v133 = vsel %vm131, %v95, 0
  %v136 = vsel %vm131, %v100, 0
  %v139 = vsel %vm131, %v105, 0
  %v142 = vsel %vm131, %v110, 0
  %v145 = vsel %vm131, %v115, 0
  %v148 = vsel %vm131, %v120, 0
  %v151 = vsel %vm131, %v125, 0
  %v154 = vsel %vm131, %v130, 0
  %156 = vmatprep.subr.mxu0 0.0
  %157 = vmatpush1.msra.mxu0 %v17
  %158 = vmatprep.subr.mxu0 0.0
  %159 = vmatpush1.msra.mxu0 %v18
  %160 = vmatprep.subr.mxu0 0.0
  %161 = vmatpush1.msra.mxu0 %v19
  %162 = vmatprep.subr.mxu0 0.0
  %163 = vmatpush1.msra.mxu0 %v20
  %164 = vmatprep.subr.mxu0 0.0
  %165 = vmatpush1.msra.mxu0 %v21
  %166 = vmatprep.subr.mxu0 0.0
  %167 = vmatpush1.msra.mxu0 %v22
  %168 = vmatprep.subr.mxu0 0.0
  %169 = vmatpush1.msra.mxu0 %v23
  %170 = vmatprep.subr.mxu0 0.0
  %171 = vmatpush1.msra.mxu0 %v24
  %172 = vmatprep.subr.mxu0 0.0
  %173 = vmatpush1.msra.mxu0 %v25
  %174 = vmatprep.subr.mxu0 0.0
  %175 = vmatpush1.msra.mxu0 %v26
  %176 = vmatprep.subr.mxu0 0.0
  %177 = vmatpush1.msra.mxu0 %v27
  %178 = vmatprep.subr.mxu0 0.0
  %179 = vmatpush1.msra.mxu0 %v28
  %180 = vmatprep.subr.mxu0 0.0
  %181 = vmatpush1.msra.mxu0 %v29
  %182 = vmatprep.subr.mxu0 0.0
  %183 = vmatpush1.msra.mxu0 %v30
  %184 = vmatprep.subr.mxu0 0.0
  %185 = vmatpush1.msra.mxu0 %v31
  %186 = vmatprep.subr.mxu0 0.0
  %187 = vmatpush1.msra.mxu0 %v32
  %188 = vmatprep.subr.mxu0 0.0
  %189 = vmatpush1.msra.mxu0 %v33
  %190 = vmatprep.subr.mxu0 0.0
  %191 = vmatpush1.msra.mxu0 %v34
  %192 = vmatprep.subr.mxu0 0.0
  %193 = vmatpush1.msra.mxu0 %v35
  %194 = vmatprep.subr.mxu0 0.0
  %195 = vmatpush1.msra.mxu0 %v36
  %196 = vmatprep.subr.mxu0 0.0
  %197 = vmatpush1.msra.mxu0 %v37
  %198 = vmatprep.subr.mxu0 0.0
  %199 = vmatpush1.msra.mxu0 %v38
  %200 = vmatprep.subr.mxu0 0.0
  %201 = vmatpush1.msra.mxu0 %v39
  %202 = vmatprep.subr.mxu0 0.0
  %203 = vmatpush1.msra.mxu0 %v40
  %204 = vmatprep.subr.mxu0 0.0
  %205 = vmatpush1.msra.mxu0 %v41
  %206 = vmatprep.subr.mxu0 0.0
  %207 = vmatpush1.msra.mxu0 %v42
  %208 = vmatprep.subr.mxu0 0.0
  %209 = vmatpush1.msra.mxu0 %v43
  %210 = vmatprep.subr.mxu0 0.0
  %211 = vmatpush1.msra.mxu0 %v44
  %212 = vmatprep.subr.mxu0 0.0
  %213 = vmatpush1.msra.mxu0 %v45
  %214 = vmatprep.subr.mxu0 0.0
  %215 = vmatpush1.msra.mxu0 %v46
  %216 = vmatprep.subr.mxu0 0.0
  %217 = vmatpush1.msra.mxu0 %v47
  %218 = vmatprep.subr.mxu0 0.0
  %219 = vmatpush1.msra.mxu0 %v48
  %220 = vmatprep.mubr.f32.mxu0 %v92
  %221 = vmatmul.mubr.f32.gmra.mrb[0].mxu0 %v91
  %v222 = vpop.f32.mrb[0].mxu0
  %v223 = vadd.f32 0.0, %v222
  %v224 = vpop.f32.mrb[0].mxu0
  %225 = vmatprep.mubr.f32.mxu0 %v97
  %226 = vmatmul.mubr.f32.gmra.mrb[0].mxu0 %v96
  %v227 = vpop.f32.mrb[0].mxu0
  %v228 = vadd.f32 0.0, %v227
  %v229 = vpop.f32.mrb[0].mxu0
  %230 = vmatprep.mubr.f32.mxu0 %v102
  %231 = vmatmul.mubr.f32.gmra.mrb[0].mxu0 %v101
  %v232 = vpop.f32.mrb[0].mxu0
  %v233 = vadd.f32 0.0, %v232
  %v234 = vpop.f32.mrb[0].mxu0
  %235 = vmatprep.mubr.f32.mxu0 %v107
  %236 = vmatmul.mubr.f32.gmra.mrb[0].mxu0 %v106
  %v237 = vpop.f32.mrb[0].mxu0
  %v238 = vadd.f32 0.0, %v237
  %v239 = vpop.f32.mrb[0].mxu0
  %240 = vmatprep.mubr.f32.mxu0 %v112
  %241 = vmatmul.mubr.f32.gmra.mrb[0].mxu0 %v111
  %v242 = vpop.f32.mrb[0].mxu0
  %v243 = vadd.f32 0.0, %v242
  %v244 = vpop.f32.mrb[0].mxu0
  %245 = vmatprep.mubr.f32.mxu0 %v117
  %246 = vmatmul.mubr.f32.gmra.mrb[0].mxu0 %v116
  %v247 = vpop.f32.mrb[0].mxu0
  %v248 = vadd.f32 0.0, %v247
  %v249 = vpop.f32.mrb[0].mxu0
  %250 = vmatprep.mubr.f32.mxu0 %v122
  %251 = vmatmul.mubr.f32.gmra.mrb[0].mxu0 %v121
  %v252 = vpop.f32.mrb[0].mxu0
  %v253 = vadd.f32 0.0, %v252
  %v254 = vpop.f32.mrb[0].mxu0
  %255 = vmatprep.mubr.f32.mxu0 %v127
  %256 = vmatmul.mubr.f32.gmra.mrb[0].mxu0 %v126
  %v257 = vpop.f32.mrb[0].mxu0
  %v258 = vadd.f32 0.0, %v257
  %v259 = vpop.f32.mrb[0].mxu0
  %260 = vdwg.mxu0
  %261 = vmatprep.subr.mxu0 0.0
  %262 = vmatpush1.msra.mxu0 %v49
  %263 = vmatprep.subr.mxu0 0.0
  %264 = vmatpush1.msra.mxu0 %v50
  %265 = vmatprep.subr.mxu0 0.0
  %266 = vmatpush1.msra.mxu0 %v51
  %267 = vmatprep.subr.mxu0 0.0
  %268 = vmatpush1.msra.mxu0 %v52
  %269 = vmatprep.subr.mxu0 0.0
  %270 = vmatpush1.msra.mxu0 %v53
  %271 = vmatprep.subr.mxu0 0.0
  %272 = vmatpush1.msra.mxu0 %v54
  %273 = vmatprep.subr.mxu0 0.0
  %274 = vmatpush1.msra.mxu0 %v55
  %275 = vmatprep.subr.mxu0 0.0
  %276 = vmatpush1.msra.mxu0 %v56
  %277 = vmatprep.subr.mxu0 0.0
  %278 = vmatpush1.msra.mxu0 %v57
  %279 = vmatprep.subr.mxu0 0.0
  %280 = vmatpush1.msra.mxu0 %v58
  %281 = vmatprep.subr.mxu0 0.0
  %282 = vmatpush1.msra.mxu0 %v59
  %283 = vmatprep.subr.mxu0 0.0
  %284 = vmatpush1.msra.mxu0 %v60
  %285 = vmatprep.subr.mxu0 0.0
  %286 = vmatpush1.msra.mxu0 %v61
  %287 = vmatprep.subr.mxu0 0.0
  %288 = vmatpush1.msra.mxu0 %v62
  %289 = vmatprep.subr.mxu0 0.0
  %290 = vmatpush1.msra.mxu0 %v63
  %291 = vmatprep.subr.mxu0 0.0
  %292 = vmatpush1.msra.mxu0 %v64
  %293 = vmatprep.subr.mxu0 0.0
  %294 = vmatpush1.msra.mxu0 %v65
  %295 = vmatprep.subr.mxu0 0.0
  %296 = vmatpush1.msra.mxu0 %v66
  %297 = vmatprep.subr.mxu0 0.0
  %298 = vmatpush1.msra.mxu0 %v67
  %299 = vmatprep.subr.mxu0 0.0
  %300 = vmatpush1.msra.mxu0 %v68
  %301 = vmatprep.subr.mxu0 0.0
  %302 = vmatpush1.msra.mxu0 %v69
  %303 = vmatprep.subr.mxu0 0.0
  %304 = vmatpush1.msra.mxu0 %v70
  %305 = vmatprep.subr.mxu0 0.0
  %306 = vmatpush1.msra.mxu0 %v71
  %307 = vmatprep.subr.mxu0 0.0
  %308 = vmatpush1.msra.mxu0 %v72
  %309 = vmatprep.subr.mxu0 0.0
  %310 = vmatpush1.msra.mxu0 %v73
  %311 = vmatprep.subr.mxu0 0.0
  %312 = vmatpush1.msra.mxu0 %v74
  %313 = vmatprep.subr.mxu0 0.0
  %314 = vmatpush1.msra.mxu0 %v75
  %315 = vmatprep.subr.mxu0 0.0
  %316 = vmatpush1.msra.mxu0 %v76
  %317 = vmatprep.subr.mxu0 0.0
  %318 = vmatpush1.msra.mxu0 %v77
  %319 = vmatprep.subr.mxu0 0.0
  %320 = vmatpush1.msra.mxu0 %v78
  %321 = vmatprep.subr.mxu0 0.0
  %322 = vmatpush1.msra.mxu0 %v79
  %323 = vmatprep.subr.mxu0 0.0
  %324 = vmatpush1.msra.mxu0 %v80
  %325 = vmatprep.mubr.f32.mxu0 %v94
  %326 = vmatmul.mubr.f32.gmra.mrb[0].mxu0 %v93
  %v327 = vpop.f32.mrb[0].mxu0
  %v328 = vadd.f32 %v223, %v327
  %v329 = vpop.f32.mrb[0].mxu0
  %330 = vmatprep.mubr.f32.mxu0 %v99
  %331 = vmatmul.mubr.f32.gmra.mrb[0].mxu0 %v98
  %v332 = vpop.f32.mrb[0].mxu0
  %v333 = vadd.f32 %v228, %v332
  %v334 = vpop.f32.mrb[0].mxu0
  %335 = vmatprep.mubr.f32.mxu0 %v104
  %336 = vmatmul.mubr.f32.gmra.mrb[0].mxu0 %v103
  %v337 = vpop.f32.mrb[0].mxu0
  %v338 = vadd.f32 %v233, %v337
  %v339 = vpop.f32.mrb[0].mxu0
  %340 = vmatprep.mubr.f32.mxu0 %v109
  %341 = vmatmul.mubr.f32.gmra.mrb[0].mxu0 %v108
  %v342 = vpop.f32.mrb[0].mxu0
  %v343 = vadd.f32 %v238, %v342
  %v344 = vpop.f32.mrb[0].mxu0
  %345 = vmatprep.mubr.f32.mxu0 %v114
  %346 = vmatmul.mubr.f32.gmra.mrb[0].mxu0 %v113
  %v347 = vpop.f32.mrb[0].mxu0
  %v348 = vadd.f32 %v243, %v347
  %v349 = vpop.f32.mrb[0].mxu0
  %350 = vmatprep.mubr.f32.mxu0 %v119
  %351 = vmatmul.mubr.f32.gmra.mrb[0].mxu0 %v118
  %v352 = vpop.f32.mrb[0].mxu0
  %v353 = vadd.f32 %v248, %v352
  %v354 = vpop.f32.mrb[0].mxu0
  %355 = vmatprep.mubr.f32.mxu0 %v124
  %356 = vmatmul.mubr.f32.gmra.mrb[0].mxu0 %v123
  %v357 = vpop.f32.mrb[0].mxu0
  %v358 = vadd.f32 %v253, %v357
  %v359 = vpop.f32.mrb[0].mxu0
  %360 = vmatprep.mubr.f32.mxu0 %v129
  %361 = vmatmul.mubr.f32.gmra.mrb[0].mxu0 %v128
  %v362 = vpop.f32.mrb[0].mxu0
  %v363 = vadd.f32 %v258, %v362
  %v364 = vpop.f32.mrb[0].mxu0
  %365 = vdwg.mxu0
  %366 = vmatprep.subr.mxu0 0.0
  %367 = vmatpush1.msra.mxu0 %v81
  %368 = vmatprep.subr.mxu0 0.0
  %369 = vmatpush1.msra.mxu0 %v82
  %370 = vmatprep.subr.mxu0 0.0
  %371 = vmatpush1.msra.mxu0 %v83
  %372 = vmatprep.subr.mxu0 0.0
  %373 = vmatpush1.msra.mxu0 %v84
  %374 = vmatprep.subr.mxu0 0.0
  %375 = vmatpush1.msra.mxu0 %v85
  %376 = vmatprep.subr.mxu0 0.0
  %377 = vmatpush1.msra.mxu0 %v86
  %378 = vmatprep.subr.mxu0 0.0
  %379 = vmatpush1.msra.mxu0 %v87
  %380 = vmatprep.subr.mxu0 0.0
  %381 = vmatpush1.msra.mxu0 %v88
  %382 = vmatprep.subr.mxu0 0.0
  %383 = vmatpush1.msra.mxu0 0.0
  %384 = vmatprep.subr.mxu0 0.0
  %385 = vmatpush1.msra.mxu0 0.0
  %386 = vmatprep.subr.mxu0 0.0
  %387 = vmatpush1.msra.mxu0 0.0
  %388 = vmatprep.subr.mxu0 0.0
  %389 = vmatpush1.msra.mxu0 0.0
  %390 = vmatprep.subr.mxu0 0.0
  %391 = vmatpush1.msra.mxu0 0.0
  %392 = vmatprep.subr.mxu0 0.0
  %393 = vmatpush1.msra.mxu0 0.0
  %394 = vmatprep.subr.mxu0 0.0
  %395 = vmatpush1.msra.mxu0 0.0
  %396 = vmatprep.subr.mxu0 0.0
  %397 = vmatpush1.msra.mxu0 0.0
  %398 = vmatprep.subr.mxu0 0.0
  %399 = vmatpush1.msra.mxu0 0.0
  %400 = vmatprep.subr.mxu0 0.0
  %401 = vmatpush1.msra.mxu0 0.0
  %402 = vmatprep.subr.mxu0 0.0
  %403 = vmatpush1.msra.mxu0 0.0
  %404 = vmatprep.subr.mxu0 0.0
  %405 = vmatpush1.msra.mxu0 0.0
  %406 = vmatprep.subr.mxu0 0.0
  %407 = vmatpush1.msra.mxu0 0.0
  %408 = vmatprep.subr.mxu0 0.0
  %409 = vmatpush1.msra.mxu0 0.0
  %410 = vmatprep.subr.mxu0 0.0
  %411 = vmatpush1.msra.mxu0 0.0
  %412 = vmatprep.subr.mxu0 0.0
  %413 = vmatpush1.msra.mxu0 0.0
  %414 = vmatprep.subr.mxu0 0.0
  %415 = vmatpush1.msra.mxu0 0.0
  %416 = vmatprep.subr.mxu0 0.0
  %417 = vmatpush1.msra.mxu0 0.0
  %418 = vmatprep.subr.mxu0 0.0
  %419 = vmatpush1.msra.mxu0 0.0
  %420 = vmatprep.subr.mxu0 0.0
  %421 = vmatpush1.msra.mxu0 0.0
  %422 = vmatprep.subr.mxu0 0.0
  %423 = vmatpush1.msra.mxu0 0.0
  %424 = vmatprep.subr.mxu0 0.0
  %425 = vmatpush1.msra.mxu0 0.0
  %426 = vmatprep.subr.mxu0 0.0
  %427 = vmatpush1.msra.mxu0 0.0
  %428 = vmatprep.subr.mxu0 0.0
  %429 = vmatpush1.msra.mxu0 0.0
  %430 = vmatprep.mubr.f32.mxu0 0.0
  %431 = vmatmul.mubr.f32.gmra.mrb[0].mxu0 %v133
  %v432 = vpop.f32.mrb[0].mxu0
  %v433 = vadd.f32 %v328, %v432
  %v434 = vpop.f32.mrb[0].mxu0
  %435 = vmatprep.mubr.f32.mxu0 0.0
  %436 = vmatmul.mubr.f32.gmra.mrb[0].mxu0 %v136
  %v437 = vpop.f32.mrb[0].mxu0
  %v438 = vadd.f32 %v333, %v437
  %v439 = vpop.f32.mrb[0].mxu0
  %440 = vmatprep.mubr.f32.mxu0 0.0
  %441 = vmatmul.mubr.f32.gmra.mrb[0].mxu0 %v139
  %v442 = vpop.f32.mrb[0].mxu0
  %v443 = vadd.f32 %v338, %v442
  %v444 = vpop.f32.mrb[0].mxu0
  %445 = vmatprep.mubr.f32.mxu0 0.0
  %446 = vmatmul.mubr.f32.gmra.mrb[0].mxu0 %v142
  %v447 = vpop.f32.mrb[0].mxu0
  %v448 = vadd.f32 %v343, %v447
  %v449 = vpop.f32.mrb[0].mxu0
  %450 = vmatprep.mubr.f32.mxu0 0.0
  %451 = vmatmul.mubr.f32.gmra.mrb[0].mxu0 %v145
  %v452 = vpop.f32.mrb[0].mxu0
  %v453 = vadd.f32 %v348, %v452
  %v454 = vpop.f32.mrb[0].mxu0
  %455 = vmatprep.mubr.f32.mxu0 0.0
  %456 = vmatmul.mubr.f32.gmra.mrb[0].mxu0 %v148
  %v457 = vpop.f32.mrb[0].mxu0
  %v458 = vadd.f32 %v353, %v457
  %v459 = vpop.f32.mrb[0].mxu0
  %460 = vmatprep.mubr.f32.mxu0 0.0
  %461 = vmatmul.mubr.f32.gmra.mrb[0].mxu0 %v151
  %v462 = vpop.f32.mrb[0].mxu0
  %v463 = vadd.f32 %v358, %v462
  %v464 = vpop.f32.mrb[0].mxu0
  %465 = vmatprep.mubr.f32.mxu0 0.0
  %466 = vmatmul.mubr.f32.gmra.mrb[0].mxu0 %v154
  %v467 = vpop.f32.mrb[0].mxu0
  %v468 = vadd.f32 %v363, %v467
  %v469 = vpop.f32.mrb[0].mxu0
  %470 = vdwg.mxu0
  %v472 = vlaneseq
  %v473 = vshrl.u32 %v472, 7
  %v474 = vsub.s32 0, %v473
  %v475 = vrot.slane %v89, %v474
  %v477 = vmul.f32 %v433, %v475
  %v478 = vmul.f32 %v438, %v475
  %v479 = vmul.f32 %v443, %v475
  %v480 = vmul.f32 %v448, %v475
  %v481 = vmul.f32 %v453, %v475
  %v482 = vmul.f32 %v458, %v475
  %v483 = vmul.f32 %v463, %v475
  %v484 = vmul.f32 %v468, %v475
  %v486 = vlaneseq
  %v487 = vshrl.u32 %v486, 7
  %v488 = vsub.s32 0, %v487
  %v489 = vrot.slane %v90, %v488
  %v491 = vadd.f32 %v477, %v489
  %v492 = vadd.f32 %v478, %v489
  %v493 = vadd.f32 %v479, %v489
  %v494 = vadd.f32 %v480, %v489
  %v495 = vadd.f32 %v481, %v489
  %v496 = vadd.f32 %v482, %v489
  %v497 = vadd.f32 %v483, %v489
  %v498 = vadd.f32 %v484, %v489
  %s499 = scalar_lea.vmem %s0, 320
  %v500 = vld [vmem:[%s499] sm:$0xff]
  %v501 = vld [vmem:[%s499 + $0x8] sm:$0xff]
  %v502 = vld [vmem:[%s499 + $0x10] sm:$0xff]
  %v503 = vld [vmem:[%s499 + $0x18] sm:$0xff]
  %v504 = vld [vmem:[%s499 + $0x20] sm:$0xff]
  %v505 = vld [vmem:[%s499 + $0x28] sm:$0xff]
  %v506 = vld [vmem:[%s499 + $0x30] sm:$0xff]
  %v507 = vld [vmem:[%s499 + $0x38] sm:$0xff]
  %v508 = vld [vmem:[%s499 + $0x40] sm:$0xff]
  %v509 = vld [vmem:[%s499 + $0x48] sm:$0xff]
  %v510 = vld [vmem:[%s499 + $0x50] sm:$0xff]
  %v511 = vld [vmem:[%s499 + $0x58] sm:$0xff]
  %v512 = vld [vmem:[%s499 + $0x60] sm:$0xff]
  %v513 = vld [vmem:[%s499 + $0x68] sm:$0xff]
  %v514 = vld [vmem:[%s499 + $0x70] sm:$0xff]
  %v515 = vld [vmem:[%s499 + $0x78] sm:$0xff]
  %v516 = vld [vmem:[%s499 + $0x80] sm:$0xff]
  %v517 = vld [vmem:[%s499 + $0x88] sm:$0xff]
  %v518 = vld [vmem:[%s499 + $0x90] sm:$0xff]
  %v519 = vld [vmem:[%s499 + $0x98] sm:$0xff]
  %v520 = vld [vmem:[%s499 + $0xa0] sm:$0xff]
  %v521 = vld [vmem:[%s499 + $0xa8] sm:$0xff]
  %v522 = vld [vmem:[%s499 + $0xb0] sm:$0xff]
  %v523 = vld [vmem:[%s499 + $0xb8] sm:$0xff]
  %v524 = vld [vmem:[%s499 + $0xc0] sm:$0xff]
  %v525 = vld [vmem:[%s499 + $0xc8] sm:$0xff]
  %v526 = vld [vmem:[%s499 + $0xd0] sm:$0xff]
  %v527 = vld [vmem:[%s499 + $0xd8] sm:$0xff]
  %v528 = vld [vmem:[%s499 + $0xe0] sm:$0xff]
  %v529 = vld [vmem:[%s499 + $0xe8] sm:$0xff]
  %v530 = vld [vmem:[%s499 + $0xf0] sm:$0xff]
  %v531 = vld [vmem:[%s499 + $0xf8] sm:$0xff]
  %v532 = vld [vmem:[%s499 + $0x100] sm:$0xff]
  %v533 = vld [vmem:[%s499 + $0x108] sm:$0xff]
  %v534 = vld [vmem:[%s499 + $0x110] sm:$0xff]
  %v535 = vld [vmem:[%s499 + $0x118] sm:$0xff]
  %v536 = vld [vmem:[%s499 + $0x120] sm:$0xff]
  %v537 = vld [vmem:[%s499 + $0x128] sm:$0xff]
  %v538 = vld [vmem:[%s499 + $0x130] sm:$0xff]
  %v539 = vld [vmem:[%s499 + $0x138] sm:$0xff]
  %v541 = vsel %vm131, %v504, 0
  %v544 = vsel %vm131, %v509, 0
  %v547 = vsel %vm131, %v514, 0
  %v550 = vsel %vm131, %v519, 0
  %v553 = vsel %vm131, %v524, 0
  %v556 = vsel %vm131, %v529, 0
  %v559 = vsel %vm131, %v534, 0
  %v562 = vsel %vm131, %v539, 0
  %564 = vmatprep.subr.mxu0 0.0
  %565 = vmatpush1.msra.mxu0 %v17
  %566 = vmatprep.subr.mxu0 0.0
  %567 = vmatpush1.msra.mxu0 %v18
  %568 = vmatprep.subr.mxu0 0.0
  %569 = vmatpush1.msra.mxu0 %v19
  %570 = vmatprep.subr.mxu0 0.0
  %571 = vmatpush1.msra.mxu0 %v20
  %572 = vmatprep.subr.mxu0 0.0
  %573 = vmatpush1.msra.mxu0 %v21
  %574 = vmatprep.subr.mxu0 0.0
  %575 = vmatpush1.msra.mxu0 %v22
  %576 = vmatprep.subr.mxu0 0.0
  %577 = vmatpush1.msra.mxu0 %v23
  %578 = vmatprep.subr.mxu0 0.0
  %579 = vmatpush1.msra.mxu0 %v24
  %580 = vmatprep.subr.mxu0 0.0
  %581 = vmatpush1.msra.mxu0 %v25
  %582 = vmatprep.subr.mxu0 0.0
  %583 = vmatpush1.msra.mxu0 %v26
  %584 = vmatprep.subr.mxu0 0.0
  %585 = vmatpush1.msra.mxu0 %v27
  %586 = vmatprep.subr.mxu0 0.0
  %587 = vmatpush1.msra.mxu0 %v28
  %588 = vmatprep.subr.mxu0 0.0
  %589 = vmatpush1.msra.mxu0 %v29
  %590 = vmatprep.subr.mxu0 0.0
  %591 = vmatpush1.msra.mxu0 %v30
  %592 = vmatprep.subr.mxu0 0.0
  %593 = vmatpush1.msra.mxu0 %v31
  %594 = vmatprep.subr.mxu0 0.0
  %595 = vmatpush1.msra.mxu0 %v32
  %596 = vmatprep.subr.mxu0 0.0
  %597 = vmatpush1.msra.mxu0 %v33
  %598 = vmatprep.subr.mxu0 0.0
  %599 = vmatpush1.msra.mxu0 %v34
  %600 = vmatprep.subr.mxu0 0.0
  %601 = vmatpush1.msra.mxu0 %v35
  %602 = vmatprep.subr.mxu0 0.0
  %603 = vmatpush1.msra.mxu0 %v36
  %604 = vmatprep.subr.mxu0 0.0
  %605 = vmatpush1.msra.mxu0 %v37
  %606 = vmatprep.subr.mxu0 0.0
  %607 = vmatpush1.msra.mxu0 %v38
  %608 = vmatprep.subr.mxu0 0.0
  %609 = vmatpush1.msra.mxu0 %v39
  %610 = vmatprep.subr.mxu0 0.0
  %611 = vmatpush1.msra.mxu0 %v40
  %612 = vmatprep.subr.mxu0 0.0
  %613 = vmatpush1.msra.mxu0 %v41
  %614 = vmatprep.subr.mxu0 0.0
  %615 = vmatpush1.msra.mxu0 %v42
  %616 = vmatprep.subr.mxu0 0.0
  %617 = vmatpush1.msra.mxu0 %v43
  %618 = vmatprep.subr.mxu0 0.0
  %619 = vmatpush1.msra.mxu0 %v44
  %620 = vmatprep.subr.mxu0 0.0
  %621 = vmatpush1.msra.mxu0 %v45
  %622 = vmatprep.subr.mxu0 0.0
  %623 = vmatpush1.msra.mxu0 %v46
  %624 = vmatprep.subr.mxu0 0.0
  %625 = vmatpush1.msra.mxu0 %v47
  %626 = vmatprep.subr.mxu0 0.0
  %627 = vmatpush1.msra.mxu0 %v48
  %628 = vmatprep.mubr.f32.mxu0 %v501
  %629 = vmatmul.mubr.f32.gmra.mrb[0].mxu0 %v500
  %v630 = vpop.f32.mrb[0].mxu0
  %v631 = vadd.f32 0.0, %v630
  %v632 = vpop.f32.mrb[0].mxu0
  %633 = vmatprep.mubr.f32.mxu0 %v506
  %634 = vmatmul.mubr.f32.gmra.mrb[0].mxu0 %v505
  %v635 = vpop.f32.mrb[0].mxu0
  %v636 = vadd.f32 0.0, %v635
  %v637 = vpop.f32.mrb[0].mxu0
  %638 = vmatprep.mubr.f32.mxu0 %v511
  %639 = vmatmul.mubr.f32.gmra.mrb[0].mxu0 %v510
  %v640 = vpop.f32.mrb[0].mxu0
  %v641 = vadd.f32 0.0, %v640
  %v642 = vpop.f32.mrb[0].mxu0
  %643 = vmatprep.mubr.f32.mxu0 %v516
  %644 = vmatmul.mubr.f32.gmra.mrb[0].mxu0 %v515
  %v645 = vpop.f32.mrb[0].mxu0
  %v646 = vadd.f32 0.0, %v645
  %v647 = vpop.f32.mrb[0].mxu0
  %648 = vmatprep.mubr.f32.mxu0 %v521
  %649 = vmatmul.mubr.f32.gmra.mrb[0].mxu0 %v520
  %v650 = vpop.f32.mrb[0].mxu0
  %v651 = vadd.f32 0.0, %v650
  %v652 = vpop.f32.mrb[0].mxu0
  %653 = vmatprep.mubr.f32.mxu0 %v526
  %654 = vmatmul.mubr.f32.gmra.mrb[0].mxu0 %v525
  %v655 = vpop.f32.mrb[0].mxu0
  %v656 = vadd.f32 0.0, %v655
  %v657 = vpop.f32.mrb[0].mxu0
  %658 = vmatprep.mubr.f32.mxu0 %v531
  %659 = vmatmul.mubr.f32.gmra.mrb[0].mxu0 %v530
  %v660 = vpop.f32.mrb[0].mxu0
  %v661 = vadd.f32 0.0, %v660
  %v662 = vpop.f32.mrb[0].mxu0
  %663 = vmatprep.mubr.f32.mxu0 %v536
  %664 = vmatmul.mubr.f32.gmra.mrb[0].mxu0 %v535
  %v665 = vpop.f32.mrb[0].mxu0
  %v666 = vadd.f32 0.0, %v665
  %v667 = vpop.f32.mrb[0].mxu0
  %668 = vdwg.mxu0
  %669 = vmatprep.subr.mxu0 0.0
  %670 = vmatpush1.msra.mxu0 %v49
  %671 = vmatprep.subr.mxu0 0.0
  %672 = vmatpush1.msra.mxu0 %v50
  %673 = vmatprep.subr.mxu0 0.0
  %674 = vmatpush1.msra.mxu0 %v51
  %675 = vmatprep.subr.mxu0 0.0
  %676 = vmatpush1.msra.mxu0 %v52
  %677 = vmatprep.subr.mxu0 0.0
  %678 = vmatpush1.msra.mxu0 %v53
  %679 = vmatprep.subr.mxu0 0.0
  %680 = vmatpush1.msra.mxu0 %v54
  %681 = vmatprep.subr.mxu0 0.0
  %682 = vmatpush1.msra.mxu0 %v55
  %683 = vmatprep.subr.mxu0 0.0
  %684 = vmatpush1.msra.mxu0 %v56
  %685 = vmatprep.subr.mxu0 0.0
  %686 = vmatpush1.msra.mxu0 %v57
  %687 = vmatprep.subr.mxu0 0.0
  %688 = vmatpush1.msra.mxu0 %v58
  %689 = vmatprep.subr.mxu0 0.0
  %690 = vmatpush1.msra.mxu0 %v59
  %691 = vmatprep.subr.mxu0 0.0
  %692 = vmatpush1.msra.mxu0 %v60
  %693 = vmatprep.subr.mxu0 0.0
  %694 = vmatpush1.msra.mxu0 %v61
  %695 = vmatprep.subr.mxu0 0.0
  %696 = vmatpush1.msra.mxu0 %v62
  %697 = vmatprep.subr.mxu0 0.0
  %698 = vmatpush1.msra.mxu0 %v63
  %699 = vmatprep.subr.mxu0 0.0
  %700 = vmatpush1.msra.mxu0 %v64
  %701 = vmatprep.subr.mxu0 0.0
  %702 = vmatpush1.msra.mxu0 %v65
  %703 = vmatprep.subr.mxu0 0.0
  %704 = vmatpush1.msra.mxu0 %v66
  %705 = vmatprep.subr.mxu0 0.0
  %706 = vmatpush1.msra.mxu0 %v67
  %707 = vmatprep.subr.mxu0 0.0
  %708 = vmatpush1.msra.mxu0 %v68
  %709 = vmatprep.subr.mxu0 0.0
  %710 = vmatpush1.msra.mxu0 %v69
  %711 = vmatprep.subr.mxu0 0.0
  %712 = vmatpush1.msra.mxu0 %v70
  %713 = vmatprep.subr.mxu0 0.0
  %714 = vmatpush1.msra.mxu0 %v71
  %715 = vmatprep.subr.mxu0 0.0
  %716 = vmatpush1.msra.mxu0 %v72
  %717 = vmatprep.subr.mxu0 0.0
  %718 = vmatpush1.msra.mxu0 %v73
  %719 = vmatprep.subr.mxu0 0.0
  %720 = vmatpush1.msra.mxu0 %v74
  %721 = vmatprep.subr.mxu0 0.0
  %722 = vmatpush1.msra.mxu0 %v75
  %723 = vmatprep.subr.mxu0 0.0
  %724 = vmatpush1.msra.mxu0 %v76
  %725 = vmatprep.subr.mxu0 0.0
  %726 = vmatpush1.msra.mxu0 %v77
  %727 = vmatprep.subr.mxu0 0.0
  %728 = vmatpush1.msra.mxu0 %v78
  %729 = vmatprep.subr.mxu0 0.0
  %730 = vmatpush1.msra.mxu0 %v79
  %731 = vmatprep.subr.mxu0 0.0
  %732 = vmatpush1.msra.mxu0 %v80
  %733 = vmatprep.mubr.f32.mxu0 %v503
  %734 = vmatmul.mubr.f32.gmra.mrb[0].mxu0 %v502
  %v735 = vpop.f32.mrb[0].mxu0
  %v736 = vadd.f32 %v631, %v735
  %v737 = vpop.f32.mrb[0].mxu0
  %738 = vmatprep.mubr.f32.mxu0 %v508
  %739 = vmatmul.mubr.f32.gmra.mrb[0].mxu0 %v507
  %v740 = vpop.f32.mrb[0].mxu0
  %v741 = vadd.f32 %v636, %v740
  %v742 = vpop.f32.mrb[0].mxu0
  %743 = vmatprep.mubr.f32.mxu0 %v513
  %744 = vmatmul.mubr.f32.gmra.mrb[0].mxu0 %v512
  %v745 = vpop.f32.mrb[0].mxu0
  %v746 = vadd.f32 %v641, %v745
  %v747 = vpop.f32.mrb[0].mxu0
  %748 = vmatprep.mubr.f32.mxu0 %v518
  %749 = vmatmul.mubr.f32.gmra.mrb[0].mxu0 %v517
  %v750 = vpop.f32.mrb[0].mxu0
  %v751 = vadd.f32 %v646, %v750
  %v752 = vpop.f32.mrb[0].mxu0
  %753 = vmatprep.mubr.f32.mxu0 %v523
  %754 = vmatmul.mubr.f32.gmra.mrb[0].mxu0 %v522
  %v755 = vpop.f32.mrb[0].mxu0
  %v756 = vadd.f32 %v651, %v755
  %v757 = vpop.f32.mrb[0].mxu0
  %758 = vmatprep.mubr.f32.mxu0 %v528
  %759 = vmatmul.mubr.f32.gmra.mrb[0].mxu0 %v527
  %v760 = vpop.f32.mrb[0].mxu0
  %v761 = vadd.f32 %v656, %v760
  %v762 = vpop.f32.mrb[0].mxu0
  %763 = vmatprep.mubr.f32.mxu0 %v533
  %764 = vmatmul.mubr.f32.gmra.mrb[0].mxu0 %v532
  %v765 = vpop.f32.mrb[0].mxu0
  %v766 = vadd.f32 %v661, %v765
  %v767 = vpop.f32.mrb[0].mxu0
  %768 = vmatprep.mubr.f32.mxu0 %v538
  %769 = vmatmul.mubr.f32.gmra.mrb[0].mxu0 %v537
  %v770 = vpop.f32.mrb[0].mxu0
  %v771 = vadd.f32 %v666, %v770
  %v772 = vpop.f32.mrb[0].mxu0
  %773 = vdwg.mxu0
  %774 = vmatprep.subr.mxu0 0.0
  %775 = vmatpush1.msra.mxu0 %v81
  %776 = vmatprep.subr.mxu0 0.0
  %777 = vmatpush1.msra.mxu0 %v82
  %778 = vmatprep.subr.mxu0 0.0
  %779 = vmatpush1.msra.mxu0 %v83
  %780 = vmatprep.subr.mxu0 0.0
  %781 = vmatpush1.msra.mxu0 %v84
  %782 = vmatprep.subr.mxu0 0.0
  %783 = vmatpush1.msra.mxu0 %v85
  %784 = vmatprep.subr.mxu0 0.0
  %785 = vmatpush1.msra.mxu0 %v86
  %786 = vmatprep.subr.mxu0 0.0
  %787 = vmatpush1.msra.mxu0 %v87
  %788 = vmatprep.subr.mxu0 0.0
  %789 = vmatpush1.msra.mxu0 %v88
  %790 = vmatprep.subr.mxu0 0.0
  %791 = vmatpush1.msra.mxu0 0.0
  %792 = vmatprep.subr.mxu0 0.0
  %793 = vmatpush1.msra.mxu0 0.0
  %794 = vmatprep.subr.mxu0 0.0
  %795 = vmatpush1.msra.mxu0 0.0
  %796 = vmatprep.subr.mxu0 0.0
  %797 = vmatpush1.msra.mxu0 0.0
  %798 = vmatprep.subr.mxu0 0.0
  %799 = vmatpush1.msra.mxu0 0.0
  %800 = vmatprep.subr.mxu0 0.0
  %801 = vmatpush1.msra.mxu0 0.0
  %802 = vmatprep.subr.mxu0 0.0
  %803 = vmatpush1.msra.mxu0 0.0
  %804 = vmatprep.subr.mxu0 0.0
  %805 = vmatpush1.msra.mxu0 0.0
  %806 = vmatprep.subr.mxu0 0.0
  %807 = vmatpush1.msra.mxu0 0.0
  %808 = vmatprep.subr.mxu0 0.0
  %809 = vmatpush1.msra.mxu0 0.0
  %810 = vmatprep.subr.mxu0 0.0
  %811 = vmatpush1.msra.mxu0 0.0
  %812 = vmatprep.subr.mxu0 0.0
  %813 = vmatpush1.msra.mxu0 0.0
  %814 = vmatprep.subr.mxu0 0.0
  %815 = vmatpush1.msra.mxu0 0.0
  %816 = vmatprep.subr.mxu0 0.0
  %817 = vmatpush1.msra.mxu0 0.0
  %818 = vmatprep.subr.mxu0 0.0
  %819 = vmatpush1.msra.mxu0 0.0
  %820 = vmatprep.subr.mxu0 0.0
  %821 = vmatpush1.msra.mxu0 0.0
  %822 = vmatprep.subr.mxu0 0.0
  %823 = vmatpush1.msra.mxu0 0.0
  %824 = vmatprep.subr.mxu0 0.0
  %825 = vmatpush1.msra.mxu0 0.0
  %826 = vmatprep.subr.mxu0 0.0
  %827 = vmatpush1.msra.mxu0 0.0
  %828 = vmatprep.subr.mxu0 0.0
  %829 = vmatpush1.msra.mxu0 0.0
  %830 = vmatprep.subr.mxu0 0.0
  %831 = vmatpush1.msra.mxu0 0.0
  %832 = vmatprep.subr.mxu0 0.0
  %833 = vmatpush1.msra.mxu0 0.0
  %834 = vmatprep.subr.mxu0 0.0
  %835 = vmatpush1.msra.mxu0 0.0
  %836 = vmatprep.subr.mxu0 0.0
  %837 = vmatpush1.msra.mxu0 0.0
  %838 = vmatprep.mubr.f32.mxu0 0.0
  %839 = vmatmul.mubr.f32.gmra.mrb[0].mxu0 %v541
  %v840 = vpop.f32.mrb[0].mxu0
  %v841 = vadd.f32 %v736, %v840
  %v842 = vpop.f32.mrb[0].mxu0
  %843 = vmatprep.mubr.f32.mxu0 0.0
  %844 = vmatmul.mubr.f32.gmra.mrb[0].mxu0 %v544
  %v845 = vpop.f32.mrb[0].mxu0
  %v846 = vadd.f32 %v741, %v845
  %v847 = vpop.f32.mrb[0].mxu0
  %848 = vmatprep.mubr.f32.mxu0 0.0
  %849 = vmatmul.mubr.f32.gmra.mrb[0].mxu0 %v547
  %v850 = vpop.f32.mrb[0].mxu0
  %v851 = vadd.f32 %v746, %v850
  %v852 = vpop.f32.mrb[0].mxu0
  %853 = vmatprep.mubr.f32.mxu0 0.0
  %854 = vmatmul.mubr.f32.gmra.mrb[0].mxu0 %v550
  %v855 = vpop.f32.mrb[0].mxu0
  %v856 = vadd.f32 %v751, %v855
  %v857 = vpop.f32.mrb[0].mxu0
  %858 = vmatprep.mubr.f32.mxu0 0.0
  %859 = vmatmul.mubr.f32.gmra.mrb[0].mxu0 %v553
  %v860 = vpop.f32.mrb[0].mxu0
  %v861 = vadd.f32 %v756, %v860
  %v862 = vpop.f32.mrb[0].mxu0
  %863 = vmatprep.mubr.f32.mxu0 0.0
  %864 = vmatmul.mubr.f32.gmra.mrb[0].mxu0 %v556
  %v865 = vpop.f32.mrb[0].mxu0
  %v866 = vadd.f32 %v761, %v865
  %v867 = vpop.f32.mrb[0].mxu0
  %868 = vmatprep.mubr.f32.mxu0 0.0
  %869 = vmatmul.mubr.f32.gmra.mrb[0].mxu0 %v559
  %v870 = vpop.f32.mrb[0].mxu0
  %v871 = vadd.f32 %v766, %v870
  %v872 = vpop.f32.mrb[0].mxu0
  %873 = vmatprep.mubr.f32.mxu0 0.0
  %874 = vmatmul.mubr.f32.gmra.mrb[0].mxu0 %v562
  %v875 = vpop.f32.mrb[0].mxu0
  %v876 = vadd.f32 %v771, %v875
  %v877 = vpop.f32.mrb[0].mxu0
  %878 = vdwg.mxu0
  %v879 = vmul.f32 %v841, %v475
  %v880 = vmul.f32 %v846, %v475
  %v881 = vmul.f32 %v851, %v475
  %v882 = vmul.f32 %v856, %v475
  %v883 = vmul.f32 %v861, %v475
  %v884 = vmul.f32 %v866, %v475
  %v885 = vmul.f32 %v871, %v475
  %v886 = vmul.f32 %v876, %v475
  %v887 = vadd.f32 %v879, %v489
  %v888 = vadd.f32 %v880, %v489
  %v889 = vadd.f32 %v881, %v489
  %v890 = vadd.f32 %v882, %v489
  %v891 = vadd.f32 %v883, %v489
  %v892 = vadd.f32 %v884, %v489
  %v893 = vadd.f32 %v885, %v489
  %v894 = vadd.f32 %v886, %v489
  %v895 = vmax.f32 %v491, %v887
  %v896 = vmax.f32 %v492, %v888
  %v897 = vmax.f32 %v493, %v889
  %v898 = vmax.f32 %v494, %v890
  %v899 = vmax.f32 %v495, %v891
  %v900 = vmax.f32 %v496, %v892
  %v901 = vmax.f32 %v497, %v893
  %v902 = vmax.f32 %v498, %v894
  %s903 = scalar_lea.vmem %s0, 640
  %v904 = vld [vmem:[%s903] sm:$0xff]
  %v905 = vld [vmem:[%s903 + $0x8] sm:$0xff]
  %v906 = vld [vmem:[%s903 + $0x10] sm:$0xff]
  %v907 = vld [vmem:[%s903 + $0x18] sm:$0xff]
  %v908 = vld [vmem:[%s903 + $0x20] sm:$0xff]
  %v909 = vld [vmem:[%s903 + $0x28] sm:$0xff]
  %v910 = vld [vmem:[%s903 + $0x30] sm:$0xff]
  %v911 = vld [vmem:[%s903 + $0x38] sm:$0xff]
  %v912 = vld [vmem:[%s903 + $0x40] sm:$0xff]
  %v913 = vld [vmem:[%s903 + $0x48] sm:$0xff]
  %v914 = vld [vmem:[%s903 + $0x50] sm:$0xff]
  %v915 = vld [vmem:[%s903 + $0x58] sm:$0xff]
  %v916 = vld [vmem:[%s903 + $0x60] sm:$0xff]
  %v917 = vld [vmem:[%s903 + $0x68] sm:$0xff]
  %v918 = vld [vmem:[%s903 + $0x70] sm:$0xff]
  %v919 = vld [vmem:[%s903 + $0x78] sm:$0xff]
  %v920 = vld [vmem:[%s903 + $0x80] sm:$0xff]
  %v921 = vld [vmem:[%s903 + $0x88] sm:$0xff]
  %v922 = vld [vmem:[%s903 + $0x90] sm:$0xff]
  %v923 = vld [vmem:[%s903 + $0x98] sm:$0xff]
  %v924 = vld [vmem:[%s903 + $0xa0] sm:$0xff]
  %v925 = vld [vmem:[%s903 + $0xa8] sm:$0xff]
  %v926 = vld [vmem:[%s903 + $0xb0] sm:$0xff]
  %v927 = vld [vmem:[%s903 + $0xb8] sm:$0xff]
  %v928 = vld [vmem:[%s903 + $0xc0] sm:$0xff]
  %v929 = vld [vmem:[%s903 + $0xc8] sm:$0xff]
  %v930 = vld [vmem:[%s903 + $0xd0] sm:$0xff]
  %v931 = vld [vmem:[%s903 + $0xd8] sm:$0xff]
  %v932 = vld [vmem:[%s903 + $0xe0] sm:$0xff]
  %v933 = vld [vmem:[%s903 + $0xe8] sm:$0xff]
  %v934 = vld [vmem:[%s903 + $0xf0] sm:$0xff]
  %v935 = vld [vmem:[%s903 + $0xf8] sm:$0xff]
  %v936 = vld [vmem:[%s903 + $0x100] sm:$0xff]
  %v937 = vld [vmem:[%s903 + $0x108] sm:$0xff]
  %v938 = vld [vmem:[%s903 + $0x110] sm:$0xff]
  %v939 = vld [vmem:[%s903 + $0x118] sm:$0xff]
  %v940 = vld [vmem:[%s903 + $0x120] sm:$0xff]
  %v941 = vld [vmem:[%s903 + $0x128] sm:$0xff]
  %v942 = vld [vmem:[%s903 + $0x130] sm:$0xff]
  %v943 = vld [vmem:[%s903 + $0x138] sm:$0xff]
  %v945 = vsel %vm131, %v908, 0
  %v948 = vsel %vm131, %v913, 0
  %v951 = vsel %vm131, %v918, 0
  %v954 = vsel %vm131, %v923, 0
  %v957 = vsel %vm131, %v928, 0
  %v960 = vsel %vm131, %v933, 0
  %v963 = vsel %vm131, %v938, 0
  %v966 = vsel %vm131, %v943, 0
  %968 = vmatprep.subr.mxu0 0.0
  %969 = vmatpush1.msra.mxu0 %v17
  %970 = vmatprep.subr.mxu0 0.0
  %971 = vmatpush1.msra.mxu0 %v18
  %972 = vmatprep.subr.mxu0 0.0
  %973 = vmatpush1.msra.mxu0 %v19
  %974 = vmatprep.subr.mxu0 0.0
  %975 = vmatpush1.msra.mxu0 %v20
  %976 = vmatprep.subr.mxu0 0.0
  %977 = vmatpush1.msra.mxu0 %v21
  %978 = vmatprep.subr.mxu0 0.0
  %979 = vmatpush1.msra.mxu0 %v22
  %980 = vmatprep.subr.mxu0 0.0
  %981 = vmatpush1.msra.mxu0 %v23
  %982 = vmatprep.subr.mxu0 0.0
  %983 = vmatpush1.msra.mxu0 %v24
  %984 = vmatprep.subr.mxu0 0.0
  %985 = vmatpush1.msra.mxu0 %v25
  %986 = vmatprep.subr.mxu0 0.0
  %987 = vmatpush1.msra.mxu0 %v26
  %988 = vmatprep.subr.mxu0 0.0
  %989 = vmatpush1.msra.mxu0 %v27
  %990 = vmatprep.subr.mxu0 0.0
  %991 = vmatpush1.msra.mxu0 %v28
  %992 = vmatprep.subr.mxu0 0.0
  %993 = vmatpush1.msra.mxu0 %v29
  %994 = vmatprep.subr.mxu0 0.0
  %995 = vmatpush1.msra.mxu0 %v30
  %996 = vmatprep.subr.mxu0 0.0
  %997 = vmatpush1.msra.mxu0 %v31
  %998 = vmatprep.subr.mxu0 0.0
  %999 = vmatpush1.msra.mxu0 %v32
  %1000 = vmatprep.subr.mxu0 0.0
  %1001 = vmatpush1.msra.mxu0 %v33
  %1002 = vmatprep.subr.mxu0 0.0
  %1003 = vmatpush1.msra.mxu0 %v34
  %1004 = vmatprep.subr.mxu0 0.0
  %1005 = vmatpush1.msra.mxu0 %v35
  %1006 = vmatprep.subr.mxu0 0.0
  %1007 = vmatpush1.msra.mxu0 %v36
  %1008 = vmatprep.subr.mxu0 0.0
  %1009 = vmatpush1.msra.mxu0 %v37
  %1010 = vmatprep.subr.mxu0 0.0
  %1011 = vmatpush1.msra.mxu0 %v38
  %1012 = vmatprep.subr.mxu0 0.0
  %1013 = vmatpush1.msra.mxu0 %v39
  %1014 = vmatprep.subr.mxu0 0.0
  %1015 = vmatpush1.msra.mxu0 %v40
  %1016 = vmatprep.subr.mxu0 0.0
  %1017 = vmatpush1.msra.mxu0 %v41
  %1018 = vmatprep.subr.mxu0 0.0
  %1019 = vmatpush1.msra.mxu0 %v42
  %1020 = vmatprep.subr.mxu0 0.0
  %1021 = vmatpush1.msra.mxu0 %v43
  %1022 = vmatprep.subr.mxu0 0.0
  %1023 = vmatpush1.msra.mxu0 %v44
  %1024 = vmatprep.subr.mxu0 0.0
  %1025 = vmatpush1.msra.mxu0 %v45
  %1026 = vmatprep.subr.mxu0 0.0
  %1027 = vmatpush1.msra.mxu0 %v46
  %1028 = vmatprep.subr.mxu0 0.0
  %1029 = vmatpush1.msra.mxu0 %v47
  %1030 = vmatprep.subr.mxu0 0.0
  %1031 = vmatpush1.msra.mxu0 %v48
  %1032 = vmatprep.mubr.f32.mxu0 %v905
  %1033 = vmatmul.mubr.f32.gmra.mrb[0].mxu0 %v904
  %v1034 = vpop.f32.mrb[0].mxu0
  %v1035 = vadd.f32 0.0, %v1034
  %v1036 = vpop.f32.mrb[0].mxu0
  %1037 = vmatprep.mubr.f32.mxu0 %v910
  %1038 = vmatmul.mubr.f32.gmra.mrb[0].mxu0 %v909
  %v1039 = vpop.f32.mrb[0].mxu0
  %v1040 = vadd.f32 0.0, %v1039
  %v1041 = vpop.f32.mrb[0].mxu0
  %1042 = vmatprep.mubr.f32.mxu0 %v915
  %1043 = vmatmul.mubr.f32.gmra.mrb[0].mxu0 %v914
  %v1044 = vpop.f32.mrb[0].mxu0
  %v1045 = vadd.f32 0.0, %v1044
  %v1046 = vpop.f32.mrb[0].mxu0
  %1047 = vmatprep.mubr.f32.mxu0 %v920
  %1048 = vmatmul.mubr.f32.gmra.mrb[0].mxu0 %v919
  %v1049 = vpop.f32.mrb[0].mxu0
  %v1050 = vadd.f32 0.0, %v1049
  %v1051 = vpop.f32.mrb[0].mxu0
  %1052 = vmatprep.mubr.f32.mxu0 %v925
  %1053 = vmatmul.mubr.f32.gmra.mrb[0].mxu0 %v924
  %v1054 = vpop.f32.mrb[0].mxu0
  %v1055 = vadd.f32 0.0, %v1054
  %v1056 = vpop.f32.mrb[0].mxu0
  %1057 = vmatprep.mubr.f32.mxu0 %v930
  %1058 = vmatmul.mubr.f32.gmra.mrb[0].mxu0 %v929
  %v1059 = vpop.f32.mrb[0].mxu0
  %v1060 = vadd.f32 0.0, %v1059
  %v1061 = vpop.f32.mrb[0].mxu0
  %1062 = vmatprep.mubr.f32.mxu0 %v935
  %1063 = vmatmul.mubr.f32.gmra.mrb[0].mxu0 %v934
  %v1064 = vpop.f32.mrb[0].mxu0
  %v1065 = vadd.f32 0.0, %v1064
  %v1066 = vpop.f32.mrb[0].mxu0
  %1067 = vmatprep.mubr.f32.mxu0 %v940
  %1068 = vmatmul.mubr.f32.gmra.mrb[0].mxu0 %v939
  %v1069 = vpop.f32.mrb[0].mxu0
  %v1070 = vadd.f32 0.0, %v1069
  %v1071 = vpop.f32.mrb[0].mxu0
  %1072 = vdwg.mxu0
  %1073 = vmatprep.subr.mxu0 0.0
  %1074 = vmatpush1.msra.mxu0 %v49
  %1075 = vmatprep.subr.mxu0 0.0
  %1076 = vmatpush1.msra.mxu0 %v50
  %1077 = vmatprep.subr.mxu0 0.0
  %1078 = vmatpush1.msra.mxu0 %v51
  %1079 = vmatprep.subr.mxu0 0.0
  %1080 = vmatpush1.msra.mxu0 %v52
  %1081 = vmatprep.subr.mxu0 0.0
  %1082 = vmatpush1.msra.mxu0 %v53
  %1083 = vmatprep.subr.mxu0 0.0
  %1084 = vmatpush1.msra.mxu0 %v54
  %1085 = vmatprep.subr.mxu0 0.0
  %1086 = vmatpush1.msra.mxu0 %v55
  %1087 = vmatprep.subr.mxu0 0.0
  %1088 = vmatpush1.msra.mxu0 %v56
  %1089 = vmatprep.subr.mxu0 0.0
  %1090 = vmatpush1.msra.mxu0 %v57
  %1091 = vmatprep.subr.mxu0 0.0
  %1092 = vmatpush1.msra.mxu0 %v58
  %1093 = vmatprep.subr.mxu0 0.0
  %1094 = vmatpush1.msra.mxu0 %v59
  %1095 = vmatprep.subr.mxu0 0.0
  %1096 = vmatpush1.msra.mxu0 %v60
  %1097 = vmatprep.subr.mxu0 0.0
  %1098 = vmatpush1.msra.mxu0 %v61
  %1099 = vmatprep.subr.mxu0 0.0
  %1100 = vmatpush1.msra.mxu0 %v62
  %1101 = vmatprep.subr.mxu0 0.0
  %1102 = vmatpush1.msra.mxu0 %v63
  %1103 = vmatprep.subr.mxu0 0.0
  %1104 = vmatpush1.msra.mxu0 %v64
  %1105 = vmatprep.subr.mxu0 0.0
  %1106 = vmatpush1.msra.mxu0 %v65
  %1107 = vmatprep.subr.mxu0 0.0
  %1108 = vmatpush1.msra.mxu0 %v66
  %1109 = vmatprep.subr.mxu0 0.0
  %1110 = vmatpush1.msra.mxu0 %v67
  %1111 = vmatprep.subr.mxu0 0.0
  %1112 = vmatpush1.msra.mxu0 %v68
  %1113 = vmatprep.subr.mxu0 0.0
  %1114 = vmatpush1.msra.mxu0 %v69
  %1115 = vmatprep.subr.mxu0 0.0
  %1116 = vmatpush1.msra.mxu0 %v70
  %1117 = vmatprep.subr.mxu0 0.0
  %1118 = vmatpush1.msra.mxu0 %v71
  %1119 = vmatprep.subr.mxu0 0.0
  %1120 = vmatpush1.msra.mxu0 %v72
  %1121 = vmatprep.subr.mxu0 0.0
  %1122 = vmatpush1.msra.mxu0 %v73
  %1123 = vmatprep.subr.mxu0 0.0
  %1124 = vmatpush1.msra.mxu0 %v74
  %1125 = vmatprep.subr.mxu0 0.0
  %1126 = vmatpush1.msra.mxu0 %v75
  %1127 = vmatprep.subr.mxu0 0.0
  %1128 = vmatpush1.msra.mxu0 %v76
  %1129 = vmatprep.subr.mxu0 0.0
  %1130 = vmatpush1.msra.mxu0 %v77
  %1131 = vmatprep.subr.mxu0 0.0
  %1132 = vmatpush1.msra.mxu0 %v78
  %1133 = vmatprep.subr.mxu0 0.0
  %1134 = vmatpush1.msra.mxu0 %v79
  %1135 = vmatprep.subr.mxu0 0.0
  %1136 = vmatpush1.msra.mxu0 %v80
  %1137 = vmatprep.mubr.f32.mxu0 %v907
  %1138 = vmatmul.mubr.f32.gmra.mrb[0].mxu0 %v906
  %v1139 = vpop.f32.mrb[0].mxu0
  %v1140 = vadd.f32 %v1035, %v1139
  %v1141 = vpop.f32.mrb[0].mxu0
  %1142 = vmatprep.mubr.f32.mxu0 %v912
  %1143 = vmatmul.mubr.f32.gmra.mrb[0].mxu0 %v911
  %v1144 = vpop.f32.mrb[0].mxu0
  %v1145 = vadd.f32 %v1040, %v1144
  %v1146 = vpop.f32.mrb[0].mxu0
  %1147 = vmatprep.mubr.f32.mxu0 %v917
  %1148 = vmatmul.mubr.f32.gmra.mrb[0].mxu0 %v916
  %v1149 = vpop.f32.mrb[0].mxu0
  %v1150 = vadd.f32 %v1045, %v1149
  %v1151 = vpop.f32.mrb[0].mxu0
  %1152 = vmatprep.mubr.f32.mxu0 %v922
  %1153 = vmatmul.mubr.f32.gmra.mrb[0].mxu0 %v921
  %v1154 = vpop.f32.mrb[0].mxu0
  %v1155 = vadd.f32 %v1050, %v1154
  %v1156 = vpop.f32.mrb[0].mxu0
  %1157 = vmatprep.mubr.f32.mxu0 %v927
  %1158 = vmatmul.mubr.f32.gmra.mrb[0].mxu0 %v926
  %v1159 = vpop.f32.mrb[0].mxu0
  %v1160 = vadd.f32 %v1055, %v1159
  %v1161 = vpop.f32.mrb[0].mxu0
  %1162 = vmatprep.mubr.f32.mxu0 %v932
  %1163 = vmatmul.mubr.f32.gmra.mrb[0].mxu0 %v931
  %v1164 = vpop.f32.mrb[0].mxu0
  %v1165 = vadd.f32 %v1060, %v1164
  %v1166 = vpop.f32.mrb[0].mxu0
  %1167 = vmatprep.mubr.f32.mxu0 %v937
  %1168 = vmatmul.mubr.f32.gmra.mrb[0].mxu0 %v936
  %v1169 = vpop.f32.mrb[0].mxu0
  %v1170 = vadd.f32 %v1065, %v1169
  %v1171 = vpop.f32.mrb[0].mxu0
  %1172 = vmatprep.mubr.f32.mxu0 %v942
  %1173 = vmatmul.mubr.f32.gmra.mrb[0].mxu0 %v941
  %v1174 = vpop.f32.mrb[0].mxu0
  %v1175 = vadd.f32 %v1070, %v1174
  %v1176 = vpop.f32.mrb[0].mxu0
  %1177 = vdwg.mxu0
  %1178 = vmatprep.subr.mxu0 0.0
  %1179 = vmatpush1.msra.mxu0 %v81
  %1180 = vmatprep.subr.mxu0 0.0
  %1181 = vmatpush1.msra.mxu0 %v82
  %1182 = vmatprep.subr.mxu0 0.0
  %1183 = vmatpush1.msra.mxu0 %v83
  %1184 = vmatprep.subr.mxu0 0.0
  %1185 = vmatpush1.msra.mxu0 %v84
  %1186 = vmatprep.subr.mxu0 0.0
  %1187 = vmatpush1.msra.mxu0 %v85
  %1188 = vmatprep.subr.mxu0 0.0
  %1189 = vmatpush1.msra.mxu0 %v86
  %1190 = vmatprep.subr.mxu0 0.0
  %1191 = vmatpush1.msra.mxu0 %v87
  %1192 = vmatprep.subr.mxu0 0.0
  %1193 = vmatpush1.msra.mxu0 %v88
  %1194 = vmatprep.subr.mxu0 0.0
  %1195 = vmatpush1.msra.mxu0 0.0
  %1196 = vmatprep.subr.mxu0 0.0
  %1197 = vmatpush1.msra.mxu0 0.0
  %1198 = vmatprep.subr.mxu0 0.0
  %1199 = vmatpush1.msra.mxu0 0.0
  %1200 = vmatprep.subr.mxu0 0.0
  %1201 = vmatpush1.msra.mxu0 0.0
  %1202 = vmatprep.subr.mxu0 0.0
  %1203 = vmatpush1.msra.mxu0 0.0
  %1204 = vmatprep.subr.mxu0 0.0
  %1205 = vmatpush1.msra.mxu0 0.0
  %1206 = vmatprep.subr.mxu0 0.0
  %1207 = vmatpush1.msra.mxu0 0.0
  %1208 = vmatprep.subr.mxu0 0.0
  %1209 = vmatpush1.msra.mxu0 0.0
  %1210 = vmatprep.subr.mxu0 0.0
  %1211 = vmatpush1.msra.mxu0 0.0
  %1212 = vmatprep.subr.mxu0 0.0
  %1213 = vmatpush1.msra.mxu0 0.0
  %1214 = vmatprep.subr.mxu0 0.0
  %1215 = vmatpush1.msra.mxu0 0.0
  %1216 = vmatprep.subr.mxu0 0.0
  %1217 = vmatpush1.msra.mxu0 0.0
  %1218 = vmatprep.subr.mxu0 0.0
  %1219 = vmatpush1.msra.mxu0 0.0
  %1220 = vmatprep.subr.mxu0 0.0
  %1221 = vmatpush1.msra.mxu0 0.0
  %1222 = vmatprep.subr.mxu0 0.0
  %1223 = vmatpush1.msra.mxu0 0.0
  %1224 = vmatprep.subr.mxu0 0.0
  %1225 = vmatpush1.msra.mxu0 0.0
  %1226 = vmatprep.subr.mxu0 0.0
  %1227 = vmatpush1.msra.mxu0 0.0
  %1228 = vmatprep.subr.mxu0 0.0
  %1229 = vmatpush1.msra.mxu0 0.0
  %1230 = vmatprep.subr.mxu0 0.0
  %1231 = vmatpush1.msra.mxu0 0.0
  %1232 = vmatprep.subr.mxu0 0.0
  %1233 = vmatpush1.msra.mxu0 0.0
  %1234 = vmatprep.subr.mxu0 0.0
  %1235 = vmatpush1.msra.mxu0 0.0
  %1236 = vmatprep.subr.mxu0 0.0
  %1237 = vmatpush1.msra.mxu0 0.0
  %1238 = vmatprep.subr.mxu0 0.0
  %1239 = vmatpush1.msra.mxu0 0.0
  %1240 = vmatprep.subr.mxu0 0.0
  %1241 = vmatpush1.msra.mxu0 0.0
  %1242 = vmatprep.mubr.f32.mxu0 0.0
  %1243 = vmatmul.mubr.f32.gmra.mrb[0].mxu0 %v945
  %v1244 = vpop.f32.mrb[0].mxu0
  %v1245 = vadd.f32 %v1140, %v1244
  %v1246 = vpop.f32.mrb[0].mxu0
  %1247 = vmatprep.mubr.f32.mxu0 0.0
  %1248 = vmatmul.mubr.f32.gmra.mrb[0].mxu0 %v948
  %v1249 = vpop.f32.mrb[0].mxu0
  %v1250 = vadd.f32 %v1145, %v1249
  %v1251 = vpop.f32.mrb[0].mxu0
  %1252 = vmatprep.mubr.f32.mxu0 0.0
  %1253 = vmatmul.mubr.f32.gmra.mrb[0].mxu0 %v951
  %v1254 = vpop.f32.mrb[0].mxu0
  %v1255 = vadd.f32 %v1150, %v1254
  %v1256 = vpop.f32.mrb[0].mxu0
  %1257 = vmatprep.mubr.f32.mxu0 0.0
  %1258 = vmatmul.mubr.f32.gmra.mrb[0].mxu0 %v954
  %v1259 = vpop.f32.mrb[0].mxu0
  %v1260 = vadd.f32 %v1155, %v1259
  %v1261 = vpop.f32.mrb[0].mxu0
  %1262 = vmatprep.mubr.f32.mxu0 0.0
  %1263 = vmatmul.mubr.f32.gmra.mrb[0].mxu0 %v957
  %v1264 = vpop.f32.mrb[0].mxu0
  %v1265 = vadd.f32 %v1160, %v1264
  %v1266 = vpop.f32.mrb[0].mxu0
  %1267 = vmatprep.mubr.f32.mxu0 0.0
  %1268 = vmatmul.mubr.f32.gmra.mrb[0].mxu0 %v960
  %v1269 = vpop.f32.mrb[0].mxu0
  %v1270 = vadd.f32 %v1165, %v1269
  %v1271 = vpop.f32.mrb[0].mxu0
  %1272 = vmatprep.mubr.f32.mxu0 0.0
  %1273 = vmatmul.mubr.f32.gmra.mrb[0].mxu0 %v963
  %v1274 = vpop.f32.mrb[0].mxu0
  %v1275 = vadd.f32 %v1170, %v1274
  %v1276 = vpop.f32.mrb[0].mxu0
  %1277 = vmatprep.mubr.f32.mxu0 0.0
  %1278 = vmatmul.mubr.f32.gmra.mrb[0].mxu0 %v966
  %v1279 = vpop.f32.mrb[0].mxu0
  %v1280 = vadd.f32 %v1175, %v1279
  %v1281 = vpop.f32.mrb[0].mxu0
  %1282 = vdwg.mxu0
  %v1283 = vmul.f32 %v1245, %v475
  %v1284 = vmul.f32 %v1250, %v475
  %v1285 = vmul.f32 %v1255, %v475
  %v1286 = vmul.f32 %v1260, %v475
  %v1287 = vmul.f32 %v1265, %v475
  %v1288 = vmul.f32 %v1270, %v475
  %v1289 = vmul.f32 %v1275, %v475
  %v1290 = vmul.f32 %v1280, %v475
  %v1291 = vadd.f32 %v1283, %v489
  %v1292 = vadd.f32 %v1284, %v489
  %v1293 = vadd.f32 %v1285, %v489
  %v1294 = vadd.f32 %v1286, %v489
  %v1295 = vadd.f32 %v1287, %v489
  %v1296 = vadd.f32 %v1288, %v489
  %v1297 = vadd.f32 %v1289, %v489
  %v1298 = vadd.f32 %v1290, %v489
  %v1299 = vmax.f32 %v895, %v1291
  %v1300 = vmax.f32 %v896, %v1292
  %v1301 = vmax.f32 %v897, %v1293
  %v1302 = vmax.f32 %v898, %v1294
  %v1303 = vmax.f32 %v899, %v1295
  %v1304 = vmax.f32 %v900, %v1296
  %v1305 = vmax.f32 %v901, %v1297
  %v1306 = vmax.f32 %v902, %v1298
  %s1307 = scalar_lea.vmem %s0, 960
  %v1308 = vld [vmem:[%s1307] sm:$0xff]
  %v1309 = vld [vmem:[%s1307 + $0x8] sm:$0xff]
  %v1310 = vld [vmem:[%s1307 + $0x10] sm:$0xff]
  %v1311 = vld [vmem:[%s1307 + $0x18] sm:$0xff]
  %v1312 = vld [vmem:[%s1307 + $0x20] sm:$0xff]
  %v1313 = vld [vmem:[%s1307 + $0x28] sm:$0xff]
  %v1314 = vld [vmem:[%s1307 + $0x30] sm:$0xff]
  %v1315 = vld [vmem:[%s1307 + $0x38] sm:$0xff]
  %v1316 = vld [vmem:[%s1307 + $0x40] sm:$0xff]
  %v1317 = vld [vmem:[%s1307 + $0x48] sm:$0xff]
  %v1318 = vld [vmem:[%s1307 + $0x50] sm:$0xff]
  %v1319 = vld [vmem:[%s1307 + $0x58] sm:$0xff]
  %v1320 = vld [vmem:[%s1307 + $0x60] sm:$0xff]
  %v1321 = vld [vmem:[%s1307 + $0x68] sm:$0xff]
  %v1322 = vld [vmem:[%s1307 + $0x70] sm:$0xff]
  %v1323 = vld [vmem:[%s1307 + $0x78] sm:$0xff]
  %v1324 = vld [vmem:[%s1307 + $0x80] sm:$0xff]
  %v1325 = vld [vmem:[%s1307 + $0x88] sm:$0xff]
  %v1326 = vld [vmem:[%s1307 + $0x90] sm:$0xff]
  %v1327 = vld [vmem:[%s1307 + $0x98] sm:$0xff]
  %v1328 = vld [vmem:[%s1307 + $0xa0] sm:$0xff]
  %v1329 = vld [vmem:[%s1307 + $0xa8] sm:$0xff]
  %v1330 = vld [vmem:[%s1307 + $0xb0] sm:$0xff]
  %v1331 = vld [vmem:[%s1307 + $0xb8] sm:$0xff]
  %v1332 = vld [vmem:[%s1307 + $0xc0] sm:$0xff]
  %v1333 = vld [vmem:[%s1307 + $0xc8] sm:$0xff]
  %v1334 = vld [vmem:[%s1307 + $0xd0] sm:$0xff]
  %v1335 = vld [vmem:[%s1307 + $0xd8] sm:$0xff]
  %v1336 = vld [vmem:[%s1307 + $0xe0] sm:$0xff]
  %v1337 = vld [vmem:[%s1307 + $0xe8] sm:$0xff]
  %v1338 = vld [vmem:[%s1307 + $0xf0] sm:$0xff]
  %v1339 = vld [vmem:[%s1307 + $0xf8] sm:$0xff]
  %v1340 = vld [vmem:[%s1307 + $0x100] sm:$0xff]
  %v1341 = vld [vmem:[%s1307 + $0x108] sm:$0xff]
  %v1342 = vld [vmem:[%s1307 + $0x110] sm:$0xff]
  %v1343 = vld [vmem:[%s1307 + $0x118] sm:$0xff]
  %v1344 = vld [vmem:[%s1307 + $0x120] sm:$0xff]
  %v1345 = vld [vmem:[%s1307 + $0x128] sm:$0xff]
  %v1346 = vld [vmem:[%s1307 + $0x130] sm:$0xff]
  %v1347 = vld [vmem:[%s1307 + $0x138] sm:$0xff]
  %v1349 = vsel %vm131, %v1312, 0
  %v1352 = vsel %vm131, %v1317, 0
  %v1355 = vsel %vm131, %v1322, 0
  %v1358 = vsel %vm131, %v1327, 0
  %v1361 = vsel %vm131, %v1332, 0
  %v1364 = vsel %vm131, %v1337, 0
  %v1367 = vsel %vm131, %v1342, 0
  %v1370 = vsel %vm131, %v1347, 0
  %1372 = vmatprep.subr.mxu0 0.0
  %1373 = vmatpush1.msra.mxu0 %v17
  %1374 = vmatprep.subr.mxu0 0.0
  %1375 = vmatpush1.msra.mxu0 %v18
  %1376 = vmatprep.subr.mxu0 0.0
  %1377 = vmatpush1.msra.mxu0 %v19
  %1378 = vmatprep.subr.mxu0 0.0
  %1379 = vmatpush1.msra.mxu0 %v20
  %1380 = vmatprep.subr.mxu0 0.0
  %1381 = vmatpush1.msra.mxu0 %v21
  %1382 = vmatprep.subr.mxu0 0.0
  %1383 = vmatpush1.msra.mxu0 %v22
  %1384 = vmatprep.subr.mxu0 0.0
  %1385 = vmatpush1.msra.mxu0 %v23
  %1386 = vmatprep.subr.mxu0 0.0
  %1387 = vmatpush1.msra.mxu0 %v24
  %1388 = vmatprep.subr.mxu0 0.0
  %1389 = vmatpush1.msra.mxu0 %v25
  %1390 = vmatprep.subr.mxu0 0.0
  %1391 = vmatpush1.msra.mxu0 %v26
  %1392 = vmatprep.subr.mxu0 0.0
  %1393 = vmatpush1.msra.mxu0 %v27
  %1394 = vmatprep.subr.mxu0 0.0
  %1395 = vmatpush1.msra.mxu0 %v28
  %1396 = vmatprep.subr.mxu0 0.0
  %1397 = vmatpush1.msra.mxu0 %v29
  %1398 = vmatprep.subr.mxu0 0.0
  %1399 = vmatpush1.msra.mxu0 %v30
  %1400 = vmatprep.subr.mxu0 0.0
  %1401 = vmatpush1.msra.mxu0 %v31
  %1402 = vmatprep.subr.mxu0 0.0
  %1403 = vmatpush1.msra.mxu0 %v32
  %1404 = vmatprep.subr.mxu0 0.0
  %1405 = vmatpush1.msra.mxu0 %v33
  %1406 = vmatprep.subr.mxu0 0.0
  %1407 = vmatpush1.msra.mxu0 %v34
  %1408 = vmatprep.subr.mxu0 0.0
  %1409 = vmatpush1.msra.mxu0 %v35
  %1410 = vmatprep.subr.mxu0 0.0
  %1411 = vmatpush1.msra.mxu0 %v36
  %1412 = vmatprep.subr.mxu0 0.0
  %1413 = vmatpush1.msra.mxu0 %v37
  %1414 = vmatprep.subr.mxu0 0.0
  %1415 = vmatpush1.msra.mxu0 %v38
  %1416 = vmatprep.subr.mxu0 0.0
  %1417 = vmatpush1.msra.mxu0 %v39
  %1418 = vmatprep.subr.mxu0 0.0
  %1419 = vmatpush1.msra.mxu0 %v40
  %1420 = vmatprep.subr.mxu0 0.0
  %1421 = vmatpush1.msra.mxu0 %v41
  %1422 = vmatprep.subr.mxu0 0.0
  %1423 = vmatpush1.msra.mxu0 %v42
  %1424 = vmatprep.subr.mxu0 0.0
  %1425 = vmatpush1.msra.mxu0 %v43
  %1426 = vmatprep.subr.mxu0 0.0
  %1427 = vmatpush1.msra.mxu0 %v44
  %1428 = vmatprep.subr.mxu0 0.0
  %1429 = vmatpush1.msra.mxu0 %v45
  %1430 = vmatprep.subr.mxu0 0.0
  %1431 = vmatpush1.msra.mxu0 %v46
  %1432 = vmatprep.subr.mxu0 0.0
  %1433 = vmatpush1.msra.mxu0 %v47
  %1434 = vmatprep.subr.mxu0 0.0
  %1435 = vmatpush1.msra.mxu0 %v48
  %1436 = vmatprep.mubr.f32.mxu0 %v1309
  %1437 = vmatmul.mubr.f32.gmra.mrb[0].mxu0 %v1308
  %v1438 = vpop.f32.mrb[0].mxu0
  %v1439 = vadd.f32 0.0, %v1438
  %v1440 = vpop.f32.mrb[0].mxu0
  %1441 = vmatprep.mubr.f32.mxu0 %v1314
  %1442 = vmatmul.mubr.f32.gmra.mrb[0].mxu0 %v1313
  %v1443 = vpop.f32.mrb[0].mxu0
  %v1444 = vadd.f32 0.0, %v1443
  %v1445 = vpop.f32.mrb[0].mxu0
  %1446 = vmatprep.mubr.f32.mxu0 %v1319
  %1447 = vmatmul.mubr.f32.gmra.mrb[0].mxu0 %v1318
  %v1448 = vpop.f32.mrb[0].mxu0
  %v1449 = vadd.f32 0.0, %v1448
  %v1450 = vpop.f32.mrb[0].mxu0
  %1451 = vmatprep.mubr.f32.mxu0 %v1324
  %1452 = vmatmul.mubr.f32.gmra.mrb[0].mxu0 %v1323
  %v1453 = vpop.f32.mrb[0].mxu0
  %v1454 = vadd.f32 0.0, %v1453
  %v1455 = vpop.f32.mrb[0].mxu0
  %1456 = vmatprep.mubr.f32.mxu0 %v1329
  %1457 = vmatmul.mubr.f32.gmra.mrb[0].mxu0 %v1328
  %v1458 = vpop.f32.mrb[0].mxu0
  %v1459 = vadd.f32 0.0, %v1458
  %v1460 = vpop.f32.mrb[0].mxu0
  %1461 = vmatprep.mubr.f32.mxu0 %v1334
  %1462 = vmatmul.mubr.f32.gmra.mrb[0].mxu0 %v1333
  %v1463 = vpop.f32.mrb[0].mxu0
  %v1464 = vadd.f32 0.0, %v1463
  %v1465 = vpop.f32.mrb[0].mxu0
  %1466 = vmatprep.mubr.f32.mxu0 %v1339
  %1467 = vmatmul.mubr.f32.gmra.mrb[0].mxu0 %v1338
  %v1468 = vpop.f32.mrb[0].mxu0
  %v1469 = vadd.f32 0.0, %v1468
  %v1470 = vpop.f32.mrb[0].mxu0
  %1471 = vmatprep.mubr.f32.mxu0 %v1344
  %1472 = vmatmul.mubr.f32.gmra.mrb[0].mxu0 %v1343
  %v1473 = vpop.f32.mrb[0].mxu0
  %v1474 = vadd.f32 0.0, %v1473
  %v1475 = vpop.f32.mrb[0].mxu0
  %1476 = vdwg.mxu0
  %1477 = vmatprep.subr.mxu0 0.0
  %1478 = vmatpush1.msra.mxu0 %v49
  %1479 = vmatprep.subr.mxu0 0.0
  %1480 = vmatpush1.msra.mxu0 %v50
  %1481 = vmatprep.subr.mxu0 0.0
  %1482 = vmatpush1.msra.mxu0 %v51
  %1483 = vmatprep.subr.mxu0 0.0
  %1484 = vmatpush1.msra.mxu0 %v52
  %1485 = vmatprep.subr.mxu0 0.0
  %1486 = vmatpush1.msra.mxu0 %v53
  %1487 = vmatprep.subr.mxu0 0.0
  %1488 = vmatpush1.msra.mxu0 %v54
  %1489 = vmatprep.subr.mxu0 0.0
  %1490 = vmatpush1.msra.mxu0 %v55
  %1491 = vmatprep.subr.mxu0 0.0
  %1492 = vmatpush1.msra.mxu0 %v56
  %1493 = vmatprep.subr.mxu0 0.0
  %1494 = vmatpush1.msra.mxu0 %v57
  %1495 = vmatprep.subr.mxu0 0.0
  %1496 = vmatpush1.msra.mxu0 %v58
  %1497 = vmatprep.subr.mxu0 0.0
  %1498 = vmatpush1.msra.mxu0 %v59
  %1499 = vmatprep.subr.mxu0 0.0
  %1500 = vmatpush1.msra.mxu0 %v60
  %1501 = vmatprep.subr.mxu0 0.0
  %1502 = vmatpush1.msra.mxu0 %v61
  %1503 = vmatprep.subr.mxu0 0.0
  %1504 = vmatpush1.msra.mxu0 %v62
  %1505 = vmatprep.subr.mxu0 0.0
  %1506 = vmatpush1.msra.mxu0 %v63
  %1507 = vmatprep.subr.mxu0 0.0
  %1508 = vmatpush1.msra.mxu0 %v64
  %1509 = vmatprep.subr.mxu0 0.0
  %1510 = vmatpush1.msra.mxu0 %v65
  %1511 = vmatprep.subr.mxu0 0.0
  %1512 = vmatpush1.msra.mxu0 %v66
  %1513 = vmatprep.subr.mxu0 0.0
  %1514 = vmatpush1.msra.mxu0 %v67
  %1515 = vmatprep.subr.mxu0 0.0
  %1516 = vmatpush1.msra.mxu0 %v68
  %1517 = vmatprep.subr.mxu0 0.0
  %1518 = vmatpush1.msra.mxu0 %v69
  %1519 = vmatprep.subr.mxu0 0.0
  %1520 = vmatpush1.msra.mxu0 %v70
  %1521 = vmatprep.subr.mxu0 0.0
  %1522 = vmatpush1.msra.mxu0 %v71
  %1523 = vmatprep.subr.mxu0 0.0
  %1524 = vmatpush1.msra.mxu0 %v72
  %1525 = vmatprep.subr.mxu0 0.0
  %1526 = vmatpush1.msra.mxu0 %v73
  %1527 = vmatprep.subr.mxu0 0.0
  %1528 = vmatpush1.msra.mxu0 %v74
  %1529 = vmatprep.subr.mxu0 0.0
  %1530 = vmatpush1.msra.mxu0 %v75
  %1531 = vmatprep.subr.mxu0 0.0
  %1532 = vmatpush1.msra.mxu0 %v76
  %1533 = vmatprep.subr.mxu0 0.0
  %1534 = vmatpush1.msra.mxu0 %v77
  %1535 = vmatprep.subr.mxu0 0.0
  %1536 = vmatpush1.msra.mxu0 %v78
  %1537 = vmatprep.subr.mxu0 0.0
  %1538 = vmatpush1.msra.mxu0 %v79
  %1539 = vmatprep.subr.mxu0 0.0
  %1540 = vmatpush1.msra.mxu0 %v80
  %1541 = vmatprep.mubr.f32.mxu0 %v1311
  %1542 = vmatmul.mubr.f32.gmra.mrb[0].mxu0 %v1310
  %v1543 = vpop.f32.mrb[0].mxu0
  %v1544 = vadd.f32 %v1439, %v1543
  %v1545 = vpop.f32.mrb[0].mxu0
  %1546 = vmatprep.mubr.f32.mxu0 %v1316
  %1547 = vmatmul.mubr.f32.gmra.mrb[0].mxu0 %v1315
  %v1548 = vpop.f32.mrb[0].mxu0
  %v1549 = vadd.f32 %v1444, %v1548
  %v1550 = vpop.f32.mrb[0].mxu0
  %1551 = vmatprep.mubr.f32.mxu0 %v1321
  %1552 = vmatmul.mubr.f32.gmra.mrb[0].mxu0 %v1320
  %v1553 = vpop.f32.mrb[0].mxu0
  %v1554 = vadd.f32 %v1449, %v1553
  %v1555 = vpop.f32.mrb[0].mxu0
  %1556 = vmatprep.mubr.f32.mxu0 %v1326
  %1557 = vmatmul.mubr.f32.gmra.mrb[0].mxu0 %v1325
  %v1558 = vpop.f32.mrb[0].mxu0
  %v1559 = vadd.f32 %v1454, %v1558
  %v1560 = vpop.f32.mrb[0].mxu0
  %1561 = vmatprep.mubr.f32.mxu0 %v1331
  %1562 = vmatmul.mubr.f32.gmra.mrb[0].mxu0 %v1330
  %v1563 = vpop.f32.mrb[0].mxu0
  %v1564 = vadd.f32 %v1459, %v1563
  %v1565 = vpop.f32.mrb[0].mxu0
  %1566 = vmatprep.mubr.f32.mxu0 %v1336
  %1567 = vmatmul.mubr.f32.gmra.mrb[0].mxu0 %v1335
  %v1568 = vpop.f32.mrb[0].mxu0
  %v1569 = vadd.f32 %v1464, %v1568
  %v1570 = vpop.f32.mrb[0].mxu0
  %1571 = vmatprep.mubr.f32.mxu0 %v1341
  %1572 = vmatmul.mubr.f32.gmra.mrb[0].mxu0 %v1340
  %v1573 = vpop.f32.mrb[0].mxu0
  %v1574 = vadd.f32 %v1469, %v1573
  %v1575 = vpop.f32.mrb[0].mxu0
  %1576 = vmatprep.mubr.f32.mxu0 %v1346
  %1577 = vmatmul.mubr.f32.gmra.mrb[0].mxu0 %v1345
  %v1578 = vpop.f32.mrb[0].mxu0
  %v1579 = vadd.f32 %v1474, %v1578
  %v1580 = vpop.f32.mrb[0].mxu0
  %1581 = vdwg.mxu0
  %1582 = vmatprep.subr.mxu0 0.0
  %1583 = vmatpush1.msra.mxu0 %v81
  %1584 = vmatprep.subr.mxu0 0.0
  %1585 = vmatpush1.msra.mxu0 %v82
  %1586 = vmatprep.subr.mxu0 0.0
  %1587 = vmatpush1.msra.mxu0 %v83
  %1588 = vmatprep.subr.mxu0 0.0
  %1589 = vmatpush1.msra.mxu0 %v84
  %1590 = vmatprep.subr.mxu0 0.0
  %1591 = vmatpush1.msra.mxu0 %v85
  %1592 = vmatprep.subr.mxu0 0.0
  %1593 = vmatpush1.msra.mxu0 %v86
  %1594 = vmatprep.subr.mxu0 0.0
  %1595 = vmatpush1.msra.mxu0 %v87
  %1596 = vmatprep.subr.mxu0 0.0
  %1597 = vmatpush1.msra.mxu0 %v88
  %1598 = vmatprep.subr.mxu0 0.0
  %1599 = vmatpush1.msra.mxu0 0.0
  %1600 = vmatprep.subr.mxu0 0.0
  %1601 = vmatpush1.msra.mxu0 0.0
  %1602 = vmatprep.subr.mxu0 0.0
  %1603 = vmatpush1.msra.mxu0 0.0
  %1604 = vmatprep.subr.mxu0 0.0
  %1605 = vmatpush1.msra.mxu0 0.0
  %1606 = vmatprep.subr.mxu0 0.0
  %1607 = vmatpush1.msra.mxu0 0.0
  %1608 = vmatprep.subr.mxu0 0.0
  %1609 = vmatpush1.msra.mxu0 0.0
  %1610 = vmatprep.subr.mxu0 0.0
  %1611 = vmatpush1.msra.mxu0 0.0
  %1612 = vmatprep.subr.mxu0 0.0
  %1613 = vmatpush1.msra.mxu0 0.0
  %1614 = vmatprep.subr.mxu0 0.0
  %1615 = vmatpush1.msra.mxu0 0.0
  %1616 = vmatprep.subr.mxu0 0.0
  %1617 = vmatpush1.msra.mxu0 0.0
  %1618 = vmatprep.subr.mxu0 0.0
  %1619 = vmatpush1.msra.mxu0 0.0
  %1620 = vmatprep.subr.mxu0 0.0
  %1621 = vmatpush1.msra.mxu0 0.0
  %1622 = vmatprep.subr.mxu0 0.0
  %1623 = vmatpush1.msra.mxu0 0.0
  %1624 = vmatprep.subr.mxu0 0.0
  %1625 = vmatpush1.msra.mxu0 0.0
  %1626 = vmatprep.subr.mxu0 0.0
  %1627 = vmatpush1.msra.mxu0 0.0
  %1628 = vmatprep.subr.mxu0 0.0
  %1629 = vmatpush1.msra.mxu0 0.0
  %1630 = vmatprep.subr.mxu0 0.0
  %1631 = vmatpush1.msra.mxu0 0.0
  %1632 = vmatprep.subr.mxu0 0.0
  %1633 = vmatpush1.msra.mxu0 0.0
  %1634 = vmatprep.subr.mxu0 0.0
  %1635 = vmatpush1.msra.mxu0 0.0
  %1636 = vmatprep.subr.mxu0 0.0
  %1637 = vmatpush1.msra.mxu0 0.0
  %1638 = vmatprep.subr.mxu0 0.0
  %1639 = vmatpush1.msra.mxu0 0.0
  %1640 = vmatprep.subr.mxu0 0.0
  %1641 = vmatpush1.msra.mxu0 0.0
  %1642 = vmatprep.subr.mxu0 0.0
  %1643 = vmatpush1.msra.mxu0 0.0
  %1644 = vmatprep.subr.mxu0 0.0
  %1645 = vmatpush1.msra.mxu0 0.0
  %1646 = vmatprep.mubr.f32.mxu0 0.0
  %1647 = vmatmul.mubr.f32.gmra.mrb[0].mxu0 %v1349
  %v1648 = vpop.f32.mrb[0].mxu0
  %v1649 = vadd.f32 %v1544, %v1648
  %v1650 = vpop.f32.mrb[0].mxu0
  %1651 = vmatprep.mubr.f32.mxu0 0.0
  %1652 = vmatmul.mubr.f32.gmra.mrb[0].mxu0 %v1352
  %v1653 = vpop.f32.mrb[0].mxu0
  %v1654 = vadd.f32 %v1549, %v1653
  %v1655 = vpop.f32.mrb[0].mxu0
  %1656 = vmatprep.mubr.f32.mxu0 0.0
  %1657 = vmatmul.mubr.f32.gmra.mrb[0].mxu0 %v1355
  %v1658 = vpop.f32.mrb[0].mxu0
  %v1659 = vadd.f32 %v1554, %v1658
  %v1660 = vpop.f32.mrb[0].mxu0
  %1661 = vmatprep.mubr.f32.mxu0 0.0
  %1662 = vmatmul.mubr.f32.gmra.mrb[0].mxu0 %v1358
  %v1663 = vpop.f32.mrb[0].mxu0
  %v1664 = vadd.f32 %v1559, %v1663
  %v1665 = vpop.f32.mrb[0].mxu0
  %1666 = vmatprep.mubr.f32.mxu0 0.0
  %1667 = vmatmul.mubr.f32.gmra.mrb[0].mxu0 %v1361
  %v1668 = vpop.f32.mrb[0].mxu0
  %v1669 = vadd.f32 %v1564, %v1668
  %v1670 = vpop.f32.mrb[0].mxu0
  %1671 = vmatprep.mubr.f32.mxu0 0.0
  %1672 = vmatmul.mubr.f32.gmra.mrb[0].mxu0 %v1364
  %v1673 = vpop.f32.mrb[0].mxu0
  %v1674 = vadd.f32 %v1569, %v1673
  %v1675 = vpop.f32.mrb[0].mxu0
  %1676 = vmatprep.mubr.f32.mxu0 0.0
  %1677 = vmatmul.mubr.f32.gmra.mrb[0].mxu0 %v1367
  %v1678 = vpop.f32.mrb[0].mxu0
  %v1679 = vadd.f32 %v1574, %v1678
  %v1680 = vpop.f32.mrb[0].mxu0
  %1681 = vmatprep.mubr.f32.mxu0 0.0
  %1682 = vmatmul.mubr.f32.gmra.mrb[0].mxu0 %v1370
  %v1683 = vpop.f32.mrb[0].mxu0
  %v1684 = vadd.f32 %v1579, %v1683
  %v1685 = vpop.f32.mrb[0].mxu0
  %1686 = vdwg.mxu0
  %v1687 = vmul.f32 %v1649, %v475
  %v1688 = vmul.f32 %v1654, %v475
  %v1689 = vmul.f32 %v1659, %v475
  %v1690 = vmul.f32 %v1664, %v475
  %v1691 = vmul.f32 %v1669, %v475
  %v1692 = vmul.f32 %v1674, %v475
  %v1693 = vmul.f32 %v1679, %v475
  %v1694 = vmul.f32 %v1684, %v475
  %v1695 = vadd.f32 %v1687, %v489
  %v1696 = vadd.f32 %v1688, %v489
  %v1697 = vadd.f32 %v1689, %v489
  %v1698 = vadd.f32 %v1690, %v489
  %v1699 = vadd.f32 %v1691, %v489
  %v1700 = vadd.f32 %v1692, %v489
  %v1701 = vadd.f32 %v1693, %v489
  %v1702 = vadd.f32 %v1694, %v489
  %v1703 = vmax.f32 %v1299, %v1695
  %v1704 = vmax.f32 %v1300, %v1696
  %v1705 = vmax.f32 %v1301, %v1697
  %v1706 = vmax.f32 %v1302, %v1698
  %v1707 = vmax.f32 %v1303, %v1699
  %v1708 = vmax.f32 %v1304, %v1700
  %v1709 = vmax.f32 %v1305, %v1701
  %v1710 = vmax.f32 %v1306, %v1702
  %v1711 = vmax.f32 %v1703, 0.0
  %v1712 = vmax.f32 %v1704, 0.0
  %v1713 = vmax.f32 %v1705, 0.0
  %v1714 = vmax.f32 %v1706, 0.0
  %v1715 = vmax.f32 %v1707, 0.0
  %v1716 = vmax.f32 %v1708, 0.0
  %v1717 = vmax.f32 %v1709, 0.0
  %v1718 = vmax.f32 %v1710, 0.0
  %1719 = vst [vmem:[%s4] sm:$0xff] %v1711
  %1720 = vst [vmem:[%s4 + $0x8] sm:$0xff] %v1712
  %1721 = vst [vmem:[%s4 + $0x10] sm:$0xff] %v1713
  %1722 = vst [vmem:[%s4 + $0x18] sm:$0xff] %v1714
  %1723 = vst [vmem:[%s4 + $0x20] sm:$0xff] %v1715
  %1724 = vst [vmem:[%s4 + $0x28] sm:$0xff] %v1716
  %1725 = vst [vmem:[%s4 + $0x30] sm:$0xff] %v1717
  %1726 = vst [vmem:[%s4 + $0x38] sm:$0xff] %v1718
  // Predicated region
  $region18: #{crnn_forward.10} parent=0 // pred_check
    _
  $region19: #{crnn_forward.10} parent=0 // pred_check_branch
    %1728 = sbr.rel (0) target = $region21
  $region20: #{crnn_forward.10} parent=0 // pred_region
    _
  $region21: #{crnn_forward.10} parent=0 // pred_fallthru
    _
  // Predicated region
  $region22: #{crnn_forward.10} parent=0 // pred_check
    _
  $region23: #{crnn_forward.10} parent=0 // pred_check_branch
    %1730 = sbr.rel (0) target = $region25
  $region24: #{crnn_forward.10} parent=0 // pred_region
    _
  $region25: #{crnn_forward.10} parent=0 // pred_fallthru
    _

// kernel: crnn_forward.11
$region0: #{crnn_forward.11}
  #allocation0 [shape = 'u32[]', space=smem, size = 0x4, offset = 0x4, fixed_abs, tag = 'smem constant byte address 0x4 - core index']
  #allocation1 [shape = 'u32[144,128]{1,0:T(1,128)}', space=vmem, size = 0x12000, scoped, tag = 'internal scratch']
  %s0 = inlined_call_operand.vmem [shape: f32[2,32,1152], index: 0, kind: input, shape index: {}]
  %s1 = inlined_call_operand.vmem [shape: f32[1152,256], index: 1, kind: input, shape index: {}]
  %s2 = inlined_call_operand.vmem [shape: f32[1,256], index: 2, kind: input, shape index: {}]
  %s3 = inlined_call_operand.vmem [shape: f32[1,256], index: 3, kind: input, shape index: {}]
  %s4 = inlined_call_operand.vmem [shape: f32[32,256], index: 4, kind: output, shape index: {}]
  %s5 = sld [smem:[#allocation0]]
  $region26: #{crnn_forward.11} parent=0
    _
  %s7 = ssub.s32 1, %s5
  %s8 = scalar_select 0, %s7, %s5
  // Predicated region
  $region2: #{crnn_forward.11} parent=0 // pred_check
    _
  $region3: #{crnn_forward.11} parent=0 // pred_check_branch
    %10 = sbr.rel (0) target = $region5
  $region4: #{crnn_forward.11} parent=0 // pred_region
    _
  $region5: #{crnn_forward.11} parent=0 // pred_fallthru
    _
  // Predicated region
  $region6: #{crnn_forward.11} parent=0 // pred_check
    _
  $region7: #{crnn_forward.11} parent=0 // pred_check_branch
    %12 = sbr.rel (0) target = $region9
  $region8: #{crnn_forward.11} parent=0 // pred_region
    _
  $region9: #{crnn_forward.11} parent=0 // pred_fallthru
    _
  // Predicated region
  $region10: #{crnn_forward.11} parent=0 // pred_check
    _
  $region11: #{crnn_forward.11} parent=0 // pred_check_branch
    %14 = sbr.rel (0) target = $region13
  $region12: #{crnn_forward.11} parent=0 // pred_region
    _
  $region13: #{crnn_forward.11} parent=0 // pred_fallthru
    _
  // Predicated region
  $region14: #{crnn_forward.11} parent=0 // pred_check
    _
  $region15: #{crnn_forward.11} parent=0 // pred_check_branch
    %16 = sbr.rel (0) target = $region17
  $region16: #{crnn_forward.11} parent=0 // pred_region
    _
  $region17: #{crnn_forward.11} parent=0 // pred_fallthru
    _
  %v17 = vld [vmem:[%s1] sm:$0xff]
  %v18 = vld [vmem:[%s1 + $0x8] sm:$0xff]
  %v19 = vld [vmem:[%s1 + $0x10] sm:$0xff]
  %v20 = vld [vmem:[%s1 + $0x18] sm:$0xff]
  %v21 = vld [vmem:[%s1 + $0x20] sm:$0xff]
  %v22 = vld [vmem:[%s1 + $0x28] sm:$0xff]
  %v23 = vld [vmem:[%s1 + $0x30] sm:$0xff]
  %v24 = vld [vmem:[%s1 + $0x38] sm:$0xff]
  %v25 = vld [vmem:[%s1 + $0x40] sm:$0xff]
  %v26 = vld [vmem:[%s1 + $0x48] sm:$0xff]
  %v27 = vld [vmem:[%s1 + $0x50] sm:$0xff]
  %v28 = vld [vmem:[%s1 + $0x58] sm:$0xff]
  %v29 = vld [vmem:[%s1 + $0x60] sm:$0xff]
  %v30 = vld [vmem:[%s1 + $0x68] sm:$0xff]
  %v31 = vld [vmem:[%s1 + $0x70] sm:$0xff]
  %v32 = vld [vmem:[%s1 + $0x78] sm:$0xff]
  %v33 = vld [vmem:[%s1 + $0x80] sm:$0xff]
  %v34 = vld [vmem:[%s1 + $0x88] sm:$0xff]
  %v35 = vld [vmem:[%s1 + $0x90] sm:$0xff]
  %v36 = vld [vmem:[%s1 + $0x98] sm:$0xff]
  %v37 = vld [vmem:[%s1 + $0xa0] sm:$0xff]
  %v38 = vld [vmem:[%s1 + $0xa8] sm:$0xff]
  %v39 = vld [vmem:[%s1 + $0xb0] sm:$0xff]
  %v40 = vld [vmem:[%s1 + $0xb8] sm:$0xff]
  %v41 = vld [vmem:[%s1 + $0xc0] sm:$0xff]
  %v42 = vld [vmem:[%s1 + $0xc8] sm:$0xff]
  %v43 = vld [vmem:[%s1 + $0xd0] sm:$0xff]
  %v44 = vld [vmem:[%s1 + $0xd8] sm:$0xff]
  %v45 = vld [vmem:[%s1 + $0xe0] sm:$0xff]
  %v46 = vld [vmem:[%s1 + $0xe8] sm:$0xff]
  %v47 = vld [vmem:[%s1 + $0xf0] sm:$0xff]
  %v48 = vld [vmem:[%s1 + $0xf8] sm:$0xff]
  %v49 = vld [vmem:[%s1 + $0x100] sm:$0xff]
  %v50 = vld [vmem:[%s1 + $0x108] sm:$0xff]
  %v51 = vld [vmem:[%s1 + $0x110] sm:$0xff]
  %v52 = vld [vmem:[%s1 + $0x118] sm:$0xff]
  %v53 = vld [vmem:[%s1 + $0x120] sm:$0xff]
  %v54 = vld [vmem:[%s1 + $0x128] sm:$0xff]
  %v55 = vld [vmem:[%s1 + $0x130] sm:$0xff]
  %v56 = vld [vmem:[%s1 + $0x138] sm:$0xff]
  %v57 = vld [vmem:[%s1 + $0x140] sm:$0xff]
  %v58 = vld [vmem:[%s1 + $0x148] sm:$0xff]
  %v59 = vld [vmem:[%s1 + $0x150] sm:$0xff]
  %v60 = vld [vmem:[%s1 + $0x158] sm:$0xff]
  %v61 = vld [vmem:[%s1 + $0x160] sm:$0xff]
  %v62 = vld [vmem:[%s1 + $0x168] sm:$0xff]
  %v63 = vld [vmem:[%s1 + $0x170] sm:$0xff]
  %v64 = vld [vmem:[%s1 + $0x178] sm:$0xff]
  %v65 = vld [vmem:[%s1 + $0x180] sm:$0xff]
  %v66 = vld [vmem:[%s1 + $0x188] sm:$0xff]
  %v67 = vld [vmem:[%s1 + $0x190] sm:$0xff]
  %v68 = vld [vmem:[%s1 + $0x198] sm:$0xff]
  %v69 = vld [vmem:[%s1 + $0x1a0] sm:$0xff]
  %v70 = vld [vmem:[%s1 + $0x1a8] sm:$0xff]
  %v71 = vld [vmem:[%s1 + $0x1b0] sm:$0xff]
  %v72 = vld [vmem:[%s1 + $0x1b8] sm:$0xff]
  %v73 = vld [vmem:[%s1 + $0x1c0] sm:$0xff]
  %v74 = vld [vmem:[%s1 + $0x1c8] sm:$0xff]
  %v75 = vld [vmem:[%s1 + $0x1d0] sm:$0xff]
  %v76 = vld [vmem:[%s1 + $0x1d8] sm:$0xff]
  %v77 = vld [vmem:[%s1 + $0x1e0] sm:$0xff]
  %v78 = vld [vmem:[%s1 + $0x1e8] sm:$0xff]
  %v79 = vld [vmem:[%s1 + $0x1f0] sm:$0xff]
  %v80 = vld [vmem:[%s1 + $0x1f8] sm:$0xff]
  %v81 = vld [vmem:[%s1 + $0x200] sm:$0xff]
  %v82 = vld [vmem:[%s1 + $0x208] sm:$0xff]
  %v83 = vld [vmem:[%s1 + $0x210] sm:$0xff]
  %v84 = vld [vmem:[%s1 + $0x218] sm:$0xff]
  %v85 = vld [vmem:[%s1 + $0x220] sm:$0xff]
  %v86 = vld [vmem:[%s1 + $0x228] sm:$0xff]
  %v87 = vld [vmem:[%s1 + $0x230] sm:$0xff]
  %v88 = vld [vmem:[%s1 + $0x238] sm:$0xff]
  %v89 = vld [vmem:[%s1 + $0x240] sm:$0xff]
  %v90 = vld [vmem:[%s1 + $0x248] sm:$0xff]
  %v91 = vld [vmem:[%s1 + $0x250] sm:$0xff]
  %v92 = vld [vmem:[%s1 + $0x258] sm:$0xff]
  %v93 = vld [vmem:[%s1 + $0x260] sm:$0xff]
  %v94 = vld [vmem:[%s1 + $0x268] sm:$0xff]
  %v95 = vld [vmem:[%s1 + $0x270] sm:$0xff]
  %v96 = vld [vmem:[%s1 + $0x278] sm:$0xff]
  %v97 = vld [vmem:[%s1 + $0x280] sm:$0xff]
  %v98 = vld [vmem:[%s1 + $0x288] sm:$0xff]
  %v99 = vld [vmem:[%s1 + $0x290] sm:$0xff]
  %v100 = vld [vmem:[%s1 + $0x298] sm:$0xff]
  %v101 = vld [vmem:[%s1 + $0x2a0] sm:$0xff]
  %v102 = vld [vmem:[%s1 + $0x2a8] sm:$0xff]
  %v103 = vld [vmem:[%s1 + $0x2b0] sm:$0xff]
  %v104 = vld [vmem:[%s1 + $0x2b8] sm:$0xff]
  %v105 = vld [vmem:[%s1 + $0x2c0] sm:$0xff]
  %v106 = vld [vmem:[%s1 + $0x2c8] sm:$0xff]
  %v107 = vld [vmem:[%s1 + $0x2d0] sm:$0xff]
  %v108 = vld [vmem:[%s1 + $0x2d8] sm:$0xff]
  %v109 = vld [vmem:[%s1 + $0x2e0] sm:$0xff]
  %v110 = vld [vmem:[%s1 + $0x2e8] sm:$0xff]
  %v111 = vld [vmem:[%s1 + $0x2f0] sm:$0xff]
  %v112 = vld [vmem:[%s1 + $0x2f8] sm:$0xff]
  %v113 = vld [vmem:[%s1 + $0x300] sm:$0xff]
  %v114 = vld [vmem:[%s1 + $0x308] sm:$0xff]
  %v115 = vld [vmem:[%s1 + $0x310] sm:$0xff]
  %v116 = vld [vmem:[%s1 + $0x318] sm:$0xff]
  %v117 = vld [vmem:[%s1 + $0x320] sm:$0xff]
  %v118 = vld [vmem:[%s1 + $0x328] sm:$0xff]
  %v119 = vld [vmem:[%s1 + $0x330] sm:$0xff]
  %v120 = vld [vmem:[%s1 + $0x338] sm:$0xff]
  %v121 = vld [vmem:[%s1 + $0x340] sm:$0xff]
  %v122 = vld [vmem:[%s1 + $0x348] sm:$0xff]
  %v123 = vld [vmem:[%s1 + $0x350] sm:$0xff]
  %v124 = vld [vmem:[%s1 + $0x358] sm:$0xff]
  %v125 = vld [vmem:[%s1 + $0x360] sm:$0xff]
  %v126 = vld [vmem:[%s1 + $0x368] sm:$0xff]
  %v127 = vld [vmem:[%s1 + $0x370] sm:$0xff]
  %v128 = vld [vmem:[%s1 + $0x378] sm:$0xff]
  %v129 = vld [vmem:[%s1 + $0x380] sm:$0xff]
  %v130 = vld [vmem:[%s1 + $0x388] sm:$0xff]
  %v131 = vld [vmem:[%s1 + $0x390] sm:$0xff]
  %v132 = vld [vmem:[%s1 + $0x398] sm:$0xff]
  %v133 = vld [vmem:[%s1 + $0x3a0] sm:$0xff]
  %v134 = vld [vmem:[%s1 + $0x3a8] sm:$0xff]
  %v135 = vld [vmem:[%s1 + $0x3b0] sm:$0xff]
  %v136 = vld [vmem:[%s1 + $0x3b8] sm:$0xff]
  %v137 = vld [vmem:[%s1 + $0x3c0] sm:$0xff]
  %v138 = vld [vmem:[%s1 + $0x3c8] sm:$0xff]
  %v139 = vld [vmem:[%s1 + $0x3d0] sm:$0xff]
  %v140 = vld [vmem:[%s1 + $0x3d8] sm:$0xff]
  %v141 = vld [vmem:[%s1 + $0x3e0] sm:$0xff]
  %v142 = vld [vmem:[%s1 + $0x3e8] sm:$0xff]
  %v143 = vld [vmem:[%s1 + $0x3f0] sm:$0xff]
  %v144 = vld [vmem:[%s1 + $0x3f8] sm:$0xff]
  %v145 = vld [vmem:[%s1 + $0x400] sm:$0xff]
  %v146 = vld [vmem:[%s1 + $0x408] sm:$0xff]
  %v147 = vld [vmem:[%s1 + $0x410] sm:$0xff]
  %v148 = vld [vmem:[%s1 + $0x418] sm:$0xff]
  %v149 = vld [vmem:[%s1 + $0x420] sm:$0xff]
  %v150 = vld [vmem:[%s1 + $0x428] sm:$0xff]
  %v151 = vld [vmem:[%s1 + $0x430] sm:$0xff]
  %v152 = vld [vmem:[%s1 + $0x438] sm:$0xff]
  %v153 = vld [vmem:[%s1 + $0x440] sm:$0xff]
  %v154 = vld [vmem:[%s1 + $0x448] sm:$0xff]
  %v155 = vld [vmem:[%s1 + $0x450] sm:$0xff]
  %v156 = vld [vmem:[%s1 + $0x458] sm:$0xff]
  %v157 = vld [vmem:[%s1 + $0x460] sm:$0xff]
  %v158 = vld [vmem:[%s1 + $0x468] sm:$0xff]
  %v159 = vld [vmem:[%s1 + $0x470] sm:$0xff]
  %v160 = vld [vmem:[%s1 + $0x478] sm:$0xff]
  %v161 = vld [vmem:[%s1 + $0x480] sm:$0xff]
  %v162 = vld [vmem:[%s1 + $0x488] sm:$0xff]
  %v163 = vld [vmem:[%s1 + $0x490] sm:$0xff]
  %v164 = vld [vmem:[%s1 + $0x498] sm:$0xff]
  %v165 = vld [vmem:[%s1 + $0x4a0] sm:$0xff]
  %v166 = vld [vmem:[%s1 + $0x4a8] sm:$0xff]
  %v167 = vld [vmem:[%s1 + $0x4b0] sm:$0xff]
  %v168 = vld [vmem:[%s1 + $0x4b8] sm:$0xff]
  %v169 = vld [vmem:[%s1 + $0x4c0] sm:$0xff]
  %v170 = vld [vmem:[%s1 + $0x4c8] sm:$0xff]
  %v171 = vld [vmem:[%s1 + $0x4d0] sm:$0xff]
  %v172 = vld [vmem:[%s1 + $0x4d8] sm:$0xff]
  %v173 = vld [vmem:[%s1 + $0x4e0] sm:$0xff]
  %v174 = vld [vmem:[%s1 + $0x4e8] sm:$0xff]
  %v175 = vld [vmem:[%s1 + $0x4f0] sm:$0xff]
  %v176 = vld [vmem:[%s1 + $0x4f8] sm:$0xff]
  %v177 = vld [vmem:[%s1 + $0x500] sm:$0xff]
  %v178 = vld [vmem:[%s1 + $0x508] sm:$0xff]
  %v179 = vld [vmem:[%s1 + $0x510] sm:$0xff]
  %v180 = vld [vmem:[%s1 + $0x518] sm:$0xff]
  %v181 = vld [vmem:[%s1 + $0x520] sm:$0xff]
  %v182 = vld [vmem:[%s1 + $0x528] sm:$0xff]
  %v183 = vld [vmem:[%s1 + $0x530] sm:$0xff]
  %v184 = vld [vmem:[%s1 + $0x538] sm:$0xff]
  %v185 = vld [vmem:[%s1 + $0x540] sm:$0xff]
  %v186 = vld [vmem:[%s1 + $0x548] sm:$0xff]
  %v187 = vld [vmem:[%s1 + $0x550] sm:$0xff]
  %v188 = vld [vmem:[%s1 + $0x558] sm:$0xff]
  %v189 = vld [vmem:[%s1 + $0x560] sm:$0xff]
  %v190 = vld [vmem:[%s1 + $0x568] sm:$0xff]
  %v191 = vld [vmem:[%s1 + $0x570] sm:$0xff]
  %v192 = vld [vmem:[%s1 + $0x578] sm:$0xff]
  %v193 = vld [vmem:[%s1 + $0x580] sm:$0xff]
  %v194 = vld [vmem:[%s1 + $0x588] sm:$0xff]
  %v195 = vld [vmem:[%s1 + $0x590] sm:$0xff]
  %v196 = vld [vmem:[%s1 + $0x598] sm:$0xff]
  %v197 = vld [vmem:[%s1 + $0x5a0] sm:$0xff]
  %v198 = vld [vmem:[%s1 + $0x5a8] sm:$0xff]
  %v199 = vld [vmem:[%s1 + $0x5b0] sm:$0xff]
  %v200 = vld [vmem:[%s1 + $0x5b8] sm:$0xff]
  %v201 = vld [vmem:[%s1 + $0x5c0] sm:$0xff]
  %v202 = vld [vmem:[%s1 + $0x5c8] sm:$0xff]
  %v203 = vld [vmem:[%s1 + $0x5d0] sm:$0xff]
  %v204 = vld [vmem:[%s1 + $0x5d8] sm:$0xff]
  %v205 = vld [vmem:[%s1 + $0x5e0] sm:$0xff]
  %v206 = vld [vmem:[%s1 + $0x5e8] sm:$0xff]
  %v207 = vld [vmem:[%s1 + $0x5f0] sm:$0xff]
  %v208 = vld [vmem:[%s1 + $0x5f8] sm:$0xff]
  %v209 = vld [vmem:[%s1 + $0x600] sm:$0xff]
  %v210 = vld [vmem:[%s1 + $0x608] sm:$0xff]
  %v211 = vld [vmem:[%s1 + $0x610] sm:$0xff]
  %v212 = vld [vmem:[%s1 + $0x618] sm:$0xff]
  %v213 = vld [vmem:[%s1 + $0x620] sm:$0xff]
  %v214 = vld [vmem:[%s1 + $0x628] sm:$0xff]
  %v215 = vld [vmem:[%s1 + $0x630] sm:$0xff]
  %v216 = vld [vmem:[%s1 + $0x638] sm:$0xff]
  %v217 = vld [vmem:[%s1 + $0x640] sm:$0xff]
  %v218 = vld [vmem:[%s1 + $0x648] sm:$0xff]
  %v219 = vld [vmem:[%s1 + $0x650] sm:$0xff]
  %v220 = vld [vmem:[%s1 + $0x658] sm:$0xff]
  %v221 = vld [vmem:[%s1 + $0x660] sm:$0xff]
  %v222 = vld [vmem:[%s1 + $0x668] sm:$0xff]
  %v223 = vld [vmem:[%s1 + $0x670] sm:$0xff]
  %v224 = vld [vmem:[%s1 + $0x678] sm:$0xff]
  %v225 = vld [vmem:[%s1 + $0x680] sm:$0xff]
  %v226 = vld [vmem:[%s1 + $0x688] sm:$0xff]
  %v227 = vld [vmem:[%s1 + $0x690] sm:$0xff]
  %v228 = vld [vmem:[%s1 + $0x698] sm:$0xff]
  %v229 = vld [vmem:[%s1 + $0x6a0] sm:$0xff]
  %v230 = vld [vmem:[%s1 + $0x6a8] sm:$0xff]
  %v231 = vld [vmem:[%s1 + $0x6b0] sm:$0xff]
  %v232 = vld [vmem:[%s1 + $0x6b8] sm:$0xff]
  %v233 = vld [vmem:[%s1 + $0x6c0] sm:$0xff]
  %v234 = vld [vmem:[%s1 + $0x6c8] sm:$0xff]
  %v235 = vld [vmem:[%s1 + $0x6d0] sm:$0xff]
  %v236 = vld [vmem:[%s1 + $0x6d8] sm:$0xff]
  %v237 = vld [vmem:[%s1 + $0x6e0] sm:$0xff]
  %v238 = vld [vmem:[%s1 + $0x6e8] sm:$0xff]
  %v239 = vld [vmem:[%s1 + $0x6f0] sm:$0xff]
  %v240 = vld [vmem:[%s1 + $0x6f8] sm:$0xff]
  %v241 = vld [vmem:[%s1 + $0x700] sm:$0xff]
  %v242 = vld [vmem:[%s1 + $0x708] sm:$0xff]
  %v243 = vld [vmem:[%s1 + $0x710] sm:$0xff]
  %v244 = vld [vmem:[%s1 + $0x718] sm:$0xff]
  %v245 = vld [vmem:[%s1 + $0x720] sm:$0xff]
  %v246 = vld [vmem:[%s1 + $0x728] sm:$0xff]
  %v247 = vld [vmem:[%s1 + $0x730] sm:$0xff]
  %v248 = vld [vmem:[%s1 + $0x738] sm:$0xff]
  %v249 = vld [vmem:[%s1 + $0x740] sm:$0xff]
  %v250 = vld [vmem:[%s1 + $0x748] sm:$0xff]
  %v251 = vld [vmem:[%s1 + $0x750] sm:$0xff]
  %v252 = vld [vmem:[%s1 + $0x758] sm:$0xff]
  %v253 = vld [vmem:[%s1 + $0x760] sm:$0xff]
  %v254 = vld [vmem:[%s1 + $0x768] sm:$0xff]
  %v255 = vld [vmem:[%s1 + $0x770] sm:$0xff]
  %v256 = vld [vmem:[%s1 + $0x778] sm:$0xff]
  %v257 = vld [vmem:[%s1 + $0x780] sm:$0xff]
  %v258 = vld [vmem:[%s1 + $0x788] sm:$0xff]
  %v259 = vld [vmem:[%s1 + $0x790] sm:$0xff]
  %v260 = vld [vmem:[%s1 + $0x798] sm:$0xff]
  %v261 = vld [vmem:[%s1 + $0x7a0] sm:$0xff]
  %v262 = vld [vmem:[%s1 + $0x7a8] sm:$0xff]
  %v263 = vld [vmem:[%s1 + $0x7b0] sm:$0xff]
  %v264 = vld [vmem:[%s1 + $0x7b8] sm:$0xff]
  %v265 = vld [vmem:[%s1 + $0x7c0] sm:$0xff]
  %v266 = vld [vmem:[%s1 + $0x7c8] sm:$0xff]
  %v267 = vld [vmem:[%s1 + $0x7d0] sm:$0xff]
  %v268 = vld [vmem:[%s1 + $0x7d8] sm:$0xff]
  %v269 = vld [vmem:[%s1 + $0x7e0] sm:$0xff]
  %v270 = vld [vmem:[%s1 + $0x7e8] sm:$0xff]
  %v271 = vld [vmem:[%s1 + $0x7f0] sm:$0xff]
  %v272 = vld [vmem:[%s1 + $0x7f8] sm:$0xff]
  %v273 = vld [vmem:[%s1 + $0x800] sm:$0xff]
  %v274 = vld [vmem:[%s1 + $0x808] sm:$0xff]
  %v275 = vld [vmem:[%s1 + $0x810] sm:$0xff]
  %v276 = vld [vmem:[%s1 + $0x818] sm:$0xff]
  %v277 = vld [vmem:[%s1 + $0x820] sm:$0xff]
  %v278 = vld [vmem:[%s1 + $0x828] sm:$0xff]
  %v279 = vld [vmem:[%s1 + $0x830] sm:$0xff]
  %v280 = vld [vmem:[%s1 + $0x838] sm:$0xff]
  %v281 = vld [vmem:[%s1 + $0x840] sm:$0xff]
  %v282 = vld [vmem:[%s1 + $0x848] sm:$0xff]
  %v283 = vld [vmem:[%s1 + $0x850] sm:$0xff]
  %v284 = vld [vmem:[%s1 + $0x858] sm:$0xff]
  %v285 = vld [vmem:[%s1 + $0x860] sm:$0xff]
  %v286 = vld [vmem:[%s1 + $0x868] sm:$0xff]
  %v287 = vld [vmem:[%s1 + $0x870] sm:$0xff]
  %v288 = vld [vmem:[%s1 + $0x878] sm:$0xff]
  %v289 = vld [vmem:[%s1 + $0x880] sm:$0xff]
  %v290 = vld [vmem:[%s1 + $0x888] sm:$0xff]
  %v291 = vld [vmem:[%s1 + $0x890] sm:$0xff]
  %v292 = vld [vmem:[%s1 + $0x898] sm:$0xff]
  %v293 = vld [vmem:[%s1 + $0x8a0] sm:$0xff]
  %v294 = vld [vmem:[%s1 + $0x8a8] sm:$0xff]
  %v295 = vld [vmem:[%s1 + $0x8b0] sm:$0xff]
  %v296 = vld [vmem:[%s1 + $0x8b8] sm:$0xff]
  %v297 = vld [vmem:[%s1 + $0x8c0] sm:$0xff]
  %v298 = vld [vmem:[%s1 + $0x8c8] sm:$0xff]
  %v299 = vld [vmem:[%s1 + $0x8d0] sm:$0xff]
  %v300 = vld [vmem:[%s1 + $0x8d8] sm:$0xff]
  %v301 = vld [vmem:[%s1 + $0x8e0] sm:$0xff]
  %v302 = vld [vmem:[%s1 + $0x8e8] sm:$0xff]
  %v303 = vld [vmem:[%s1 + $0x8f0] sm:$0xff]
  %v304 = vld [vmem:[%s1 + $0x8f8] sm:$0xff]
  %v305 = vld [vmem:[%s2] sm:$0x3]
  %v306 = vld [vmem:[%s3] sm:$0x3]
  %v307 = vld [vmem:[%s0] sm:$0xff]
  %v308 = vld [vmem:[%s0 + $0x8] sm:$0xff]
  %v309 = vld [vmem:[%s0 + $0x10] sm:$0xff]
  %v310 = vld [vmem:[%s0 + $0x18] sm:$0xff]
  %v311 = vld [vmem:[%s0 + $0x20] sm:$0xff]
  %v312 = vld [vmem:[%s0 + $0x28] sm:$0xff]
  %v313 = vld [vmem:[%s0 + $0x30] sm:$0xff]
  %v314 = vld [vmem:[%s0 + $0x38] sm:$0xff]
  %v315 = vld [vmem:[%s0 + $0x40] sm:$0xff]
  %v316 = vld [vmem:[%s0 + $0x48] sm:$0xff]
  %v317 = vld [vmem:[%s0 + $0x50] sm:$0xff]
  %v318 = vld [vmem:[%s0 + $0x58] sm:$0xff]
  %v319 = vld [vmem:[%s0 + $0x60] sm:$0xff]
  %v320 = vld [vmem:[%s0 + $0x68] sm:$0xff]
  %v321 = vld [vmem:[%s0 + $0x70] sm:$0xff]
  %v322 = vld [vmem:[%s0 + $0x78] sm:$0xff]
  %v323 = vld [vmem:[%s0 + $0x80] sm:$0xff]
  %v324 = vld [vmem:[%s0 + $0x88] sm:$0xff]
  %v325 = vld [vmem:[%s0 + $0x90] sm:$0xff]
  %v326 = vld [vmem:[%s0 + $0x98] sm:$0xff]
  %v327 = vld [vmem:[%s0 + $0xa0] sm:$0xff]
  %v328 = vld [vmem:[%s0 + $0xa8] sm:$0xff]
  %v329 = vld [vmem:[%s0 + $0xb0] sm:$0xff]
  %v330 = vld [vmem:[%s0 + $0xb8] sm:$0xff]
  %v331 = vld [vmem:[%s0 + $0xc0] sm:$0xff]
  %v332 = vld [vmem:[%s0 + $0xc8] sm:$0xff]
  %v333 = vld [vmem:[%s0 + $0xd0] sm:$0xff]
  %v334 = vld [vmem:[%s0 + $0xd8] sm:$0xff]
  %v335 = vld [vmem:[%s0 + $0xe0] sm:$0xff]
  %v336 = vld [vmem:[%s0 + $0xe8] sm:$0xff]
  %v337 = vld [vmem:[%s0 + $0xf0] sm:$0xff]
  %v338 = vld [vmem:[%s0 + $0xf8] sm:$0xff]
  %v339 = vld [vmem:[%s0 + $0x100] sm:$0xff]
  %v340 = vld [vmem:[%s0 + $0x108] sm:$0xff]
  %v341 = vld [vmem:[%s0 + $0x110] sm:$0xff]
  %v342 = vld [vmem:[%s0 + $0x118] sm:$0xff]
  %343 = vmatprep.subr.mxu0 %v18
  %344 = vmatpush1.msra.mxu0 %v17
  %345 = vmatprep.subr.mxu0 %v20
  %346 = vmatpush1.msra.mxu0 %v19
  %347 = vmatprep.subr.mxu0 %v22
  %348 = vmatpush1.msra.mxu0 %v21
  %349 = vmatprep.subr.mxu0 %v24
  %350 = vmatpush1.msra.mxu0 %v23
  %351 = vmatprep.subr.mxu0 %v26
  %352 = vmatpush1.msra.mxu0 %v25
  %353 = vmatprep.subr.mxu0 %v28
  %354 = vmatpush1.msra.mxu0 %v27
  %355 = vmatprep.subr.mxu0 %v30
  %356 = vmatpush1.msra.mxu0 %v29
  %357 = vmatprep.subr.mxu0 %v32
  %358 = vmatpush1.msra.mxu0 %v31
  %359 = vmatprep.subr.mxu0 %v34
  %360 = vmatpush1.msra.mxu0 %v33
  %361 = vmatprep.subr.mxu0 %v36
  %362 = vmatpush1.msra.mxu0 %v35
  %363 = vmatprep.subr.mxu0 %v38
  %364 = vmatpush1.msra.mxu0 %v37
  %365 = vmatprep.subr.mxu0 %v40
  %366 = vmatpush1.msra.mxu0 %v39
  %367 = vmatprep.subr.mxu0 %v42
  %368 = vmatpush1.msra.mxu0 %v41
  %369 = vmatprep.subr.mxu0 %v44
  %370 = vmatpush1.msra.mxu0 %v43
  %371 = vmatprep.subr.mxu0 %v46
  %372 = vmatpush1.msra.mxu0 %v45
  %373 = vmatprep.subr.mxu0 %v48
  %374 = vmatpush1.msra.mxu0 %v47
  %375 = vmatprep.subr.mxu0 %v50
  %376 = vmatpush1.msra.mxu0 %v49
  %377 = vmatprep.subr.mxu0 %v52
  %378 = vmatpush1.msra.mxu0 %v51
  %379 = vmatprep.subr.mxu0 %v54
  %380 = vmatpush1.msra.mxu0 %v53
  %381 = vmatprep.subr.mxu0 %v56
  %382 = vmatpush1.msra.mxu0 %v55
  %383 = vmatprep.subr.mxu0 %v58
  %384 = vmatpush1.msra.mxu0 %v57
  %385 = vmatprep.subr.mxu0 %v60
  %386 = vmatpush1.msra.mxu0 %v59
  %387 = vmatprep.subr.mxu0 %v62
  %388 = vmatpush1.msra.mxu0 %v61
  %389 = vmatprep.subr.mxu0 %v64
  %390 = vmatpush1.msra.mxu0 %v63
  %391 = vmatprep.subr.mxu0 %v66
  %392 = vmatpush1.msra.mxu0 %v65
  %393 = vmatprep.subr.mxu0 %v68
  %394 = vmatpush1.msra.mxu0 %v67
  %395 = vmatprep.subr.mxu0 %v70
  %396 = vmatpush1.msra.mxu0 %v69
  %397 = vmatprep.subr.mxu0 %v72
  %398 = vmatpush1.msra.mxu0 %v71
  %399 = vmatprep.subr.mxu0 %v74
  %400 = vmatpush1.msra.mxu0 %v73
  %401 = vmatprep.subr.mxu0 %v76
  %402 = vmatpush1.msra.mxu0 %v75
  %403 = vmatprep.subr.mxu0 %v78
  %404 = vmatpush1.msra.mxu0 %v77
  %405 = vmatprep.subr.mxu0 %v80
  %406 = vmatpush1.msra.mxu0 %v79
  %407 = vmatprep.mubr.f32.mxu0 %v308
  %408 = vmatmul.mubr.f32.gmra.mrb[0].mxu0 %v307
  %v409 = vpop.f32.mrb[0].mxu0
  %v410 = vadd.f32 0.0, %v409
  %v411 = vpop.f32.mrb[0].mxu0
  %v412 = vadd.f32 0.0, %v411
  %413 = vmatprep.mubr.f32.mxu0 %v317
  %414 = vmatmul.mubr.f32.gmra.mrb[0].mxu0 %v316
  %v415 = vpop.f32.mrb[0].mxu0
  %v416 = vadd.f32 0.0, %v415
  %v417 = vpop.f32.mrb[0].mxu0
  %v418 = vadd.f32 0.0, %v417
  %419 = vmatprep.mubr.f32.mxu0 %v326
  %420 = vmatmul.mubr.f32.gmra.mrb[0].mxu0 %v325
  %v421 = vpop.f32.mrb[0].mxu0
  %v422 = vadd.f32 0.0, %v421
  %v423 = vpop.f32.mrb[0].mxu0
  %v424 = vadd.f32 0.0, %v423
  %425 = vmatprep.mubr.f32.mxu0 %v335
  %426 = vmatmul.mubr.f32.gmra.mrb[0].mxu0 %v334
  %v427 = vpop.f32.mrb[0].mxu0
  %v428 = vadd.f32 0.0, %v427
  %v429 = vpop.f32.mrb[0].mxu0
  %v430 = vadd.f32 0.0, %v429
  %431 = vdwg.mxu0
  %432 = vmatprep.subr.mxu0 %v82
  %433 = vmatpush1.msra.mxu0 %v81
  %434 = vmatprep.subr.mxu0 %v84
  %435 = vmatpush1.msra.mxu0 %v83
  %436 = vmatprep.subr.mxu0 %v86
  %437 = vmatpush1.msra.mxu0 %v85
  %438 = vmatprep.subr.mxu0 %v88
  %439 = vmatpush1.msra.mxu0 %v87
  %440 = vmatprep.subr.mxu0 %v90
  %441 = vmatpush1.msra.mxu0 %v89
  %442 = vmatprep.subr.mxu0 %v92
  %443 = vmatpush1.msra.mxu0 %v91
  %444 = vmatprep.subr.mxu0 %v94
  %445 = vmatpush1.msra.mxu0 %v93
  %446 = vmatprep.subr.mxu0 %v96
  %447 = vmatpush1.msra.mxu0 %v95
  %448 = vmatprep.subr.mxu0 %v98
  %449 = vmatpush1.msra.mxu0 %v97
  %450 = vmatprep.subr.mxu0 %v100
  %451 = vmatpush1.msra.mxu0 %v99
  %452 = vmatprep.subr.mxu0 %v102
  %453 = vmatpush1.msra.mxu0 %v101
  %454 = vmatprep.subr.mxu0 %v104
  %455 = vmatpush1.msra.mxu0 %v103
  %456 = vmatprep.subr.mxu0 %v106
  %457 = vmatpush1.msra.mxu0 %v105
  %458 = vmatprep.subr.mxu0 %v108
  %459 = vmatpush1.msra.mxu0 %v107
  %460 = vmatprep.subr.mxu0 %v110
  %461 = vmatpush1.msra.mxu0 %v109
  %462 = vmatprep.subr.mxu0 %v112
  %463 = vmatpush1.msra.mxu0 %v111
  %464 = vmatprep.subr.mxu0 %v114
  %465 = vmatpush1.msra.mxu0 %v113
  %466 = vmatprep.subr.mxu0 %v116
  %467 = vmatpush1.msra.mxu0 %v115
  %468 = vmatprep.subr.mxu0 %v118
  %469 = vmatpush1.msra.mxu0 %v117
  %470 = vmatprep.subr.mxu0 %v120
  %471 = vmatpush1.msra.mxu0 %v119
  %472 = vmatprep.subr.mxu0 %v122
  %473 = vmatpush1.msra.mxu0 %v121
  %474 = vmatprep.subr.mxu0 %v124
  %475 = vmatpush1.msra.mxu0 %v123
  %476 = vmatprep.subr.mxu0 %v126
  %477 = vmatpush1.msra.mxu0 %v125
  %478 = vmatprep.subr.mxu0 %v128
  %479 = vmatpush1.msra.mxu0 %v127
  %480 = vmatprep.subr.mxu0 %v130
  %481 = vmatpush1.msra.mxu0 %v129
  %482 = vmatprep.subr.mxu0 %v132
  %483 = vmatpush1.msra.mxu0 %v131
  %484 = vmatprep.subr.mxu0 %v134
  %485 = vmatpush1.msra.mxu0 %v133
  %486 = vmatprep.subr.mxu0 %v136
  %487 = vmatpush1.msra.mxu0 %v135
  %488 = vmatprep.subr.mxu0 %v138
  %489 = vmatpush1.msra.mxu0 %v137
  %490 = vmatprep.subr.mxu0 %v140
  %491 = vmatpush1.msra.mxu0 %v139
  %492 = vmatprep.subr.mxu0 %v142
  %493 = vmatpush1.msra.mxu0 %v141
  %494 = vmatprep.subr.mxu0 %v144
  %495 = vmatpush1.msra.mxu0 %v143
  %496 = vmatprep.mubr.f32.mxu0 %v310
  %497 = vmatmul.mubr.f32.gmra.mrb[0].mxu0 %v309
  %v498 = vpop.f32.mrb[0].mxu0
  %v499 = vadd.f32 %v410, %v498
  %v500 = vpop.f32.mrb[0].mxu0
  %v501 = vadd.f32 %v412, %v500
  %502 = vmatprep.mubr.f32.mxu0 %v319
  %503 = vmatmul.mubr.f32.gmra.mrb[0].mxu0 %v318
  %v504 = vpop.f32.mrb[0].mxu0
  %v505 = vadd.f32 %v416, %v504
  %v506 = vpop.f32.mrb[0].mxu0
  %v507 = vadd.f32 %v418, %v506
  %508 = vmatprep.mubr.f32.mxu0 %v328
  %509 = vmatmul.mubr.f32.gmra.mrb[0].mxu0 %v327
  %v510 = vpop.f32.mrb[0].mxu0
  %v511 = vadd.f32 %v422, %v510
  %v512 = vpop.f32.mrb[0].mxu0
  %v513 = vadd.f32 %v424, %v512
  %514 = vmatprep.mubr.f32.mxu0 %v337
  %515 = vmatmul.mubr.f32.gmra.mrb[0].mxu0 %v336
  %v516 = vpop.f32.mrb[0].mxu0
  %v517 = vadd.f32 %v428, %v516
  %v518 = vpop.f32.mrb[0].mxu0
  %v519 = vadd.f32 %v430, %v518
  %520 = vdwg.mxu0
  %521 = vmatprep.subr.mxu0 %v146
  %522 = vmatpush1.msra.mxu0 %v145
  %523 = vmatprep.subr.mxu0 %v148
  %524 = vmatpush1.msra.mxu0 %v147
  %525 = vmatprep.subr.mxu0 %v150
  %526 = vmatpush1.msra.mxu0 %v149
  %527 = vmatprep.subr.mxu0 %v152
  %528 = vmatpush1.msra.mxu0 %v151
  %529 = vmatprep.subr.mxu0 %v154
  %530 = vmatpush1.msra.mxu0 %v153
  %531 = vmatprep.subr.mxu0 %v156
  %532 = vmatpush1.msra.mxu0 %v155
  %533 = vmatprep.subr.mxu0 %v158
  %534 = vmatpush1.msra.mxu0 %v157
  %535 = vmatprep.subr.mxu0 %v160
  %536 = vmatpush1.msra.mxu0 %v159
  %537 = vmatprep.subr.mxu0 %v162
  %538 = vmatpush1.msra.mxu0 %v161
  %539 = vmatprep.subr.mxu0 %v164
  %540 = vmatpush1.msra.mxu0 %v163
  %541 = vmatprep.subr.mxu0 %v166
  %542 = vmatpush1.msra.mxu0 %v165
  %543 = vmatprep.subr.mxu0 %v168
  %544 = vmatpush1.msra.mxu0 %v167
  %545 = vmatprep.subr.mxu0 %v170
  %546 = vmatpush1.msra.mxu0 %v169
  %547 = vmatprep.subr.mxu0 %v172
  %548 = vmatpush1.msra.mxu0 %v171
  %549 = vmatprep.subr.mxu0 %v174
  %550 = vmatpush1.msra.mxu0 %v173
  %551 = vmatprep.subr.mxu0 %v176
  %552 = vmatpush1.msra.mxu0 %v175
  %553 = vmatprep.subr.mxu0 %v178
  %554 = vmatpush1.msra.mxu0 %v177
  %555 = vmatprep.subr.mxu0 %v180
  %556 = vmatpush1.msra.mxu0 %v179
  %557 = vmatprep.subr.mxu0 %v182
  %558 = vmatpush1.msra.mxu0 %v181
  %559 = vmatprep.subr.mxu0 %v184
  %560 = vmatpush1.msra.mxu0 %v183
  %561 = vmatprep.subr.mxu0 %v186
  %562 = vmatpush1.msra.mxu0 %v185
  %563 = vmatprep.subr.mxu0 %v188
  %564 = vmatpush1.msra.mxu0 %v187
  %565 = vmatprep.subr.mxu0 %v190
  %566 = vmatpush1.msra.mxu0 %v189
  %567 = vmatprep.subr.mxu0 %v192
  %568 = vmatpush1.msra.mxu0 %v191
  %569 = vmatprep.subr.mxu0 %v194
  %570 = vmatpush1.msra.mxu0 %v193
  %571 = vmatprep.subr.mxu0 %v196
  %572 = vmatpush1.msra.mxu0 %v195
  %573 = vmatprep.subr.mxu0 %v198
  %574 = vmatpush1.msra.mxu0 %v197
  %575 = vmatprep.subr.mxu0 %v200
  %576 = vmatpush1.msra.mxu0 %v199
  %577 = vmatprep.subr.mxu0 %v202
  %578 = vmatpush1.msra.mxu0 %v201
  %579 = vmatprep.subr.mxu0 %v204
  %580 = vmatpush1.msra.mxu0 %v203
  %581 = vmatprep.subr.mxu0 %v206
  %582 = vmatpush1.msra.mxu0 %v205
  %583 = vmatprep.subr.mxu0 %v208
  %584 = vmatpush1.msra.mxu0 %v207
  %585 = vmatprep.mubr.f32.mxu0 %v312
  %586 = vmatmul.mubr.f32.gmra.mrb[0].mxu0 %v311
  %v587 = vpop.f32.mrb[0].mxu0
  %v588 = vadd.f32 %v499, %v587
  %v589 = vpop.f32.mrb[0].mxu0
  %v590 = vadd.f32 %v501, %v589
  %591 = vmatprep.mubr.f32.mxu0 %v321
  %592 = vmatmul.mubr.f32.gmra.mrb[0].mxu0 %v320
  %v593 = vpop.f32.mrb[0].mxu0
  %v594 = vadd.f32 %v505, %v593
  %v595 = vpop.f32.mrb[0].mxu0
  %v596 = vadd.f32 %v507, %v595
  %597 = vmatprep.mubr.f32.mxu0 %v330
  %598 = vmatmul.mubr.f32.gmra.mrb[0].mxu0 %v329
  %v599 = vpop.f32.mrb[0].mxu0
  %v600 = vadd.f32 %v511, %v599
  %v601 = vpop.f32.mrb[0].mxu0
  %v602 = vadd.f32 %v513, %v601
  %603 = vmatprep.mubr.f32.mxu0 %v339
  %604 = vmatmul.mubr.f32.gmra.mrb[0].mxu0 %v338
  %v605 = vpop.f32.mrb[0].mxu0
  %v606 = vadd.f32 %v517, %v605
  %v607 = vpop.f32.mrb[0].mxu0
  %v608 = vadd.f32 %v519, %v607
  %609 = vdwg.mxu0
  %610 = vmatprep.subr.mxu0 %v210
  %611 = vmatpush1.msra.mxu0 %v209
  %612 = vmatprep.subr.mxu0 %v212
  %613 = vmatpush1.msra.mxu0 %v211
  %614 = vmatprep.subr.mxu0 %v214
  %615 = vmatpush1.msra.mxu0 %v213
  %616 = vmatprep.subr.mxu0 %v216
  %617 = vmatpush1.msra.mxu0 %v215
  %618 = vmatprep.subr.mxu0 %v218
  %619 = vmatpush1.msra.mxu0 %v217
  %620 = vmatprep.subr.mxu0 %v220
  %621 = vmatpush1.msra.mxu0 %v219
  %622 = vmatprep.subr.mxu0 %v222
  %623 = vmatpush1.msra.mxu0 %v221
  %624 = vmatprep.subr.mxu0 %v224
  %625 = vmatpush1.msra.mxu0 %v223
  %626 = vmatprep.subr.mxu0 %v226
  %627 = vmatpush1.msra.mxu0 %v225
  %628 = vmatprep.subr.mxu0 %v228
  %629 = vmatpush1.msra.mxu0 %v227
  %630 = vmatprep.subr.mxu0 %v230
  %631 = vmatpush1.msra.mxu0 %v229
  %632 = vmatprep.subr.mxu0 %v232
  %633 = vmatpush1.msra.mxu0 %v231
  %634 = vmatprep.subr.mxu0 %v234
  %635 = vmatpush1.msra.mxu0 %v233
  %636 = vmatprep.subr.mxu0 %v236
  %637 = vmatpush1.msra.mxu0 %v235
  %638 = vmatprep.subr.mxu0 %v238
  %639 = vmatpush1.msra.mxu0 %v237
  %640 = vmatprep.subr.mxu0 %v240
  %641 = vmatpush1.msra.mxu0 %v239
  %642 = vmatprep.subr.mxu0 %v242
  %643 = vmatpush1.msra.mxu0 %v241
  %644 = vmatprep.subr.mxu0 %v244
  %645 = vmatpush1.msra.mxu0 %v243
  %646 = vmatprep.subr.mxu0 %v246
  %647 = vmatpush1.msra.mxu0 %v245
  %648 = vmatprep.subr.mxu0 %v248
  %649 = vmatpush1.msra.mxu0 %v247
  %650 = vmatprep.subr.mxu0 %v250
  %651 = vmatpush1.msra.mxu0 %v249
  %652 = vmatprep.subr.mxu0 %v252
  %653 = vmatpush1.msra.mxu0 %v251
  %654 = vmatprep.subr.mxu0 %v254
  %655 = vmatpush1.msra.mxu0 %v253
  %656 = vmatprep.subr.mxu0 %v256
  %657 = vmatpush1.msra.mxu0 %v255
  %658 = vmatprep.subr.mxu0 %v258
  %659 = vmatpush1.msra.mxu0 %v257
  %660 = vmatprep.subr.mxu0 %v260
  %661 = vmatpush1.msra.mxu0 %v259
  %662 = vmatprep.subr.mxu0 %v262
  %663 = vmatpush1.msra.mxu0 %v261
  %664 = vmatprep.subr.mxu0 %v264
  %665 = vmatpush1.msra.mxu0 %v263
  %666 = vmatprep.subr.mxu0 %v266
  %667 = vmatpush1.msra.mxu0 %v265
  %668 = vmatprep.subr.mxu0 %v268
  %669 = vmatpush1.msra.mxu0 %v267
  %670 = vmatprep.subr.mxu0 %v270
  %671 = vmatpush1.msra.mxu0 %v269
  %672 = vmatprep.subr.mxu0 %v272
  %673 = vmatpush1.msra.mxu0 %v271
  %674 = vmatprep.mubr.f32.mxu0 %v314
  %675 = vmatmul.mubr.f32.gmra.mrb[0].mxu0 %v313
  %v676 = vpop.f32.mrb[0].mxu0
  %v677 = vadd.f32 %v588, %v676
  %v678 = vpop.f32.mrb[0].mxu0
  %v679 = vadd.f32 %v590, %v678
  %680 = vmatprep.mubr.f32.mxu0 %v323
  %681 = vmatmul.mubr.f32.gmra.mrb[0].mxu0 %v322
  %v682 = vpop.f32.mrb[0].mxu0
  %v683 = vadd.f32 %v594, %v682
  %v684 = vpop.f32.mrb[0].mxu0
  %v685 = vadd.f32 %v596, %v684
  %686 = vmatprep.mubr.f32.mxu0 %v332
  %687 = vmatmul.mubr.f32.gmra.mrb[0].mxu0 %v331
  %v688 = vpop.f32.mrb[0].mxu0
  %v689 = vadd.f32 %v600, %v688
  %v690 = vpop.f32.mrb[0].mxu0
  %v691 = vadd.f32 %v602, %v690
  %692 = vmatprep.mubr.f32.mxu0 %v341
  %693 = vmatmul.mubr.f32.gmra.mrb[0].mxu0 %v340
  %v694 = vpop.f32.mrb[0].mxu0
  %v695 = vadd.f32 %v606, %v694
  %v696 = vpop.f32.mrb[0].mxu0
  %v697 = vadd.f32 %v608, %v696
  %698 = vdwg.mxu0
  %699 = vmatprep.subr.mxu0 %v274
  %700 = vmatpush1.msra.mxu0 %v273
  %701 = vmatprep.subr.mxu0 %v276
  %702 = vmatpush1.msra.mxu0 %v275
  %703 = vmatprep.subr.mxu0 %v278
  %704 = vmatpush1.msra.mxu0 %v277
  %705 = vmatprep.subr.mxu0 %v280
  %706 = vmatpush1.msra.mxu0 %v279
  %707 = vmatprep.subr.mxu0 %v282
  %708 = vmatpush1.msra.mxu0 %v281
  %709 = vmatprep.subr.mxu0 %v284
  %710 = vmatpush1.msra.mxu0 %v283
  %711 = vmatprep.subr.mxu0 %v286
  %712 = vmatpush1.msra.mxu0 %v285
  %713 = vmatprep.subr.mxu0 %v288
  %714 = vmatpush1.msra.mxu0 %v287
  %715 = vmatprep.subr.mxu0 %v290
  %716 = vmatpush1.msra.mxu0 %v289
  %717 = vmatprep.subr.mxu0 %v292
  %718 = vmatpush1.msra.mxu0 %v291
  %719 = vmatprep.subr.mxu0 %v294
  %720 = vmatpush1.msra.mxu0 %v293
  %721 = vmatprep.subr.mxu0 %v296
  %722 = vmatpush1.msra.mxu0 %v295
  %723 = vmatprep.subr.mxu0 %v298
  %724 = vmatpush1.msra.mxu0 %v297
  %725 = vmatprep.subr.mxu0 %v300
  %726 = vmatpush1.msra.mxu0 %v299
  %727 = vmatprep.subr.mxu0 %v302
  %728 = vmatpush1.msra.mxu0 %v301
  %729 = vmatprep.subr.mxu0 %v304
  %730 = vmatpush1.msra.mxu0 %v303
  %731 = vmatprep.subr.mxu0 0.0
  %732 = vmatpush1.msra.mxu0 0.0
  %733 = vmatprep.subr.mxu0 0.0
  %734 = vmatpush1.msra.mxu0 0.0
  %735 = vmatprep.subr.mxu0 0.0
  %736 = vmatpush1.msra.mxu0 0.0
  %737 = vmatprep.subr.mxu0 0.0
  %738 = vmatpush1.msra.mxu0 0.0
  %739 = vmatprep.subr.mxu0 0.0
  %740 = vmatpush1.msra.mxu0 0.0
  %741 = vmatprep.subr.mxu0 0.0
  %742 = vmatpush1.msra.mxu0 0.0
  %743 = vmatprep.subr.mxu0 0.0
  %744 = vmatpush1.msra.mxu0 0.0
  %745 = vmatprep.subr.mxu0 0.0
  %746 = vmatpush1.msra.mxu0 0.0
  %747 = vmatprep.subr.mxu0 0.0
  %748 = vmatpush1.msra.mxu0 0.0
  %749 = vmatprep.subr.mxu0 0.0
  %750 = vmatpush1.msra.mxu0 0.0
  %751 = vmatprep.subr.mxu0 0.0
  %752 = vmatpush1.msra.mxu0 0.0
  %753 = vmatprep.subr.mxu0 0.0
  %754 = vmatpush1.msra.mxu0 0.0
  %755 = vmatprep.subr.mxu0 0.0
  %756 = vmatpush1.msra.mxu0 0.0
  %757 = vmatprep.subr.mxu0 0.0
  %758 = vmatpush1.msra.mxu0 0.0
  %759 = vmatprep.subr.mxu0 0.0
  %760 = vmatpush1.msra.mxu0 0.0
  %761 = vmatprep.subr.mxu0 0.0
  %762 = vmatpush1.msra.mxu0 0.0
  %763 = vmatprep.mubr.f32.mxu0 0.0
  %764 = vmatmul.mubr.f32.gmra.mrb[0].mxu0 %v315
  %v765 = vpop.f32.mrb[0].mxu0
  %v766 = vadd.f32 %v677, %v765
  %v767 = vpop.f32.mrb[0].mxu0
  %v768 = vadd.f32 %v679, %v767
  %769 = vmatprep.mubr.f32.mxu0 0.0
  %770 = vmatmul.mubr.f32.gmra.mrb[0].mxu0 %v324
  %v771 = vpop.f32.mrb[0].mxu0
  %v772 = vadd.f32 %v683, %v771
  %v773 = vpop.f32.mrb[0].mxu0
  %v774 = vadd.f32 %v685, %v773
  %775 = vmatprep.mubr.f32.mxu0 0.0
  %776 = vmatmul.mubr.f32.gmra.mrb[0].mxu0 %v333
  %v777 = vpop.f32.mrb[0].mxu0
  %v778 = vadd.f32 %v689, %v777
  %v779 = vpop.f32.mrb[0].mxu0
  %v780 = vadd.f32 %v691, %v779
  %781 = vmatprep.mubr.f32.mxu0 0.0
  %782 = vmatmul.mubr.f32.gmra.mrb[0].mxu0 %v342
  %v783 = vpop.f32.mrb[0].mxu0
  %v784 = vadd.f32 %v695, %v783
  %v785 = vpop.f32.mrb[0].mxu0
  %v786 = vadd.f32 %v697, %v785
  %787 = vdwg.mxu0
  %v789 = vlaneseq
  %v790 = vshrl.u32 %v789, 7
  %v791 = vsub.s32 0, %v790
  %v792 = vrot.slane %v305, %v791
  %v793 = vlaneseq
  %v794 = vshrl.u32 %v793, 7
  %v795 = vsub.s32 1, %v794
  %v796 = vrot.slane %v305, %v795
  %v799 = vmul.f32 %v766, %v792
  %v800 = vmul.f32 %v768, %v796
  %v801 = vmul.f32 %v772, %v792
  %v802 = vmul.f32 %v774, %v796
  %v803 = vmul.f32 %v778, %v792
  %v804 = vmul.f32 %v780, %v796
  %v805 = vmul.f32 %v784, %v792
  %v806 = vmul.f32 %v786, %v796
  %v808 = vlaneseq
  %v809 = vshrl.u32 %v808, 7
  %v810 = vsub.s32 0, %v809
  %v811 = vrot.slane %v306, %v810
  %v812 = vlaneseq
  %v813 = vshrl.u32 %v812, 7
  %v814 = vsub.s32 1, %v813
  %v815 = vrot.slane %v306, %v814
  %v818 = vadd.f32 %v799, %v811
  %v819 = vadd.f32 %v800, %v815
  %v820 = vadd.f32 %v801, %v811
  %v821 = vadd.f32 %v802, %v815
  %v822 = vadd.f32 %v803, %v811
  %v823 = vadd.f32 %v804, %v815
  %v824 = vadd.f32 %v805, %v811
  %v825 = vadd.f32 %v806, %v815
  %s826 = scalar_lea.vmem %s0, 288
  %v827 = vld [vmem:[%s826] sm:$0xff]
  %v828 = vld [vmem:[%s826 + $0x8] sm:$0xff]
  %v829 = vld [vmem:[%s826 + $0x10] sm:$0xff]
  %v830 = vld [vmem:[%s826 + $0x18] sm:$0xff]
  %v831 = vld [vmem:[%s826 + $0x20] sm:$0xff]
  %v832 = vld [vmem:[%s826 + $0x28] sm:$0xff]
  %v833 = vld [vmem:[%s826 + $0x30] sm:$0xff]
  %v834 = vld [vmem:[%s826 + $0x38] sm:$0xff]
  %v835 = vld [vmem:[%s826 + $0x40] sm:$0xff]
  %v836 = vld [vmem:[%s826 + $0x48] sm:$0xff]
  %v837 = vld [vmem:[%s826 + $0x50] sm:$0xff]
  %v838 = vld [vmem:[%s826 + $0x58] sm:$0xff]
  %v839 = vld [vmem:[%s826 + $0x60] sm:$0xff]
  %v840 = vld [vmem:[%s826 + $0x68] sm:$0xff]
  %v841 = vld [vmem:[%s826 + $0x70] sm:$0xff]
  %v842 = vld [vmem:[%s826 + $0x78] sm:$0xff]
  %v843 = vld [vmem:[%s826 + $0x80] sm:$0xff]
  %v844 = vld [vmem:[%s826 + $0x88] sm:$0xff]
  %v845 = vld [vmem:[%s826 + $0x90] sm:$0xff]
  %v846 = vld [vmem:[%s826 + $0x98] sm:$0xff]
  %v847 = vld [vmem:[%s826 + $0xa0] sm:$0xff]
  %v848 = vld [vmem:[%s826 + $0xa8] sm:$0xff]
  %v849 = vld [vmem:[%s826 + $0xb0] sm:$0xff]
  %v850 = vld [vmem:[%s826 + $0xb8] sm:$0xff]
  %v851 = vld [vmem:[%s826 + $0xc0] sm:$0xff]
  %v852 = vld [vmem:[%s826 + $0xc8] sm:$0xff]
  %v853 = vld [vmem:[%s826 + $0xd0] sm:$0xff]
  %v854 = vld [vmem:[%s826 + $0xd8] sm:$0xff]
  %v855 = vld [vmem:[%s826 + $0xe0] sm:$0xff]
  %v856 = vld [vmem:[%s826 + $0xe8] sm:$0xff]
  %v857 = vld [vmem:[%s826 + $0xf0] sm:$0xff]
  %v858 = vld [vmem:[%s826 + $0xf8] sm:$0xff]
  %v859 = vld [vmem:[%s826 + $0x100] sm:$0xff]
  %v860 = vld [vmem:[%s826 + $0x108] sm:$0xff]
  %v861 = vld [vmem:[%s826 + $0x110] sm:$0xff]
  %v862 = vld [vmem:[%s826 + $0x118] sm:$0xff]
  %863 = vmatprep.subr.mxu0 %v18
  %864 = vmatpush1.msra.mxu0 %v17
  %865 = vmatprep.subr.mxu0 %v20
  %866 = vmatpush1.msra.mxu0 %v19
  %867 = vmatprep.subr.mxu0 %v22
  %868 = vmatpush1.msra.mxu0 %v21
  %869 = vmatprep.subr.mxu0 %v24
  %870 = vmatpush1.msra.mxu0 %v23
  %871 = vmatprep.subr.mxu0 %v26
  %872 = vmatpush1.msra.mxu0 %v25
  %873 = vmatprep.subr.mxu0 %v28
  %874 = vmatpush1.msra.mxu0 %v27
  %875 = vmatprep.subr.mxu0 %v30
  %876 = vmatpush1.msra.mxu0 %v29
  %877 = vmatprep.subr.mxu0 %v32
  %878 = vmatpush1.msra.mxu0 %v31
  %879 = vmatprep.subr.mxu0 %v34
  %880 = vmatpush1.msra.mxu0 %v33
  %881 = vmatprep.subr.mxu0 %v36
  %882 = vmatpush1.msra.mxu0 %v35
  %883 = vmatprep.subr.mxu0 %v38
  %884 = vmatpush1.msra.mxu0 %v37
  %885 = vmatprep.subr.mxu0 %v40
  %886 = vmatpush1.msra.mxu0 %v39
  %887 = vmatprep.subr.mxu0 %v42
  %888 = vmatpush1.msra.mxu0 %v41
  %889 = vmatprep.subr.mxu0 %v44
  %890 = vmatpush1.msra.mxu0 %v43
  %891 = vmatprep.subr.mxu0 %v46
  %892 = vmatpush1.msra.mxu0 %v45
  %893 = vmatprep.subr.mxu0 %v48
  %894 = vmatpush1.msra.mxu0 %v47
  %895 = vmatprep.subr.mxu0 %v50
  %896 = vmatpush1.msra.mxu0 %v49
  %897 = vmatprep.subr.mxu0 %v52
  %898 = vmatpush1.msra.mxu0 %v51
  %899 = vmatprep.subr.mxu0 %v54
  %900 = vmatpush1.msra.mxu0 %v53
  %901 = vmatprep.subr.mxu0 %v56
  %902 = vmatpush1.msra.mxu0 %v55
  %903 = vmatprep.subr.mxu0 %v58
  %904 = vmatpush1.msra.mxu0 %v57
  %905 = vmatprep.subr.mxu0 %v60
  %906 = vmatpush1.msra.mxu0 %v59
  %907 = vmatprep.subr.mxu0 %v62
  %908 = vmatpush1.msra.mxu0 %v61
  %909 = vmatprep.subr.mxu0 %v64
  %910 = vmatpush1.msra.mxu0 %v63
  %911 = vmatprep.subr.mxu0 %v66
  %912 = vmatpush1.msra.mxu0 %v65
  %913 = vmatprep.subr.mxu0 %v68
  %914 = vmatpush1.msra.mxu0 %v67
  %915 = vmatprep.subr.mxu0 %v70
  %916 = vmatpush1.msra.mxu0 %v69
  %917 = vmatprep.subr.mxu0 %v72
  %918 = vmatpush1.msra.mxu0 %v71
  %919 = vmatprep.subr.mxu0 %v74
  %920 = vmatpush1.msra.mxu0 %v73
  %921 = vmatprep.subr.mxu0 %v76
  %922 = vmatpush1.msra.mxu0 %v75
  %923 = vmatprep.subr.mxu0 %v78
  %924 = vmatpush1.msra.mxu0 %v77
  %925 = vmatprep.subr.mxu0 %v80
  %926 = vmatpush1.msra.mxu0 %v79
  %927 = vmatprep.mubr.f32.mxu0 %v828
  %928 = vmatmul.mubr.f32.gmra.mrb[0].mxu0 %v827
  %v929 = vpop.f32.mrb[0].mxu0
  %v930 = vadd.f32 0.0, %v929
  %v931 = vpop.f32.mrb[0].mxu0
  %v932 = vadd.f32 0.0, %v931
  %933 = vmatprep.mubr.f32.mxu0 %v837
  %934 = vmatmul.mubr.f32.gmra.mrb[0].mxu0 %v836
  %v935 = vpop.f32.mrb[0].mxu0
  %v936 = vadd.f32 0.0, %v935
  %v937 = vpop.f32.mrb[0].mxu0
  %v938 = vadd.f32 0.0, %v937
  %939 = vmatprep.mubr.f32.mxu0 %v846
  %940 = vmatmul.mubr.f32.gmra.mrb[0].mxu0 %v845
  %v941 = vpop.f32.mrb[0].mxu0
  %v942 = vadd.f32 0.0, %v941
  %v943 = vpop.f32.mrb[0].mxu0
  %v944 = vadd.f32 0.0, %v943
  %945 = vmatprep.mubr.f32.mxu0 %v855
  %946 = vmatmul.mubr.f32.gmra.mrb[0].mxu0 %v854
  %v947 = vpop.f32.mrb[0].mxu0
  %v948 = vadd.f32 0.0, %v947
  %v949 = vpop.f32.mrb[0].mxu0
  %v950 = vadd.f32 0.0, %v949
  %951 = vdwg.mxu0
  %952 = vmatprep.subr.mxu0 %v82
  %953 = vmatpush1.msra.mxu0 %v81
  %954 = vmatprep.subr.mxu0 %v84
  %955 = vmatpush1.msra.mxu0 %v83
  %956 = vmatprep.subr.mxu0 %v86
  %957 = vmatpush1.msra.mxu0 %v85
  %958 = vmatprep.subr.mxu0 %v88
  %959 = vmatpush1.msra.mxu0 %v87
  %960 = vmatprep.subr.mxu0 %v90
  %961 = vmatpush1.msra.mxu0 %v89
  %962 = vmatprep.subr.mxu0 %v92
  %963 = vmatpush1.msra.mxu0 %v91
  %964 = vmatprep.subr.mxu0 %v94
  %965 = vmatpush1.msra.mxu0 %v93
  %966 = vmatprep.subr.mxu0 %v96
  %967 = vmatpush1.msra.mxu0 %v95
  %968 = vmatprep.subr.mxu0 %v98
  %969 = vmatpush1.msra.mxu0 %v97
  %970 = vmatprep.subr.mxu0 %v100
  %971 = vmatpush1.msra.mxu0 %v99
  %972 = vmatprep.subr.mxu0 %v102
  %973 = vmatpush1.msra.mxu0 %v101
  %974 = vmatprep.subr.mxu0 %v104
  %975 = vmatpush1.msra.mxu0 %v103
  %976 = vmatprep.subr.mxu0 %v106
  %977 = vmatpush1.msra.mxu0 %v105
  %978 = vmatprep.subr.mxu0 %v108
  %979 = vmatpush1.msra.mxu0 %v107
  %980 = vmatprep.subr.mxu0 %v110
  %981 = vmatpush1.msra.mxu0 %v109
  %982 = vmatprep.subr.mxu0 %v112
  %983 = vmatpush1.msra.mxu0 %v111
  %984 = vmatprep.subr.mxu0 %v114
  %985 = vmatpush1.msra.mxu0 %v113
  %986 = vmatprep.subr.mxu0 %v116
  %987 = vmatpush1.msra.mxu0 %v115
  %988 = vmatprep.subr.mxu0 %v118
  %989 = vmatpush1.msra.mxu0 %v117
  %990 = vmatprep.subr.mxu0 %v120
  %991 = vmatpush1.msra.mxu0 %v119
  %992 = vmatprep.subr.mxu0 %v122
  %993 = vmatpush1.msra.mxu0 %v121
  %994 = vmatprep.subr.mxu0 %v124
  %995 = vmatpush1.msra.mxu0 %v123
  %996 = vmatprep.subr.mxu0 %v126
  %997 = vmatpush1.msra.mxu0 %v125
  %998 = vmatprep.subr.mxu0 %v128
  %999 = vmatpush1.msra.mxu0 %v127
  %1000 = vmatprep.subr.mxu0 %v130
  %1001 = vmatpush1.msra.mxu0 %v129
  %1002 = vmatprep.subr.mxu0 %v132
  %1003 = vmatpush1.msra.mxu0 %v131
  %1004 = vmatprep.subr.mxu0 %v134
  %1005 = vmatpush1.msra.mxu0 %v133
  %1006 = vmatprep.subr.mxu0 %v136
  %1007 = vmatpush1.msra.mxu0 %v135
  %1008 = vmatprep.subr.mxu0 %v138
  %1009 = vmatpush1.msra.mxu0 %v137
  %1010 = vmatprep.subr.mxu0 %v140
  %1011 = vmatpush1.msra.mxu0 %v139
  %1012 = vmatprep.subr.mxu0 %v142
  %1013 = vmatpush1.msra.mxu0 %v141
  %1014 = vmatprep.subr.mxu0 %v144
  %1015 = vmatpush1.msra.mxu0 %v143
  %1016 = vmatprep.mubr.f32.mxu0 %v830
  %1017 = vmatmul.mubr.f32.gmra.mrb[0].mxu0 %v829
  %v1018 = vpop.f32.mrb[0].mxu0
  %v1019 = vadd.f32 %v930, %v1018
  %v1020 = vpop.f32.mrb[0].mxu0
  %v1021 = vadd.f32 %v932, %v1020
  %1022 = vmatprep.mubr.f32.mxu0 %v839
  %1023 = vmatmul.mubr.f32.gmra.mrb[0].mxu0 %v838
  %v1024 = vpop.f32.mrb[0].mxu0
  %v1025 = vadd.f32 %v936, %v1024
  %v1026 = vpop.f32.mrb[0].mxu0
  %v1027 = vadd.f32 %v938, %v1026
  %1028 = vmatprep.mubr.f32.mxu0 %v848
  %1029 = vmatmul.mubr.f32.gmra.mrb[0].mxu0 %v847
  %v1030 = vpop.f32.mrb[0].mxu0
  %v1031 = vadd.f32 %v942, %v1030
  %v1032 = vpop.f32.mrb[0].mxu0
  %v1033 = vadd.f32 %v944, %v1032
  %1034 = vmatprep.mubr.f32.mxu0 %v857
  %1035 = vmatmul.mubr.f32.gmra.mrb[0].mxu0 %v856
  %v1036 = vpop.f32.mrb[0].mxu0
  %v1037 = vadd.f32 %v948, %v1036
  %v1038 = vpop.f32.mrb[0].mxu0
  %v1039 = vadd.f32 %v950, %v1038
  %1040 = vdwg.mxu0
  %1041 = vmatprep.subr.mxu0 %v146
  %1042 = vmatpush1.msra.mxu0 %v145
  %1043 = vmatprep.subr.mxu0 %v148
  %1044 = vmatpush1.msra.mxu0 %v147
  %1045 = vmatprep.subr.mxu0 %v150
  %1046 = vmatpush1.msra.mxu0 %v149
  %1047 = vmatprep.subr.mxu0 %v152
  %1048 = vmatpush1.msra.mxu0 %v151
  %1049 = vmatprep.subr.mxu0 %v154
  %1050 = vmatpush1.msra.mxu0 %v153
  %1051 = vmatprep.subr.mxu0 %v156
  %1052 = vmatpush1.msra.mxu0 %v155
  %1053 = vmatprep.subr.mxu0 %v158
  %1054 = vmatpush1.msra.mxu0 %v157
  %1055 = vmatprep.subr.mxu0 %v160
  %1056 = vmatpush1.msra.mxu0 %v159
  %1057 = vmatprep.subr.mxu0 %v162
  %1058 = vmatpush1.msra.mxu0 %v161
  %1059 = vmatprep.subr.mxu0 %v164
  %1060 = vmatpush1.msra.mxu0 %v163
  %1061 = vmatprep.subr.mxu0 %v166
  %1062 = vmatpush1.msra.mxu0 %v165
  %1063 = vmatprep.subr.mxu0 %v168
  %1064 = vmatpush1.msra.mxu0 %v167
  %1065 = vmatprep.subr.mxu0 %v170
  %1066 = vmatpush1.msra.mxu0 %v169
  %1067 = vmatprep.subr.mxu0 %v172
  %1068 = vmatpush1.msra.mxu0 %v171
  %1069 = vmatprep.subr.mxu0 %v174
  %1070 = vmatpush1.msra.mxu0 %v173
  %1071 = vmatprep.subr.mxu0 %v176
  %1072 = vmatpush1.msra.mxu0 %v175
  %1073 = vmatprep.subr.mxu0 %v178
  %1074 = vmatpush1.msra.mxu0 %v177
  %1075 = vmatprep.subr.mxu0 %v180
  %1076 = vmatpush1.msra.mxu0 %v179
  %1077 = vmatprep.subr.mxu0 %v182
  %1078 = vmatpush1.msra.mxu0 %v181
  %1079 = vmatprep.subr.mxu0 %v184
  %1080 = vmatpush1.msra.mxu0 %v183
  %1081 = vmatprep.subr.mxu0 %v186
  %1082 = vmatpush1.msra.mxu0 %v185
  %1083 = vmatprep.subr.mxu0 %v188
  %1084 = vmatpush1.msra.mxu0 %v187
  %1085 = vmatprep.subr.mxu0 %v190
  %1086 = vmatpush1.msra.mxu0 %v189
  %1087 = vmatprep.subr.mxu0 %v192
  %1088 = vmatpush1.msra.mxu0 %v191
  %1089 = vmatprep.subr.mxu0 %v194
  %1090 = vmatpush1.msra.mxu0 %v193
  %1091 = vmatprep.subr.mxu0 %v196
  %1092 = vmatpush1.msra.mxu0 %v195
  %1093 = vmatprep.subr.mxu0 %v198
  %1094 = vmatpush1.msra.mxu0 %v197
  %1095 = vmatprep.subr.mxu0 %v200
  %1096 = vmatpush1.msra.mxu0 %v199
  %1097 = vmatprep.subr.mxu0 %v202
  %1098 = vmatpush1.msra.mxu0 %v201
  %1099 = vmatprep.subr.mxu0 %v204
  %1100 = vmatpush1.msra.mxu0 %v203
  %1101 = vmatprep.subr.mxu0 %v206
  %1102 = vmatpush1.msra.mxu0 %v205
  %1103 = vmatprep.subr.mxu0 %v208
  %1104 = vmatpush1.msra.mxu0 %v207
  %1105 = vmatprep.mubr.f32.mxu0 %v832
  %1106 = vmatmul.mubr.f32.gmra.mrb[0].mxu0 %v831
  %v1107 = vpop.f32.mrb[0].mxu0
  %v1108 = vadd.f32 %v1019, %v1107
  %v1109 = vpop.f32.mrb[0].mxu0
  %v1110 = vadd.f32 %v1021, %v1109
  %1111 = vmatprep.mubr.f32.mxu0 %v841
  %1112 = vmatmul.mubr.f32.gmra.mrb[0].mxu0 %v840
  %v1113 = vpop.f32.mrb[0].mxu0
  %v1114 = vadd.f32 %v1025, %v1113
  %v1115 = vpop.f32.mrb[0].mxu0
  %v1116 = vadd.f32 %v1027, %v1115
  %1117 = vmatprep.mubr.f32.mxu0 %v850
  %1118 = vmatmul.mubr.f32.gmra.mrb[0].mxu0 %v849
  %v1119 = vpop.f32.mrb[0].mxu0
  %v1120 = vadd.f32 %v1031, %v1119
  %v1121 = vpop.f32.mrb[0].mxu0
  %v1122 = vadd.f32 %v1033, %v1121
  %1123 = vmatprep.mubr.f32.mxu0 %v859
  %1124 = vmatmul.mubr.f32.gmra.mrb[0].mxu0 %v858
  %v1125 = vpop.f32.mrb[0].mxu0
  %v1126 = vadd.f32 %v1037, %v1125
  %v1127 = vpop.f32.mrb[0].mxu0
  %v1128 = vadd.f32 %v1039, %v1127
  %1129 = vdwg.mxu0
  %1130 = vmatprep.subr.mxu0 %v210
  %1131 = vmatpush1.msra.mxu0 %v209
  %1132 = vmatprep.subr.mxu0 %v212
  %1133 = vmatpush1.msra.mxu0 %v211
  %1134 = vmatprep.subr.mxu0 %v214
  %1135 = vmatpush1.msra.mxu0 %v213
  %1136 = vmatprep.subr.mxu0 %v216
  %1137 = vmatpush1.msra.mxu0 %v215
  %1138 = vmatprep.subr.mxu0 %v218
  %1139 = vmatpush1.msra.mxu0 %v217
  %1140 = vmatprep.subr.mxu0 %v220
  %1141 = vmatpush1.msra.mxu0 %v219
  %1142 = vmatprep.subr.mxu0 %v222
  %1143 = vmatpush1.msra.mxu0 %v221
  %1144 = vmatprep.subr.mxu0 %v224
  %1145 = vmatpush1.msra.mxu0 %v223
  %1146 = vmatprep.subr.mxu0 %v226
  %1147 = vmatpush1.msra.mxu0 %v225
  %1148 = vmatprep.subr.mxu0 %v228
  %1149 = vmatpush1.msra.mxu0 %v227
  %1150 = vmatprep.subr.mxu0 %v230
  %1151 = vmatpush1.msra.mxu0 %v229
  %1152 = vmatprep.subr.mxu0 %v232
  %1153 = vmatpush1.msra.mxu0 %v231
  %1154 = vmatprep.subr.mxu0 %v234
  %1155 = vmatpush1.msra.mxu0 %v233
  %1156 = vmatprep.subr.mxu0 %v236
  %1157 = vmatpush1.msra.mxu0 %v235
  %1158 = vmatprep.subr.mxu0 %v238
  %1159 = vmatpush1.msra.mxu0 %v237
  %1160 = vmatprep.subr.mxu0 %v240
  %1161 = vmatpush1.msra.mxu0 %v239
  %1162 = vmatprep.subr.mxu0 %v242
  %1163 = vmatpush1.msra.mxu0 %v241
  %1164 = vmatprep.subr.mxu0 %v244
  %1165 = vmatpush1.msra.mxu0 %v243
  %1166 = vmatprep.subr.mxu0 %v246
  %1167 = vmatpush1.msra.mxu0 %v245
  %1168 = vmatprep.subr.mxu0 %v248
  %1169 = vmatpush1.msra.mxu0 %v247
  %1170 = vmatprep.subr.mxu0 %v250
  %1171 = vmatpush1.msra.mxu0 %v249
  %1172 = vmatprep.subr.mxu0 %v252
  %1173 = vmatpush1.msra.mxu0 %v251
  %1174 = vmatprep.subr.mxu0 %v254
  %1175 = vmatpush1.msra.mxu0 %v253
  %1176 = vmatprep.subr.mxu0 %v256
  %1177 = vmatpush1.msra.mxu0 %v255
  %1178 = vmatprep.subr.mxu0 %v258
  %1179 = vmatpush1.msra.mxu0 %v257
  %1180 = vmatprep.subr.mxu0 %v260
  %1181 = vmatpush1.msra.mxu0 %v259
  %1182 = vmatprep.subr.mxu0 %v262
  %1183 = vmatpush1.msra.mxu0 %v261
  %1184 = vmatprep.subr.mxu0 %v264
  %1185 = vmatpush1.msra.mxu0 %v263
  %1186 = vmatprep.subr.mxu0 %v266
  %1187 = vmatpush1.msra.mxu0 %v265
  %1188 = vmatprep.subr.mxu0 %v268
  %1189 = vmatpush1.msra.mxu0 %v267
  %1190 = vmatprep.subr.mxu0 %v270
  %1191 = vmatpush1.msra.mxu0 %v269
  %1192 = vmatprep.subr.mxu0 %v272
  %1193 = vmatpush1.msra.mxu0 %v271
  %1194 = vmatprep.mubr.f32.mxu0 %v834
  %1195 = vmatmul.mubr.f32.gmra.mrb[0].mxu0 %v833
  %v1196 = vpop.f32.mrb[0].mxu0
  %v1197 = vadd.f32 %v1108, %v1196
  %v1198 = vpop.f32.mrb[0].mxu0
  %v1199 = vadd.f32 %v1110, %v1198
  %1200 = vmatprep.mubr.f32.mxu0 %v843
  %1201 = vmatmul.mubr.f32.gmra.mrb[0].mxu0 %v842
  %v1202 = vpop.f32.mrb[0].mxu0
  %v1203 = vadd.f32 %v1114, %v1202
  %v1204 = vpop.f32.mrb[0].mxu0
  %v1205 = vadd.f32 %v1116, %v1204
  %1206 = vmatprep.mubr.f32.mxu0 %v852
  %1207 = vmatmul.mubr.f32.gmra.mrb[0].mxu0 %v851
  %v1208 = vpop.f32.mrb[0].mxu0
  %v1209 = vadd.f32 %v1120, %v1208
  %v1210 = vpop.f32.mrb[0].mxu0
  %v1211 = vadd.f32 %v1122, %v1210
  %1212 = vmatprep.mubr.f32.mxu0 %v861
  %1213 = vmatmul.mubr.f32.gmra.mrb[0].mxu0 %v860
  %v1214 = vpop.f32.mrb[0].mxu0
  %v1215 = vadd.f32 %v1126, %v1214
  %v1216 = vpop.f32.mrb[0].mxu0
  %v1217 = vadd.f32 %v1128, %v1216
  %1218 = vdwg.mxu0
  %1219 = vmatprep.subr.mxu0 %v274
  %1220 = vmatpush1.msra.mxu0 %v273
  %1221 = vmatprep.subr.mxu0 %v276
  %1222 = vmatpush1.msra.mxu0 %v275
  %1223 = vmatprep.subr.mxu0 %v278
  %1224 = vmatpush1.msra.mxu0 %v277
  %1225 = vmatprep.subr.mxu0 %v280
  %1226 = vmatpush1.msra.mxu0 %v279
  %1227 = vmatprep.subr.mxu0 %v282
  %1228 = vmatpush1.msra.mxu0 %v281
  %1229 = vmatprep.subr.mxu0 %v284
  %1230 = vmatpush1.msra.mxu0 %v283
  %1231 = vmatprep.subr.mxu0 %v286
  %1232 = vmatpush1.msra.mxu0 %v285
  %1233 = vmatprep.subr.mxu0 %v288
  %1234 = vmatpush1.msra.mxu0 %v287
  %1235 = vmatprep.subr.mxu0 %v290
  %1236 = vmatpush1.msra.mxu0 %v289
  %1237 = vmatprep.subr.mxu0 %v292
  %1238 = vmatpush1.msra.mxu0 %v291
  %1239 = vmatprep.subr.mxu0 %v294
  %1240 = vmatpush1.msra.mxu0 %v293
  %1241 = vmatprep.subr.mxu0 %v296
  %1242 = vmatpush1.msra.mxu0 %v295
  %1243 = vmatprep.subr.mxu0 %v298
  %1244 = vmatpush1.msra.mxu0 %v297
  %1245 = vmatprep.subr.mxu0 %v300
  %1246 = vmatpush1.msra.mxu0 %v299
  %1247 = vmatprep.subr.mxu0 %v302
  %1248 = vmatpush1.msra.mxu0 %v301
  %1249 = vmatprep.subr.mxu0 %v304
  %1250 = vmatpush1.msra.mxu0 %v303
  %1251 = vmatprep.subr.mxu0 0.0
  %1252 = vmatpush1.msra.mxu0 0.0
  %1253 = vmatprep.subr.mxu0 0.0
  %1254 = vmatpush1.msra.mxu0 0.0
  %1255 = vmatprep.subr.mxu0 0.0
  %1256 = vmatpush1.msra.mxu0 0.0
  %1257 = vmatprep.subr.mxu0 0.0
  %1258 = vmatpush1.msra.mxu0 0.0
  %1259 = vmatprep.subr.mxu0 0.0
  %1260 = vmatpush1.msra.mxu0 0.0
  %1261 = vmatprep.subr.mxu0 0.0
  %1262 = vmatpush1.msra.mxu0 0.0
  %1263 = vmatprep.subr.mxu0 0.0
  %1264 = vmatpush1.msra.mxu0 0.0
  %1265 = vmatprep.subr.mxu0 0.0
  %1266 = vmatpush1.msra.mxu0 0.0
  %1267 = vmatprep.subr.mxu0 0.0
  %1268 = vmatpush1.msra.mxu0 0.0
  %1269 = vmatprep.subr.mxu0 0.0
  %1270 = vmatpush1.msra.mxu0 0.0
  %1271 = vmatprep.subr.mxu0 0.0
  %1272 = vmatpush1.msra.mxu0 0.0
  %1273 = vmatprep.subr.mxu0 0.0
  %1274 = vmatpush1.msra.mxu0 0.0
  %1275 = vmatprep.subr.mxu0 0.0
  %1276 = vmatpush1.msra.mxu0 0.0
  %1277 = vmatprep.subr.mxu0 0.0
  %1278 = vmatpush1.msra.mxu0 0.0
  %1279 = vmatprep.subr.mxu0 0.0
  %1280 = vmatpush1.msra.mxu0 0.0
  %1281 = vmatprep.subr.mxu0 0.0
  %1282 = vmatpush1.msra.mxu0 0.0
  %1283 = vmatprep.mubr.f32.mxu0 0.0
  %1284 = vmatmul.mubr.f32.gmra.mrb[0].mxu0 %v835
  %v1285 = vpop.f32.mrb[0].mxu0
  %v1286 = vadd.f32 %v1197, %v1285
  %v1287 = vpop.f32.mrb[0].mxu0
  %v1288 = vadd.f32 %v1199, %v1287
  %1289 = vmatprep.mubr.f32.mxu0 0.0
  %1290 = vmatmul.mubr.f32.gmra.mrb[0].mxu0 %v844
  %v1291 = vpop.f32.mrb[0].mxu0
  %v1292 = vadd.f32 %v1203, %v1291
  %v1293 = vpop.f32.mrb[0].mxu0
  %v1294 = vadd.f32 %v1205, %v1293
  %1295 = vmatprep.mubr.f32.mxu0 0.0
  %1296 = vmatmul.mubr.f32.gmra.mrb[0].mxu0 %v853
  %v1297 = vpop.f32.mrb[0].mxu0
  %v1298 = vadd.f32 %v1209, %v1297
  %v1299 = vpop.f32.mrb[0].mxu0
  %v1300 = vadd.f32 %v1211, %v1299
  %1301 = vmatprep.mubr.f32.mxu0 0.0
  %1302 = vmatmul.mubr.f32.gmra.mrb[0].mxu0 %v862
  %v1303 = vpop.f32.mrb[0].mxu0
  %v1304 = vadd.f32 %v1215, %v1303
  %v1305 = vpop.f32.mrb[0].mxu0
  %v1306 = vadd.f32 %v1217, %v1305
  %1307 = vdwg.mxu0
  %v1308 = vmul.f32 %v1286, %v792
  %v1309 = vmul.f32 %v1288, %v796
  %v1310 = vmul.f32 %v1292, %v792
  %v1311 = vmul.f32 %v1294, %v796
  %v1312 = vmul.f32 %v1298, %v792
  %v1313 = vmul.f32 %v1300, %v796
  %v1314 = vmul.f32 %v1304, %v792
  %v1315 = vmul.f32 %v1306, %v796
  %v1316 = vadd.f32 %v1308, %v811
  %v1317 = vadd.f32 %v1309, %v815
  %v1318 = vadd.f32 %v1310, %v811
  %v1319 = vadd.f32 %v1311, %v815
  %v1320 = vadd.f32 %v1312, %v811
  %v1321 = vadd.f32 %v1313, %v815
  %v1322 = vadd.f32 %v1314, %v811
  %v1323 = vadd.f32 %v1315, %v815
  %v1324 = vmax.f32 %v818, %v1316
  %v1325 = vmax.f32 %v819, %v1317
  %v1326 = vmax.f32 %v820, %v1318
  %v1327 = vmax.f32 %v821, %v1319
  %v1328 = vmax.f32 %v822, %v1320
  %v1329 = vmax.f32 %v823, %v1321
  %v1330 = vmax.f32 %v824, %v1322
  %v1331 = vmax.f32 %v825, %v1323
  %v1332 = vmax.f32 %v1324, 0.0
  %v1333 = vmax.f32 %v1325, 0.0
  %v1334 = vmax.f32 %v1326, 0.0
  %v1335 = vmax.f32 %v1327, 0.0
  %v1336 = vmax.f32 %v1328, 0.0
  %v1337 = vmax.f32 %v1329, 0.0
  %v1338 = vmax.f32 %v1330, 0.0
  %v1339 = vmax.f32 %v1331, 0.0
  %1340 = vst [vmem:[%s4] sm:$0xff] %v1332
  %1341 = vst [vmem:[%s4 + $0x8] sm:$0xff] %v1333
  %1342 = vst [vmem:[%s4 + $0x10] sm:$0xff] %v1334
  %1343 = vst [vmem:[%s4 + $0x18] sm:$0xff] %v1335
  %1344 = vst [vmem:[%s4 + $0x20] sm:$0xff] %v1336
  %1345 = vst [vmem:[%s4 + $0x28] sm:$0xff] %v1337
  %1346 = vst [vmem:[%s4 + $0x30] sm:$0xff] %v1338
  %1347 = vst [vmem:[%s4 + $0x38] sm:$0xff] %v1339
  // Predicated region
  $region18: #{crnn_forward.11} parent=0 // pred_check
    _
  $region19: #{crnn_forward.11} parent=0 // pred_check_branch
    %1349 = sbr.rel (0) target = $region21
  $region20: #{crnn_forward.11} parent=0 // pred_region
    _
  $region21: #{crnn_forward.11} parent=0 // pred_fallthru
    _
  // Predicated region
  $region22: #{crnn_forward.11} parent=0 // pred_check
    _
  $region23: #{crnn_forward.11} parent=0 // pred_check_branch
    %1351 = sbr.rel (0) target = $region25
  $region24: #{crnn_forward.11} parent=0 // pred_region
    _
  $region25: #{crnn_forward.11} parent=0 // pred_fallthru
    _

// kernel: crnn_forward.13
$region0: #{crnn_forward.13}
  #allocation0 [shape = 'u32[]', space=smem, size = 0x4, offset = 0x4, fixed_abs, tag = 'smem constant byte address 0x4 - core index']
  #allocation1 [shape = 'u32[144,128]{1,0:T(1,128)}', space=vmem, size = 0x12000, scoped, tag = 'internal scratch']
  %s0 = inlined_call_operand.vmem [shape: f32[8,1024], index: 0, kind: input, shape index: {}]
  %s1 = inlined_call_operand.vmem [shape: f32[1024,256], index: 1, kind: input, shape index: {}]
  %s2 = inlined_call_operand.vmem [shape: f32[1,256], index: 2, kind: input, shape index: {}]
  %s3 = inlined_call_operand.vmem [shape: f32[8,256], index: 3, kind: output, shape index: {}]
  %s4 = sld [smem:[#allocation0]]
  $region22: #{crnn_forward.13} parent=0
    _
  %s6 = ssub.s32 1, %s4
  %s7 = scalar_select 0, %s6, %s4
  // Predicated region
  $region2: #{crnn_forward.13} parent=0 // pred_check
    _
  $region3: #{crnn_forward.13} parent=0 // pred_check_branch
    %9 = sbr.rel (0) target = $region5
  $region4: #{crnn_forward.13} parent=0 // pred_region
    _
  $region5: #{crnn_forward.13} parent=0 // pred_fallthru
    _
  // Predicated region
  $region6: #{crnn_forward.13} parent=0 // pred_check
    _
  $region7: #{crnn_forward.13} parent=0 // pred_check_branch
    %11 = sbr.rel (0) target = $region9
  $region8: #{crnn_forward.13} parent=0 // pred_region
    _
  $region9: #{crnn_forward.13} parent=0 // pred_fallthru
    _
  // Predicated region
  $region10: #{crnn_forward.13} parent=0 // pred_check
    _
  $region11: #{crnn_forward.13} parent=0 // pred_check_branch
    %13 = sbr.rel (0) target = $region13
  $region12: #{crnn_forward.13} parent=0 // pred_region
    _
  $region13: #{crnn_forward.13} parent=0 // pred_fallthru
    _
  %v14 = vld [vmem:[%s0] sm:$0xff]
  %v15 = vld [vmem:[%s0 + $0x8] sm:$0xff]
  %v16 = vld [vmem:[%s0 + $0x10] sm:$0xff]
  %v17 = vld [vmem:[%s0 + $0x18] sm:$0xff]
  %v18 = vld [vmem:[%s0 + $0x20] sm:$0xff]
  %v19 = vld [vmem:[%s0 + $0x28] sm:$0xff]
  %v20 = vld [vmem:[%s0 + $0x30] sm:$0xff]
  %v21 = vld [vmem:[%s0 + $0x38] sm:$0xff]
  %v22 = vld [vmem:[%s1] sm:$0xff]
  %v23 = vld [vmem:[%s1 + $0x8] sm:$0xff]
  %v24 = vld [vmem:[%s1 + $0x10] sm:$0xff]
  %v25 = vld [vmem:[%s1 + $0x18] sm:$0xff]
  %v26 = vld [vmem:[%s1 + $0x20] sm:$0xff]
  %v27 = vld [vmem:[%s1 + $0x28] sm:$0xff]
  %v28 = vld [vmem:[%s1 + $0x30] sm:$0xff]
  %v29 = vld [vmem:[%s1 + $0x38] sm:$0xff]
  %v30 = vld [vmem:[%s1 + $0x40] sm:$0xff]
  %v31 = vld [vmem:[%s1 + $0x48] sm:$0xff]
  %v32 = vld [vmem:[%s1 + $0x50] sm:$0xff]
  %v33 = vld [vmem:[%s1 + $0x58] sm:$0xff]
  %v34 = vld [vmem:[%s1 + $0x60] sm:$0xff]
  %v35 = vld [vmem:[%s1 + $0x68] sm:$0xff]
  %v36 = vld [vmem:[%s1 + $0x70] sm:$0xff]
  %v37 = vld [vmem:[%s1 + $0x78] sm:$0xff]
  %v38 = vld [vmem:[%s1 + $0x80] sm:$0xff]
  %v39 = vld [vmem:[%s1 + $0x88] sm:$0xff]
  %v40 = vld [vmem:[%s1 + $0x90] sm:$0xff]
  %v41 = vld [vmem:[%s1 + $0x98] sm:$0xff]
  %v42 = vld [vmem:[%s1 + $0xa0] sm:$0xff]
  %v43 = vld [vmem:[%s1 + $0xa8] sm:$0xff]
  %v44 = vld [vmem:[%s1 + $0xb0] sm:$0xff]
  %v45 = vld [vmem:[%s1 + $0xb8] sm:$0xff]
  %v46 = vld [vmem:[%s1 + $0xc0] sm:$0xff]
  %v47 = vld [vmem:[%s1 + $0xc8] sm:$0xff]
  %v48 = vld [vmem:[%s1 + $0xd0] sm:$0xff]
  %v49 = vld [vmem:[%s1 + $0xd8] sm:$0xff]
  %v50 = vld [vmem:[%s1 + $0xe0] sm:$0xff]
  %v51 = vld [vmem:[%s1 + $0xe8] sm:$0xff]
  %v52 = vld [vmem:[%s1 + $0xf0] sm:$0xff]
  %v53 = vld [vmem:[%s1 + $0xf8] sm:$0xff]
  %v54 = vld [vmem:[%s1 + $0x100] sm:$0xff]
  %v55 = vld [vmem:[%s1 + $0x108] sm:$0xff]
  %v56 = vld [vmem:[%s1 + $0x110] sm:$0xff]
  %v57 = vld [vmem:[%s1 + $0x118] sm:$0xff]
  %v58 = vld [vmem:[%s1 + $0x120] sm:$0xff]
  %v59 = vld [vmem:[%s1 + $0x128] sm:$0xff]
  %v60 = vld [vmem:[%s1 + $0x130] sm:$0xff]
  %v61 = vld [vmem:[%s1 + $0x138] sm:$0xff]
  %v62 = vld [vmem:[%s1 + $0x140] sm:$0xff]
  %v63 = vld [vmem:[%s1 + $0x148] sm:$0xff]
  %v64 = vld [vmem:[%s1 + $0x150] sm:$0xff]
  %v65 = vld [vmem:[%s1 + $0x158] sm:$0xff]
  %v66 = vld [vmem:[%s1 + $0x160] sm:$0xff]
  %v67 = vld [vmem:[%s1 + $0x168] sm:$0xff]
  %v68 = vld [vmem:[%s1 + $0x170] sm:$0xff]
  %v69 = vld [vmem:[%s1 + $0x178] sm:$0xff]
  %v70 = vld [vmem:[%s1 + $0x180] sm:$0xff]
  %v71 = vld [vmem:[%s1 + $0x188] sm:$0xff]
  %v72 = vld [vmem:[%s1 + $0x190] sm:$0xff]
  %v73 = vld [vmem:[%s1 + $0x198] sm:$0xff]
  %v74 = vld [vmem:[%s1 + $0x1a0] sm:$0xff]
  %v75 = vld [vmem:[%s1 + $0x1a8] sm:$0xff]
  %v76 = vld [vmem:[%s1 + $0x1b0] sm:$0xff]
  %v77 = vld [vmem:[%s1 + $0x1b8] sm:$0xff]
  %v78 = vld [vmem:[%s1 + $0x1c0] sm:$0xff]
  %v79 = vld [vmem:[%s1 + $0x1c8] sm:$0xff]
  %v80 = vld [vmem:[%s1 + $0x1d0] sm:$0xff]
  %v81 = vld [vmem:[%s1 + $0x1d8] sm:$0xff]
  %v82 = vld [vmem:[%s1 + $0x1e0] sm:$0xff]
  %v83 = vld [vmem:[%s1 + $0x1e8] sm:$0xff]
  %v84 = vld [vmem:[%s1 + $0x1f0] sm:$0xff]
  %v85 = vld [vmem:[%s1 + $0x1f8] sm:$0xff]
  %v86 = vld [vmem:[%s1 + $0x200] sm:$0xff]
  %v87 = vld [vmem:[%s1 + $0x208] sm:$0xff]
  %v88 = vld [vmem:[%s1 + $0x210] sm:$0xff]
  %v89 = vld [vmem:[%s1 + $0x218] sm:$0xff]
  %v90 = vld [vmem:[%s1 + $0x220] sm:$0xff]
  %v91 = vld [vmem:[%s1 + $0x228] sm:$0xff]
  %v92 = vld [vmem:[%s1 + $0x230] sm:$0xff]
  %v93 = vld [vmem:[%s1 + $0x238] sm:$0xff]
  %v94 = vld [vmem:[%s1 + $0x240] sm:$0xff]
  %v95 = vld [vmem:[%s1 + $0x248] sm:$0xff]
  %v96 = vld [vmem:[%s1 + $0x250] sm:$0xff]
  %v97 = vld [vmem:[%s1 + $0x258] sm:$0xff]
  %v98 = vld [vmem:[%s1 + $0x260] sm:$0xff]
  %v99 = vld [vmem:[%s1 + $0x268] sm:$0xff]
  %v100 = vld [vmem:[%s1 + $0x270] sm:$0xff]
  %v101 = vld [vmem:[%s1 + $0x278] sm:$0xff]
  %v102 = vld [vmem:[%s1 + $0x280] sm:$0xff]
  %v103 = vld [vmem:[%s1 + $0x288] sm:$0xff]
  %v104 = vld [vmem:[%s1 + $0x290] sm:$0xff]
  %v105 = vld [vmem:[%s1 + $0x298] sm:$0xff]
  %v106 = vld [vmem:[%s1 + $0x2a0] sm:$0xff]
  %v107 = vld [vmem:[%s1 + $0x2a8] sm:$0xff]
  %v108 = vld [vmem:[%s1 + $0x2b0] sm:$0xff]
  %v109 = vld [vmem:[%s1 + $0x2b8] sm:$0xff]
  %v110 = vld [vmem:[%s1 + $0x2c0] sm:$0xff]
  %v111 = vld [vmem:[%s1 + $0x2c8] sm:$0xff]
  %v112 = vld [vmem:[%s1 + $0x2d0] sm:$0xff]
  %v113 = vld [vmem:[%s1 + $0x2d8] sm:$0xff]
  %v114 = vld [vmem:[%s1 + $0x2e0] sm:$0xff]
  %v115 = vld [vmem:[%s1 + $0x2e8] sm:$0xff]
  %v116 = vld [vmem:[%s1 + $0x2f0] sm:$0xff]
  %v117 = vld [vmem:[%s1 + $0x2f8] sm:$0xff]
  %v118 = vld [vmem:[%s1 + $0x300] sm:$0xff]
  %v119 = vld [vmem:[%s1 + $0x308] sm:$0xff]
  %v120 = vld [vmem:[%s1 + $0x310] sm:$0xff]
  %v121 = vld [vmem:[%s1 + $0x318] sm:$0xff]
  %v122 = vld [vmem:[%s1 + $0x320] sm:$0xff]
  %v123 = vld [vmem:[%s1 + $0x328] sm:$0xff]
  %v124 = vld [vmem:[%s1 + $0x330] sm:$0xff]
  %v125 = vld [vmem:[%s1 + $0x338] sm:$0xff]
  %v126 = vld [vmem:[%s1 + $0x340] sm:$0xff]
  %v127 = vld [vmem:[%s1 + $0x348] sm:$0xff]
  %v128 = vld [vmem:[%s1 + $0x350] sm:$0xff]
  %v129 = vld [vmem:[%s1 + $0x358] sm:$0xff]
  %v130 = vld [vmem:[%s1 + $0x360] sm:$0xff]
  %v131 = vld [vmem:[%s1 + $0x368] sm:$0xff]
  %v132 = vld [vmem:[%s1 + $0x370] sm:$0xff]
  %v133 = vld [vmem:[%s1 + $0x378] sm:$0xff]
  %v134 = vld [vmem:[%s1 + $0x380] sm:$0xff]
  %v135 = vld [vmem:[%s1 + $0x388] sm:$0xff]
  %v136 = vld [vmem:[%s1 + $0x390] sm:$0xff]
  %v137 = vld [vmem:[%s1 + $0x398] sm:$0xff]
  %v138 = vld [vmem:[%s1 + $0x3a0] sm:$0xff]
  %v139 = vld [vmem:[%s1 + $0x3a8] sm:$0xff]
  %v140 = vld [vmem:[%s1 + $0x3b0] sm:$0xff]
  %v141 = vld [vmem:[%s1 + $0x3b8] sm:$0xff]
  %v142 = vld [vmem:[%s1 + $0x3c0] sm:$0xff]
  %v143 = vld [vmem:[%s1 + $0x3c8] sm:$0xff]
  %v144 = vld [vmem:[%s1 + $0x3d0] sm:$0xff]
  %v145 = vld [vmem:[%s1 + $0x3d8] sm:$0xff]
  %v146 = vld [vmem:[%s1 + $0x3e0] sm:$0xff]
  %v147 = vld [vmem:[%s1 + $0x3e8] sm:$0xff]
  %v148 = vld [vmem:[%s1 + $0x3f0] sm:$0xff]
  %v149 = vld [vmem:[%s1 + $0x3f8] sm:$0xff]
  %v150 = vld [vmem:[%s1 + $0x400] sm:$0xff]
  %v151 = vld [vmem:[%s1 + $0x408] sm:$0xff]
  %v152 = vld [vmem:[%s1 + $0x410] sm:$0xff]
  %v153 = vld [vmem:[%s1 + $0x418] sm:$0xff]
  %v154 = vld [vmem:[%s1 + $0x420] sm:$0xff]
  %v155 = vld [vmem:[%s1 + $0x428] sm:$0xff]
  %v156 = vld [vmem:[%s1 + $0x430] sm:$0xff]
  %v157 = vld [vmem:[%s1 + $0x438] sm:$0xff]
  %v158 = vld [vmem:[%s1 + $0x440] sm:$0xff]
  %v159 = vld [vmem:[%s1 + $0x448] sm:$0xff]
  %v160 = vld [vmem:[%s1 + $0x450] sm:$0xff]
  %v161 = vld [vmem:[%s1 + $0x458] sm:$0xff]
  %v162 = vld [vmem:[%s1 + $0x460] sm:$0xff]
  %v163 = vld [vmem:[%s1 + $0x468] sm:$0xff]
  %v164 = vld [vmem:[%s1 + $0x470] sm:$0xff]
  %v165 = vld [vmem:[%s1 + $0x478] sm:$0xff]
  %v166 = vld [vmem:[%s1 + $0x480] sm:$0xff]
  %v167 = vld [vmem:[%s1 + $0x488] sm:$0xff]
  %v168 = vld [vmem:[%s1 + $0x490] sm:$0xff]
  %v169 = vld [vmem:[%s1 + $0x498] sm:$0xff]
  %v170 = vld [vmem:[%s1 + $0x4a0] sm:$0xff]
  %v171 = vld [vmem:[%s1 + $0x4a8] sm:$0xff]
  %v172 = vld [vmem:[%s1 + $0x4b0] sm:$0xff]
  %v173 = vld [vmem:[%s1 + $0x4b8] sm:$0xff]
  %v174 = vld [vmem:[%s1 + $0x4c0] sm:$0xff]
  %v175 = vld [vmem:[%s1 + $0x4c8] sm:$0xff]
  %v176 = vld [vmem:[%s1 + $0x4d0] sm:$0xff]
  %v177 = vld [vmem:[%s1 + $0x4d8] sm:$0xff]
  %v178 = vld [vmem:[%s1 + $0x4e0] sm:$0xff]
  %v179 = vld [vmem:[%s1 + $0x4e8] sm:$0xff]
  %v180 = vld [vmem:[%s1 + $0x4f0] sm:$0xff]
  %v181 = vld [vmem:[%s1 + $0x4f8] sm:$0xff]
  %v182 = vld [vmem:[%s1 + $0x500] sm:$0xff]
  %v183 = vld [vmem:[%s1 + $0x508] sm:$0xff]
  %v184 = vld [vmem:[%s1 + $0x510] sm:$0xff]
  %v185 = vld [vmem:[%s1 + $0x518] sm:$0xff]
  %v186 = vld [vmem:[%s1 + $0x520] sm:$0xff]
  %v187 = vld [vmem:[%s1 + $0x528] sm:$0xff]
  %v188 = vld [vmem:[%s1 + $0x530] sm:$0xff]
  %v189 = vld [vmem:[%s1 + $0x538] sm:$0xff]
  %v190 = vld [vmem:[%s1 + $0x540] sm:$0xff]
  %v191 = vld [vmem:[%s1 + $0x548] sm:$0xff]
  %v192 = vld [vmem:[%s1 + $0x550] sm:$0xff]
  %v193 = vld [vmem:[%s1 + $0x558] sm:$0xff]
  %v194 = vld [vmem:[%s1 + $0x560] sm:$0xff]
  %v195 = vld [vmem:[%s1 + $0x568] sm:$0xff]
  %v196 = vld [vmem:[%s1 + $0x570] sm:$0xff]
  %v197 = vld [vmem:[%s1 + $0x578] sm:$0xff]
  %v198 = vld [vmem:[%s1 + $0x580] sm:$0xff]
  %v199 = vld [vmem:[%s1 + $0x588] sm:$0xff]
  %v200 = vld [vmem:[%s1 + $0x590] sm:$0xff]
  %v201 = vld [vmem:[%s1 + $0x598] sm:$0xff]
  %v202 = vld [vmem:[%s1 + $0x5a0] sm:$0xff]
  %v203 = vld [vmem:[%s1 + $0x5a8] sm:$0xff]
  %v204 = vld [vmem:[%s1 + $0x5b0] sm:$0xff]
  %v205 = vld [vmem:[%s1 + $0x5b8] sm:$0xff]
  %v206 = vld [vmem:[%s1 + $0x5c0] sm:$0xff]
  %v207 = vld [vmem:[%s1 + $0x5c8] sm:$0xff]
  %v208 = vld [vmem:[%s1 + $0x5d0] sm:$0xff]
  %v209 = vld [vmem:[%s1 + $0x5d8] sm:$0xff]
  %v210 = vld [vmem:[%s1 + $0x5e0] sm:$0xff]
  %v211 = vld [vmem:[%s1 + $0x5e8] sm:$0xff]
  %v212 = vld [vmem:[%s1 + $0x5f0] sm:$0xff]
  %v213 = vld [vmem:[%s1 + $0x5f8] sm:$0xff]
  %v214 = vld [vmem:[%s1 + $0x600] sm:$0xff]
  %v215 = vld [vmem:[%s1 + $0x608] sm:$0xff]
  %v216 = vld [vmem:[%s1 + $0x610] sm:$0xff]
  %v217 = vld [vmem:[%s1 + $0x618] sm:$0xff]
  %v218 = vld [vmem:[%s1 + $0x620] sm:$0xff]
  %v219 = vld [vmem:[%s1 + $0x628] sm:$0xff]
  %v220 = vld [vmem:[%s1 + $0x630] sm:$0xff]
  %v221 = vld [vmem:[%s1 + $0x638] sm:$0xff]
  %v222 = vld [vmem:[%s1 + $0x640] sm:$0xff]
  %v223 = vld [vmem:[%s1 + $0x648] sm:$0xff]
  %v224 = vld [vmem:[%s1 + $0x650] sm:$0xff]
  %v225 = vld [vmem:[%s1 + $0x658] sm:$0xff]
  %v226 = vld [vmem:[%s1 + $0x660] sm:$0xff]
  %v227 = vld [vmem:[%s1 + $0x668] sm:$0xff]
  %v228 = vld [vmem:[%s1 + $0x670] sm:$0xff]
  %v229 = vld [vmem:[%s1 + $0x678] sm:$0xff]
  %v230 = vld [vmem:[%s1 + $0x680] sm:$0xff]
  %v231 = vld [vmem:[%s1 + $0x688] sm:$0xff]
  %v232 = vld [vmem:[%s1 + $0x690] sm:$0xff]
  %v233 = vld [vmem:[%s1 + $0x698] sm:$0xff]
  %v234 = vld [vmem:[%s1 + $0x6a0] sm:$0xff]
  %v235 = vld [vmem:[%s1 + $0x6a8] sm:$0xff]
  %v236 = vld [vmem:[%s1 + $0x6b0] sm:$0xff]
  %v237 = vld [vmem:[%s1 + $0x6b8] sm:$0xff]
  %v238 = vld [vmem:[%s1 + $0x6c0] sm:$0xff]
  %v239 = vld [vmem:[%s1 + $0x6c8] sm:$0xff]
  %v240 = vld [vmem:[%s1 + $0x6d0] sm:$0xff]
  %v241 = vld [vmem:[%s1 + $0x6d8] sm:$0xff]
  %v242 = vld [vmem:[%s1 + $0x6e0] sm:$0xff]
  %v243 = vld [vmem:[%s1 + $0x6e8] sm:$0xff]
  %v244 = vld [vmem:[%s1 + $0x6f0] sm:$0xff]
  %v245 = vld [vmem:[%s1 + $0x6f8] sm:$0xff]
  %v246 = vld [vmem:[%s1 + $0x700] sm:$0xff]
  %v247 = vld [vmem:[%s1 + $0x708] sm:$0xff]
  %v248 = vld [vmem:[%s1 + $0x710] sm:$0xff]
  %v249 = vld [vmem:[%s1 + $0x718] sm:$0xff]
  %v250 = vld [vmem:[%s1 + $0x720] sm:$0xff]
  %v251 = vld [vmem:[%s1 + $0x728] sm:$0xff]
  %v252 = vld [vmem:[%s1 + $0x730] sm:$0xff]
  %v253 = vld [vmem:[%s1 + $0x738] sm:$0xff]
  %v254 = vld [vmem:[%s1 + $0x740] sm:$0xff]
  %v255 = vld [vmem:[%s1 + $0x748] sm:$0xff]
  %v256 = vld [vmem:[%s1 + $0x750] sm:$0xff]
  %v257 = vld [vmem:[%s1 + $0x758] sm:$0xff]
  %v258 = vld [vmem:[%s1 + $0x760] sm:$0xff]
  %v259 = vld [vmem:[%s1 + $0x768] sm:$0xff]
  %v260 = vld [vmem:[%s1 + $0x770] sm:$0xff]
  %v261 = vld [vmem:[%s1 + $0x778] sm:$0xff]
  %v262 = vld [vmem:[%s1 + $0x780] sm:$0xff]
  %v263 = vld [vmem:[%s1 + $0x788] sm:$0xff]
  %v264 = vld [vmem:[%s1 + $0x790] sm:$0xff]
  %v265 = vld [vmem:[%s1 + $0x798] sm:$0xff]
  %v266 = vld [vmem:[%s1 + $0x7a0] sm:$0xff]
  %v267 = vld [vmem:[%s1 + $0x7a8] sm:$0xff]
  %v268 = vld [vmem:[%s1 + $0x7b0] sm:$0xff]
  %v269 = vld [vmem:[%s1 + $0x7b8] sm:$0xff]
  %v270 = vld [vmem:[%s1 + $0x7c0] sm:$0xff]
  %v271 = vld [vmem:[%s1 + $0x7c8] sm:$0xff]
  %v272 = vld [vmem:[%s1 + $0x7d0] sm:$0xff]
  %v273 = vld [vmem:[%s1 + $0x7d8] sm:$0xff]
  %v274 = vld [vmem:[%s1 + $0x7e0] sm:$0xff]
  %v275 = vld [vmem:[%s1 + $0x7e8] sm:$0xff]
  %v276 = vld [vmem:[%s1 + $0x7f0] sm:$0xff]
  %v277 = vld [vmem:[%s1 + $0x7f8] sm:$0xff]
  %v278 = vld [vmem:[%s2] sm:$0x3]
  %v280 = vlaneseq
  %v281 = vshrl.u32 %v280, 7
  %v282 = vsub.s32 0, %v281
  %v283 = vrot.slane %v278, %v282
  %v284 = vlaneseq
  %v285 = vshrl.u32 %v284, 7
  %v286 = vsub.s32 1, %v285
  %v287 = vrot.slane %v278, %v286
  %290 = vmatprep.subr.mxu0 %v23
  %291 = vmatpush1.msra.mxu0 %v22
  %292 = vmatprep.subr.mxu0 %v25
  %293 = vmatpush1.msra.mxu0 %v24
  %294 = vmatprep.subr.mxu0 %v27
  %295 = vmatpush1.msra.mxu0 %v26
  %296 = vmatprep.subr.mxu0 %v29
  %297 = vmatpush1.msra.mxu0 %v28
  %298 = vmatprep.subr.mxu0 %v31
  %299 = vmatpush1.msra.mxu0 %v30
  %300 = vmatprep.subr.mxu0 %v33
  %301 = vmatpush1.msra.mxu0 %v32
  %302 = vmatprep.subr.mxu0 %v35
  %303 = vmatpush1.msra.mxu0 %v34
  %304 = vmatprep.subr.mxu0 %v37
  %305 = vmatpush1.msra.mxu0 %v36
  %306 = vmatprep.subr.mxu0 %v39
  %307 = vmatpush1.msra.mxu0 %v38
  %308 = vmatprep.subr.mxu0 %v41
  %309 = vmatpush1.msra.mxu0 %v40
  %310 = vmatprep.subr.mxu0 %v43
  %311 = vmatpush1.msra.mxu0 %v42
  %312 = vmatprep.subr.mxu0 %v45
  %313 = vmatpush1.msra.mxu0 %v44
  %314 = vmatprep.subr.mxu0 %v47
  %315 = vmatpush1.msra.mxu0 %v46
  %316 = vmatprep.subr.mxu0 %v49
  %317 = vmatpush1.msra.mxu0 %v48
  %318 = vmatprep.subr.mxu0 %v51
  %319 = vmatpush1.msra.mxu0 %v50
  %320 = vmatprep.subr.mxu0 %v53
  %321 = vmatpush1.msra.mxu0 %v52
  %322 = vmatprep.subr.mxu0 %v55
  %323 = vmatpush1.msra.mxu0 %v54
  %324 = vmatprep.subr.mxu0 %v57
  %325 = vmatpush1.msra.mxu0 %v56
  %326 = vmatprep.subr.mxu0 %v59
  %327 = vmatpush1.msra.mxu0 %v58
  %328 = vmatprep.subr.mxu0 %v61
  %329 = vmatpush1.msra.mxu0 %v60
  %330 = vmatprep.subr.mxu0 %v63
  %331 = vmatpush1.msra.mxu0 %v62
  %332 = vmatprep.subr.mxu0 %v65
  %333 = vmatpush1.msra.mxu0 %v64
  %334 = vmatprep.subr.mxu0 %v67
  %335 = vmatpush1.msra.mxu0 %v66
  %336 = vmatprep.subr.mxu0 %v69
  %337 = vmatpush1.msra.mxu0 %v68
  %338 = vmatprep.subr.mxu0 %v71
  %339 = vmatpush1.msra.mxu0 %v70
  %340 = vmatprep.subr.mxu0 %v73
  %341 = vmatpush1.msra.mxu0 %v72
  %342 = vmatprep.subr.mxu0 %v75
  %343 = vmatpush1.msra.mxu0 %v74
  %344 = vmatprep.subr.mxu0 %v77
  %345 = vmatpush1.msra.mxu0 %v76
  %346 = vmatprep.subr.mxu0 %v79
  %347 = vmatpush1.msra.mxu0 %v78
  %348 = vmatprep.subr.mxu0 %v81
  %349 = vmatpush1.msra.mxu0 %v80
  %350 = vmatprep.subr.mxu0 %v83
  %351 = vmatpush1.msra.mxu0 %v82
  %352 = vmatprep.subr.mxu0 %v85
  %353 = vmatpush1.msra.mxu0 %v84
  %354 = vmatprep.mubr.f32.mxu0 %v15
  %355 = vmatmul.mubr.f32.gmra.mrb[0].mxu0 %v14
  %v356 = vpop.f32.mrb[0].mxu0
  %v357 = vadd.f32 %v283, %v356
  %v358 = vpop.f32.mrb[0].mxu0
  %v359 = vadd.f32 %v287, %v358
  %360 = vdwg.mxu0
  %361 = vmatprep.subr.mxu0 %v87
  %362 = vmatpush1.msra.mxu0 %v86
  %363 = vmatprep.subr.mxu0 %v89
  %364 = vmatpush1.msra.mxu0 %v88
  %365 = vmatprep.subr.mxu0 %v91
  %366 = vmatpush1.msra.mxu0 %v90
  %367 = vmatprep.subr.mxu0 %v93
  %368 = vmatpush1.msra.mxu0 %v92
  %369 = vmatprep.subr.mxu0 %v95
  %370 = vmatpush1.msra.mxu0 %v94
  %371 = vmatprep.subr.mxu0 %v97
  %372 = vmatpush1.msra.mxu0 %v96
  %373 = vmatprep.subr.mxu0 %v99
  %374 = vmatpush1.msra.mxu0 %v98
  %375 = vmatprep.subr.mxu0 %v101
  %376 = vmatpush1.msra.mxu0 %v100
  %377 = vmatprep.subr.mxu0 %v103
  %378 = vmatpush1.msra.mxu0 %v102
  %379 = vmatprep.subr.mxu0 %v105
  %380 = vmatpush1.msra.mxu0 %v104
  %381 = vmatprep.subr.mxu0 %v107
  %382 = vmatpush1.msra.mxu0 %v106
  %383 = vmatprep.subr.mxu0 %v109
  %384 = vmatpush1.msra.mxu0 %v108
  %385 = vmatprep.subr.mxu0 %v111
  %386 = vmatpush1.msra.mxu0 %v110
  %387 = vmatprep.subr.mxu0 %v113
  %388 = vmatpush1.msra.mxu0 %v112
  %389 = vmatprep.subr.mxu0 %v115
  %390 = vmatpush1.msra.mxu0 %v114
  %391 = vmatprep.subr.mxu0 %v117
  %392 = vmatpush1.msra.mxu0 %v116
  %393 = vmatprep.subr.mxu0 %v119
  %394 = vmatpush1.msra.mxu0 %v118
  %395 = vmatprep.subr.mxu0 %v121
  %396 = vmatpush1.msra.mxu0 %v120
  %397 = vmatprep.subr.mxu0 %v123
  %398 = vmatpush1.msra.mxu0 %v122
  %399 = vmatprep.subr.mxu0 %v125
  %400 = vmatpush1.msra.mxu0 %v124
  %401 = vmatprep.subr.mxu0 %v127
  %402 = vmatpush1.msra.mxu0 %v126
  %403 = vmatprep.subr.mxu0 %v129
  %404 = vmatpush1.msra.mxu0 %v128
  %405 = vmatprep.subr.mxu0 %v131
  %406 = vmatpush1.msra.mxu0 %v130
  %407 = vmatprep.subr.mxu0 %v133
  %408 = vmatpush1.msra.mxu0 %v132
  %409 = vmatprep.subr.mxu0 %v135
  %410 = vmatpush1.msra.mxu0 %v134
  %411 = vmatprep.subr.mxu0 %v137
  %412 = vmatpush1.msra.mxu0 %v136
  %413 = vmatprep.subr.mxu0 %v139
  %414 = vmatpush1.msra.mxu0 %v138
  %415 = vmatprep.subr.mxu0 %v141
  %416 = vmatpush1.msra.mxu0 %v140
  %417 = vmatprep.subr.mxu0 %v143
  %418 = vmatpush1.msra.mxu0 %v142
  %419 = vmatprep.subr.mxu0 %v145
  %420 = vmatpush1.msra.mxu0 %v144
  %421 = vmatprep.subr.mxu0 %v147
  %422 = vmatpush1.msra.mxu0 %v146
  %423 = vmatprep.subr.mxu0 %v149
  %424 = vmatpush1.msra.mxu0 %v148
  %425 = vmatprep.mubr.f32.mxu0 %v17
  %426 = vmatmul.mubr.f32.gmra.mrb[0].mxu0 %v16
  %v427 = vpop.f32.mrb[0].mxu0
  %v428 = vadd.f32 %v357, %v427
  %v429 = vpop.f32.mrb[0].mxu0
  %v430 = vadd.f32 %v359, %v429
  %431 = vdwg.mxu0
  %432 = vmatprep.subr.mxu0 %v151
  %433 = vmatpush1.msra.mxu0 %v150
  %434 = vmatprep.subr.mxu0 %v153
  %435 = vmatpush1.msra.mxu0 %v152
  %436 = vmatprep.subr.mxu0 %v155
  %437 = vmatpush1.msra.mxu0 %v154
  %438 = vmatprep.subr.mxu0 %v157
  %439 = vmatpush1.msra.mxu0 %v156
  %440 = vmatprep.subr.mxu0 %v159
  %441 = vmatpush1.msra.mxu0 %v158
  %442 = vmatprep.subr.mxu0 %v161
  %443 = vmatpush1.msra.mxu0 %v160
  %444 = vmatprep.subr.mxu0 %v163
  %445 = vmatpush1.msra.mxu0 %v162
  %446 = vmatprep.subr.mxu0 %v165
  %447 = vmatpush1.msra.mxu0 %v164
  %448 = vmatprep.subr.mxu0 %v167
  %449 = vmatpush1.msra.mxu0 %v166
  %450 = vmatprep.subr.mxu0 %v169
  %451 = vmatpush1.msra.mxu0 %v168
  %452 = vmatprep.subr.mxu0 %v171
  %453 = vmatpush1.msra.mxu0 %v170
  %454 = vmatprep.subr.mxu0 %v173
  %455 = vmatpush1.msra.mxu0 %v172
  %456 = vmatprep.subr.mxu0 %v175
  %457 = vmatpush1.msra.mxu0 %v174
  %458 = vmatprep.subr.mxu0 %v177
  %459 = vmatpush1.msra.mxu0 %v176
  %460 = vmatprep.subr.mxu0 %v179
  %461 = vmatpush1.msra.mxu0 %v178
  %462 = vmatprep.subr.mxu0 %v181
  %463 = vmatpush1.msra.mxu0 %v180
  %464 = vmatprep.subr.mxu0 %v183
  %465 = vmatpush1.msra.mxu0 %v182
  %466 = vmatprep.subr.mxu0 %v185
  %467 = vmatpush1.msra.mxu0 %v184
  %468 = vmatprep.subr.mxu0 %v187
  %469 = vmatpush1.msra.mxu0 %v186
  %470 = vmatprep.subr.mxu0 %v189
  %471 = vmatpush1.msra.mxu0 %v188
  %472 = vmatprep.subr.mxu0 %v191
  %473 = vmatpush1.msra.mxu0 %v190
  %474 = vmatprep.subr.mxu0 %v193
  %475 = vmatpush1.msra.mxu0 %v192
  %476 = vmatprep.subr.mxu0 %v195
  %477 = vmatpush1.msra.mxu0 %v194
  %478 = vmatprep.subr.mxu0 %v197
  %479 = vmatpush1.msra.mxu0 %v196
  %480 = vmatprep.subr.mxu0 %v199
  %481 = vmatpush1.msra.mxu0 %v198
  %482 = vmatprep.subr.mxu0 %v201
  %483 = vmatpush1.msra.mxu0 %v200
  %484 = vmatprep.subr.mxu0 %v203
  %485 = vmatpush1.msra.mxu0 %v202
  %486 = vmatprep.subr.mxu0 %v205
  %487 = vmatpush1.msra.mxu0 %v204
  %488 = vmatprep.subr.mxu0 %v207
  %489 = vmatpush1.msra.mxu0 %v206
  %490 = vmatprep.subr.mxu0 %v209
  %491 = vmatpush1.msra.mxu0 %v208
  %492 = vmatprep.subr.mxu0 %v211
  %493 = vmatpush1.msra.mxu0 %v210
  %494 = vmatprep.subr.mxu0 %v213
  %495 = vmatpush1.msra.mxu0 %v212
  %496 = vmatprep.mubr.f32.mxu0 %v19
  %497 = vmatmul.mubr.f32.gmra.mrb[0].mxu0 %v18
  %v498 = vpop.f32.mrb[0].mxu0
  %v499 = vadd.f32 %v428, %v498
  %v500 = vpop.f32.mrb[0].mxu0
  %v501 = vadd.f32 %v430, %v500
  %502 = vdwg.mxu0
  %503 = vmatprep.subr.mxu0 %v215
  %504 = vmatpush1.msra.mxu0 %v214
  %505 = vmatprep.subr.mxu0 %v217
  %506 = vmatpush1.msra.mxu0 %v216
  %507 = vmatprep.subr.mxu0 %v219
  %508 = vmatpush1.msra.mxu0 %v218
  %509 = vmatprep.subr.mxu0 %v221
  %510 = vmatpush1.msra.mxu0 %v220
  %511 = vmatprep.subr.mxu0 %v223
  %512 = vmatpush1.msra.mxu0 %v222
  %513 = vmatprep.subr.mxu0 %v225
  %514 = vmatpush1.msra.mxu0 %v224
  %515 = vmatprep.subr.mxu0 %v227
  %516 = vmatpush1.msra.mxu0 %v226
  %517 = vmatprep.subr.mxu0 %v229
  %518 = vmatpush1.msra.mxu0 %v228
  %519 = vmatprep.subr.mxu0 %v231
  %520 = vmatpush1.msra.mxu0 %v230
  %521 = vmatprep.subr.mxu0 %v233
  %522 = vmatpush1.msra.mxu0 %v232
  %523 = vmatprep.subr.mxu0 %v235
  %524 = vmatpush1.msra.mxu0 %v234
  %525 = vmatprep.subr.mxu0 %v237
  %526 = vmatpush1.msra.mxu0 %v236
  %527 = vmatprep.subr.mxu0 %v239
  %528 = vmatpush1.msra.mxu0 %v238
  %529 = vmatprep.subr.mxu0 %v241
  %530 = vmatpush1.msra.mxu0 %v240
  %531 = vmatprep.subr.mxu0 %v243
  %532 = vmatpush1.msra.mxu0 %v242
  %533 = vmatprep.subr.mxu0 %v245
  %534 = vmatpush1.msra.mxu0 %v244
  %535 = vmatprep.subr.mxu0 %v247
  %536 = vmatpush1.msra.mxu0 %v246
  %537 = vmatprep.subr.mxu0 %v249
  %538 = vmatpush1.msra.mxu0 %v248
  %539 = vmatprep.subr.mxu0 %v251
  %540 = vmatpush1.msra.mxu0 %v250
  %541 = vmatprep.subr.mxu0 %v253
  %542 = vmatpush1.msra.mxu0 %v252
  %543 = vmatprep.subr.mxu0 %v255
  %544 = vmatpush1.msra.mxu0 %v254
  %545 = vmatprep.subr.mxu0 %v257
  %546 = vmatpush1.msra.mxu0 %v256
  %547 = vmatprep.subr.mxu0 %v259
  %548 = vmatpush1.msra.mxu0 %v258
  %549 = vmatprep.subr.mxu0 %v261
  %550 = vmatpush1.msra.mxu0 %v260
  %551 = vmatprep.subr.mxu0 %v263
  %552 = vmatpush1.msra.mxu0 %v262
  %553 = vmatprep.subr.mxu0 %v265
  %554 = vmatpush1.msra.mxu0 %v264
  %555 = vmatprep.subr.mxu0 %v267
  %556 = vmatpush1.msra.mxu0 %v266
  %557 = vmatprep.subr.mxu0 %v269
  %558 = vmatpush1.msra.mxu0 %v268
  %559 = vmatprep.subr.mxu0 %v271
  %560 = vmatpush1.msra.mxu0 %v270
  %561 = vmatprep.subr.mxu0 %v273
  %562 = vmatpush1.msra.mxu0 %v272
  %563 = vmatprep.subr.mxu0 %v275
  %564 = vmatpush1.msra.mxu0 %v274
  %565 = vmatprep.subr.mxu0 %v277
  %566 = vmatpush1.msra.mxu0 %v276
  %567 = vmatprep.mubr.f32.mxu0 %v21
  %568 = vmatmul.mubr.f32.gmra.mrb[0].mxu0 %v20
  %v569 = vpop.f32.mrb[0].mxu0
  %v570 = vadd.f32 %v499, %v569
  %v571 = vpop.f32.mrb[0].mxu0
  %v572 = vadd.f32 %v501, %v571
  %573 = vdwg.mxu0
  %574 = vst [vmem:[%s3] sm:$0xff] %v570
  %575 = vst [vmem:[%s3 + $0x8] sm:$0xff] %v572
  // Predicated region
  $region14: #{crnn_forward.13} parent=0 // pred_check
    _
  $region15: #{crnn_forward.13} parent=0 // pred_check_branch
    %577 = sbr.rel (0) target = $region17
  $region16: #{crnn_forward.13} parent=0 // pred_region
    _
  $region17: #{crnn_forward.13} parent=0 // pred_fallthru
    _
  // Predicated region
  $region18: #{crnn_forward.13} parent=0 // pred_check
    _
  $region19: #{crnn_forward.13} parent=0 // pred_check_branch
    %579 = sbr.rel (0) target = $region21
  $region20: #{crnn_forward.13} parent=0 // pred_region
    _
  $region21: #{crnn_forward.13} parent=0 // pred_fallthru
    _

// kernel: crnn_forward.15
$region0: #{crnn_forward.15}
  #allocation0 [shape = 'u32[]', space=smem, size = 0x4, offset = 0x4, fixed_abs, tag = 'smem constant byte address 0x4 - core index']
  #allocation1 [shape = 'u32[144,128]{1,0:T(1,128)}', space=vmem, size = 0x12000, scoped, tag = 'internal scratch']
  %s0 = inlined_call_operand.vmem [shape: f32[8,64], index: 0, kind: input, shape index: {}]
  %s1 = inlined_call_operand.vmem [shape: f32[64,256], index: 1, kind: input, shape index: {}]
  %s2 = inlined_call_operand.vmem [shape: f32[1,256], index: 2, kind: input, shape index: {}]
  %s3 = inlined_call_operand.vmem [shape: f32[8,256], index: 3, kind: output, shape index: {}]
  %s4 = sld [smem:[#allocation0]]
  $region22: #{crnn_forward.15} parent=0
    _
  %s6 = ssub.s32 1, %s4
  %s7 = scalar_select 0, %s6, %s4
  // Predicated region
  $region2: #{crnn_forward.15} parent=0 // pred_check
    _
  $region3: #{crnn_forward.15} parent=0 // pred_check_branch
    %9 = sbr.rel (0) target = $region5
  $region4: #{crnn_forward.15} parent=0 // pred_region
    _
  $region5: #{crnn_forward.15} parent=0 // pred_fallthru
    _
  // Predicated region
  $region6: #{crnn_forward.15} parent=0 // pred_check
    _
  $region7: #{crnn_forward.15} parent=0 // pred_check_branch
    %11 = sbr.rel (0) target = $region9
  $region8: #{crnn_forward.15} parent=0 // pred_region
    _
  $region9: #{crnn_forward.15} parent=0 // pred_fallthru
    _
  // Predicated region
  $region10: #{crnn_forward.15} parent=0 // pred_check
    _
  $region11: #{crnn_forward.15} parent=0 // pred_check_branch
    %13 = sbr.rel (0) target = $region13
  $region12: #{crnn_forward.15} parent=0 // pred_region
    _
  $region13: #{crnn_forward.15} parent=0 // pred_fallthru
    _
  %v14 = vld [vmem:[%s0] sm:$0xff]
  %v15 = vld [vmem:[%s1] sm:$0xff]
  %v16 = vld [vmem:[%s1 + $0x8] sm:$0xff]
  %v17 = vld [vmem:[%s1 + $0x10] sm:$0xff]
  %v18 = vld [vmem:[%s1 + $0x18] sm:$0xff]
  %v19 = vld [vmem:[%s1 + $0x20] sm:$0xff]
  %v20 = vld [vmem:[%s1 + $0x28] sm:$0xff]
  %v21 = vld [vmem:[%s1 + $0x30] sm:$0xff]
  %v22 = vld [vmem:[%s1 + $0x38] sm:$0xff]
  %v23 = vld [vmem:[%s1 + $0x40] sm:$0xff]
  %v24 = vld [vmem:[%s1 + $0x48] sm:$0xff]
  %v25 = vld [vmem:[%s1 + $0x50] sm:$0xff]
  %v26 = vld [vmem:[%s1 + $0x58] sm:$0xff]
  %v27 = vld [vmem:[%s1 + $0x60] sm:$0xff]
  %v28 = vld [vmem:[%s1 + $0x68] sm:$0xff]
  %v29 = vld [vmem:[%s1 + $0x70] sm:$0xff]
  %v30 = vld [vmem:[%s1 + $0x78] sm:$0xff]
  %v31 = vld [vmem:[%s2] sm:$0x3]
  %v33 = vlaneseq
  %v34 = vshrl.u32 %v33, 7
  %v35 = vsub.s32 0, %v34
  %v36 = vrot.slane %v31, %v35
  %v37 = vlaneseq
  %v38 = vshrl.u32 %v37, 7
  %v39 = vsub.s32 1, %v38
  %v40 = vrot.slane %v31, %v39
  %vm43 = vcmask 523264
  %v45 = vsel %vm43, %v14, 0
  %47 = vmatprep.subr.mxu0 %v16
  %48 = vmatpush1.msra.mxu0 %v15
  %49 = vmatprep.subr.mxu0 %v18
  %50 = vmatpush1.msra.mxu0 %v17
  %51 = vmatprep.subr.mxu0 %v20
  %52 = vmatpush1.msra.mxu0 %v19
  %53 = vmatprep.subr.mxu0 %v22
  %54 = vmatpush1.msra.mxu0 %v21
  %55 = vmatprep.subr.mxu0 %v24
  %56 = vmatpush1.msra.mxu0 %v23
  %57 = vmatprep.subr.mxu0 %v26
  %58 = vmatpush1.msra.mxu0 %v25
  %59 = vmatprep.subr.mxu0 %v28
  %60 = vmatpush1.msra.mxu0 %v27
  %61 = vmatprep.subr.mxu0 %v30
  %62 = vmatpush1.msra.mxu0 %v29
  %63 = vmatprep.subr.mxu0 0.0
  %64 = vmatpush1.msra.mxu0 0.0
  %65 = vmatprep.subr.mxu0 0.0
  %66 = vmatpush1.msra.mxu0 0.0
  %67 = vmatprep.subr.mxu0 0.0
  %68 = vmatpush1.msra.mxu0 0.0
  %69 = vmatprep.subr.mxu0 0.0
  %70 = vmatpush1.msra.mxu0 0.0
  %71 = vmatprep.subr.mxu0 0.0
  %72 = vmatpush1.msra.mxu0 0.0
  %73 = vmatprep.subr.mxu0 0.0
  %74 = vmatpush1.msra.mxu0 0.0
  %75 = vmatprep.subr.mxu0 0.0
  %76 = vmatpush1.msra.mxu0 0.0
  %77 = vmatprep.subr.mxu0 0.0
  %78 = vmatpush1.msra.mxu0 0.0
  %79 = vmatprep.subr.mxu0 0.0
  %80 = vmatpush1.msra.mxu0 0.0
  %81 = vmatprep.subr.mxu0 0.0
  %82 = vmatpush1.msra.mxu0 0.0
  %83 = vmatprep.subr.mxu0 0.0
  %84 = vmatpush1.msra.mxu0 0.0
  %85 = vmatprep.subr.mxu0 0.0
  %86 = vmatpush1.msra.mxu0 0.0
  %87 = vmatprep.subr.mxu0 0.0
  %88 = vmatpush1.msra.mxu0 0.0
  %89 = vmatprep.subr.mxu0 0.0
  %90 = vmatpush1.msra.mxu0 0.0
  %91 = vmatprep.subr.mxu0 0.0
  %92 = vmatpush1.msra.mxu0 0.0
  %93 = vmatprep.subr.mxu0 0.0
  %94 = vmatpush1.msra.mxu0 0.0
  %95 = vmatprep.subr.mxu0 0.0
  %96 = vmatpush1.msra.mxu0 0.0
  %97 = vmatprep.subr.mxu0 0.0
  %98 = vmatpush1.msra.mxu0 0.0
  %99 = vmatprep.subr.mxu0 0.0
  %100 = vmatpush1.msra.mxu0 0.0
  %101 = vmatprep.subr.mxu0 0.0
  %102 = vmatpush1.msra.mxu0 0.0
  %103 = vmatprep.subr.mxu0 0.0
  %104 = vmatpush1.msra.mxu0 0.0
  %105 = vmatprep.subr.mxu0 0.0
  %106 = vmatpush1.msra.mxu0 0.0
  %107 = vmatprep.subr.mxu0 0.0
  %108 = vmatpush1.msra.mxu0 0.0
  %109 = vmatprep.subr.mxu0 0.0
  %110 = vmatpush1.msra.mxu0 0.0
  %111 = vmatprep.mubr.f32.mxu0 0.0
  %112 = vmatmul.mubr.f32.gmra.mrb[0].mxu0 %v45
  %v113 = vpop.f32.mrb[0].mxu0
  %v114 = vadd.f32 %v36, %v113
  %v115 = vpop.f32.mrb[0].mxu0
  %v116 = vadd.f32 %v40, %v115
  %117 = vdwg.mxu0
  %118 = vst [vmem:[%s3] sm:$0xff] %v114
  %119 = vst [vmem:[%s3 + $0x8] sm:$0xff] %v116
  // Predicated region
  $region14: #{crnn_forward.15} parent=0 // pred_check
    _
  $region15: #{crnn_forward.15} parent=0 // pred_check_branch
    %121 = sbr.rel (0) target = $region17
  $region16: #{crnn_forward.15} parent=0 // pred_region
    _
  $region17: #{crnn_forward.15} parent=0 // pred_fallthru
    _
  // Predicated region
  $region18: #{crnn_forward.15} parent=0 // pred_check
    _
  $region19: #{crnn_forward.15} parent=0 // pred_check_branch
    %123 = sbr.rel (0) target = $region21
  $region20: #{crnn_forward.15} parent=0 // pred_region
    _
  $region21: #{crnn_forward.15} parent=0 // pred_fallthru
    _

// kernel: crnn_forward.14
$region0: #{crnn_forward.14}
  #allocation0 [shape = 'u32[]', space=smem, size = 0x4, offset = 0x4, fixed_abs, tag = 'smem constant byte address 0x4 - core index']
  #allocation1 [shape = 'u32[144,128]{1,0:T(1,128)}', space=vmem, size = 0x12000, scoped, tag = 'internal scratch']
  #allocation2 [shape = 'f32[2,64]{1,0:T(2,128)}', space=vmem, size = 0x400, scoped, tag = 'scratch operand']
  #allocation3 [shape = 'f32[2,64]{1,0:T(2,128)}', space=vmem, size = 0x400, scoped, tag = 'scratch operand']
  %s0 = inlined_call_operand.vmem [shape: f32[4,2,128], index: 0, kind: input, shape index: {}]
  %s1 = inlined_call_operand.vmem [shape: f32[4,2,128], index: 1, kind: input, shape index: {}]
  %s2 = inlined_call_operand.vmem [shape: f32[64,256], index: 2, kind: input, shape index: {}]
  %s3 = inlined_call_operand.vmem [shape: f32[4,2,32], index: 3, kind: output, shape index: {0}]
  %s4 = inlined_call_operand.vmem [shape: f32[4,2,32], index: 4, kind: output, shape index: {1}]
  %5 = xla_tuple %s3, %s4
  %s6 = sld [smem:[#allocation0]]
  $region57: #{crnn_forward.14} parent=0
    _
  %s8 = ssub.s32 1, %s6
  %s9 = scalar_select 0, %s8, %s6
  loop: start=0, step=1, limit=6
  $region2: #{crnn_forward.14} parent=0 // loop_pre_header
    _
  $region3: #{crnn_forward.14} parent=0 // loop_header
    %s11 = sphi 0, %s15
    %p12 = scmp.ge.s32.totalorder %s11, 6
    %s21 = sphi 0, %s23
    %s24 = sphi 0, %s21
    %s25 = sphi 0, %s24
    %s41 = sphi 0, %s25
    %s49 = sphi 0, %s51
    %s52 = sphi 0, %s49
    %s53 = sphi 0, %s52
    %s69 = sphi 0, %s53
    %s73 = sphi 0, %s73
    %s75 = sphi 0, %s73
    %s76 = sphi 0, %s75
    %s90 = sphi 0, %s76
    %s96 = sphi 0, %s98
    %s99 = sphi 0, %s96
    %s100 = sphi 0, %s99
    %s116 = sphi 0, %s100
    %s124 = sphi 0, %s126
    %s127 = sphi 0, %s124
    %s128 = sphi 0, %s127
    %s144 = sphi 0, %s128
  $region4: #{crnn_forward.14} parent=0 // loop_header_branch
    %14 = sbr.rel (%p12) target = $region8
  $region5: #{crnn_forward.14} parent=0 // loop_body
    %s16 = ssub.s32 %s11, 1
    %s17 = ssub.s32 %s11, 2
    %s18 = sadd.s32 %s11, 1
    %s19 = ssub.s32 %s11, %s18
    %p20 = scmp.eq.s32.totalorder %s19, 0
    %s22 = sadd.s32 %s21, 1
    %s23 = scalar_select %p20, %s21, %s22
    %p26 = pneg %p20
    %p27 = scmp.eq.s32.totalorder %s11, 3
    %p28 = por %p26, %p27
    %p29 = scmp.ne.s32.totalorder %s21, %s24
    %p30 = scmp.eq.s32.totalorder %s11, 0
    %p31 = por %p29, %p30
    %p32 = scmp.ne.s32.totalorder %s21, %s24
    %p33 = scmp.eq.s32.totalorder %s16, 3
    %p34 = por %p32, %p33
    %p35 = scmp.ne.s32.totalorder %s24, %s25
    %p36 = scmp.eq.s32.totalorder %s16, 0
    %p37 = por %p35, %p36
    %p38 = scmp.ne.s32.totalorder %s24, %s25
    %p39 = scmp.eq.s32.totalorder %s17, 3
    %p40 = por %p38, %p39
    %p42 = scmp.ne.s32.totalorder %s25, %s41
    %p43 = scmp.eq.s32.totalorder %s17, 0
    %p44 = por %p42, %p43
    %s45 = ssub.s32 3, %s11
    %s46 = ssub.s32 3, %s18
    %s47 = ssub.s32 %s45, %s46
    %p48 = scmp.eq.s32.totalorder %s47, 0
    %s50 = sadd.s32 %s49, 1
    %s51 = scalar_select %p48, %s49, %s50
    %p54 = pneg %p48
    %p55 = scmp.eq.s32.totalorder %s11, 3
    %p56 = por %p54, %p55
    %p57 = scmp.ne.s32.totalorder %s49, %s52
    %p58 = scmp.eq.s32.totalorder %s11, 0
    %p59 = por %p57, %p58
    %p60 = scmp.ne.s32.totalorder %s49, %s52
    %p61 = scmp.eq.s32.totalorder %s16, 3
    %p62 = por %p60, %p61
    %p63 = scmp.ne.s32.totalorder %s52, %s53
    %p64 = scmp.eq.s32.totalorder %s16, 0
    %p65 = por %p63, %p64
    %p66 = scmp.ne.s32.totalorder %s52, %s53
    %p67 = scmp.eq.s32.totalorder %s17, 3
    %p68 = por %p66, %p67
    %p70 = scmp.ne.s32.totalorder %s53, %s69
    %p71 = scmp.eq.s32.totalorder %s17, 0
    %p72 = por %p70, %p71
    %s74 = sadd.s32 %s73, 1
    %p77 = scmp.eq.s32.totalorder %s11, 3
    %p78 = scmp.ne.s32.totalorder %s73, %s75
    %p79 = scmp.eq.s32.totalorder %s11, 0
    %p80 = por %p78, %p79
    %p81 = scmp.ne.s32.totalorder %s73, %s75
    %p82 = scmp.eq.s32.totalorder %s16, 3
    %p83 = por %p81, %p82
    %p84 = scmp.ne.s32.totalorder %s75, %s76
    %p85 = scmp.eq.s32.totalorder %s16, 0
    %p86 = por %p84, %p85
    %p87 = scmp.ne.s32.totalorder %s75, %s76
    %p88 = scmp.eq.s32.totalorder %s17, 3
    %p89 = por %p87, %p88
    %p91 = scmp.ne.s32.totalorder %s76, %s90
    %p92 = scmp.eq.s32.totalorder %s17, 0
    %p93 = por %p91, %p92
    %s94 = ssub.s32 %s11, %s18
    %p95 = scmp.eq.s32.totalorder %s94, 0
    %s97 = sadd.s32 %s96, 1
    %s98 = scalar_select %p95, %s96, %s97
    %p101 = pneg %p95
    %p102 = scmp.eq.s32.totalorder %s11, 3
    %p103 = por %p101, %p102
    %p104 = scmp.ne.s32.totalorder %s96, %s99
    %p105 = scmp.eq.s32.totalorder %s11, 0
    %p106 = por %p104, %p105
    %p107 = scmp.ne.s32.totalorder %s96, %s99
    %p108 = scmp.eq.s32.totalorder %s16, 3
    %p109 = por %p107, %p108
    %p110 = scmp.ne.s32.totalorder %s99, %s100
    %p111 = scmp.eq.s32.totalorder %s16, 0
    %p112 = por %p110, %p111
    %p113 = scmp.ne.s32.totalorder %s99, %s100
    %p114 = scmp.eq.s32.totalorder %s17, 3
    %p115 = por %p113, %p114
    %p117 = scmp.ne.s32.totalorder %s100, %s116
    %p118 = scmp.eq.s32.totalorder %s17, 0
    %p119 = por %p117, %p118
    %s120 = ssub.s32 3, %s11
    %s121 = ssub.s32 3, %s18
    %s122 = ssub.s32 %s120, %s121
    %p123 = scmp.eq.s32.totalorder %s122, 0
    %s125 = sadd.s32 %s124, 1
    %s126 = scalar_select %p123, %s124, %s125
    %p129 = pneg %p123
    %p130 = scmp.eq.s32.totalorder %s11, 3
    %p131 = por %p129, %p130
    %p132 = scmp.ne.s32.totalorder %s124, %s127
    %p133 = scmp.eq.s32.totalorder %s11, 0
    %p134 = por %p132, %p133
    %p135 = scmp.ne.s32.totalorder %s124, %s127
    %p136 = scmp.eq.s32.totalorder %s16, 3
    %p137 = por %p135, %p136
    %p138 = scmp.ne.s32.totalorder %s127, %s128
    %p139 = scmp.eq.s32.totalorder %s16, 0
    %p140 = por %p138, %p139
    %p141 = scmp.ne.s32.totalorder %s127, %s128
    %p142 = scmp.eq.s32.totalorder %s17, 3
    %p143 = por %p141, %p142
    %p145 = scmp.ne.s32.totalorder %s128, %s144
    %p146 = scmp.eq.s32.totalorder %s17, 0
    %p147 = por %p145, %p146
    %p148 = scmp.le.s32.totalorder 1, %s11
    %p149 = scmp.lt.s32.totalorder %s11, 5
    %p150 = pnand %p148, %p149
    %p151 = pneg %p150
    // Predicated region
    $region9: #{crnn_forward.14} parent=5 // pred_check
      _
    $region10: #{crnn_forward.14} parent=5 // pred_check_branch
      %153 = sbr.rel (%p150) target = $region12
    $region11: #{crnn_forward.14} parent=5 // pred_region
      %s154 = ssub.s32 %s11, 1
      // Predicated region
      $region13: #{crnn_forward.14} parent=11 // pred_check
        %p155 = pneg %p86
      $region14: #{crnn_forward.14} parent=11 // pred_check_branch
        %157 = sbr.rel (%p155) target = $region16
      $region15: #{crnn_forward.14} parent=11 // pred_region
        _
      $region16: #{crnn_forward.14} parent=11 // pred_fallthru
        _
    $region12: #{crnn_forward.14} parent=5 // pred_fallthru
      _
    %p158 = scmp.lt.s32.totalorder %s11, 4
    // Predicated region
    $region17: #{crnn_forward.14} parent=5 // pred_check
      %p159 = pneg %p158
    $region18: #{crnn_forward.14} parent=5 // pred_check_branch
      %161 = sbr.rel (%p159) target = $region20
    $region19: #{crnn_forward.14} parent=5 // pred_region
      // Predicated region
      $region21: #{crnn_forward.14} parent=19 // pred_check
        %p162 = pneg %p31
      $region22: #{crnn_forward.14} parent=19 // pred_check_branch
        %164 = sbr.rel (%p162) target = $region24
      $region23: #{crnn_forward.14} parent=19 // pred_region
        %p165 = scmp.lt.s32.totalorder %s11, 3
        %s166 = scalar_select %p165, %s11, 3
        %s167 = smul.addr %s166, 2
        %s168 = scalar_lea.vmem %s0, %s167
      $region24: #{crnn_forward.14} parent=19 // pred_fallthru
        _
      // Predicated region
      $region25: #{crnn_forward.14} parent=19 // pred_check
        %p169 = pneg %p59
      $region26: #{crnn_forward.14} parent=19 // pred_check_branch
        %171 = sbr.rel (%p169) target = $region28
      $region27: #{crnn_forward.14} parent=19 // pred_region
        %s172 = ssub.s32 3, %s11
        %p173 = scmp.lt.s32.totalorder %s172, 3
        %s174 = scalar_select %p173, %s172, 3
        %s175 = smul.addr %s174, 2
        %s176 = scalar_lea.vmem %s1, %s175
        %s177 = ssub.s32 3, %s11
      $region28: #{crnn_forward.14} parent=19 // pred_fallthru
        _
    $region20: #{crnn_forward.14} parent=5 // pred_fallthru
      _
    %p178 = scmp.le.s32.totalorder 1, %s11
    %p179 = scmp.lt.s32.totalorder %s11, 5
    %p180 = pnand %p178, %p179
    %p181 = pneg %p180
    // Predicated region
    $region29: #{crnn_forward.14} parent=5 // pred_check
      _
    $region30: #{crnn_forward.14} parent=5 // pred_check_branch
      %183 = sbr.rel (%p180) target = $region32
    $region31: #{crnn_forward.14} parent=5 // pred_region
      %s184 = ssub.s32 %s11, 1
      %p185 = scmp.lt.s32.totalorder %s16, 3
      %s186 = scalar_select %p185, %s16, 3
      %s187 = smul.addr %s186, 2
      %s188 = scalar_lea.vmem %s0, %s187
      %p189 = pneg %p37
      %p190 = pneg %p34
      %s191 = ssub.s32 3, %s16
      %p192 = scmp.lt.s32.totalorder %s191, 3
      %s193 = scalar_select %p192, %s191, 3
      %s194 = smul.addr %s193, 2
      %s195 = scalar_lea.vmem %s1, %s194
      %p196 = pneg %p65
      %p197 = pneg %p62
      %p198 = pneg %p86
      %p199 = pneg %p83
      %p200 = pneg %p112
      %p201 = pneg %p109
      %p202 = scmp.lt.s32.totalorder %s16, 3
      %s203 = scalar_select %p202, %s16, 3
      %s204 = smul.addr %s203, 2
      %s205 = scalar_lea.vmem %s3, %s204
      %p206 = pneg %p140
      %p207 = pneg %p137
      %s208 = ssub.s32 3, %s16
      %p209 = scmp.lt.s32.totalorder %s208, 3
      %s210 = scalar_select %p209, %s208, 3
      %s211 = smul.addr %s210, 2
      %s212 = scalar_lea.vmem %s4, %s211
      %p213 = scmp.lt.s32.totalorder %s16, 3
      %s214 = scalar_select %p213, %s16, 3
      %s215 = smul.addr %s214, 2
      %s216 = scalar_lea.vmem %s0, %s215
      %s217 = ssub.s32 3, %s16
      %p218 = scmp.lt.s32.totalorder %s217, 3
      %s219 = scalar_select %p218, %s217, 3
      %s220 = smul.addr %s219, 2
      %s221 = scalar_lea.vmem %s1, %s220
      %s222 = ssub.s32 3, %s16
      %p223 = scmp.lt.s32.totalorder %s16, 3
      %s224 = scalar_select %p223, %s16, 3
      %s225 = smul.addr %s224, 2
      %s226 = scalar_lea.vmem %s3, %s225
      %s227 = ssub.s32 3, %s16
      %p228 = scmp.lt.s32.totalorder %s227, 3
      %s229 = scalar_select %p228, %s227, 3
      %s230 = smul.addr %s229, 2
      %s231 = scalar_lea.vmem %s4, %s230
      %s232 = ssub.s32 3, %s16
      %p233 = scmp.eq.s32.totalorder %s16, 0
      // Predicated region
      $region33: #{crnn_forward.14} parent=31 // pred_check
        %p234 = pneg %p233
      $region34: #{crnn_forward.14} parent=31 // pred_check_branch
        %236 = sbr.rel (%p234) target = $region36
      $region35: #{crnn_forward.14} parent=31 // pred_region
        %vm237 = vcmask 517120
        %238 = vst.msk [vmem:[#allocation2] sm:$0x3] %vm237, 0.0
        %239 = vst.msk [vmem:[#allocation3] sm:$0x3] %vm237, 0.0
      $region36: #{crnn_forward.14} parent=31 // pred_fallthru
        _
      %v240 = vld [vmem:[%s216] sm:$0x3]
      %v241 = vld [vmem:[%s221] sm:$0x3]
      %v242 = vld [vmem:[#allocation2] sm:$0x3]
      %v243 = vld [vmem:[%s2] sm:$0xff]
      %v244 = vld [vmem:[%s2 + $0x8] sm:$0xff]
      %v245 = vld [vmem:[%s2 + $0x10] sm:$0xff]
      %v246 = vld [vmem:[%s2 + $0x18] sm:$0xff]
      %v247 = vld [vmem:[%s2 + $0x20] sm:$0xff]
      %v248 = vld [vmem:[%s2 + $0x28] sm:$0xff]
      %v249 = vld [vmem:[%s2 + $0x30] sm:$0xff]
      %v250 = vld [vmem:[%s2 + $0x38] sm:$0xff]
      %v251 = vld [vmem:[%s2 + $0x40] sm:$0xff]
      %v252 = vld [vmem:[%s2 + $0x48] sm:$0xff]
      %v253 = vld [vmem:[%s2 + $0x50] sm:$0xff]
      %v254 = vld [vmem:[%s2 + $0x58] sm:$0xff]
      %v255 = vld [vmem:[%s2 + $0x60] sm:$0xff]
      %v256 = vld [vmem:[%s2 + $0x68] sm:$0xff]
      %v257 = vld [vmem:[%s2 + $0x70] sm:$0xff]
      %v258 = vld [vmem:[%s2 + $0x78] sm:$0xff]
      %vm259 = vcmask 523264
      %v261 = vsel %vm259, %v242, 0
      %263 = vmatprep.subr.mxu0 %v244
      %264 = vmatpush1.msra.mxu0 %v243
      %265 = vmatprep.subr.mxu0 %v246
      %266 = vmatpush1.msra.mxu0 %v245
      %267 = vmatprep.subr.mxu0 %v248
      %268 = vmatpush1.msra.mxu0 %v247
      %269 = vmatprep.subr.mxu0 %v250
      %270 = vmatpush1.msra.mxu0 %v249
      %271 = vmatprep.subr.mxu0 %v252
      %272 = vmatpush1.msra.mxu0 %v251
      %273 = vmatprep.subr.mxu0 %v254
      %274 = vmatpush1.msra.mxu0 %v253
      %275 = vmatprep.subr.mxu0 %v256
      %276 = vmatpush1.msra.mxu0 %v255
      %277 = vmatprep.subr.mxu0 %v258
      %278 = vmatpush1.msra.mxu0 %v257
      %279 = vmatprep.subr.mxu0 0.0
      %280 = vmatpush1.msra.mxu0 0.0
      %281 = vmatprep.subr.mxu0 0.0
      %282 = vmatpush1.msra.mxu0 0.0
      %283 = vmatprep.subr.mxu0 0.0
      %284 = vmatpush1.msra.mxu0 0.0
      %285 = vmatprep.subr.mxu0 0.0
      %286 = vmatpush1.msra.mxu0 0.0
      %287 = vmatprep.subr.mxu0 0.0
      %288 = vmatpush1.msra.mxu0 0.0
      %289 = vmatprep.subr.mxu0 0.0
      %290 = vmatpush1.msra.mxu0 0.0
      %291 = vmatprep.subr.mxu0 0.0
      %292 = vmatpush1.msra.mxu0 0.0
      %293 = vmatprep.subr.mxu0 0.0
      %294 = vmatpush1.msra.mxu0 0.0
      %295 = vmatprep.subr.mxu0 0.0
      %296 = vmatpush1.msra.mxu0 0.0
      %297 = vmatprep.subr.mxu0 0.0
      %298 = vmatpush1.msra.mxu0 0.0
      %299 = vmatprep.subr.mxu0 0.0
      %300 = vmatpush1.msra.mxu0 0.0
      %301 = vmatprep.subr.mxu0 0.0
      %302 = vmatpush1.msra.mxu0 0.0
      %303 = vmatprep.subr.mxu0 0.0
      %304 = vmatpush1.msra.mxu0 0.0
      %305 = vmatprep.subr.mxu0 0.0
      %306 = vmatpush1.msra.mxu0 0.0
      %307 = vmatprep.subr.mxu0 0.0
      %308 = vmatpush1.msra.mxu0 0.0
      %309 = vmatprep.subr.mxu0 0.0
      %310 = vmatpush1.msra.mxu0 0.0
      %311 = vmatprep.subr.mxu0 0.0
      %312 = vmatpush1.msra.mxu0 0.0
      %313 = vmatprep.subr.mxu0 0.0
      %314 = vmatpush1.msra.mxu0 0.0
      %315 = vmatprep.subr.mxu0 0.0
      %316 = vmatpush1.msra.mxu0 0.0
      %317 = vmatprep.subr.mxu0 0.0
      %318 = vmatpush1.msra.mxu0 0.0
      %319 = vmatprep.subr.mxu0 0.0
      %320 = vmatpush1.msra.mxu0 0.0
      %321 = vmatprep.subr.mxu0 0.0
      %322 = vmatpush1.msra.mxu0 0.0
      %323 = vmatprep.subr.mxu0 0.0
      %324 = vmatpush1.msra.mxu0 0.0
      %325 = vmatprep.subr.mxu0 0.0
      %326 = vmatpush1.msra.mxu0 0.0
      %327 = vmatprep.mubr.f32.mxu0 0.0
      %328 = vmatmul.mubr.f32.gmra.mrb[0].mxu0 %v261
      %v329 = vpop.f32.mrb[0].mxu0
      %v330 = vadd.f32 0.0, %v329
      %v331 = vpop.f32.mrb[0].mxu0
      %v332 = vadd.f32 0.0, %v331
      %333 = vdwg.mxu0
      %v334 = vadd.f32 %v240, %v330
      %v335 = vadd.f32 %v241, %v332
      %v336 = vld [vmem:[#allocation3] sm:$0x3]
      %v337 = vxor.u32 %v334, 2147483648
      %v338 = vmul.f32 %v337, 1.442695
      %v339 = vpow.pop %v338
      %v340 = vadd.f32 %v339, 1.0
      %v341 = vrcp.pop %v340
      %v342 = vmul.f32 1.0, %v341
      %v343 = vtanh.pop %v334
      %345 = vrot.lane.b32.xlu0 %v336, 32
      %v346 = vpop.permute.xlu0 %345
      %v348 = vmul.f32 %v342, %v346
      %350 = vrot.lane.b32.xlu0 %v343, 64
      %v351 = vpop.permute.xlu0 %350
      %v353 = vmul.f32 %v342, %v351
      %355 = vrot.lane.b32.xlu0 %v353, 32
      %v356 = vpop.permute.xlu0 %355
      %v358 = vadd.f32 %v348, %v356
      %v359 = vtanh.pop %v358
      %361 = vrot.lane.b32.xlu0 %v359, 64
      %v362 = vpop.permute.xlu0 %361
      %v364 = vmul.f32 %v342, %v362
      %v365 = vxor.u32 %v335, 2147483648
      %v366 = vmul.f32 %v365, 1.442695
      %v367 = vpow.pop %v366
      %v368 = vadd.f32 %v367, 1.0
      %v369 = vrcp.pop %v368
      %v370 = vmul.f32 1.0, %v369
      %v371 = vtanh.pop %v335
      %v372 = vmul.f32 %v370, %v336
      %374 = vrot.lane.b32.xlu0 %v371, 64
      %v375 = vpop.permute.xlu0 %374
      %v377 = vmul.f32 %v370, %v375
      %379 = vrot.lane.b32.xlu0 %v377, 32
      %v380 = vpop.permute.xlu0 %379
      %v382 = vadd.f32 %v372, %v380
      %v383 = vtanh.pop %v382
      %385 = vrot.lane.b32.xlu0 %v383, 64
      %v386 = vpop.permute.xlu0 %385
      %v388 = vmul.f32 %v370, %v386
      %390 = vrot.lane.b32.xlu0 %v364, 32
      %v391 = vpop.permute.xlu0 %390
      %394 = vrot.lane.b32.xlu0 %v388, 64
      %v395 = vpop.permute.xlu0 %394
      %vm397 = vcmask 261120
      %v398 = vsel %vm397, %v391, %v395
      %vm399 = vcmask 517120
      %400 = vst.msk [vmem:[#allocation2] sm:$0x3] %vm399, %v398
      %402 = vrot.lane.b32.xlu0 %v358, 96
      %v403 = vpop.permute.xlu0 %402
      %v405 = vsel %vm397, %v403, %v382
      %406 = vst.msk [vmem:[#allocation3] sm:$0x3] %vm399, %v405
      %vm407 = vcmask 254976
      %408 = vst.msk [vmem:[%s226] sm:$0x3] %vm407, %v391
      %409 = vrot.lane.b32.xlu0 %v388, 32
      %v410 = vpop.permute.xlu0 %409
      %412 = vst.msk [vmem:[%s231] sm:$0x3] %vm407, %v410
      %p413 = scmp.lt.s32.totalorder %s16, 3
      %s414 = scalar_select %p413, %s16, 3
      %s415 = smul.addr %s414, 2
      %s416 = scalar_lea.vmem %s3, %s415
      %s417 = ssub.s32 3, %s16
      %p418 = scmp.lt.s32.totalorder %s417, 3
      %s419 = scalar_select %p418, %s417, 3
      %s420 = smul.addr %s419, 2
      %s421 = scalar_lea.vmem %s4, %s420
      // Predicated region
      $region37: #{crnn_forward.14} parent=31 // pred_check
        %p422 = pneg %p109
      $region38: #{crnn_forward.14} parent=31 // pred_check_branch
        %424 = sbr.rel (%p422) target = $region40
      $region39: #{crnn_forward.14} parent=31 // pred_region
        _
      $region40: #{crnn_forward.14} parent=31 // pred_fallthru
        _
      // Predicated region
      $region41: #{crnn_forward.14} parent=31 // pred_check
        %p425 = pneg %p137
      $region42: #{crnn_forward.14} parent=31 // pred_check_branch
        %427 = sbr.rel (%p425) target = $region44
      $region43: #{crnn_forward.14} parent=31 // pred_region
        %s428 = ssub.s32 3, %s16
      $region44: #{crnn_forward.14} parent=31 // pred_fallthru
        _
    $region32: #{crnn_forward.14} parent=5 // pred_fallthru
      _
    %p429 = scmp.le.s32.totalorder 2, %s11
    // Predicated region
    $region45: #{crnn_forward.14} parent=5 // pred_check
      %p430 = pneg %p429
    $region46: #{crnn_forward.14} parent=5 // pred_check_branch
      %432 = sbr.rel (%p430) target = $region48
    $region47: #{crnn_forward.14} parent=5 // pred_region
      %s433 = ssub.s32 %s11, 2
      // Predicated region
      $region49: #{crnn_forward.14} parent=47 // pred_check
        %p434 = pneg %p115
      $region50: #{crnn_forward.14} parent=47 // pred_check_branch
        %436 = sbr.rel (%p434) target = $region52
      $region51: #{crnn_forward.14} parent=47 // pred_region
        %p437 = scmp.lt.s32.totalorder %s17, 3
        %s438 = scalar_select %p437, %s17, 3
        %s439 = smul.addr %s438, 2
        %s440 = scalar_lea.vmem %s3, %s439
      $region52: #{crnn_forward.14} parent=47 // pred_fallthru
        _
      // Predicated region
      $region53: #{crnn_forward.14} parent=47 // pred_check
        %p441 = pneg %p143
      $region54: #{crnn_forward.14} parent=47 // pred_check_branch
        %443 = sbr.rel (%p441) target = $region56
      $region55: #{crnn_forward.14} parent=47 // pred_region
        %s444 = ssub.s32 3, %s17
        %p445 = scmp.lt.s32.totalorder %s444, 3
        %s446 = scalar_select %p445, %s444, 3
        %s447 = smul.addr %s446, 2
        %s448 = scalar_lea.vmem %s4, %s447
      $region56: #{crnn_forward.14} parent=47 // pred_fallthru
        _
    $region48: #{crnn_forward.14} parent=5 // pred_fallthru
      _
  $region6: #{crnn_forward.14} parent=0 // loop_footer
    %s15 = sadd.s32 1, %s11
  $region7: #{crnn_forward.14} parent=0 // loop_footer_branch
    %10 = sbr.rel target = $region3
  $region8: #{crnn_forward.14} parent=0 // loop_exit
    _

// kernel: crnn_forward.17
$region0: #{crnn_forward.17}
  #allocation0 [shape = 'u32[]', space=smem, size = 0x4, offset = 0x4, fixed_abs, tag = 'smem constant byte address 0x4 - core index']
  #allocation1 [shape = 'u32[144,128]{1,0:T(1,128)}', space=vmem, size = 0x12000, scoped, tag = 'internal scratch']
  %s0 = inlined_call_operand.vmem [shape: f32[8,64], index: 0, kind: input, shape index: {}]
  %s1 = inlined_call_operand.vmem [shape: f32[64,128], index: 1, kind: input, shape index: {}]
  %s2 = inlined_call_operand.vmem [shape: f32[1,128], index: 2, kind: input, shape index: {}]
  %s3 = inlined_call_operand.vmem [shape: f32[8,128], index: 3, kind: output, shape index: {}]
  %s4 = sld [smem:[#allocation0]]
  $region22: #{crnn_forward.17} parent=0
    _
  %s6 = ssub.s32 1, %s4
  %s7 = scalar_select 0, %s6, %s4
  // Predicated region
  $region2: #{crnn_forward.17} parent=0 // pred_check
    _
  $region3: #{crnn_forward.17} parent=0 // pred_check_branch
    %9 = sbr.rel (0) target = $region5
  $region4: #{crnn_forward.17} parent=0 // pred_region
    _
  $region5: #{crnn_forward.17} parent=0 // pred_fallthru
    _
  // Predicated region
  $region6: #{crnn_forward.17} parent=0 // pred_check
    _
  $region7: #{crnn_forward.17} parent=0 // pred_check_branch
    %11 = sbr.rel (0) target = $region9
  $region8: #{crnn_forward.17} parent=0 // pred_region
    _
  $region9: #{crnn_forward.17} parent=0 // pred_fallthru
    _
  // Predicated region
  $region10: #{crnn_forward.17} parent=0 // pred_check
    _
  $region11: #{crnn_forward.17} parent=0 // pred_check_branch
    %13 = sbr.rel (0) target = $region13
  $region12: #{crnn_forward.17} parent=0 // pred_region
    _
  $region13: #{crnn_forward.17} parent=0 // pred_fallthru
    _
  %v14 = vld [vmem:[%s0] sm:$0xff]
  %v15 = vld [vmem:[%s1] sm:$0xff]
  %v16 = vld [vmem:[%s1 + $0x8] sm:$0xff]
  %v17 = vld [vmem:[%s1 + $0x10] sm:$0xff]
  %v18 = vld [vmem:[%s1 + $0x18] sm:$0xff]
  %v19 = vld [vmem:[%s1 + $0x20] sm:$0xff]
  %v20 = vld [vmem:[%s1 + $0x28] sm:$0xff]
  %v21 = vld [vmem:[%s1 + $0x30] sm:$0xff]
  %v22 = vld [vmem:[%s1 + $0x38] sm:$0xff]
  %v23 = vld [vmem:[%s2] sm:$0x1]
  %v25 = vlaneseq
  %v26 = vshrl.u32 %v25, 7
  %v27 = vsub.s32 0, %v26
  %v28 = vrot.slane %v23, %v27
  %vm30 = vcmask 523264
  %v32 = vsel %vm30, %v14, 0
  %34 = vmatprep.subr.mxu0 0.0
  %35 = vmatpush1.msra.mxu0 %v15
  %36 = vmatprep.subr.mxu0 0.0
  %37 = vmatpush1.msra.mxu0 %v16
  %38 = vmatprep.subr.mxu0 0.0
  %39 = vmatpush1.msra.mxu0 %v17
  %40 = vmatprep.subr.mxu0 0.0
  %41 = vmatpush1.msra.mxu0 %v18
  %42 = vmatprep.subr.mxu0 0.0
  %43 = vmatpush1.msra.mxu0 %v19
  %44 = vmatprep.subr.mxu0 0.0
  %45 = vmatpush1.msra.mxu0 %v20
  %46 = vmatprep.subr.mxu0 0.0
  %47 = vmatpush1.msra.mxu0 %v21
  %48 = vmatprep.subr.mxu0 0.0
  %49 = vmatpush1.msra.mxu0 %v22
  %50 = vmatprep.subr.mxu0 0.0
  %51 = vmatpush1.msra.mxu0 0.0
  %52 = vmatprep.subr.mxu0 0.0
  %53 = vmatpush1.msra.mxu0 0.0
  %54 = vmatprep.subr.mxu0 0.0
  %55 = vmatpush1.msra.mxu0 0.0
  %56 = vmatprep.subr.mxu0 0.0
  %57 = vmatpush1.msra.mxu0 0.0
  %58 = vmatprep.subr.mxu0 0.0
  %59 = vmatpush1.msra.mxu0 0.0
  %60 = vmatprep.subr.mxu0 0.0
  %61 = vmatpush1.msra.mxu0 0.0
  %62 = vmatprep.subr.mxu0 0.0
  %63 = vmatpush1.msra.mxu0 0.0
  %64 = vmatprep.subr.mxu0 0.0
  %65 = vmatpush1.msra.mxu0 0.0
  %66 = vmatprep.subr.mxu0 0.0
  %67 = vmatpush1.msra.mxu0 0.0
  %68 = vmatprep.subr.mxu0 0.0
  %69 = vmatpush1.msra.mxu0 0.0
  %70 = vmatprep.subr.mxu0 0.0
  %71 = vmatpush1.msra.mxu0 0.0
  %72 = vmatprep.subr.mxu0 0.0
  %73 = vmatpush1.msra.mxu0 0.0
  %74 = vmatprep.subr.mxu0 0.0
  %75 = vmatpush1.msra.mxu0 0.0
  %76 = vmatprep.subr.mxu0 0.0
  %77 = vmatpush1.msra.mxu0 0.0
  %78 = vmatprep.subr.mxu0 0.0
  %79 = vmatpush1.msra.mxu0 0.0
  %80 = vmatprep.subr.mxu0 0.0
  %81 = vmatpush1.msra.mxu0 0.0
  %82 = vmatprep.subr.mxu0 0.0
  %83 = vmatpush1.msra.mxu0 0.0
  %84 = vmatprep.subr.mxu0 0.0
  %85 = vmatpush1.msra.mxu0 0.0
  %86 = vmatprep.subr.mxu0 0.0
  %87 = vmatpush1.msra.mxu0 0.0
  %88 = vmatprep.subr.mxu0 0.0
  %89 = vmatpush1.msra.mxu0 0.0
  %90 = vmatprep.subr.mxu0 0.0
  %91 = vmatpush1.msra.mxu0 0.0
  %92 = vmatprep.subr.mxu0 0.0
  %93 = vmatpush1.msra.mxu0 0.0
  %94 = vmatprep.subr.mxu0 0.0
  %95 = vmatpush1.msra.mxu0 0.0
  %96 = vmatprep.subr.mxu0 0.0
  %97 = vmatpush1.msra.mxu0 0.0
  %98 = vmatprep.mubr.f32.mxu0 0.0
  %99 = vmatmul.mubr.f32.gmra.mrb[0].mxu0 %v32
  %v100 = vpop.f32.mrb[0].mxu0
  %v101 = vadd.f32 %v28, %v100
  %v102 = vpop.f32.mrb[0].mxu0
  %103 = vdwg.mxu0
  %104 = vst [vmem:[%s3] sm:$0xff] %v101
  // Predicated region
  $region14: #{crnn_forward.17} parent=0 // pred_check
    _
  $region15: #{crnn_forward.17} parent=0 // pred_check_branch
    %106 = sbr.rel (0) target = $region17
  $region16: #{crnn_forward.17} parent=0 // pred_region
    _
  $region17: #{crnn_forward.17} parent=0 // pred_fallthru
    _
  // Predicated region
  $region18: #{crnn_forward.17} parent=0 // pred_check
    _
  $region19: #{crnn_forward.17} parent=0 // pred_check_branch
    %108 = sbr.rel (0) target = $region21
  $region20: #{crnn_forward.17} parent=0 // pred_region
    _
  $region21: #{crnn_forward.17} parent=0 // pred_fallthru
    _

// kernel: crnn_forward.12
$region0: #{crnn_forward.12}
  #allocation0 [shape = 'u32[]', space=smem, size = 0x4, offset = 0x4, fixed_abs, tag = 'smem constant byte address 0x4 - core index']
  #allocation1 [shape = 'u32[144,128]{1,0:T(1,128)}', space=vmem, size = 0x12000, scoped, tag = 'internal scratch']
  %s0 = inlined_call_operand.vmem [shape: f32[2,16,2304], index: 0, kind: input, shape index: {}]
  %s1 = inlined_call_operand.vmem [shape: f32[2304,512], index: 1, kind: input, shape index: {}]
  %s2 = inlined_call_operand.vmem [shape: f32[1,512], index: 2, kind: input, shape index: {}]
  %s3 = inlined_call_operand.vmem [shape: f32[1,512], index: 3, kind: input, shape index: {}]
  %s4 = inlined_call_operand.vmem [shape: f32[16,512], index: 4, kind: output, shape index: {}]
  %s5 = sld [smem:[#allocation0]]
  $region26: #{crnn_forward.12} parent=0
    _
  %s7 = ssub.s32 1, %s5
  %s8 = scalar_select 0, %s7, %s5
  // Predicated region
  $region2: #{crnn_forward.12} parent=0 // pred_check
    _
  $region3: #{crnn_forward.12} parent=0 // pred_check_branch
    %10 = sbr.rel (0) target = $region5
  $region4: #{crnn_forward.12} parent=0 // pred_region
    _
  $region5: #{crnn_forward.12} parent=0 // pred_fallthru
    _
  // Predicated region
  $region6: #{crnn_forward.12} parent=0 // pred_check
    _
  $region7: #{crnn_forward.12} parent=0 // pred_check_branch
    %12 = sbr.rel (0) target = $region9
  $region8: #{crnn_forward.12} parent=0 // pred_region
    _
  $region9: #{crnn_forward.12} parent=0 // pred_fallthru
    _
  // Predicated region
  $region10: #{crnn_forward.12} parent=0 // pred_check
    _
  $region11: #{crnn_forward.12} parent=0 // pred_check_branch
    %14 = sbr.rel (0) target = $region13
  $region12: #{crnn_forward.12} parent=0 // pred_region
    _
  $region13: #{crnn_forward.12} parent=0 // pred_fallthru
    _
  // Predicated region
  $region14: #{crnn_forward.12} parent=0 // pred_check
    _
  $region15: #{crnn_forward.12} parent=0 // pred_check_branch
    %16 = sbr.rel (0) target = $region17
  $region16: #{crnn_forward.12} parent=0 // pred_region
    _
  $region17: #{crnn_forward.12} parent=0 // pred_fallthru
    _
  %v17 = vld [vmem:[%s1] sm:$0xff]
  %v18 = vld [vmem:[%s1 + $0x8] sm:$0xff]
  %v19 = vld [vmem:[%s1 + $0x10] sm:$0xff]
  %v20 = vld [vmem:[%s1 + $0x18] sm:$0xff]
  %v21 = vld [vmem:[%s1 + $0x20] sm:$0xff]
  %v22 = vld [vmem:[%s1 + $0x28] sm:$0xff]
  %v23 = vld [vmem:[%s1 + $0x30] sm:$0xff]
  %v24 = vld [vmem:[%s1 + $0x38] sm:$0xff]
  %v25 = vld [vmem:[%s1 + $0x40] sm:$0xff]
  %v26 = vld [vmem:[%s1 + $0x48] sm:$0xff]
  %v27 = vld [vmem:[%s1 + $0x50] sm:$0xff]
  %v28 = vld [vmem:[%s1 + $0x58] sm:$0xff]
  %v29 = vld [vmem:[%s1 + $0x60] sm:$0xff]
  %v30 = vld [vmem:[%s1 + $0x68] sm:$0xff]
  %v31 = vld [vmem:[%s1 + $0x70] sm:$0xff]
  %v32 = vld [vmem:[%s1 + $0x78] sm:$0xff]
  %v33 = vld [vmem:[%s1 + $0x80] sm:$0xff]
  %v34 = vld [vmem:[%s1 + $0x88] sm:$0xff]
  %v35 = vld [vmem:[%s1 + $0x90] sm:$0xff]
  %v36 = vld [vmem:[%s1 + $0x98] sm:$0xff]
  %v37 = vld [vmem:[%s1 + $0xa0] sm:$0xff]
  %v38 = vld [vmem:[%s1 + $0xa8] sm:$0xff]
  %v39 = vld [vmem:[%s1 + $0xb0] sm:$0xff]
  %v40 = vld [vmem:[%s1 + $0xb8] sm:$0xff]
  %v41 = vld [vmem:[%s1 + $0xc0] sm:$0xff]
  %v42 = vld [vmem:[%s1 + $0xc8] sm:$0xff]
  %v43 = vld [vmem:[%s1 + $0xd0] sm:$0xff]
  %v44 = vld [vmem:[%s1 + $0xd8] sm:$0xff]
  %v45 = vld [vmem:[%s1 + $0xe0] sm:$0xff]
  %v46 = vld [vmem:[%s1 + $0xe8] sm:$0xff]
  %v47 = vld [vmem:[%s1 + $0xf0] sm:$0xff]
  %v48 = vld [vmem:[%s1 + $0xf8] sm:$0xff]
  %v49 = vld [vmem:[%s1 + $0x100] sm:$0xff]
  %v50 = vld [vmem:[%s1 + $0x108] sm:$0xff]
  %v51 = vld [vmem:[%s1 + $0x110] sm:$0xff]
  %v52 = vld [vmem:[%s1 + $0x118] sm:$0xff]
  %v53 = vld [vmem:[%s1 + $0x120] sm:$0xff]
  %v54 = vld [vmem:[%s1 + $0x128] sm:$0xff]
  %v55 = vld [vmem:[%s1 + $0x130] sm:$0xff]
  %v56 = vld [vmem:[%s1 + $0x138] sm:$0xff]
  %v57 = vld [vmem:[%s1 + $0x140] sm:$0xff]
  %v58 = vld [vmem:[%s1 + $0x148] sm:$0xff]
  %v59 = vld [vmem:[%s1 + $0x150] sm:$0xff]
  %v60 = vld [vmem:[%s1 + $0x158] sm:$0xff]
  %v61 = vld [vmem:[%s1 + $0x160] sm:$0xff]
  %v62 = vld [vmem:[%s1 + $0x168] sm:$0xff]
  %v63 = vld [vmem:[%s1 + $0x170] sm:$0xff]
  %v64 = vld [vmem:[%s1 + $0x178] sm:$0xff]
  %v65 = vld [vmem:[%s1 + $0x180] sm:$0xff]
  %v66 = vld [vmem:[%s1 + $0x188] sm:$0xff]
  %v67 = vld [vmem:[%s1 + $0x190] sm:$0xff]
  %v68 = vld [vmem:[%s1 + $0x198] sm:$0xff]
  %v69 = vld [vmem:[%s1 + $0x1a0] sm:$0xff]
  %v70 = vld [vmem:[%s1 + $0x1a8] sm:$0xff]
  %v71 = vld [vmem:[%s1 + $0x1b0] sm:$0xff]
  %v72 = vld [vmem:[%s1 + $0x1b8] sm:$0xff]
  %v73 = vld [vmem:[%s1 + $0x1c0] sm:$0xff]
  %v74 = vld [vmem:[%s1 + $0x1c8] sm:$0xff]
  %v75 = vld [vmem:[%s1 + $0x1d0] sm:$0xff]
  %v76 = vld [vmem:[%s1 + $0x1d8] sm:$0xff]
  %v77 = vld [vmem:[%s1 + $0x1e0] sm:$0xff]
  %v78 = vld [vmem:[%s1 + $0x1e8] sm:$0xff]
  %v79 = vld [vmem:[%s1 + $0x1f0] sm:$0xff]
  %v80 = vld [vmem:[%s1 + $0x1f8] sm:$0xff]
  %v81 = vld [vmem:[%s1 + $0x200] sm:$0xff]
  %v82 = vld [vmem:[%s1 + $0x208] sm:$0xff]
  %v83 = vld [vmem:[%s1 + $0x210] sm:$0xff]
  %v84 = vld [vmem:[%s1 + $0x218] sm:$0xff]
  %v85 = vld [vmem:[%s1 + $0x220] sm:$0xff]
  %v86 = vld [vmem:[%s1 + $0x228] sm:$0xff]
  %v87 = vld [vmem:[%s1 + $0x230] sm:$0xff]
  %v88 = vld [vmem:[%s1 + $0x238] sm:$0xff]
  %v89 = vld [vmem:[%s1 + $0x240] sm:$0xff]
  %v90 = vld [vmem:[%s1 + $0x248] sm:$0xff]
  %v91 = vld [vmem:[%s1 + $0x250] sm:$0xff]
  %v92 = vld [vmem:[%s1 + $0x258] sm:$0xff]
  %v93 = vld [vmem:[%s1 + $0x260] sm:$0xff]
  %v94 = vld [vmem:[%s1 + $0x268] sm:$0xff]
  %v95 = vld [vmem:[%s1 + $0x270] sm:$0xff]
  %v96 = vld [vmem:[%s1 + $0x278] sm:$0xff]
  %v97 = vld [vmem:[%s1 + $0x280] sm:$0xff]
  %v98 = vld [vmem:[%s1 + $0x288] sm:$0xff]
  %v99 = vld [vmem:[%s1 + $0x290] sm:$0xff]
  %v100 = vld [vmem:[%s1 + $0x298] sm:$0xff]
  %v101 = vld [vmem:[%s1 + $0x2a0] sm:$0xff]
  %v102 = vld [vmem:[%s1 + $0x2a8] sm:$0xff]
  %v103 = vld [vmem:[%s1 + $0x2b0] sm:$0xff]
  %v104 = vld [vmem:[%s1 + $0x2b8] sm:$0xff]
  %v105 = vld [vmem:[%s1 + $0x2c0] sm:$0xff]
  %v106 = vld [vmem:[%s1 + $0x2c8] sm:$0xff]
  %v107 = vld [vmem:[%s1 + $0x2d0] sm:$0xff]
  %v108 = vld [vmem:[%s1 + $0x2d8] sm:$0xff]
  %v109 = vld [vmem:[%s1 + $0x2e0] sm:$0xff]
  %v110 = vld [vmem:[%s1 + $0x2e8] sm:$0xff]
  %v111 = vld [vmem:[%s1 + $0x2f0] sm:$0xff]
  %v112 = vld [vmem:[%s1 + $0x2f8] sm:$0xff]
  %v113 = vld [vmem:[%s1 + $0x300] sm:$0xff]
  %v114 = vld [vmem:[%s1 + $0x308] sm:$0xff]
  %v115 = vld [vmem:[%s1 + $0x310] sm:$0xff]
  %v116 = vld [vmem:[%s1 + $0x318] sm:$0xff]
  %v117 = vld [vmem:[%s1 + $0x320] sm:$0xff]
  %v118 = vld [vmem:[%s1 + $0x328] sm:$0xff]
  %v119 = vld [vmem:[%s1 + $0x330] sm:$0xff]
  %v120 = vld [vmem:[%s1 + $0x338] sm:$0xff]
  %v121 = vld [vmem:[%s1 + $0x340] sm:$0xff]
  %v122 = vld [vmem:[%s1 + $0x348] sm:$0xff]
  %v123 = vld [vmem:[%s1 + $0x350] sm:$0xff]
  %v124 = vld [vmem:[%s1 + $0x358] sm:$0xff]
  %v125 = vld [vmem:[%s1 + $0x360] sm:$0xff]
  %v126 = vld [vmem:[%s1 + $0x368] sm:$0xff]
  %v127 = vld [vmem:[%s1 + $0x370] sm:$0xff]
  %v128 = vld [vmem:[%s1 + $0x378] sm:$0xff]
  %v129 = vld [vmem:[%s1 + $0x380] sm:$0xff]
  %v130 = vld [vmem:[%s1 + $0x388] sm:$0xff]
  %v131 = vld [vmem:[%s1 + $0x390] sm:$0xff]
  %v132 = vld [vmem:[%s1 + $0x398] sm:$0xff]
  %v133 = vld [vmem:[%s1 + $0x3a0] sm:$0xff]
  %v134 = vld [vmem:[%s1 + $0x3a8] sm:$0xff]
  %v135 = vld [vmem:[%s1 + $0x3b0] sm:$0xff]
  %v136 = vld [vmem:[%s1 + $0x3b8] sm:$0xff]
  %v137 = vld [vmem:[%s1 + $0x3c0] sm:$0xff]
  %v138 = vld [vmem:[%s1 + $0x3c8] sm:$0xff]
  %v139 = vld [vmem:[%s1 + $0x3d0] sm:$0xff]
  %v140 = vld [vmem:[%s1 + $0x3d8] sm:$0xff]
  %v141 = vld [vmem:[%s1 + $0x3e0] sm:$0xff]
  %v142 = vld [vmem:[%s1 + $0x3e8] sm:$0xff]
  %v143 = vld [vmem:[%s1 + $0x3f0] sm:$0xff]
  %v144 = vld [vmem:[%s1 + $0x3f8] sm:$0xff]
  %v145 = vld [vmem:[%s1 + $0x400] sm:$0xff]
  %v146 = vld [vmem:[%s1 + $0x408] sm:$0xff]
  %v147 = vld [vmem:[%s1 + $0x410] sm:$0xff]
  %v148 = vld [vmem:[%s1 + $0x418] sm:$0xff]
  %v149 = vld [vmem:[%s1 + $0x420] sm:$0xff]
  %v150 = vld [vmem:[%s1 + $0x428] sm:$0xff]
  %v151 = vld [vmem:[%s1 + $0x430] sm:$0xff]
  %v152 = vld [vmem:[%s1 + $0x438] sm:$0xff]
  %v153 = vld [vmem:[%s1 + $0x440] sm:$0xff]
  %v154 = vld [vmem:[%s1 + $0x448] sm:$0xff]
  %v155 = vld [vmem:[%s1 + $0x450] sm:$0xff]
  %v156 = vld [vmem:[%s1 + $0x458] sm:$0xff]
  %v157 = vld [vmem:[%s1 + $0x460] sm:$0xff]
  %v158 = vld [vmem:[%s1 + $0x468] sm:$0xff]
  %v159 = vld [vmem:[%s1 + $0x470] sm:$0xff]
  %v160 = vld [vmem:[%s1 + $0x478] sm:$0xff]
  %v161 = vld [vmem:[%s1 + $0x480] sm:$0xff]
  %v162 = vld [vmem:[%s1 + $0x488] sm:$0xff]
  %v163 = vld [vmem:[%s1 + $0x490] sm:$0xff]
  %v164 = vld [vmem:[%s1 + $0x498] sm:$0xff]
  %v165 = vld [vmem:[%s1 + $0x4a0] sm:$0xff]
  %v166 = vld [vmem:[%s1 + $0x4a8] sm:$0xff]
  %v167 = vld [vmem:[%s1 + $0x4b0] sm:$0xff]
  %v168 = vld [vmem:[%s1 + $0x4b8] sm:$0xff]
  %v169 = vld [vmem:[%s1 + $0x4c0] sm:$0xff]
  %v170 = vld [vmem:[%s1 + $0x4c8] sm:$0xff]
  %v171 = vld [vmem:[%s1 + $0x4d0] sm:$0xff]
  %v172 = vld [vmem:[%s1 + $0x4d8] sm:$0xff]
  %v173 = vld [vmem:[%s1 + $0x4e0] sm:$0xff]
  %v174 = vld [vmem:[%s1 + $0x4e8] sm:$0xff]
  %v175 = vld [vmem:[%s1 + $0x4f0] sm:$0xff]
  %v176 = vld [vmem:[%s1 + $0x4f8] sm:$0xff]
  %v177 = vld [vmem:[%s1 + $0x500] sm:$0xff]
  %v178 = vld [vmem:[%s1 + $0x508] sm:$0xff]
  %v179 = vld [vmem:[%s1 + $0x510] sm:$0xff]
  %v180 = vld [vmem:[%s1 + $0x518] sm:$0xff]
  %v181 = vld [vmem:[%s1 + $0x520] sm:$0xff]
  %v182 = vld [vmem:[%s1 + $0x528] sm:$0xff]
  %v183 = vld [vmem:[%s1 + $0x530] sm:$0xff]
  %v184 = vld [vmem:[%s1 + $0x538] sm:$0xff]
  %v185 = vld [vmem:[%s1 + $0x540] sm:$0xff]
  %v186 = vld [vmem:[%s1 + $0x548] sm:$0xff]
  %v187 = vld [vmem:[%s1 + $0x550] sm:$0xff]
  %v188 = vld [vmem:[%s1 + $0x558] sm:$0xff]
  %v189 = vld [vmem:[%s1 + $0x560] sm:$0xff]
  %v190 = vld [vmem:[%s1 + $0x568] sm:$0xff]
  %v191 = vld [vmem:[%s1 + $0x570] sm:$0xff]
  %v192 = vld [vmem:[%s1 + $0x578] sm:$0xff]
  %v193 = vld [vmem:[%s1 + $0x580] sm:$0xff]
  %v194 = vld [vmem:[%s1 + $0x588] sm:$0xff]
  %v195 = vld [vmem:[%s1 + $0x590] sm:$0xff]
  %v196 = vld [vmem:[%s1 + $0x598] sm:$0xff]
  %v197 = vld [vmem:[%s1 + $0x5a0] sm:$0xff]
  %v198 = vld [vmem:[%s1 + $0x5a8] sm:$0xff]
  %v199 = vld [vmem:[%s1 + $0x5b0] sm:$0xff]
  %v200 = vld [vmem:[%s1 + $0x5b8] sm:$0xff]
  %v201 = vld [vmem:[%s1 + $0x5c0] sm:$0xff]
  %v202 = vld [vmem:[%s1 + $0x5c8] sm:$0xff]
  %v203 = vld [vmem:[%s1 + $0x5d0] sm:$0xff]
  %v204 = vld [vmem:[%s1 + $0x5d8] sm:$0xff]
  %v205 = vld [vmem:[%s1 + $0x5e0] sm:$0xff]
  %v206 = vld [vmem:[%s1 + $0x5e8] sm:$0xff]
  %v207 = vld [vmem:[%s1 + $0x5f0] sm:$0xff]
  %v208 = vld [vmem:[%s1 + $0x5f8] sm:$0xff]
  %v209 = vld [vmem:[%s1 + $0x600] sm:$0xff]
  %v210 = vld [vmem:[%s1 + $0x608] sm:$0xff]
  %v211 = vld [vmem:[%s1 + $0x610] sm:$0xff]
  %v212 = vld [vmem:[%s1 + $0x618] sm:$0xff]
  %v213 = vld [vmem:[%s1 + $0x620] sm:$0xff]
  %v214 = vld [vmem:[%s1 + $0x628] sm:$0xff]
  %v215 = vld [vmem:[%s1 + $0x630] sm:$0xff]
  %v216 = vld [vmem:[%s1 + $0x638] sm:$0xff]
  %v217 = vld [vmem:[%s1 + $0x640] sm:$0xff]
  %v218 = vld [vmem:[%s1 + $0x648] sm:$0xff]
  %v219 = vld [vmem:[%s1 + $0x650] sm:$0xff]
  %v220 = vld [vmem:[%s1 + $0x658] sm:$0xff]
  %v221 = vld [vmem:[%s1 + $0x660] sm:$0xff]
  %v222 = vld [vmem:[%s1 + $0x668] sm:$0xff]
  %v223 = vld [vmem:[%s1 + $0x670] sm:$0xff]
  %v224 = vld [vmem:[%s1 + $0x678] sm:$0xff]
  %v225 = vld [vmem:[%s1 + $0x680] sm:$0xff]
  %v226 = vld [vmem:[%s1 + $0x688] sm:$0xff]
  %v227 = vld [vmem:[%s1 + $0x690] sm:$0xff]
  %v228 = vld [vmem:[%s1 + $0x698] sm:$0xff]
  %v229 = vld [vmem:[%s1 + $0x6a0] sm:$0xff]
  %v230 = vld [vmem:[%s1 + $0x6a8] sm:$0xff]
  %v231 = vld [vmem:[%s1 + $0x6b0] sm:$0xff]
  %v232 = vld [vmem:[%s1 + $0x6b8] sm:$0xff]
  %v233 = vld [vmem:[%s1 + $0x6c0] sm:$0xff]
  %v234 = vld [vmem:[%s1 + $0x6c8] sm:$0xff]
  %v235 = vld [vmem:[%s1 + $0x6d0] sm:$0xff]
  %v236 = vld [vmem:[%s1 + $0x6d8] sm:$0xff]
  %v237 = vld [vmem:[%s1 + $0x6e0] sm:$0xff]
  %v238 = vld [vmem:[%s1 + $0x6e8] sm:$0xff]
  %v239 = vld [vmem:[%s1 + $0x6f0] sm:$0xff]
  %v240 = vld [vmem:[%s1 + $0x6f8] sm:$0xff]
  %v241 = vld [vmem:[%s1 + $0x700] sm:$0xff]
  %v242 = vld [vmem:[%s1 + $0x708] sm:$0xff]
  %v243 = vld [vmem:[%s1 + $0x710] sm:$0xff]
  %v244 = vld [vmem:[%s1 + $0x718] sm:$0xff]
  %v245 = vld [vmem:[%s1 + $0x720] sm:$0xff]
  %v246 = vld [vmem:[%s1 + $0x728] sm:$0xff]
  %v247 = vld [vmem:[%s1 + $0x730] sm:$0xff]
  %v248 = vld [vmem:[%s1 + $0x738] sm:$0xff]
  %v249 = vld [vmem:[%s1 + $0x740] sm:$0xff]
  %v250 = vld [vmem:[%s1 + $0x748] sm:$0xff]
  %v251 = vld [vmem:[%s1 + $0x750] sm:$0xff]
  %v252 = vld [vmem:[%s1 + $0x758] sm:$0xff]
  %v253 = vld [vmem:[%s1 + $0x760] sm:$0xff]
  %v254 = vld [vmem:[%s1 + $0x768] sm:$0xff]
  %v255 = vld [vmem:[%s1 + $0x770] sm:$0xff]
  %v256 = vld [vmem:[%s1 + $0x778] sm:$0xff]
  %v257 = vld [vmem:[%s1 + $0x780] sm:$0xff]
  %v258 = vld [vmem:[%s1 + $0x788] sm:$0xff]
  %v259 = vld [vmem:[%s1 + $0x790] sm:$0xff]
  %v260 = vld [vmem:[%s1 + $0x798] sm:$0xff]
  %v261 = vld [vmem:[%s1 + $0x7a0] sm:$0xff]
  %v262 = vld [vmem:[%s1 + $0x7a8] sm:$0xff]
  %v263 = vld [vmem:[%s1 + $0x7b0] sm:$0xff]
  %v264 = vld [vmem:[%s1 + $0x7b8] sm:$0xff]
  %v265 = vld [vmem:[%s1 + $0x7c0] sm:$0xff]
  %v266 = vld [vmem:[%s1 + $0x7c8] sm:$0xff]
  %v267 = vld [vmem:[%s1 + $0x7d0] sm:$0xff]
  %v268 = vld [vmem:[%s1 + $0x7d8] sm:$0xff]
  %v269 = vld [vmem:[%s1 + $0x7e0] sm:$0xff]
  %v270 = vld [vmem:[%s1 + $0x7e8] sm:$0xff]
  %v271 = vld [vmem:[%s1 + $0x7f0] sm:$0xff]
  %v272 = vld [vmem:[%s1 + $0x7f8] sm:$0xff]
  %v273 = vld [vmem:[%s1 + $0x800] sm:$0xff]
  %v274 = vld [vmem:[%s1 + $0x808] sm:$0xff]
  %v275 = vld [vmem:[%s1 + $0x810] sm:$0xff]
  %v276 = vld [vmem:[%s1 + $0x818] sm:$0xff]
  %v277 = vld [vmem:[%s1 + $0x820] sm:$0xff]
  %v278 = vld [vmem:[%s1 + $0x828] sm:$0xff]
  %v279 = vld [vmem:[%s1 + $0x830] sm:$0xff]
  %v280 = vld [vmem:[%s1 + $0x838] sm:$0xff]
  %v281 = vld [vmem:[%s1 + $0x840] sm:$0xff]
  %v282 = vld [vmem:[%s1 + $0x848] sm:$0xff]
  %v283 = vld [vmem:[%s1 + $0x850] sm:$0xff]
  %v284 = vld [vmem:[%s1 + $0x858] sm:$0xff]
  %v285 = vld [vmem:[%s1 + $0x860] sm:$0xff]
  %v286 = vld [vmem:[%s1 + $0x868] sm:$0xff]
  %v287 = vld [vmem:[%s1 + $0x870] sm:$0xff]
  %v288 = vld [vmem:[%s1 + $0x878] sm:$0xff]
  %v289 = vld [vmem:[%s1 + $0x880] sm:$0xff]
  %v290 = vld [vmem:[%s1 + $0x888] sm:$0xff]
  %v291 = vld [vmem:[%s1 + $0x890] sm:$0xff]
  %v292 = vld [vmem:[%s1 + $0x898] sm:$0xff]
  %v293 = vld [vmem:[%s1 + $0x8a0] sm:$0xff]
  %v294 = vld [vmem:[%s1 + $0x8a8] sm:$0xff]
  %v295 = vld [vmem:[%s1 + $0x8b0] sm:$0xff]
  %v296 = vld [vmem:[%s1 + $0x8b8] sm:$0xff]
  %v297 = vld [vmem:[%s1 + $0x8c0] sm:$0xff]
  %v298 = vld [vmem:[%s1 + $0x8c8] sm:$0xff]
  %v299 = vld [vmem:[%s1 + $0x8d0] sm:$0xff]
  %v300 = vld [vmem:[%s1 + $0x8d8] sm:$0xff]
  %v301 = vld [vmem:[%s1 + $0x8e0] sm:$0xff]
  %v302 = vld [vmem:[%s1 + $0x8e8] sm:$0xff]
  %v303 = vld [vmem:[%s1 + $0x8f0] sm:$0xff]
  %v304 = vld [vmem:[%s1 + $0x8f8] sm:$0xff]
  %v305 = vld [vmem:[%s1 + $0x900] sm:$0xff]
  %v306 = vld [vmem:[%s1 + $0x908] sm:$0xff]
  %v307 = vld [vmem:[%s1 + $0x910] sm:$0xff]
  %v308 = vld [vmem:[%s1 + $0x918] sm:$0xff]
  %v309 = vld [vmem:[%s1 + $0x920] sm:$0xff]
  %v310 = vld [vmem:[%s1 + $0x928] sm:$0xff]
  %v311 = vld [vmem:[%s1 + $0x930] sm:$0xff]
  %v312 = vld [vmem:[%s1 + $0x938] sm:$0xff]
  %v313 = vld [vmem:[%s1 + $0x940] sm:$0xff]
  %v314 = vld [vmem:[%s1 + $0x948] sm:$0xff]
  %v315 = vld [vmem:[%s1 + $0x950] sm:$0xff]
  %v316 = vld [vmem:[%s1 + $0x958] sm:$0xff]
  %v317 = vld [vmem:[%s1 + $0x960] sm:$0xff]
  %v318 = vld [vmem:[%s1 + $0x968] sm:$0xff]
  %v319 = vld [vmem:[%s1 + $0x970] sm:$0xff]
  %v320 = vld [vmem:[%s1 + $0x978] sm:$0xff]
  %v321 = vld [vmem:[%s1 + $0x980] sm:$0xff]
  %v322 = vld [vmem:[%s1 + $0x988] sm:$0xff]
  %v323 = vld [vmem:[%s1 + $0x990] sm:$0xff]
  %v324 = vld [vmem:[%s1 + $0x998] sm:$0xff]
  %v325 = vld [vmem:[%s1 + $0x9a0] sm:$0xff]
  %v326 = vld [vmem:[%s1 + $0x9a8] sm:$0xff]
  %v327 = vld [vmem:[%s1 + $0x9b0] sm:$0xff]
  %v328 = vld [vmem:[%s1 + $0x9b8] sm:$0xff]
  %v329 = vld [vmem:[%s1 + $0x9c0] sm:$0xff]
  %v330 = vld [vmem:[%s1 + $0x9c8] sm:$0xff]
  %v331 = vld [vmem:[%s1 + $0x9d0] sm:$0xff]
  %v332 = vld [vmem:[%s1 + $0x9d8] sm:$0xff]
  %v333 = vld [vmem:[%s1 + $0x9e0] sm:$0xff]
  %v334 = vld [vmem:[%s1 + $0x9e8] sm:$0xff]
  %v335 = vld [vmem:[%s1 + $0x9f0] sm:$0xff]
  %v336 = vld [vmem:[%s1 + $0x9f8] sm:$0xff]
  %v337 = vld [vmem:[%s1 + $0xa00] sm:$0xff]
  %v338 = vld [vmem:[%s1 + $0xa08] sm:$0xff]
  %v339 = vld [vmem:[%s1 + $0xa10] sm:$0xff]
  %v340 = vld [vmem:[%s1 + $0xa18] sm:$0xff]
  %v341 = vld [vmem:[%s1 + $0xa20] sm:$0xff]
  %v342 = vld [vmem:[%s1 + $0xa28] sm:$0xff]
  %v343 = vld [vmem:[%s1 + $0xa30] sm:$0xff]
  %v344 = vld [vmem:[%s1 + $0xa38] sm:$0xff]
  %v345 = vld [vmem:[%s1 + $0xa40] sm:$0xff]
  %v346 = vld [vmem:[%s1 + $0xa48] sm:$0xff]
  %v347 = vld [vmem:[%s1 + $0xa50] sm:$0xff]
  %v348 = vld [vmem:[%s1 + $0xa58] sm:$0xff]
  %v349 = vld [vmem:[%s1 + $0xa60] sm:$0xff]
  %v350 = vld [vmem:[%s1 + $0xa68] sm:$0xff]
  %v351 = vld [vmem:[%s1 + $0xa70] sm:$0xff]
  %v352 = vld [vmem:[%s1 + $0xa78] sm:$0xff]
  %v353 = vld [vmem:[%s1 + $0xa80] sm:$0xff]
  %v354 = vld [vmem:[%s1 + $0xa88] sm:$0xff]
  %v355 = vld [vmem:[%s1 + $0xa90] sm:$0xff]
  %v356 = vld [vmem:[%s1 + $0xa98] sm:$0xff]
  %v357 = vld [vmem:[%s1 + $0xaa0] sm:$0xff]
  %v358 = vld [vmem:[%s1 + $0xaa8] sm:$0xff]
  %v359 = vld [vmem:[%s1 + $0xab0] sm:$0xff]
  %v360 = vld [vmem:[%s1 + $0xab8] sm:$0xff]
  %v361 = vld [vmem:[%s1 + $0xac0] sm:$0xff]
  %v362 = vld [vmem:[%s1 + $0xac8] sm:$0xff]
  %v363 = vld [vmem:[%s1 + $0xad0] sm:$0xff]
  %v364 = vld [vmem:[%s1 + $0xad8] sm:$0xff]
  %v365 = vld [vmem:[%s1 + $0xae0] sm:$0xff]
  %v366 = vld [vmem:[%s1 + $0xae8] sm:$0xff]
  %v367 = vld [vmem:[%s1 + $0xaf0] sm:$0xff]
  %v368 = vld [vmem:[%s1 + $0xaf8] sm:$0xff]
  %v369 = vld [vmem:[%s1 + $0xb00] sm:$0xff]
  %v370 = vld [vmem:[%s1 + $0xb08] sm:$0xff]
  %v371 = vld [vmem:[%s1 + $0xb10] sm:$0xff]
  %v372 = vld [vmem:[%s1 + $0xb18] sm:$0xff]
  %v373 = vld [vmem:[%s1 + $0xb20] sm:$0xff]
  %v374 = vld [vmem:[%s1 + $0xb28] sm:$0xff]
  %v375 = vld [vmem:[%s1 + $0xb30] sm:$0xff]
  %v376 = vld [vmem:[%s1 + $0xb38] sm:$0xff]
  %v377 = vld [vmem:[%s1 + $0xb40] sm:$0xff]
  %v378 = vld [vmem:[%s1 + $0xb48] sm:$0xff]
  %v379 = vld [vmem:[%s1 + $0xb50] sm:$0xff]
  %v380 = vld [vmem:[%s1 + $0xb58] sm:$0xff]
  %v381 = vld [vmem:[%s1 + $0xb60] sm:$0xff]
  %v382 = vld [vmem:[%s1 + $0xb68] sm:$0xff]
  %v383 = vld [vmem:[%s1 + $0xb70] sm:$0xff]
  %v384 = vld [vmem:[%s1 + $0xb78] sm:$0xff]
  %v385 = vld [vmem:[%s1 + $0xb80] sm:$0xff]
  %v386 = vld [vmem:[%s1 + $0xb88] sm:$0xff]
  %v387 = vld [vmem:[%s1 + $0xb90] sm:$0xff]
  %v388 = vld [vmem:[%s1 + $0xb98] sm:$0xff]
  %v389 = vld [vmem:[%s1 + $0xba0] sm:$0xff]
  %v390 = vld [vmem:[%s1 + $0xba8] sm:$0xff]
  %v391 = vld [vmem:[%s1 + $0xbb0] sm:$0xff]
  %v392 = vld [vmem:[%s1 + $0xbb8] sm:$0xff]
  %v393 = vld [vmem:[%s1 + $0xbc0] sm:$0xff]
  %v394 = vld [vmem:[%s1 + $0xbc8] sm:$0xff]
  %v395 = vld [vmem:[%s1 + $0xbd0] sm:$0xff]
  %v396 = vld [vmem:[%s1 + $0xbd8] sm:$0xff]
  %v397 = vld [vmem:[%s1 + $0xbe0] sm:$0xff]
  %v398 = vld [vmem:[%s1 + $0xbe8] sm:$0xff]
  %v399 = vld [vmem:[%s1 + $0xbf0] sm:$0xff]
  %v400 = vld [vmem:[%s1 + $0xbf8] sm:$0xff]
  %v401 = vld [vmem:[%s1 + $0xc00] sm:$0xff]
  %v402 = vld [vmem:[%s1 + $0xc08] sm:$0xff]
  %v403 = vld [vmem:[%s1 + $0xc10] sm:$0xff]
  %v404 = vld [vmem:[%s1 + $0xc18] sm:$0xff]
  %v405 = vld [vmem:[%s1 + $0xc20] sm:$0xff]
  %v406 = vld [vmem:[%s1 + $0xc28] sm:$0xff]
  %v407 = vld [vmem:[%s1 + $0xc30] sm:$0xff]
  %v408 = vld [vmem:[%s1 + $0xc38] sm:$0xff]
  %v409 = vld [vmem:[%s1 + $0xc40] sm:$0xff]
  %v410 = vld [vmem:[%s1 + $0xc48] sm:$0xff]
  %v411 = vld [vmem:[%s1 + $0xc50] sm:$0xff]
  %v412 = vld [vmem:[%s1 + $0xc58] sm:$0xff]
  %v413 = vld [vmem:[%s1 + $0xc60] sm:$0xff]
  %v414 = vld [vmem:[%s1 + $0xc68] sm:$0xff]
  %v415 = vld [vmem:[%s1 + $0xc70] sm:$0xff]
  %v416 = vld [vmem:[%s1 + $0xc78] sm:$0xff]
  %v417 = vld [vmem:[%s1 + $0xc80] sm:$0xff]
  %v418 = vld [vmem:[%s1 + $0xc88] sm:$0xff]
  %v419 = vld [vmem:[%s1 + $0xc90] sm:$0xff]
  %v420 = vld [vmem:[%s1 + $0xc98] sm:$0xff]
  %v421 = vld [vmem:[%s1 + $0xca0] sm:$0xff]
  %v422 = vld [vmem:[%s1 + $0xca8] sm:$0xff]
  %v423 = vld [vmem:[%s1 + $0xcb0] sm:$0xff]
  %v424 = vld [vmem:[%s1 + $0xcb8] sm:$0xff]
  %v425 = vld [vmem:[%s1 + $0xcc0] sm:$0xff]
  %v426 = vld [vmem:[%s1 + $0xcc8] sm:$0xff]
  %v427 = vld [vmem:[%s1 + $0xcd0] sm:$0xff]
  %v428 = vld [vmem:[%s1 + $0xcd8] sm:$0xff]
  %v429 = vld [vmem:[%s1 + $0xce0] sm:$0xff]
  %v430 = vld [vmem:[%s1 + $0xce8] sm:$0xff]
  %v431 = vld [vmem:[%s1 + $0xcf0] sm:$0xff]
  %v432 = vld [vmem:[%s1 + $0xcf8] sm:$0xff]
  %v433 = vld [vmem:[%s1 + $0xd00] sm:$0xff]
  %v434 = vld [vmem:[%s1 + $0xd08] sm:$0xff]
  %v435 = vld [vmem:[%s1 + $0xd10] sm:$0xff]
  %v436 = vld [vmem:[%s1 + $0xd18] sm:$0xff]
  %v437 = vld [vmem:[%s1 + $0xd20] sm:$0xff]
  %v438 = vld [vmem:[%s1 + $0xd28] sm:$0xff]
  %v439 = vld [vmem:[%s1 + $0xd30] sm:$0xff]
  %v440 = vld [vmem:[%s1 + $0xd38] sm:$0xff]
  %v441 = vld [vmem:[%s1 + $0xd40] sm:$0xff]
  %v442 = vld [vmem:[%s1 + $0xd48] sm:$0xff]
  %v443 = vld [vmem:[%s1 + $0xd50] sm:$0xff]
  %v444 = vld [vmem:[%s1 + $0xd58] sm:$0xff]
  %v445 = vld [vmem:[%s1 + $0xd60] sm:$0xff]
  %v446 = vld [vmem:[%s1 + $0xd68] sm:$0xff]
  %v447 = vld [vmem:[%s1 + $0xd70] sm:$0xff]
  %v448 = vld [vmem:[%s1 + $0xd78] sm:$0xff]
  %v449 = vld [vmem:[%s1 + $0xd80] sm:$0xff]
  %v450 = vld [vmem:[%s1 + $0xd88] sm:$0xff]
  %v451 = vld [vmem:[%s1 + $0xd90] sm:$0xff]
  %v452 = vld [vmem:[%s1 + $0xd98] sm:$0xff]
  %v453 = vld [vmem:[%s1 + $0xda0] sm:$0xff]
  %v454 = vld [vmem:[%s1 + $0xda8] sm:$0xff]
  %v455 = vld [vmem:[%s1 + $0xdb0] sm:$0xff]
  %v456 = vld [vmem:[%s1 + $0xdb8] sm:$0xff]
  %v457 = vld [vmem:[%s1 + $0xdc0] sm:$0xff]
  %v458 = vld [vmem:[%s1 + $0xdc8] sm:$0xff]
  %v459 = vld [vmem:[%s1 + $0xdd0] sm:$0xff]
  %v460 = vld [vmem:[%s1 + $0xdd8] sm:$0xff]
  %v461 = vld [vmem:[%s1 + $0xde0] sm:$0xff]
  %v462 = vld [vmem:[%s1 + $0xde8] sm:$0xff]
  %v463 = vld [vmem:[%s1 + $0xdf0] sm:$0xff]
  %v464 = vld [vmem:[%s1 + $0xdf8] sm:$0xff]
  %v465 = vld [vmem:[%s1 + $0xe00] sm:$0xff]
  %v466 = vld [vmem:[%s1 + $0xe08] sm:$0xff]
  %v467 = vld [vmem:[%s1 + $0xe10] sm:$0xff]
  %v468 = vld [vmem:[%s1 + $0xe18] sm:$0xff]
  %v469 = vld [vmem:[%s1 + $0xe20] sm:$0xff]
  %v470 = vld [vmem:[%s1 + $0xe28] sm:$0xff]
  %v471 = vld [vmem:[%s1 + $0xe30] sm:$0xff]
  %v472 = vld [vmem:[%s1 + $0xe38] sm:$0xff]
  %v473 = vld [vmem:[%s1 + $0xe40] sm:$0xff]
  %v474 = vld [vmem:[%s1 + $0xe48] sm:$0xff]
  %v475 = vld [vmem:[%s1 + $0xe50] sm:$0xff]
  %v476 = vld [vmem:[%s1 + $0xe58] sm:$0xff]
  %v477 = vld [vmem:[%s1 + $0xe60] sm:$0xff]
  %v478 = vld [vmem:[%s1 + $0xe68] sm:$0xff]
  %v479 = vld [vmem:[%s1 + $0xe70] sm:$0xff]
  %v480 = vld [vmem:[%s1 + $0xe78] sm:$0xff]
  %v481 = vld [vmem:[%s1 + $0xe80] sm:$0xff]
  %v482 = vld [vmem:[%s1 + $0xe88] sm:$0xff]
  %v483 = vld [vmem:[%s1 + $0xe90] sm:$0xff]
  %v484 = vld [vmem:[%s1 + $0xe98] sm:$0xff]
  %v485 = vld [vmem:[%s1 + $0xea0] sm:$0xff]
  %v486 = vld [vmem:[%s1 + $0xea8] sm:$0xff]
  %v487 = vld [vmem:[%s1 + $0xeb0] sm:$0xff]
  %v488 = vld [vmem:[%s1 + $0xeb8] sm:$0xff]
  %v489 = vld [vmem:[%s1 + $0xec0] sm:$0xff]
  %v490 = vld [vmem:[%s1 + $0xec8] sm:$0xff]
  %v491 = vld [vmem:[%s1 + $0xed0] sm:$0xff]
  %v492 = vld [vmem:[%s1 + $0xed8] sm:$0xff]
  %v493 = vld [vmem:[%s1 + $0xee0] sm:$0xff]
  %v494 = vld [vmem:[%s1 + $0xee8] sm:$0xff]
  %v495 = vld [vmem:[%s1 + $0xef0] sm:$0xff]
  %v496 = vld [vmem:[%s1 + $0xef8] sm:$0xff]
  %v497 = vld [vmem:[%s1 + $0xf00] sm:$0xff]
  %v498 = vld [vmem:[%s1 + $0xf08] sm:$0xff]
  %v499 = vld [vmem:[%s1 + $0xf10] sm:$0xff]
  %v500 = vld [vmem:[%s1 + $0xf18] sm:$0xff]
  %v501 = vld [vmem:[%s1 + $0xf20] sm:$0xff]
  %v502 = vld [vmem:[%s1 + $0xf28] sm:$0xff]
  %v503 = vld [vmem:[%s1 + $0xf30] sm:$0xff]
  %v504 = vld [vmem:[%s1 + $0xf38] sm:$0xff]
  %v505 = vld [vmem:[%s1 + $0xf40] sm:$0xff]
  %v506 = vld [vmem:[%s1 + $0xf48] sm:$0xff]
  %v507 = vld [vmem:[%s1 + $0xf50] sm:$0xff]
  %v508 = vld [vmem:[%s1 + $0xf58] sm:$0xff]
  %v509 = vld [vmem:[%s1 + $0xf60] sm:$0xff]
  %v510 = vld [vmem:[%s1 + $0xf68] sm:$0xff]
  %v511 = vld [vmem:[%s1 + $0xf70] sm:$0xff]
  %v512 = vld [vmem:[%s1 + $0xf78] sm:$0xff]
  %v513 = vld [vmem:[%s1 + $0xf80] sm:$0xff]
  %v514 = vld [vmem:[%s1 + $0xf88] sm:$0xff]
  %v515 = vld [vmem:[%s1 + $0xf90] sm:$0xff]
  %v516 = vld [vmem:[%s1 + $0xf98] sm:$0xff]
  %v517 = vld [vmem:[%s1 + $0xfa0] sm:$0xff]
  %v518 = vld [vmem:[%s1 + $0xfa8] sm:$0xff]
  %v519 = vld [vmem:[%s1 + $0xfb0] sm:$0xff]
  %v520 = vld [vmem:[%s1 + $0xfb8] sm:$0xff]
  %v521 = vld [vmem:[%s1 + $0xfc0] sm:$0xff]
  %v522 = vld [vmem:[%s1 + $0xfc8] sm:$0xff]
  %v523 = vld [vmem:[%s1 + $0xfd0] sm:$0xff]
  %v524 = vld [vmem:[%s1 + $0xfd8] sm:$0xff]
  %v525 = vld [vmem:[%s1 + $0xfe0] sm:$0xff]
  %v526 = vld [vmem:[%s1 + $0xfe8] sm:$0xff]
  %v527 = vld [vmem:[%s1 + $0xff0] sm:$0xff]
  %v528 = vld [vmem:[%s1 + $0xff8] sm:$0xff]
  %v529 = vld [vmem:[%s1 + $0x1000] sm:$0xff]
  %v530 = vld [vmem:[%s1 + $0x1008] sm:$0xff]
  %v531 = vld [vmem:[%s1 + $0x1010] sm:$0xff]
  %v532 = vld [vmem:[%s1 + $0x1018] sm:$0xff]
  %v533 = vld [vmem:[%s1 + $0x1020] sm:$0xff]
  %v534 = vld [vmem:[%s1 + $0x1028] sm:$0xff]
  %v535 = vld [vmem:[%s1 + $0x1030] sm:$0xff]
  %v536 = vld [vmem:[%s1 + $0x1038] sm:$0xff]
  %v537 = vld [vmem:[%s1 + $0x1040] sm:$0xff]
  %v538 = vld [vmem:[%s1 + $0x1048] sm:$0xff]
  %v539 = vld [vmem:[%s1 + $0x1050] sm:$0xff]
  %v540 = vld [vmem:[%s1 + $0x1058] sm:$0xff]
  %v541 = vld [vmem:[%s1 + $0x1060] sm:$0xff]
  %v542 = vld [vmem:[%s1 + $0x1068] sm:$0xff]
  %v543 = vld [vmem:[%s1 + $0x1070] sm:$0xff]
  %v544 = vld [vmem:[%s1 + $0x1078] sm:$0xff]
  %v545 = vld [vmem:[%s1 + $0x1080] sm:$0xff]
  %v546 = vld [vmem:[%s1 + $0x1088] sm:$0xff]
  %v547 = vld [vmem:[%s1 + $0x1090] sm:$0xff]
  %v548 = vld [vmem:[%s1 + $0x1098] sm:$0xff]
  %v549 = vld [vmem:[%s1 + $0x10a0] sm:$0xff]
  %v550 = vld [vmem:[%s1 + $0x10a8] sm:$0xff]
  %v551 = vld [vmem:[%s1 + $0x10b0] sm:$0xff]
  %v552 = vld [vmem:[%s1 + $0x10b8] sm:$0xff]
  %v553 = vld [vmem:[%s1 + $0x10c0] sm:$0xff]
  %v554 = vld [vmem:[%s1 + $0x10c8] sm:$0xff]
  %v555 = vld [vmem:[%s1 + $0x10d0] sm:$0xff]
  %v556 = vld [vmem:[%s1 + $0x10d8] sm:$0xff]
  %v557 = vld [vmem:[%s1 + $0x10e0] sm:$0xff]
  %v558 = vld [vmem:[%s1 + $0x10e8] sm:$0xff]
  %v559 = vld [vmem:[%s1 + $0x10f0] sm:$0xff]
  %v560 = vld [vmem:[%s1 + $0x10f8] sm:$0xff]
  %v561 = vld [vmem:[%s1 + $0x1100] sm:$0xff]
  %v562 = vld [vmem:[%s1 + $0x1108] sm:$0xff]
  %v563 = vld [vmem:[%s1 + $0x1110] sm:$0xff]
  %v564 = vld [vmem:[%s1 + $0x1118] sm:$0xff]
  %v565 = vld [vmem:[%s1 + $0x1120] sm:$0xff]
  %v566 = vld [vmem:[%s1 + $0x1128] sm:$0xff]
  %v567 = vld [vmem:[%s1 + $0x1130] sm:$0xff]
  %v568 = vld [vmem:[%s1 + $0x1138] sm:$0xff]
  %v569 = vld [vmem:[%s1 + $0x1140] sm:$0xff]
  %v570 = vld [vmem:[%s1 + $0x1148] sm:$0xff]
  %v571 = vld [vmem:[%s1 + $0x1150] sm:$0xff]
  %v572 = vld [vmem:[%s1 + $0x1158] sm:$0xff]
  %v573 = vld [vmem:[%s1 + $0x1160] sm:$0xff]
  %v574 = vld [vmem:[%s1 + $0x1168] sm:$0xff]
  %v575 = vld [vmem:[%s1 + $0x1170] sm:$0xff]
  %v576 = vld [vmem:[%s1 + $0x1178] sm:$0xff]
  %v577 = vld [vmem:[%s1 + $0x1180] sm:$0xff]
  %v578 = vld [vmem:[%s1 + $0x1188] sm:$0xff]
  %v579 = vld [vmem:[%s1 + $0x1190] sm:$0xff]
  %v580 = vld [vmem:[%s1 + $0x1198] sm:$0xff]
  %v581 = vld [vmem:[%s1 + $0x11a0] sm:$0xff]
  %v582 = vld [vmem:[%s1 + $0x11a8] sm:$0xff]
  %v583 = vld [vmem:[%s1 + $0x11b0] sm:$0xff]
  %v584 = vld [vmem:[%s1 + $0x11b8] sm:$0xff]
  %v585 = vld [vmem:[%s1 + $0x11c0] sm:$0xff]
  %v586 = vld [vmem:[%s1 + $0x11c8] sm:$0xff]
  %v587 = vld [vmem:[%s1 + $0x11d0] sm:$0xff]
  %v588 = vld [vmem:[%s1 + $0x11d8] sm:$0xff]
  %v589 = vld [vmem:[%s1 + $0x11e0] sm:$0xff]
  %v590 = vld [vmem:[%s1 + $0x11e8] sm:$0xff]
  %v591 = vld [vmem:[%s1 + $0x11f0] sm:$0xff]
  %v592 = vld [vmem:[%s1 + $0x11f8] sm:$0xff]
  %v593 = vld [vmem:[%s1 + $0x1200] sm:$0xff]
  %v594 = vld [vmem:[%s1 + $0x1208] sm:$0xff]
  %v595 = vld [vmem:[%s1 + $0x1210] sm:$0xff]
  %v596 = vld [vmem:[%s1 + $0x1218] sm:$0xff]
  %v597 = vld [vmem:[%s1 + $0x1220] sm:$0xff]
  %v598 = vld [vmem:[%s1 + $0x1228] sm:$0xff]
  %v599 = vld [vmem:[%s1 + $0x1230] sm:$0xff]
  %v600 = vld [vmem:[%s1 + $0x1238] sm:$0xff]
  %v601 = vld [vmem:[%s1 + $0x1240] sm:$0xff]
  %v602 = vld [vmem:[%s1 + $0x1248] sm:$0xff]
  %v603 = vld [vmem:[%s1 + $0x1250] sm:$0xff]
  %v604 = vld [vmem:[%s1 + $0x1258] sm:$0xff]
  %v605 = vld [vmem:[%s1 + $0x1260] sm:$0xff]
  %v606 = vld [vmem:[%s1 + $0x1268] sm:$0xff]
  %v607 = vld [vmem:[%s1 + $0x1270] sm:$0xff]
  %v608 = vld [vmem:[%s1 + $0x1278] sm:$0xff]
  %v609 = vld [vmem:[%s1 + $0x1280] sm:$0xff]
  %v610 = vld [vmem:[%s1 + $0x1288] sm:$0xff]
  %v611 = vld [vmem:[%s1 + $0x1290] sm:$0xff]
  %v612 = vld [vmem:[%s1 + $0x1298] sm:$0xff]
  %v613 = vld [vmem:[%s1 + $0x12a0] sm:$0xff]
  %v614 = vld [vmem:[%s1 + $0x12a8] sm:$0xff]
  %v615 = vld [vmem:[%s1 + $0x12b0] sm:$0xff]
  %v616 = vld [vmem:[%s1 + $0x12b8] sm:$0xff]
  %v617 = vld [vmem:[%s1 + $0x12c0] sm:$0xff]
  %v618 = vld [vmem:[%s1 + $0x12c8] sm:$0xff]
  %v619 = vld [vmem:[%s1 + $0x12d0] sm:$0xff]
  %v620 = vld [vmem:[%s1 + $0x12d8] sm:$0xff]
  %v621 = vld [vmem:[%s1 + $0x12e0] sm:$0xff]
  %v622 = vld [vmem:[%s1 + $0x12e8] sm:$0xff]
  %v623 = vld [vmem:[%s1 + $0x12f0] sm:$0xff]
  %v624 = vld [vmem:[%s1 + $0x12f8] sm:$0xff]
  %v625 = vld [vmem:[%s1 + $0x1300] sm:$0xff]
  %v626 = vld [vmem:[%s1 + $0x1308] sm:$0xff]
  %v627 = vld [vmem:[%s1 + $0x1310] sm:$0xff]
  %v628 = vld [vmem:[%s1 + $0x1318] sm:$0xff]
  %v629 = vld [vmem:[%s1 + $0x1320] sm:$0xff]
  %v630 = vld [vmem:[%s1 + $0x1328] sm:$0xff]
  %v631 = vld [vmem:[%s1 + $0x1330] sm:$0xff]
  %v632 = vld [vmem:[%s1 + $0x1338] sm:$0xff]
  %v633 = vld [vmem:[%s1 + $0x1340] sm:$0xff]
  %v634 = vld [vmem:[%s1 + $0x1348] sm:$0xff]
  %v635 = vld [vmem:[%s1 + $0x1350] sm:$0xff]
  %v636 = vld [vmem:[%s1 + $0x1358] sm:$0xff]
  %v637 = vld [vmem:[%s1 + $0x1360] sm:$0xff]
  %v638 = vld [vmem:[%s1 + $0x1368] sm:$0xff]
  %v639 = vld [vmem:[%s1 + $0x1370] sm:$0xff]
  %v640 = vld [vmem:[%s1 + $0x1378] sm:$0xff]
  %v641 = vld [vmem:[%s1 + $0x1380] sm:$0xff]
  %v642 = vld [vmem:[%s1 + $0x1388] sm:$0xff]
  %v643 = vld [vmem:[%s1 + $0x1390] sm:$0xff]
  %v644 = vld [vmem:[%s1 + $0x1398] sm:$0xff]
  %v645 = vld [vmem:[%s1 + $0x13a0] sm:$0xff]
  %v646 = vld [vmem:[%s1 + $0x13a8] sm:$0xff]
  %v647 = vld [vmem:[%s1 + $0x13b0] sm:$0xff]
  %v648 = vld [vmem:[%s1 + $0x13b8] sm:$0xff]
  %v649 = vld [vmem:[%s1 + $0x13c0] sm:$0xff]
  %v650 = vld [vmem:[%s1 + $0x13c8] sm:$0xff]
  %v651 = vld [vmem:[%s1 + $0x13d0] sm:$0xff]
  %v652 = vld [vmem:[%s1 + $0x13d8] sm:$0xff]
  %v653 = vld [vmem:[%s1 + $0x13e0] sm:$0xff]
  %v654 = vld [vmem:[%s1 + $0x13e8] sm:$0xff]
  %v655 = vld [vmem:[%s1 + $0x13f0] sm:$0xff]
  %v656 = vld [vmem:[%s1 + $0x13f8] sm:$0xff]
  %v657 = vld [vmem:[%s1 + $0x1400] sm:$0xff]
  %v658 = vld [vmem:[%s1 + $0x1408] sm:$0xff]
  %v659 = vld [vmem:[%s1 + $0x1410] sm:$0xff]
  %v660 = vld [vmem:[%s1 + $0x1418] sm:$0xff]
  %v661 = vld [vmem:[%s1 + $0x1420] sm:$0xff]
  %v662 = vld [vmem:[%s1 + $0x1428] sm:$0xff]
  %v663 = vld [vmem:[%s1 + $0x1430] sm:$0xff]
  %v664 = vld [vmem:[%s1 + $0x1438] sm:$0xff]
  %v665 = vld [vmem:[%s1 + $0x1440] sm:$0xff]
  %v666 = vld [vmem:[%s1 + $0x1448] sm:$0xff]
  %v667 = vld [vmem:[%s1 + $0x1450] sm:$0xff]
  %v668 = vld [vmem:[%s1 + $0x1458] sm:$0xff]
  %v669 = vld [vmem:[%s1 + $0x1460] sm:$0xff]
  %v670 = vld [vmem:[%s1 + $0x1468] sm:$0xff]
  %v671 = vld [vmem:[%s1 + $0x1470] sm:$0xff]
  %v672 = vld [vmem:[%s1 + $0x1478] sm:$0xff]
  %v673 = vld [vmem:[%s1 + $0x1480] sm:$0xff]
  %v674 = vld [vmem:[%s1 + $0x1488] sm:$0xff]
  %v675 = vld [vmem:[%s1 + $0x1490] sm:$0xff]
  %v676 = vld [vmem:[%s1 + $0x1498] sm:$0xff]
  %v677 = vld [vmem:[%s1 + $0x14a0] sm:$0xff]
  %v678 = vld [vmem:[%s1 + $0x14a8] sm:$0xff]
  %v679 = vld [vmem:[%s1 + $0x14b0] sm:$0xff]
  %v680 = vld [vmem:[%s1 + $0x14b8] sm:$0xff]
  %v681 = vld [vmem:[%s1 + $0x14c0] sm:$0xff]
  %v682 = vld [vmem:[%s1 + $0x14c8] sm:$0xff]
  %v683 = vld [vmem:[%s1 + $0x14d0] sm:$0xff]
  %v684 = vld [vmem:[%s1 + $0x14d8] sm:$0xff]
  %v685 = vld [vmem:[%s1 + $0x14e0] sm:$0xff]
  %v686 = vld [vmem:[%s1 + $0x14e8] sm:$0xff]
  %v687 = vld [vmem:[%s1 + $0x14f0] sm:$0xff]
  %v688 = vld [vmem:[%s1 + $0x14f8] sm:$0xff]
  %v689 = vld [vmem:[%s1 + $0x1500] sm:$0xff]
  %v690 = vld [vmem:[%s1 + $0x1508] sm:$0xff]
  %v691 = vld [vmem:[%s1 + $0x1510] sm:$0xff]
  %v692 = vld [vmem:[%s1 + $0x1518] sm:$0xff]
  %v693 = vld [vmem:[%s1 + $0x1520] sm:$0xff]
  %v694 = vld [vmem:[%s1 + $0x1528] sm:$0xff]
  %v695 = vld [vmem:[%s1 + $0x1530] sm:$0xff]
  %v696 = vld [vmem:[%s1 + $0x1538] sm:$0xff]
  %v697 = vld [vmem:[%s1 + $0x1540] sm:$0xff]
  %v698 = vld [vmem:[%s1 + $0x1548] sm:$0xff]
  %v699 = vld [vmem:[%s1 + $0x1550] sm:$0xff]
  %v700 = vld [vmem:[%s1 + $0x1558] sm:$0xff]
  %v701 = vld [vmem:[%s1 + $0x1560] sm:$0xff]
  %v702 = vld [vmem:[%s1 + $0x1568] sm:$0xff]
  %v703 = vld [vmem:[%s1 + $0x1570] sm:$0xff]
  %v704 = vld [vmem:[%s1 + $0x1578] sm:$0xff]
  %v705 = vld [vmem:[%s1 + $0x1580] sm:$0xff]
  %v706 = vld [vmem:[%s1 + $0x1588] sm:$0xff]
  %v707 = vld [vmem:[%s1 + $0x1590] sm:$0xff]
  %v708 = vld [vmem:[%s1 + $0x1598] sm:$0xff]
  %v709 = vld [vmem:[%s1 + $0x15a0] sm:$0xff]
  %v710 = vld [vmem:[%s1 + $0x15a8] sm:$0xff]
  %v711 = vld [vmem:[%s1 + $0x15b0] sm:$0xff]
  %v712 = vld [vmem:[%s1 + $0x15b8] sm:$0xff]
  %v713 = vld [vmem:[%s1 + $0x15c0] sm:$0xff]
  %v714 = vld [vmem:[%s1 + $0x15c8] sm:$0xff]
  %v715 = vld [vmem:[%s1 + $0x15d0] sm:$0xff]
  %v716 = vld [vmem:[%s1 + $0x15d8] sm:$0xff]
  %v717 = vld [vmem:[%s1 + $0x15e0] sm:$0xff]
  %v718 = vld [vmem:[%s1 + $0x15e8] sm:$0xff]
  %v719 = vld [vmem:[%s1 + $0x15f0] sm:$0xff]
  %v720 = vld [vmem:[%s1 + $0x15f8] sm:$0xff]
  %v721 = vld [vmem:[%s1 + $0x1600] sm:$0xff]
  %v722 = vld [vmem:[%s1 + $0x1608] sm:$0xff]
  %v723 = vld [vmem:[%s1 + $0x1610] sm:$0xff]
  %v724 = vld [vmem:[%s1 + $0x1618] sm:$0xff]
  %v725 = vld [vmem:[%s1 + $0x1620] sm:$0xff]
  %v726 = vld [vmem:[%s1 + $0x1628] sm:$0xff]
  %v727 = vld [vmem:[%s1 + $0x1630] sm:$0xff]
  %v728 = vld [vmem:[%s1 + $0x1638] sm:$0xff]
  %v729 = vld [vmem:[%s1 + $0x1640] sm:$0xff]
  %v730 = vld [vmem:[%s1 + $0x1648] sm:$0xff]
  %v731 = vld [vmem:[%s1 + $0x1650] sm:$0xff]
  %v732 = vld [vmem:[%s1 + $0x1658] sm:$0xff]
  %v733 = vld [vmem:[%s1 + $0x1660] sm:$0xff]
  %v734 = vld [vmem:[%s1 + $0x1668] sm:$0xff]
  %v735 = vld [vmem:[%s1 + $0x1670] sm:$0xff]
  %v736 = vld [vmem:[%s1 + $0x1678] sm:$0xff]
  %v737 = vld [vmem:[%s1 + $0x1680] sm:$0xff]
  %v738 = vld [vmem:[%s1 + $0x1688] sm:$0xff]
  %v739 = vld [vmem:[%s1 + $0x1690] sm:$0xff]
  %v740 = vld [vmem:[%s1 + $0x1698] sm:$0xff]
  %v741 = vld [vmem:[%s1 + $0x16a0] sm:$0xff]
  %v742 = vld [vmem:[%s1 + $0x16a8] sm:$0xff]
  %v743 = vld [vmem:[%s1 + $0x16b0] sm:$0xff]
  %v744 = vld [vmem:[%s1 + $0x16b8] sm:$0xff]
  %v745 = vld [vmem:[%s1 + $0x16c0] sm:$0xff]
  %v746 = vld [vmem:[%s1 + $0x16c8] sm:$0xff]
  %v747 = vld [vmem:[%s1 + $0x16d0] sm:$0xff]
  %v748 = vld [vmem:[%s1 + $0x16d8] sm:$0xff]
  %v749 = vld [vmem:[%s1 + $0x16e0] sm:$0xff]
  %v750 = vld [vmem:[%s1 + $0x16e8] sm:$0xff]
  %v751 = vld [vmem:[%s1 + $0x16f0] sm:$0xff]
  %v752 = vld [vmem:[%s1 + $0x16f8] sm:$0xff]
  %v753 = vld [vmem:[%s1 + $0x1700] sm:$0xff]
  %v754 = vld [vmem:[%s1 + $0x1708] sm:$0xff]
  %v755 = vld [vmem:[%s1 + $0x1710] sm:$0xff]
  %v756 = vld [vmem:[%s1 + $0x1718] sm:$0xff]
  %v757 = vld [vmem:[%s1 + $0x1720] sm:$0xff]
  %v758 = vld [vmem:[%s1 + $0x1728] sm:$0xff]
  %v759 = vld [vmem:[%s1 + $0x1730] sm:$0xff]
  %v760 = vld [vmem:[%s1 + $0x1738] sm:$0xff]
  %v761 = vld [vmem:[%s1 + $0x1740] sm:$0xff]
  %v762 = vld [vmem:[%s1 + $0x1748] sm:$0xff]
  %v763 = vld [vmem:[%s1 + $0x1750] sm:$0xff]
  %v764 = vld [vmem:[%s1 + $0x1758] sm:$0xff]
  %v765 = vld [vmem:[%s1 + $0x1760] sm:$0xff]
  %v766 = vld [vmem:[%s1 + $0x1768] sm:$0xff]
  %v767 = vld [vmem:[%s1 + $0x1770] sm:$0xff]
  %v768 = vld [vmem:[%s1 + $0x1778] sm:$0xff]
  %v769 = vld [vmem:[%s1 + $0x1780] sm:$0xff]
  %v770 = vld [vmem:[%s1 + $0x1788] sm:$0xff]
  %v771 = vld [vmem:[%s1 + $0x1790] sm:$0xff]
  %v772 = vld [vmem:[%s1 + $0x1798] sm:$0xff]
  %v773 = vld [vmem:[%s1 + $0x17a0] sm:$0xff]
  %v774 = vld [vmem:[%s1 + $0x17a8] sm:$0xff]
  %v775 = vld [vmem:[%s1 + $0x17b0] sm:$0xff]
  %v776 = vld [vmem:[%s1 + $0x17b8] sm:$0xff]
  %v777 = vld [vmem:[%s1 + $0x17c0] sm:$0xff]
  %v778 = vld [vmem:[%s1 + $0x17c8] sm:$0xff]
  %v779 = vld [vmem:[%s1 + $0x17d0] sm:$0xff]
  %v780 = vld [vmem:[%s1 + $0x17d8] sm:$0xff]
  %v781 = vld [vmem:[%s1 + $0x17e0] sm:$0xff]
  %v782 = vld [vmem:[%s1 + $0x17e8] sm:$0xff]
  %v783 = vld [vmem:[%s1 + $0x17f0] sm:$0xff]
  %v784 = vld [vmem:[%s1 + $0x17f8] sm:$0xff]
  %v785 = vld [vmem:[%s1 + $0x1800] sm:$0xff]
  %v786 = vld [vmem:[%s1 + $0x1808] sm:$0xff]
  %v787 = vld [vmem:[%s1 + $0x1810] sm:$0xff]
  %v788 = vld [vmem:[%s1 + $0x1818] sm:$0xff]
  %v789 = vld [vmem:[%s1 + $0x1820] sm:$0xff]
  %v790 = vld [vmem:[%s1 + $0x1828] sm:$0xff]
  %v791 = vld [vmem:[%s1 + $0x1830] sm:$0xff]
  %v792 = vld [vmem:[%s1 + $0x1838] sm:$0xff]
  %v793 = vld [vmem:[%s1 + $0x1840] sm:$0xff]
  %v794 = vld [vmem:[%s1 + $0x1848] sm:$0xff]
  %v795 = vld [vmem:[%s1 + $0x1850] sm:$0xff]
  %v796 = vld [vmem:[%s1 + $0x1858] sm:$0xff]
  %v797 = vld [vmem:[%s1 + $0x1860] sm:$0xff]
  %v798 = vld [vmem:[%s1 + $0x1868] sm:$0xff]
  %v799 = vld [vmem:[%s1 + $0x1870] sm:$0xff]
  %v800 = vld [vmem:[%s1 + $0x1878] sm:$0xff]
  %v801 = vld [vmem:[%s1 + $0x1880] sm:$0xff]
  %v802 = vld [vmem:[%s1 + $0x1888] sm:$0xff]
  %v803 = vld [vmem:[%s1 + $0x1890] sm:$0xff]
  %v804 = vld [vmem:[%s1 + $0x1898] sm:$0xff]
  %v805 = vld [vmem:[%s1 + $0x18a0] sm:$0xff]
  %v806 = vld [vmem:[%s1 + $0x18a8] sm:$0xff]
  %v807 = vld [vmem:[%s1 + $0x18b0] sm:$0xff]
  %v808 = vld [vmem:[%s1 + $0x18b8] sm:$0xff]
  %v809 = vld [vmem:[%s1 + $0x18c0] sm:$0xff]
  %v810 = vld [vmem:[%s1 + $0x18c8] sm:$0xff]
  %v811 = vld [vmem:[%s1 + $0x18d0] sm:$0xff]
  %v812 = vld [vmem:[%s1 + $0x18d8] sm:$0xff]
  %v813 = vld [vmem:[%s1 + $0x18e0] sm:$0xff]
  %v814 = vld [vmem:[%s1 + $0x18e8] sm:$0xff]
  %v815 = vld [vmem:[%s1 + $0x18f0] sm:$0xff]
  %v816 = vld [vmem:[%s1 + $0x18f8] sm:$0xff]
  %v817 = vld [vmem:[%s1 + $0x1900] sm:$0xff]
  %v818 = vld [vmem:[%s1 + $0x1908] sm:$0xff]
  %v819 = vld [vmem:[%s1 + $0x1910] sm:$0xff]
  %v820 = vld [vmem:[%s1 + $0x1918] sm:$0xff]
  %v821 = vld [vmem:[%s1 + $0x1920] sm:$0xff]
  %v822 = vld [vmem:[%s1 + $0x1928] sm:$0xff]
  %v823 = vld [vmem:[%s1 + $0x1930] sm:$0xff]
  %v824 = vld [vmem:[%s1 + $0x1938] sm:$0xff]
  %v825 = vld [vmem:[%s1 + $0x1940] sm:$0xff]
  %v826 = vld [vmem:[%s1 + $0x1948] sm:$0xff]
  %v827 = vld [vmem:[%s1 + $0x1950] sm:$0xff]
  %v828 = vld [vmem:[%s1 + $0x1958] sm:$0xff]
  %v829 = vld [vmem:[%s1 + $0x1960] sm:$0xff]
  %v830 = vld [vmem:[%s1 + $0x1968] sm:$0xff]
  %v831 = vld [vmem:[%s1 + $0x1970] sm:$0xff]
  %v832 = vld [vmem:[%s1 + $0x1978] sm:$0xff]
  %v833 = vld [vmem:[%s1 + $0x1980] sm:$0xff]
  %v834 = vld [vmem:[%s1 + $0x1988] sm:$0xff]
  %v835 = vld [vmem:[%s1 + $0x1990] sm:$0xff]
  %v836 = vld [vmem:[%s1 + $0x1998] sm:$0xff]
  %v837 = vld [vmem:[%s1 + $0x19a0] sm:$0xff]
  %v838 = vld [vmem:[%s1 + $0x19a8] sm:$0xff]
  %v839 = vld [vmem:[%s1 + $0x19b0] sm:$0xff]
  %v840 = vld [vmem:[%s1 + $0x19b8] sm:$0xff]
  %v841 = vld [vmem:[%s1 + $0x19c0] sm:$0xff]
  %v842 = vld [vmem:[%s1 + $0x19c8] sm:$0xff]
  %v843 = vld [vmem:[%s1 + $0x19d0] sm:$0xff]
  %v844 = vld [vmem:[%s1 + $0x19d8] sm:$0xff]
  %v845 = vld [vmem:[%s1 + $0x19e0] sm:$0xff]
  %v846 = vld [vmem:[%s1 + $0x19e8] sm:$0xff]
  %v847 = vld [vmem:[%s1 + $0x19f0] sm:$0xff]
  %v848 = vld [vmem:[%s1 + $0x19f8] sm:$0xff]
  %v849 = vld [vmem:[%s1 + $0x1a00] sm:$0xff]
  %v850 = vld [vmem:[%s1 + $0x1a08] sm:$0xff]
  %v851 = vld [vmem:[%s1 + $0x1a10] sm:$0xff]
  %v852 = vld [vmem:[%s1 + $0x1a18] sm:$0xff]
  %v853 = vld [vmem:[%s1 + $0x1a20] sm:$0xff]
  %v854 = vld [vmem:[%s1 + $0x1a28] sm:$0xff]
  %v855 = vld [vmem:[%s1 + $0x1a30] sm:$0xff]
  %v856 = vld [vmem:[%s1 + $0x1a38] sm:$0xff]
  %v857 = vld [vmem:[%s1 + $0x1a40] sm:$0xff]
  %v858 = vld [vmem:[%s1 + $0x1a48] sm:$0xff]
  %v859 = vld [vmem:[%s1 + $0x1a50] sm:$0xff]
  %v860 = vld [vmem:[%s1 + $0x1a58] sm:$0xff]
  %v861 = vld [vmem:[%s1 + $0x1a60] sm:$0xff]
  %v862 = vld [vmem:[%s1 + $0x1a68] sm:$0xff]
  %v863 = vld [vmem:[%s1 + $0x1a70] sm:$0xff]
  %v864 = vld [vmem:[%s1 + $0x1a78] sm:$0xff]
  %v865 = vld [vmem:[%s1 + $0x1a80] sm:$0xff]
  %v866 = vld [vmem:[%s1 + $0x1a88] sm:$0xff]
  %v867 = vld [vmem:[%s1 + $0x1a90] sm:$0xff]
  %v868 = vld [vmem:[%s1 + $0x1a98] sm:$0xff]
  %v869 = vld [vmem:[%s1 + $0x1aa0] sm:$0xff]
  %v870 = vld [vmem:[%s1 + $0x1aa8] sm:$0xff]
  %v871 = vld [vmem:[%s1 + $0x1ab0] sm:$0xff]
  %v872 = vld [vmem:[%s1 + $0x1ab8] sm:$0xff]
  %v873 = vld [vmem:[%s1 + $0x1ac0] sm:$0xff]
  %v874 = vld [vmem:[%s1 + $0x1ac8] sm:$0xff]
  %v875 = vld [vmem:[%s1 + $0x1ad0] sm:$0xff]
  %v876 = vld [vmem:[%s1 + $0x1ad8] sm:$0xff]
  %v877 = vld [vmem:[%s1 + $0x1ae0] sm:$0xff]
  %v878 = vld [vmem:[%s1 + $0x1ae8] sm:$0xff]
  %v879 = vld [vmem:[%s1 + $0x1af0] sm:$0xff]
  %v880 = vld [vmem:[%s1 + $0x1af8] sm:$0xff]
  %v881 = vld [vmem:[%s1 + $0x1b00] sm:$0xff]
  %v882 = vld [vmem:[%s1 + $0x1b08] sm:$0xff]
  %v883 = vld [vmem:[%s1 + $0x1b10] sm:$0xff]
  %v884 = vld [vmem:[%s1 + $0x1b18] sm:$0xff]
  %v885 = vld [vmem:[%s1 + $0x1b20] sm:$0xff]
  %v886 = vld [vmem:[%s1 + $0x1b28] sm:$0xff]
  %v887 = vld [vmem:[%s1 + $0x1b30] sm:$0xff]
  %v888 = vld [vmem:[%s1 + $0x1b38] sm:$0xff]
  %v889 = vld [vmem:[%s1 + $0x1b40] sm:$0xff]
  %v890 = vld [vmem:[%s1 + $0x1b48] sm:$0xff]
  %v891 = vld [vmem:[%s1 + $0x1b50] sm:$0xff]
  %v892 = vld [vmem:[%s1 + $0x1b58] sm:$0xff]
  %v893 = vld [vmem:[%s1 + $0x1b60] sm:$0xff]
  %v894 = vld [vmem:[%s1 + $0x1b68] sm:$0xff]
  %v895 = vld [vmem:[%s1 + $0x1b70] sm:$0xff]
  %v896 = vld [vmem:[%s1 + $0x1b78] sm:$0xff]
  %v897 = vld [vmem:[%s1 + $0x1b80] sm:$0xff]
  %v898 = vld [vmem:[%s1 + $0x1b88] sm:$0xff]
  %v899 = vld [vmem:[%s1 + $0x1b90] sm:$0xff]
  %v900 = vld [vmem:[%s1 + $0x1b98] sm:$0xff]
  %v901 = vld [vmem:[%s1 + $0x1ba0] sm:$0xff]
  %v902 = vld [vmem:[%s1 + $0x1ba8] sm:$0xff]
  %v903 = vld [vmem:[%s1 + $0x1bb0] sm:$0xff]
  %v904 = vld [vmem:[%s1 + $0x1bb8] sm:$0xff]
  %v905 = vld [vmem:[%s1 + $0x1bc0] sm:$0xff]
  %v906 = vld [vmem:[%s1 + $0x1bc8] sm:$0xff]
  %v907 = vld [vmem:[%s1 + $0x1bd0] sm:$0xff]
  %v908 = vld [vmem:[%s1 + $0x1bd8] sm:$0xff]
  %v909 = vld [vmem:[%s1 + $0x1be0] sm:$0xff]
  %v910 = vld [vmem:[%s1 + $0x1be8] sm:$0xff]
  %v911 = vld [vmem:[%s1 + $0x1bf0] sm:$0xff]
  %v912 = vld [vmem:[%s1 + $0x1bf8] sm:$0xff]
  %v913 = vld [vmem:[%s1 + $0x1c00] sm:$0xff]
  %v914 = vld [vmem:[%s1 + $0x1c08] sm:$0xff]
  %v915 = vld [vmem:[%s1 + $0x1c10] sm:$0xff]
  %v916 = vld [vmem:[%s1 + $0x1c18] sm:$0xff]
  %v917 = vld [vmem:[%s1 + $0x1c20] sm:$0xff]
  %v918 = vld [vmem:[%s1 + $0x1c28] sm:$0xff]
  %v919 = vld [vmem:[%s1 + $0x1c30] sm:$0xff]
  %v920 = vld [vmem:[%s1 + $0x1c38] sm:$0xff]
  %v921 = vld [vmem:[%s1 + $0x1c40] sm:$0xff]
  %v922 = vld [vmem:[%s1 + $0x1c48] sm:$0xff]
  %v923 = vld [vmem:[%s1 + $0x1c50] sm:$0xff]
  %v924 = vld [vmem:[%s1 + $0x1c58] sm:$0xff]
  %v925 = vld [vmem:[%s1 + $0x1c60] sm:$0xff]
  %v926 = vld [vmem:[%s1 + $0x1c68] sm:$0xff]
  %v927 = vld [vmem:[%s1 + $0x1c70] sm:$0xff]
  %v928 = vld [vmem:[%s1 + $0x1c78] sm:$0xff]
  %v929 = vld [vmem:[%s1 + $0x1c80] sm:$0xff]
  %v930 = vld [vmem:[%s1 + $0x1c88] sm:$0xff]
  %v931 = vld [vmem:[%s1 + $0x1c90] sm:$0xff]
  %v932 = vld [vmem:[%s1 + $0x1c98] sm:$0xff]
  %v933 = vld [vmem:[%s1 + $0x1ca0] sm:$0xff]
  %v934 = vld [vmem:[%s1 + $0x1ca8] sm:$0xff]
  %v935 = vld [vmem:[%s1 + $0x1cb0] sm:$0xff]
  %v936 = vld [vmem:[%s1 + $0x1cb8] sm:$0xff]
  %v937 = vld [vmem:[%s1 + $0x1cc0] sm:$0xff]
  %v938 = vld [vmem:[%s1 + $0x1cc8] sm:$0xff]
  %v939 = vld [vmem:[%s1 + $0x1cd0] sm:$0xff]
  %v940 = vld [vmem:[%s1 + $0x1cd8] sm:$0xff]
  %v941 = vld [vmem:[%s1 + $0x1ce0] sm:$0xff]
  %v942 = vld [vmem:[%s1 + $0x1ce8] sm:$0xff]
  %v943 = vld [vmem:[%s1 + $0x1cf0] sm:$0xff]
  %v944 = vld [vmem:[%s1 + $0x1cf8] sm:$0xff]
  %v945 = vld [vmem:[%s1 + $0x1d00] sm:$0xff]
  %v946 = vld [vmem:[%s1 + $0x1d08] sm:$0xff]
  %v947 = vld [vmem:[%s1 + $0x1d10] sm:$0xff]
  %v948 = vld [vmem:[%s1 + $0x1d18] sm:$0xff]
  %v949 = vld [vmem:[%s1 + $0x1d20] sm:$0xff]
  %v950 = vld [vmem:[%s1 + $0x1d28] sm:$0xff]
  %v951 = vld [vmem:[%s1 + $0x1d30] sm:$0xff]
  %v952 = vld [vmem:[%s1 + $0x1d38] sm:$0xff]
  %v953 = vld [vmem:[%s1 + $0x1d40] sm:$0xff]
  %v954 = vld [vmem:[%s1 + $0x1d48] sm:$0xff]
  %v955 = vld [vmem:[%s1 + $0x1d50] sm:$0xff]
  %v956 = vld [vmem:[%s1 + $0x1d58] sm:$0xff]
  %v957 = vld [vmem:[%s1 + $0x1d60] sm:$0xff]
  %v958 = vld [vmem:[%s1 + $0x1d68] sm:$0xff]
  %v959 = vld [vmem:[%s1 + $0x1d70] sm:$0xff]
  %v960 = vld [vmem:[%s1 + $0x1d78] sm:$0xff]
  %v961 = vld [vmem:[%s1 + $0x1d80] sm:$0xff]
  %v962 = vld [vmem:[%s1 + $0x1d88] sm:$0xff]
  %v963 = vld [vmem:[%s1 + $0x1d90] sm:$0xff]
  %v964 = vld [vmem:[%s1 + $0x1d98] sm:$0xff]
  %v965 = vld [vmem:[%s1 + $0x1da0] sm:$0xff]
  %v966 = vld [vmem:[%s1 + $0x1da8] sm:$0xff]
  %v967 = vld [vmem:[%s1 + $0x1db0] sm:$0xff]
  %v968 = vld [vmem:[%s1 + $0x1db8] sm:$0xff]
  %v969 = vld [vmem:[%s1 + $0x1dc0] sm:$0xff]
  %v970 = vld [vmem:[%s1 + $0x1dc8] sm:$0xff]
  %v971 = vld [vmem:[%s1 + $0x1dd0] sm:$0xff]
  %v972 = vld [vmem:[%s1 + $0x1dd8] sm:$0xff]
  %v973 = vld [vmem:[%s1 + $0x1de0] sm:$0xff]
  %v974 = vld [vmem:[%s1 + $0x1de8] sm:$0xff]
  %v975 = vld [vmem:[%s1 + $0x1df0] sm:$0xff]
  %v976 = vld [vmem:[%s1 + $0x1df8] sm:$0xff]
  %v977 = vld [vmem:[%s1 + $0x1e00] sm:$0xff]
  %v978 = vld [vmem:[%s1 + $0x1e08] sm:$0xff]
  %v979 = vld [vmem:[%s1 + $0x1e10] sm:$0xff]
  %v980 = vld [vmem:[%s1 + $0x1e18] sm:$0xff]
  %v981 = vld [vmem:[%s1 + $0x1e20] sm:$0xff]
  %v982 = vld [vmem:[%s1 + $0x1e28] sm:$0xff]
  %v983 = vld [vmem:[%s1 + $0x1e30] sm:$0xff]
  %v984 = vld [vmem:[%s1 + $0x1e38] sm:$0xff]
  %v985 = vld [vmem:[%s1 + $0x1e40] sm:$0xff]
  %v986 = vld [vmem:[%s1 + $0x1e48] sm:$0xff]
  %v987 = vld [vmem:[%s1 + $0x1e50] sm:$0xff]
  %v988 = vld [vmem:[%s1 + $0x1e58] sm:$0xff]
  %v989 = vld [vmem:[%s1 + $0x1e60] sm:$0xff]
  %v990 = vld [vmem:[%s1 + $0x1e68] sm:$0xff]
  %v991 = vld [vmem:[%s1 + $0x1e70] sm:$0xff]
  %v992 = vld [vmem:[%s1 + $0x1e78] sm:$0xff]
  %v993 = vld [vmem:[%s1 + $0x1e80] sm:$0xff]
  %v994 = vld [vmem:[%s1 + $0x1e88] sm:$0xff]
  %v995 = vld [vmem:[%s1 + $0x1e90] sm:$0xff]
  %v996 = vld [vmem:[%s1 + $0x1e98] sm:$0xff]
  %v997 = vld [vmem:[%s1 + $0x1ea0] sm:$0xff]
  %v998 = vld [vmem:[%s1 + $0x1ea8] sm:$0xff]
  %v999 = vld [vmem:[%s1 + $0x1eb0] sm:$0xff]
  %v1000 = vld [vmem:[%s1 + $0x1eb8] sm:$0xff]
  %v1001 = vld [vmem:[%s1 + $0x1ec0] sm:$0xff]
  %v1002 = vld [vmem:[%s1 + $0x1ec8] sm:$0xff]
  %v1003 = vld [vmem:[%s1 + $0x1ed0] sm:$0xff]
  %v1004 = vld [vmem:[%s1 + $0x1ed8] sm:$0xff]
  %v1005 = vld [vmem:[%s1 + $0x1ee0] sm:$0xff]
  %v1006 = vld [vmem:[%s1 + $0x1ee8] sm:$0xff]
  %v1007 = vld [vmem:[%s1 + $0x1ef0] sm:$0xff]
  %v1008 = vld [vmem:[%s1 + $0x1ef8] sm:$0xff]
  %v1009 = vld [vmem:[%s1 + $0x1f00] sm:$0xff]
  %v1010 = vld [vmem:[%s1 + $0x1f08] sm:$0xff]
  %v1011 = vld [vmem:[%s1 + $0x1f10] sm:$0xff]
  %v1012 = vld [vmem:[%s1 + $0x1f18] sm:$0xff]
  %v1013 = vld [vmem:[%s1 + $0x1f20] sm:$0xff]
  %v1014 = vld [vmem:[%s1 + $0x1f28] sm:$0xff]
  %v1015 = vld [vmem:[%s1 + $0x1f30] sm:$0xff]
  %v1016 = vld [vmem:[%s1 + $0x1f38] sm:$0xff]
  %v1017 = vld [vmem:[%s1 + $0x1f40] sm:$0xff]
  %v1018 = vld [vmem:[%s1 + $0x1f48] sm:$0xff]
  %v1019 = vld [vmem:[%s1 + $0x1f50] sm:$0xff]
  %v1020 = vld [vmem:[%s1 + $0x1f58] sm:$0xff]
  %v1021 = vld [vmem:[%s1 + $0x1f60] sm:$0xff]
  %v1022 = vld [vmem:[%s1 + $0x1f68] sm:$0xff]
  %v1023 = vld [vmem:[%s1 + $0x1f70] sm:$0xff]
  %v1024 = vld [vmem:[%s1 + $0x1f78] sm:$0xff]
  %v1025 = vld [vmem:[%s1 + $0x1f80] sm:$0xff]
  %v1026 = vld [vmem:[%s1 + $0x1f88] sm:$0xff]
  %v1027 = vld [vmem:[%s1 + $0x1f90] sm:$0xff]
  %v1028 = vld [vmem:[%s1 + $0x1f98] sm:$0xff]
  %v1029 = vld [vmem:[%s1 + $0x1fa0] sm:$0xff]
  %v1030 = vld [vmem:[%s1 + $0x1fa8] sm:$0xff]
  %v1031 = vld [vmem:[%s1 + $0x1fb0] sm:$0xff]
  %v1032 = vld [vmem:[%s1 + $0x1fb8] sm:$0xff]
  %v1033 = vld [vmem:[%s1 + $0x1fc0] sm:$0xff]
  %v1034 = vld [vmem:[%s1 + $0x1fc8] sm:$0xff]
  %v1035 = vld [vmem:[%s1 + $0x1fd0] sm:$0xff]
  %v1036 = vld [vmem:[%s1 + $0x1fd8] sm:$0xff]
  %v1037 = vld [vmem:[%s1 + $0x1fe0] sm:$0xff]
  %v1038 = vld [vmem:[%s1 + $0x1fe8] sm:$0xff]
  %v1039 = vld [vmem:[%s1 + $0x1ff0] sm:$0xff]
  %v1040 = vld [vmem:[%s1 + $0x1ff8] sm:$0xff]
  %v1041 = vld [vmem:[%s1 + $0x2000] sm:$0xff]
  %v1042 = vld [vmem:[%s1 + $0x2008] sm:$0xff]
  %v1043 = vld [vmem:[%s1 + $0x2010] sm:$0xff]
  %v1044 = vld [vmem:[%s1 + $0x2018] sm:$0xff]
  %v1045 = vld [vmem:[%s1 + $0x2020] sm:$0xff]
  %v1046 = vld [vmem:[%s1 + $0x2028] sm:$0xff]
  %v1047 = vld [vmem:[%s1 + $0x2030] sm:$0xff]
  %v1048 = vld [vmem:[%s1 + $0x2038] sm:$0xff]
  %v1049 = vld [vmem:[%s1 + $0x2040] sm:$0xff]
  %v1050 = vld [vmem:[%s1 + $0x2048] sm:$0xff]
  %v1051 = vld [vmem:[%s1 + $0x2050] sm:$0xff]
  %v1052 = vld [vmem:[%s1 + $0x2058] sm:$0xff]
  %v1053 = vld [vmem:[%s1 + $0x2060] sm:$0xff]
  %v1054 = vld [vmem:[%s1 + $0x2068] sm:$0xff]
  %v1055 = vld [vmem:[%s1 + $0x2070] sm:$0xff]
  %v1056 = vld [vmem:[%s1 + $0x2078] sm:$0xff]
  %v1057 = vld [vmem:[%s1 + $0x2080] sm:$0xff]
  %v1058 = vld [vmem:[%s1 + $0x2088] sm:$0xff]
  %v1059 = vld [vmem:[%s1 + $0x2090] sm:$0xff]
  %v1060 = vld [vmem:[%s1 + $0x2098] sm:$0xff]
  %v1061 = vld [vmem:[%s1 + $0x20a0] sm:$0xff]
  %v1062 = vld [vmem:[%s1 + $0x20a8] sm:$0xff]
  %v1063 = vld [vmem:[%s1 + $0x20b0] sm:$0xff]
  %v1064 = vld [vmem:[%s1 + $0x20b8] sm:$0xff]
  %v1065 = vld [vmem:[%s1 + $0x20c0] sm:$0xff]
  %v1066 = vld [vmem:[%s1 + $0x20c8] sm:$0xff]
  %v1067 = vld [vmem:[%s1 + $0x20d0] sm:$0xff]
  %v1068 = vld [vmem:[%s1 + $0x20d8] sm:$0xff]
  %v1069 = vld [vmem:[%s1 + $0x20e0] sm:$0xff]
  %v1070 = vld [vmem:[%s1 + $0x20e8] sm:$0xff]
  %v1071 = vld [vmem:[%s1 + $0x20f0] sm:$0xff]
  %v1072 = vld [vmem:[%s1 + $0x20f8] sm:$0xff]
  %v1073 = vld [vmem:[%s1 + $0x2100] sm:$0xff]
  %v1074 = vld [vmem:[%s1 + $0x2108] sm:$0xff]
  %v1075 = vld [vmem:[%s1 + $0x2110] sm:$0xff]
  %v1076 = vld [vmem:[%s1 + $0x2118] sm:$0xff]
  %v1077 = vld [vmem:[%s1 + $0x2120] sm:$0xff]
  %v1078 = vld [vmem:[%s1 + $0x2128] sm:$0xff]
  %v1079 = vld [vmem:[%s1 + $0x2130] sm:$0xff]
  %v1080 = vld [vmem:[%s1 + $0x2138] sm:$0xff]
  %v1081 = vld [vmem:[%s1 + $0x2140] sm:$0xff]
  %v1082 = vld [vmem:[%s1 + $0x2148] sm:$0xff]
  %v1083 = vld [vmem:[%s1 + $0x2150] sm:$0xff]
  %v1084 = vld [vmem:[%s1 + $0x2158] sm:$0xff]
  %v1085 = vld [vmem:[%s1 + $0x2160] sm:$0xff]
  %v1086 = vld [vmem:[%s1 + $0x2168] sm:$0xff]
  %v1087 = vld [vmem:[%s1 + $0x2170] sm:$0xff]
  %v1088 = vld [vmem:[%s1 + $0x2178] sm:$0xff]
  %v1089 = vld [vmem:[%s1 + $0x2180] sm:$0xff]
  %v1090 = vld [vmem:[%s1 + $0x2188] sm:$0xff]
  %v1091 = vld [vmem:[%s1 + $0x2190] sm:$0xff]
  %v1092 = vld [vmem:[%s1 + $0x2198] sm:$0xff]
  %v1093 = vld [vmem:[%s1 + $0x21a0] sm:$0xff]
  %v1094 = vld [vmem:[%s1 + $0x21a8] sm:$0xff]
  %v1095 = vld [vmem:[%s1 + $0x21b0] sm:$0xff]
  %v1096 = vld [vmem:[%s1 + $0x21b8] sm:$0xff]
  %v1097 = vld [vmem:[%s1 + $0x21c0] sm:$0xff]
  %v1098 = vld [vmem:[%s1 + $0x21c8] sm:$0xff]
  %v1099 = vld [vmem:[%s1 + $0x21d0] sm:$0xff]
  %v1100 = vld [vmem:[%s1 + $0x21d8] sm:$0xff]
  %v1101 = vld [vmem:[%s1 + $0x21e0] sm:$0xff]
  %v1102 = vld [vmem:[%s1 + $0x21e8] sm:$0xff]
  %v1103 = vld [vmem:[%s1 + $0x21f0] sm:$0xff]
  %v1104 = vld [vmem:[%s1 + $0x21f8] sm:$0xff]
  %v1105 = vld [vmem:[%s1 + $0x2200] sm:$0xff]
  %v1106 = vld [vmem:[%s1 + $0x2208] sm:$0xff]
  %v1107 = vld [vmem:[%s1 + $0x2210] sm:$0xff]
  %v1108 = vld [vmem:[%s1 + $0x2218] sm:$0xff]
  %v1109 = vld [vmem:[%s1 + $0x2220] sm:$0xff]
  %v1110 = vld [vmem:[%s1 + $0x2228] sm:$0xff]
  %v1111 = vld [vmem:[%s1 + $0x2230] sm:$0xff]
  %v1112 = vld [vmem:[%s1 + $0x2238] sm:$0xff]
  %v1113 = vld [vmem:[%s1 + $0x2240] sm:$0xff]
  %v1114 = vld [vmem:[%s1 + $0x2248] sm:$0xff]
  %v1115 = vld [vmem:[%s1 + $0x2250] sm:$0xff]
  %v1116 = vld [vmem:[%s1 + $0x2258] sm:$0xff]
  %v1117 = vld [vmem:[%s1 + $0x2260] sm:$0xff]
  %v1118 = vld [vmem:[%s1 + $0x2268] sm:$0xff]
  %v1119 = vld [vmem:[%s1 + $0x2270] sm:$0xff]
  %v1120 = vld [vmem:[%s1 + $0x2278] sm:$0xff]
  %v1121 = vld [vmem:[%s1 + $0x2280] sm:$0xff]
  %v1122 = vld [vmem:[%s1 + $0x2288] sm:$0xff]
  %v1123 = vld [vmem:[%s1 + $0x2290] sm:$0xff]
  %v1124 = vld [vmem:[%s1 + $0x2298] sm:$0xff]
  %v1125 = vld [vmem:[%s1 + $0x22a0] sm:$0xff]
  %v1126 = vld [vmem:[%s1 + $0x22a8] sm:$0xff]
  %v1127 = vld [vmem:[%s1 + $0x22b0] sm:$0xff]
  %v1128 = vld [vmem:[%s1 + $0x22b8] sm:$0xff]
  %v1129 = vld [vmem:[%s1 + $0x22c0] sm:$0xff]
  %v1130 = vld [vmem:[%s1 + $0x22c8] sm:$0xff]
  %v1131 = vld [vmem:[%s1 + $0x22d0] sm:$0xff]
  %v1132 = vld [vmem:[%s1 + $0x22d8] sm:$0xff]
  %v1133 = vld [vmem:[%s1 + $0x22e0] sm:$0xff]
  %v1134 = vld [vmem:[%s1 + $0x22e8] sm:$0xff]
  %v1135 = vld [vmem:[%s1 + $0x22f0] sm:$0xff]
  %v1136 = vld [vmem:[%s1 + $0x22f8] sm:$0xff]
  %v1137 = vld [vmem:[%s1 + $0x2300] sm:$0xff]
  %v1138 = vld [vmem:[%s1 + $0x2308] sm:$0xff]
  %v1139 = vld [vmem:[%s1 + $0x2310] sm:$0xff]
  %v1140 = vld [vmem:[%s1 + $0x2318] sm:$0xff]
  %v1141 = vld [vmem:[%s1 + $0x2320] sm:$0xff]
  %v1142 = vld [vmem:[%s1 + $0x2328] sm:$0xff]
  %v1143 = vld [vmem:[%s1 + $0x2330] sm:$0xff]
  %v1144 = vld [vmem:[%s1 + $0x2338] sm:$0xff]
  %v1145 = vld [vmem:[%s1 + $0x2340] sm:$0xff]
  %v1146 = vld [vmem:[%s1 + $0x2348] sm:$0xff]
  %v1147 = vld [vmem:[%s1 + $0x2350] sm:$0xff]
  %v1148 = vld [vmem:[%s1 + $0x2358] sm:$0xff]
  %v1149 = vld [vmem:[%s1 + $0x2360] sm:$0xff]
  %v1150 = vld [vmem:[%s1 + $0x2368] sm:$0xff]
  %v1151 = vld [vmem:[%s1 + $0x2370] sm:$0xff]
  %v1152 = vld [vmem:[%s1 + $0x2378] sm:$0xff]
  %v1153 = vld [vmem:[%s1 + $0x2380] sm:$0xff]
  %v1154 = vld [vmem:[%s1 + $0x2388] sm:$0xff]
  %v1155 = vld [vmem:[%s1 + $0x2390] sm:$0xff]
  %v1156 = vld [vmem:[%s1 + $0x2398] sm:$0xff]
  %v1157 = vld [vmem:[%s1 + $0x23a0] sm:$0xff]
  %v1158 = vld [vmem:[%s1 + $0x23a8] sm:$0xff]
  %v1159 = vld [vmem:[%s1 + $0x23b0] sm:$0xff]
  %v1160 = vld [vmem:[%s1 + $0x23b8] sm:$0xff]
  %v1161 = vld [vmem:[%s1 + $0x23c0] sm:$0xff]
  %v1162 = vld [vmem:[%s1 + $0x23c8] sm:$0xff]
  %v1163 = vld [vmem:[%s1 + $0x23d0] sm:$0xff]
  %v1164 = vld [vmem:[%s1 + $0x23d8] sm:$0xff]
  %v1165 = vld [vmem:[%s1 + $0x23e0] sm:$0xff]
  %v1166 = vld [vmem:[%s1 + $0x23e8] sm:$0xff]
  %v1167 = vld [vmem:[%s1 + $0x23f0] sm:$0xff]
  %v1168 = vld [vmem:[%s1 + $0x23f8] sm:$0xff]
  %v1169 = vld [vmem:[%s2] sm:$0xf]
  %v1170 = vld [vmem:[%s3] sm:$0xf]
  %v1171 = vld [vmem:[%s0] sm:$0xff]
  %v1172 = vld [vmem:[%s0 + $0x8] sm:$0xff]
  %v1173 = vld [vmem:[%s0 + $0x10] sm:$0xff]
  %v1174 = vld [vmem:[%s0 + $0x18] sm:$0xff]
  %v1175 = vld [vmem:[%s0 + $0x20] sm:$0xff]
  %v1176 = vld [vmem:[%s0 + $0x28] sm:$0xff]
  %v1177 = vld [vmem:[%s0 + $0x30] sm:$0xff]
  %v1178 = vld [vmem:[%s0 + $0x38] sm:$0xff]
  %v1179 = vld [vmem:[%s0 + $0x40] sm:$0xff]
  %v1180 = vld [vmem:[%s0 + $0x48] sm:$0xff]
  %v1181 = vld [vmem:[%s0 + $0x50] sm:$0xff]
  %v1182 = vld [vmem:[%s0 + $0x58] sm:$0xff]
  %v1183 = vld [vmem:[%s0 + $0x60] sm:$0xff]
  %v1184 = vld [vmem:[%s0 + $0x68] sm:$0xff]
  %v1185 = vld [vmem:[%s0 + $0x70] sm:$0xff]
  %v1186 = vld [vmem:[%s0 + $0x78] sm:$0xff]
  %v1187 = vld [vmem:[%s0 + $0x80] sm:$0xff]
  %v1188 = vld [vmem:[%s0 + $0x88] sm:$0xff]
  %v1189 = vld [vmem:[%s0 + $0x90] sm:$0xff]
  %v1190 = vld [vmem:[%s0 + $0x98] sm:$0xff]
  %v1191 = vld [vmem:[%s0 + $0xa0] sm:$0xff]
  %v1192 = vld [vmem:[%s0 + $0xa8] sm:$0xff]
  %v1193 = vld [vmem:[%s0 + $0xb0] sm:$0xff]
  %v1194 = vld [vmem:[%s0 + $0xb8] sm:$0xff]
  %v1195 = vld [vmem:[%s0 + $0xc0] sm:$0xff]
  %v1196 = vld [vmem:[%s0 + $0xc8] sm:$0xff]
  %v1197 = vld [vmem:[%s0 + $0xd0] sm:$0xff]
  %v1198 = vld [vmem:[%s0 + $0xd8] sm:$0xff]
  %v1199 = vld [vmem:[%s0 + $0xe0] sm:$0xff]
  %v1200 = vld [vmem:[%s0 + $0xe8] sm:$0xff]
  %v1201 = vld [vmem:[%s0 + $0xf0] sm:$0xff]
  %v1202 = vld [vmem:[%s0 + $0xf8] sm:$0xff]
  %v1203 = vld [vmem:[%s0 + $0x100] sm:$0xff]
  %v1204 = vld [vmem:[%s0 + $0x108] sm:$0xff]
  %v1205 = vld [vmem:[%s0 + $0x110] sm:$0xff]
  %v1206 = vld [vmem:[%s0 + $0x118] sm:$0xff]
  %1207 = vmatprep.subr.mxu0 %v18
  %1208 = vmatpush1.msra.mxu0 %v17
  %1209 = vmatprep.subr.mxu0 %v22
  %1210 = vmatpush1.msra.mxu0 %v21
  %1211 = vmatprep.subr.mxu0 %v26
  %1212 = vmatpush1.msra.mxu0 %v25
  %1213 = vmatprep.subr.mxu0 %v30
  %1214 = vmatpush1.msra.mxu0 %v29
  %1215 = vmatprep.subr.mxu0 %v34
  %1216 = vmatpush1.msra.mxu0 %v33
  %1217 = vmatprep.subr.mxu0 %v38
  %1218 = vmatpush1.msra.mxu0 %v37
  %1219 = vmatprep.subr.mxu0 %v42
  %1220 = vmatpush1.msra.mxu0 %v41
  %1221 = vmatprep.subr.mxu0 %v46
  %1222 = vmatpush1.msra.mxu0 %v45
  %1223 = vmatprep.subr.mxu0 %v50
  %1224 = vmatpush1.msra.mxu0 %v49
  %1225 = vmatprep.subr.mxu0 %v54
  %1226 = vmatpush1.msra.mxu0 %v53
  %1227 = vmatprep.subr.mxu0 %v58
  %1228 = vmatpush1.msra.mxu0 %v57
  %1229 = vmatprep.subr.mxu0 %v62
  %1230 = vmatpush1.msra.mxu0 %v61
  %1231 = vmatprep.subr.mxu0 %v66
  %1232 = vmatpush1.msra.mxu0 %v65
  %1233 = vmatprep.subr.mxu0 %v70
  %1234 = vmatpush1.msra.mxu0 %v69
  %1235 = vmatprep.subr.mxu0 %v74
  %1236 = vmatpush1.msra.mxu0 %v73
  %1237 = vmatprep.subr.mxu0 %v78
  %1238 = vmatpush1.msra.mxu0 %v77
  %1239 = vmatprep.subr.mxu0 %v82
  %1240 = vmatpush1.msra.mxu0 %v81
  %1241 = vmatprep.subr.mxu0 %v86
  %1242 = vmatpush1.msra.mxu0 %v85
  %1243 = vmatprep.subr.mxu0 %v90
  %1244 = vmatpush1.msra.mxu0 %v89
  %1245 = vmatprep.subr.mxu0 %v94
  %1246 = vmatpush1.msra.mxu0 %v93
  %1247 = vmatprep.subr.mxu0 %v98
  %1248 = vmatpush1.msra.mxu0 %v97
  %1249 = vmatprep.subr.mxu0 %v102
  %1250 = vmatpush1.msra.mxu0 %v101
  %1251 = vmatprep.subr.mxu0 %v106
  %1252 = vmatpush1.msra.mxu0 %v105
  %1253 = vmatprep.subr.mxu0 %v110
  %1254 = vmatpush1.msra.mxu0 %v109
  %1255 = vmatprep.subr.mxu0 %v114
  %1256 = vmatpush1.msra.mxu0 %v113
  %1257 = vmatprep.subr.mxu0 %v118
  %1258 = vmatpush1.msra.mxu0 %v117
  %1259 = vmatprep.subr.mxu0 %v122
  %1260 = vmatpush1.msra.mxu0 %v121
  %1261 = vmatprep.subr.mxu0 %v126
  %1262 = vmatpush1.msra.mxu0 %v125
  %1263 = vmatprep.subr.mxu0 %v130
  %1264 = vmatpush1.msra.mxu0 %v129
  %1265 = vmatprep.subr.mxu0 %v134
  %1266 = vmatpush1.msra.mxu0 %v133
  %1267 = vmatprep.subr.mxu0 %v138
  %1268 = vmatpush1.msra.mxu0 %v137
  %1269 = vmatprep.subr.mxu0 %v142
  %1270 = vmatpush1.msra.mxu0 %v141
  %1271 = vmatprep.mubr.f32.mxu0 %v1172
  %1272 = vmatmul.mubr.f32.gmra.mrb[0].mxu0 %v1171
  %v1273 = vpop.f32.mrb[0].mxu0
  %v1274 = vadd.f32 0.0, %v1273
  %v1275 = vpop.f32.mrb[0].mxu0
  %v1276 = vadd.f32 0.0, %v1275
  %1277 = vmatprep.mubr.f32.mxu0 %v1190
  %1278 = vmatmul.mubr.f32.gmra.mrb[0].mxu0 %v1189
  %v1279 = vpop.f32.mrb[0].mxu0
  %v1280 = vadd.f32 0.0, %v1279
  %v1281 = vpop.f32.mrb[0].mxu0
  %v1282 = vadd.f32 0.0, %v1281
  %1283 = vdwg.mxu0
  %1284 = vmatprep.subr.mxu0 %v146
  %1285 = vmatpush1.msra.mxu0 %v145
  %1286 = vmatprep.subr.mxu0 %v150
  %1287 = vmatpush1.msra.mxu0 %v149
  %1288 = vmatprep.subr.mxu0 %v154
  %1289 = vmatpush1.msra.mxu0 %v153
  %1290 = vmatprep.subr.mxu0 %v158
  %1291 = vmatpush1.msra.mxu0 %v157
  %1292 = vmatprep.subr.mxu0 %v162
  %1293 = vmatpush1.msra.mxu0 %v161
  %1294 = vmatprep.subr.mxu0 %v166
  %1295 = vmatpush1.msra.mxu0 %v165
  %1296 = vmatprep.subr.mxu0 %v170
  %1297 = vmatpush1.msra.mxu0 %v169
  %1298 = vmatprep.subr.mxu0 %v174
  %1299 = vmatpush1.msra.mxu0 %v173
  %1300 = vmatprep.subr.mxu0 %v178
  %1301 = vmatpush1.msra.mxu0 %v177
  %1302 = vmatprep.subr.mxu0 %v182
  %1303 = vmatpush1.msra.mxu0 %v181
  %1304 = vmatprep.subr.mxu0 %v186
  %1305 = vmatpush1.msra.mxu0 %v185
  %1306 = vmatprep.subr.mxu0 %v190
  %1307 = vmatpush1.msra.mxu0 %v189
  %1308 = vmatprep.subr.mxu0 %v194
  %1309 = vmatpush1.msra.mxu0 %v193
  %1310 = vmatprep.subr.mxu0 %v198
  %1311 = vmatpush1.msra.mxu0 %v197
  %1312 = vmatprep.subr.mxu0 %v202
  %1313 = vmatpush1.msra.mxu0 %v201
  %1314 = vmatprep.subr.mxu0 %v206
  %1315 = vmatpush1.msra.mxu0 %v205
  %1316 = vmatprep.subr.mxu0 %v210
  %1317 = vmatpush1.msra.mxu0 %v209
  %1318 = vmatprep.subr.mxu0 %v214
  %1319 = vmatpush1.msra.mxu0 %v213
  %1320 = vmatprep.subr.mxu0 %v218
  %1321 = vmatpush1.msra.mxu0 %v217
  %1322 = vmatprep.subr.mxu0 %v222
  %1323 = vmatpush1.msra.mxu0 %v221
  %1324 = vmatprep.subr.mxu0 %v226
  %1325 = vmatpush1.msra.mxu0 %v225
  %1326 = vmatprep.subr.mxu0 %v230
  %1327 = vmatpush1.msra.mxu0 %v229
  %1328 = vmatprep.subr.mxu0 %v234
  %1329 = vmatpush1.msra.mxu0 %v233
  %1330 = vmatprep.subr.mxu0 %v238
  %1331 = vmatpush1.msra.mxu0 %v237
  %1332 = vmatprep.subr.mxu0 %v242
  %1333 = vmatpush1.msra.mxu0 %v241
  %1334 = vmatprep.subr.mxu0 %v246
  %1335 = vmatpush1.msra.mxu0 %v245
  %1336 = vmatprep.subr.mxu0 %v250
  %1337 = vmatpush1.msra.mxu0 %v249
  %1338 = vmatprep.subr.mxu0 %v254
  %1339 = vmatpush1.msra.mxu0 %v253
  %1340 = vmatprep.subr.mxu0 %v258
  %1341 = vmatpush1.msra.mxu0 %v257
  %1342 = vmatprep.subr.mxu0 %v262
  %1343 = vmatpush1.msra.mxu0 %v261
  %1344 = vmatprep.subr.mxu0 %v266
  %1345 = vmatpush1.msra.mxu0 %v265
  %1346 = vmatprep.subr.mxu0 %v270
  %1347 = vmatpush1.msra.mxu0 %v269
  %1348 = vmatprep.mubr.f32.mxu0 %v1174
  %1349 = vmatmul.mubr.f32.gmra.mrb[0].mxu0 %v1173
  %v1350 = vpop.f32.mrb[0].mxu0
  %v1351 = vadd.f32 %v1274, %v1350
  %v1352 = vpop.f32.mrb[0].mxu0
  %v1353 = vadd.f32 %v1276, %v1352
  %1354 = vmatprep.mubr.f32.mxu0 %v1192
  %1355 = vmatmul.mubr.f32.gmra.mrb[0].mxu0 %v1191
  %v1356 = vpop.f32.mrb[0].mxu0
  %v1357 = vadd.f32 %v1280, %v1356
  %v1358 = vpop.f32.mrb[0].mxu0
  %v1359 = vadd.f32 %v1282, %v1358
  %1360 = vdwg.mxu0
  %1361 = vmatprep.subr.mxu0 %v274
  %1362 = vmatpush1.msra.mxu0 %v273
  %1363 = vmatprep.subr.mxu0 %v278
  %1364 = vmatpush1.msra.mxu0 %v277
  %1365 = vmatprep.subr.mxu0 %v282
  %1366 = vmatpush1.msra.mxu0 %v281
  %1367 = vmatprep.subr.mxu0 %v286
  %1368 = vmatpush1.msra.mxu0 %v285
  %1369 = vmatprep.subr.mxu0 %v290
  %1370 = vmatpush1.msra.mxu0 %v289
  %1371 = vmatprep.subr.mxu0 %v294
  %1372 = vmatpush1.msra.mxu0 %v293
  %1373 = vmatprep.subr.mxu0 %v298
  %1374 = vmatpush1.msra.mxu0 %v297
  %1375 = vmatprep.subr.mxu0 %v302
  %1376 = vmatpush1.msra.mxu0 %v301
  %1377 = vmatprep.subr.mxu0 %v306
  %1378 = vmatpush1.msra.mxu0 %v305
  %1379 = vmatprep.subr.mxu0 %v310
  %1380 = vmatpush1.msra.mxu0 %v309
  %1381 = vmatprep.subr.mxu0 %v314
  %1382 = vmatpush1.msra.mxu0 %v313
  %1383 = vmatprep.subr.mxu0 %v318
  %1384 = vmatpush1.msra.mxu0 %v317
  %1385 = vmatprep.subr.mxu0 %v322
  %1386 = vmatpush1.msra.mxu0 %v321
  %1387 = vmatprep.subr.mxu0 %v326
  %1388 = vmatpush1.msra.mxu0 %v325
  %1389 = vmatprep.subr.mxu0 %v330
  %1390 = vmatpush1.msra.mxu0 %v329
  %1391 = vmatprep.subr.mxu0 %v334
  %1392 = vmatpush1.msra.mxu0 %v333
  %1393 = vmatprep.subr.mxu0 %v338
  %1394 = vmatpush1.msra.mxu0 %v337
  %1395 = vmatprep.subr.mxu0 %v342
  %1396 = vmatpush1.msra.mxu0 %v341
  %1397 = vmatprep.subr.mxu0 %v346
  %1398 = vmatpush1.msra.mxu0 %v345
  %1399 = vmatprep.subr.mxu0 %v350
  %1400 = vmatpush1.msra.mxu0 %v349
  %1401 = vmatprep.subr.mxu0 %v354
  %1402 = vmatpush1.msra.mxu0 %v353
  %1403 = vmatprep.subr.mxu0 %v358
  %1404 = vmatpush1.msra.mxu0 %v357
  %1405 = vmatprep.subr.mxu0 %v362
  %1406 = vmatpush1.msra.mxu0 %v361
  %1407 = vmatprep.subr.mxu0 %v366
  %1408 = vmatpush1.msra.mxu0 %v365
  %1409 = vmatprep.subr.mxu0 %v370
  %1410 = vmatpush1.msra.mxu0 %v369
  %1411 = vmatprep.subr.mxu0 %v374
  %1412 = vmatpush1.msra.mxu0 %v373
  %1413 = vmatprep.subr.mxu0 %v378
  %1414 = vmatpush1.msra.mxu0 %v377
  %1415 = vmatprep.subr.mxu0 %v382
  %1416 = vmatpush1.msra.mxu0 %v381
  %1417 = vmatprep.subr.mxu0 %v386
  %1418 = vmatpush1.msra.mxu0 %v385
  %1419 = vmatprep.subr.mxu0 %v390
  %1420 = vmatpush1.msra.mxu0 %v389
  %1421 = vmatprep.subr.mxu0 %v394
  %1422 = vmatpush1.msra.mxu0 %v393
  %1423 = vmatprep.subr.mxu0 %v398
  %1424 = vmatpush1.msra.mxu0 %v397
  %1425 = vmatprep.mubr.f32.mxu0 %v1176
  %1426 = vmatmul.mubr.f32.gmra.mrb[0].mxu0 %v1175
  %v1427 = vpop.f32.mrb[0].mxu0
  %v1428 = vadd.f32 %v1351, %v1427
  %v1429 = vpop.f32.mrb[0].mxu0
  %v1430 = vadd.f32 %v1353, %v1429
  %1431 = vmatprep.mubr.f32.mxu0 %v1194
  %1432 = vmatmul.mubr.f32.gmra.mrb[0].mxu0 %v1193
  %v1433 = vpop.f32.mrb[0].mxu0
  %v1434 = vadd.f32 %v1357, %v1433
  %v1435 = vpop.f32.mrb[0].mxu0
  %v1436 = vadd.f32 %v1359, %v1435
  %1437 = vdwg.mxu0
  %1438 = vmatprep.subr.mxu0 %v402
  %1439 = vmatpush1.msra.mxu0 %v401
  %1440 = vmatprep.subr.mxu0 %v406
  %1441 = vmatpush1.msra.mxu0 %v405
  %1442 = vmatprep.subr.mxu0 %v410
  %1443 = vmatpush1.msra.mxu0 %v409
  %1444 = vmatprep.subr.mxu0 %v414
  %1445 = vmatpush1.msra.mxu0 %v413
  %1446 = vmatprep.subr.mxu0 %v418
  %1447 = vmatpush1.msra.mxu0 %v417
  %1448 = vmatprep.subr.mxu0 %v422
  %1449 = vmatpush1.msra.mxu0 %v421
  %1450 = vmatprep.subr.mxu0 %v426
  %1451 = vmatpush1.msra.mxu0 %v425
  %1452 = vmatprep.subr.mxu0 %v430
  %1453 = vmatpush1.msra.mxu0 %v429
  %1454 = vmatprep.subr.mxu0 %v434
  %1455 = vmatpush1.msra.mxu0 %v433
  %1456 = vmatprep.subr.mxu0 %v438
  %1457 = vmatpush1.msra.mxu0 %v437
  %1458 = vmatprep.subr.mxu0 %v442
  %1459 = vmatpush1.msra.mxu0 %v441
  %1460 = vmatprep.subr.mxu0 %v446
  %1461 = vmatpush1.msra.mxu0 %v445
  %1462 = vmatprep.subr.mxu0 %v450
  %1463 = vmatpush1.msra.mxu0 %v449
  %1464 = vmatprep.subr.mxu0 %v454
  %1465 = vmatpush1.msra.mxu0 %v453
  %1466 = vmatprep.subr.mxu0 %v458
  %1467 = vmatpush1.msra.mxu0 %v457
  %1468 = vmatprep.subr.mxu0 %v462
  %1469 = vmatpush1.msra.mxu0 %v461
  %1470 = vmatprep.subr.mxu0 %v466
  %1471 = vmatpush1.msra.mxu0 %v465
  %1472 = vmatprep.subr.mxu0 %v470
  %1473 = vmatpush1.msra.mxu0 %v469
  %1474 = vmatprep.subr.mxu0 %v474
  %1475 = vmatpush1.msra.mxu0 %v473
  %1476 = vmatprep.subr.mxu0 %v478
  %1477 = vmatpush1.msra.mxu0 %v477
  %1478 = vmatprep.subr.mxu0 %v482
  %1479 = vmatpush1.msra.mxu0 %v481
  %1480 = vmatprep.subr.mxu0 %v486
  %1481 = vmatpush1.msra.mxu0 %v485
  %1482 = vmatprep.subr.mxu0 %v490
  %1483 = vmatpush1.msra.mxu0 %v489
  %1484 = vmatprep.subr.mxu0 %v494
  %1485 = vmatpush1.msra.mxu0 %v493
  %1486 = vmatprep.subr.mxu0 %v498
  %1487 = vmatpush1.msra.mxu0 %v497
  %1488 = vmatprep.subr.mxu0 %v502
  %1489 = vmatpush1.msra.mxu0 %v501
  %1490 = vmatprep.subr.mxu0 %v506
  %1491 = vmatpush1.msra.mxu0 %v505
  %1492 = vmatprep.subr.mxu0 %v510
  %1493 = vmatpush1.msra.mxu0 %v509
  %1494 = vmatprep.subr.mxu0 %v514
  %1495 = vmatpush1.msra.mxu0 %v513
  %1496 = vmatprep.subr.mxu0 %v518
  %1497 = vmatpush1.msra.mxu0 %v517
  %1498 = vmatprep.subr.mxu0 %v522
  %1499 = vmatpush1.msra.mxu0 %v521
  %1500 = vmatprep.subr.mxu0 %v526
  %1501 = vmatpush1.msra.mxu0 %v525
  %1502 = vmatprep.mubr.f32.mxu0 %v1178
  %1503 = vmatmul.mubr.f32.gmra.mrb[0].mxu0 %v1177
  %v1504 = vpop.f32.mrb[0].mxu0
  %v1505 = vadd.f32 %v1428, %v1504
  %v1506 = vpop.f32.mrb[0].mxu0
  %v1507 = vadd.f32 %v1430, %v1506
  %1508 = vmatprep.mubr.f32.mxu0 %v1196
  %1509 = vmatmul.mubr.f32.gmra.mrb[0].mxu0 %v1195
  %v1510 = vpop.f32.mrb[0].mxu0
  %v1511 = vadd.f32 %v1434, %v1510
  %v1512 = vpop.f32.mrb[0].mxu0
  %v1513 = vadd.f32 %v1436, %v1512
  %1514 = vdwg.mxu0
  %1515 = vmatprep.subr.mxu0 %v530
  %1516 = vmatpush1.msra.mxu0 %v529
  %1517 = vmatprep.subr.mxu0 %v534
  %1518 = vmatpush1.msra.mxu0 %v533
  %1519 = vmatprep.subr.mxu0 %v538
  %1520 = vmatpush1.msra.mxu0 %v537
  %1521 = vmatprep.subr.mxu0 %v542
  %1522 = vmatpush1.msra.mxu0 %v541
  %1523 = vmatprep.subr.mxu0 %v546
  %1524 = vmatpush1.msra.mxu0 %v545
  %1525 = vmatprep.subr.mxu0 %v550
  %1526 = vmatpush1.msra.mxu0 %v549
  %1527 = vmatprep.subr.mxu0 %v554
  %1528 = vmatpush1.msra.mxu0 %v553
  %1529 = vmatprep.subr.mxu0 %v558
  %1530 = vmatpush1.msra.mxu0 %v557
  %1531 = vmatprep.subr.mxu0 %v562
  %1532 = vmatpush1.msra.mxu0 %v561
  %1533 = vmatprep.subr.mxu0 %v566
  %1534 = vmatpush1.msra.mxu0 %v565
  %1535 = vmatprep.subr.mxu0 %v570
  %1536 = vmatpush1.msra.mxu0 %v569
  %1537 = vmatprep.subr.mxu0 %v574
  %1538 = vmatpush1.msra.mxu0 %v573
  %1539 = vmatprep.subr.mxu0 %v578
  %1540 = vmatpush1.msra.mxu0 %v577
  %1541 = vmatprep.subr.mxu0 %v582
  %1542 = vmatpush1.msra.mxu0 %v581
  %1543 = vmatprep.subr.mxu0 %v586
  %1544 = vmatpush1.msra.mxu0 %v585
  %1545 = vmatprep.subr.mxu0 %v590
  %1546 = vmatpush1.msra.mxu0 %v589
  %1547 = vmatprep.subr.mxu0 %v594
  %1548 = vmatpush1.msra.mxu0 %v593
  %1549 = vmatprep.subr.mxu0 %v598
  %1550 = vmatpush1.msra.mxu0 %v597
  %1551 = vmatprep.subr.mxu0 %v602
  %1552 = vmatpush1.msra.mxu0 %v601
  %1553 = vmatprep.subr.mxu0 %v606
  %1554 = vmatpush1.msra.mxu0 %v605
  %1555 = vmatprep.subr.mxu0 %v610
  %1556 = vmatpush1.msra.mxu0 %v609
  %1557 = vmatprep.subr.mxu0 %v614
  %1558 = vmatpush1.msra.mxu0 %v613
  %1559 = vmatprep.subr.mxu0 %v618
  %1560 = vmatpush1.msra.mxu0 %v617
  %1561 = vmatprep.subr.mxu0 %v622
  %1562 = vmatpush1.msra.mxu0 %v621
  %1563 = vmatprep.subr.mxu0 %v626
  %1564 = vmatpush1.msra.mxu0 %v625
  %1565 = vmatprep.subr.mxu0 %v630
  %1566 = vmatpush1.msra.mxu0 %v629
  %1567 = vmatprep.subr.mxu0 %v634
  %1568 = vmatpush1.msra.mxu0 %v633
  %1569 = vmatprep.subr.mxu0 %v638
  %1570 = vmatpush1.msra.mxu0 %v637
  %1571 = vmatprep.subr.mxu0 %v642
  %1572 = vmatpush1.msra.mxu0 %v641
  %1573 = vmatprep.subr.mxu0 %v646
  %1574 = vmatpush1.msra.mxu0 %v645
  %1575 = vmatprep.subr.mxu0 %v650
  %1576 = vmatpush1.msra.mxu0 %v649
  %1577 = vmatprep.subr.mxu0 %v654
  %1578 = vmatpush1.msra.mxu0 %v653
  %1579 = vmatprep.mubr.f32.mxu0 %v1180
  %1580 = vmatmul.mubr.f32.gmra.mrb[0].mxu0 %v1179
  %v1581 = vpop.f32.mrb[0].mxu0
  %v1582 = vadd.f32 %v1505, %v1581
  %v1583 = vpop.f32.mrb[0].mxu0
  %v1584 = vadd.f32 %v1507, %v1583
  %1585 = vmatprep.mubr.f32.mxu0 %v1198
  %1586 = vmatmul.mubr.f32.gmra.mrb[0].mxu0 %v1197
  %v1587 = vpop.f32.mrb[0].mxu0
  %v1588 = vadd.f32 %v1511, %v1587
  %v1589 = vpop.f32.mrb[0].mxu0
  %v1590 = vadd.f32 %v1513, %v1589
  %1591 = vdwg.mxu0
  %1592 = vmatprep.subr.mxu0 %v658
  %1593 = vmatpush1.msra.mxu0 %v657
  %1594 = vmatprep.subr.mxu0 %v662
  %1595 = vmatpush1.msra.mxu0 %v661
  %1596 = vmatprep.subr.mxu0 %v666
  %1597 = vmatpush1.msra.mxu0 %v665
  %1598 = vmatprep.subr.mxu0 %v670
  %1599 = vmatpush1.msra.mxu0 %v669
  %1600 = vmatprep.subr.mxu0 %v674
  %1601 = vmatpush1.msra.mxu0 %v673
  %1602 = vmatprep.subr.mxu0 %v678
  %1603 = vmatpush1.msra.mxu0 %v677
  %1604 = vmatprep.subr.mxu0 %v682
  %1605 = vmatpush1.msra.mxu0 %v681
  %1606 = vmatprep.subr.mxu0 %v686
  %1607 = vmatpush1.msra.mxu0 %v685
  %1608 = vmatprep.subr.mxu0 %v690
  %1609 = vmatpush1.msra.mxu0 %v689
  %1610 = vmatprep.subr.mxu0 %v694
  %1611 = vmatpush1.msra.mxu0 %v693
  %1612 = vmatprep.subr.mxu0 %v698
  %1613 = vmatpush1.msra.mxu0 %v697
  %1614 = vmatprep.subr.mxu0 %v702
  %1615 = vmatpush1.msra.mxu0 %v701
  %1616 = vmatprep.subr.mxu0 %v706
  %1617 = vmatpush1.msra.mxu0 %v705
  %1618 = vmatprep.subr.mxu0 %v710
  %1619 = vmatpush1.msra.mxu0 %v709
  %1620 = vmatprep.subr.mxu0 %v714
  %1621 = vmatpush1.msra.mxu0 %v713
  %1622 = vmatprep.subr.mxu0 %v718
  %1623 = vmatpush1.msra.mxu0 %v717
  %1624 = vmatprep.subr.mxu0 %v722
  %1625 = vmatpush1.msra.mxu0 %v721
  %1626 = vmatprep.subr.mxu0 %v726
  %1627 = vmatpush1.msra.mxu0 %v725
  %1628 = vmatprep.subr.mxu0 %v730
  %1629 = vmatpush1.msra.mxu0 %v729
  %1630 = vmatprep.subr.mxu0 %v734
  %1631 = vmatpush1.msra.mxu0 %v733
  %1632 = vmatprep.subr.mxu0 %v738
  %1633 = vmatpush1.msra.mxu0 %v737
  %1634 = vmatprep.subr.mxu0 %v742
  %1635 = vmatpush1.msra.mxu0 %v741
  %1636 = vmatprep.subr.mxu0 %v746
  %1637 = vmatpush1.msra.mxu0 %v745
  %1638 = vmatprep.subr.mxu0 %v750
  %1639 = vmatpush1.msra.mxu0 %v749
  %1640 = vmatprep.subr.mxu0 %v754
  %1641 = vmatpush1.msra.mxu0 %v753
  %1642 = vmatprep.subr.mxu0 %v758
  %1643 = vmatpush1.msra.mxu0 %v757
  %1644 = vmatprep.subr.mxu0 %v762
  %1645 = vmatpush1.msra.mxu0 %v761
  %1646 = vmatprep.subr.mxu0 %v766
  %1647 = vmatpush1.msra.mxu0 %v765
  %1648 = vmatprep.subr.mxu0 %v770
  %1649 = vmatpush1.msra.mxu0 %v769
  %1650 = vmatprep.subr.mxu0 %v774
  %1651 = vmatpush1.msra.mxu0 %v773
  %1652 = vmatprep.subr.mxu0 %v778
  %1653 = vmatpush1.msra.mxu0 %v777
  %1654 = vmatprep.subr.mxu0 %v782
  %1655 = vmatpush1.msra.mxu0 %v781
  %1656 = vmatprep.mubr.f32.mxu0 %v1182
  %1657 = vmatmul.mubr.f32.gmra.mrb[0].mxu0 %v1181
  %v1658 = vpop.f32.mrb[0].mxu0
  %v1659 = vadd.f32 %v1582, %v1658
  %v1660 = vpop.f32.mrb[0].mxu0
  %v1661 = vadd.f32 %v1584, %v1660
  %1662 = vmatprep.mubr.f32.mxu0 %v1200
  %1663 = vmatmul.mubr.f32.gmra.mrb[0].mxu0 %v1199
  %v1664 = vpop.f32.mrb[0].mxu0
  %v1665 = vadd.f32 %v1588, %v1664
  %v1666 = vpop.f32.mrb[0].mxu0
  %v1667 = vadd.f32 %v1590, %v1666
  %1668 = vdwg.mxu0
  %1669 = vmatprep.subr.mxu0 %v786
  %1670 = vmatpush1.msra.mxu0 %v785
  %1671 = vmatprep.subr.mxu0 %v790
  %1672 = vmatpush1.msra.mxu0 %v789
  %1673 = vmatprep.subr.mxu0 %v794
  %1674 = vmatpush1.msra.mxu0 %v793
  %1675 = vmatprep.subr.mxu0 %v798
  %1676 = vmatpush1.msra.mxu0 %v797
  %1677 = vmatprep.subr.mxu0 %v802
  %1678 = vmatpush1.msra.mxu0 %v801
  %1679 = vmatprep.subr.mxu0 %v806
  %1680 = vmatpush1.msra.mxu0 %v805
  %1681 = vmatprep.subr.mxu0 %v810
  %1682 = vmatpush1.msra.mxu0 %v809
  %1683 = vmatprep.subr.mxu0 %v814
  %1684 = vmatpush1.msra.mxu0 %v813
  %1685 = vmatprep.subr.mxu0 %v818
  %1686 = vmatpush1.msra.mxu0 %v817
  %1687 = vmatprep.subr.mxu0 %v822
  %1688 = vmatpush1.msra.mxu0 %v821
  %1689 = vmatprep.subr.mxu0 %v826
  %1690 = vmatpush1.msra.mxu0 %v825
  %1691 = vmatprep.subr.mxu0 %v830
  %1692 = vmatpush1.msra.mxu0 %v829
  %1693 = vmatprep.subr.mxu0 %v834
  %1694 = vmatpush1.msra.mxu0 %v833
  %1695 = vmatprep.subr.mxu0 %v838
  %1696 = vmatpush1.msra.mxu0 %v837
  %1697 = vmatprep.subr.mxu0 %v842
  %1698 = vmatpush1.msra.mxu0 %v841
  %1699 = vmatprep.subr.mxu0 %v846
  %1700 = vmatpush1.msra.mxu0 %v845
  %1701 = vmatprep.subr.mxu0 %v850
  %1702 = vmatpush1.msra.mxu0 %v849
  %1703 = vmatprep.subr.mxu0 %v854
  %1704 = vmatpush1.msra.mxu0 %v853
  %1705 = vmatprep.subr.mxu0 %v858
  %1706 = vmatpush1.msra.mxu0 %v857
  %1707 = vmatprep.subr.mxu0 %v862
  %1708 = vmatpush1.msra.mxu0 %v861
  %1709 = vmatprep.subr.mxu0 %v866
  %1710 = vmatpush1.msra.mxu0 %v865
  %1711 = vmatprep.subr.mxu0 %v870
  %1712 = vmatpush1.msra.mxu0 %v869
  %1713 = vmatprep.subr.mxu0 %v874
  %1714 = vmatpush1.msra.mxu0 %v873
  %1715 = vmatprep.subr.mxu0 %v878
  %1716 = vmatpush1.msra.mxu0 %v877
  %1717 = vmatprep.subr.mxu0 %v882
  %1718 = vmatpush1.msra.mxu0 %v881
  %1719 = vmatprep.subr.mxu0 %v886
  %1720 = vmatpush1.msra.mxu0 %v885
  %1721 = vmatprep.subr.mxu0 %v890
  %1722 = vmatpush1.msra.mxu0 %v889
  %1723 = vmatprep.subr.mxu0 %v894
  %1724 = vmatpush1.msra.mxu0 %v893
  %1725 = vmatprep.subr.mxu0 %v898
  %1726 = vmatpush1.msra.mxu0 %v897
  %1727 = vmatprep.subr.mxu0 %v902
  %1728 = vmatpush1.msra.mxu0 %v901
  %1729 = vmatprep.subr.mxu0 %v906
  %1730 = vmatpush1.msra.mxu0 %v905
  %1731 = vmatprep.subr.mxu0 %v910
  %1732 = vmatpush1.msra.mxu0 %v909
  %1733 = vmatprep.mubr.f32.mxu0 %v1184
  %1734 = vmatmul.mubr.f32.gmra.mrb[0].mxu0 %v1183
  %v1735 = vpop.f32.mrb[0].mxu0
  %v1736 = vadd.f32 %v1659, %v1735
  %v1737 = vpop.f32.mrb[0].mxu0
  %v1738 = vadd.f32 %v1661, %v1737
  %1739 = vmatprep.mubr.f32.mxu0 %v1202
  %1740 = vmatmul.mubr.f32.gmra.mrb[0].mxu0 %v1201
  %v1741 = vpop.f32.mrb[0].mxu0
  %v1742 = vadd.f32 %v1665, %v1741
  %v1743 = vpop.f32.mrb[0].mxu0
  %v1744 = vadd.f32 %v1667, %v1743
  %1745 = vdwg.mxu0
  %1746 = vmatprep.subr.mxu0 %v914
  %1747 = vmatpush1.msra.mxu0 %v913
  %1748 = vmatprep.subr.mxu0 %v918
  %1749 = vmatpush1.msra.mxu0 %v917
  %1750 = vmatprep.subr.mxu0 %v922
  %1751 = vmatpush1.msra.mxu0 %v921
  %1752 = vmatprep.subr.mxu0 %v926
  %1753 = vmatpush1.msra.mxu0 %v925
  %1754 = vmatprep.subr.mxu0 %v930
  %1755 = vmatpush1.msra.mxu0 %v929
  %1756 = vmatprep.subr.mxu0 %v934
  %1757 = vmatpush1.msra.mxu0 %v933
  %1758 = vmatprep.subr.mxu0 %v938
  %1759 = vmatpush1.msra.mxu0 %v937
  %1760 = vmatprep.subr.mxu0 %v942
  %1761 = vmatpush1.msra.mxu0 %v941
  %1762 = vmatprep.subr.mxu0 %v946
  %1763 = vmatpush1.msra.mxu0 %v945
  %1764 = vmatprep.subr.mxu0 %v950
  %1765 = vmatpush1.msra.mxu0 %v949
  %1766 = vmatprep.subr.mxu0 %v954
  %1767 = vmatpush1.msra.mxu0 %v953
  %1768 = vmatprep.subr.mxu0 %v958
  %1769 = vmatpush1.msra.mxu0 %v957
  %1770 = vmatprep.subr.mxu0 %v962
  %1771 = vmatpush1.msra.mxu0 %v961
  %1772 = vmatprep.subr.mxu0 %v966
  %1773 = vmatpush1.msra.mxu0 %v965
  %1774 = vmatprep.subr.mxu0 %v970
  %1775 = vmatpush1.msra.mxu0 %v969
  %1776 = vmatprep.subr.mxu0 %v974
  %1777 = vmatpush1.msra.mxu0 %v973
  %1778 = vmatprep.subr.mxu0 %v978
  %1779 = vmatpush1.msra.mxu0 %v977
  %1780 = vmatprep.subr.mxu0 %v982
  %1781 = vmatpush1.msra.mxu0 %v981
  %1782 = vmatprep.subr.mxu0 %v986
  %1783 = vmatpush1.msra.mxu0 %v985
  %1784 = vmatprep.subr.mxu0 %v990
  %1785 = vmatpush1.msra.mxu0 %v989
  %1786 = vmatprep.subr.mxu0 %v994
  %1787 = vmatpush1.msra.mxu0 %v993
  %1788 = vmatprep.subr.mxu0 %v998
  %1789 = vmatpush1.msra.mxu0 %v997
  %1790 = vmatprep.subr.mxu0 %v1002
  %1791 = vmatpush1.msra.mxu0 %v1001
  %1792 = vmatprep.subr.mxu0 %v1006
  %1793 = vmatpush1.msra.mxu0 %v1005
  %1794 = vmatprep.subr.mxu0 %v1010
  %1795 = vmatpush1.msra.mxu0 %v1009
  %1796 = vmatprep.subr.mxu0 %v1014
  %1797 = vmatpush1.msra.mxu0 %v1013
  %1798 = vmatprep.subr.mxu0 %v1018
  %1799 = vmatpush1.msra.mxu0 %v1017
  %1800 = vmatprep.subr.mxu0 %v1022
  %1801 = vmatpush1.msra.mxu0 %v1021
  %1802 = vmatprep.subr.mxu0 %v1026
  %1803 = vmatpush1.msra.mxu0 %v1025
  %1804 = vmatprep.subr.mxu0 %v1030
  %1805 = vmatpush1.msra.mxu0 %v1029
  %1806 = vmatprep.subr.mxu0 %v1034
  %1807 = vmatpush1.msra.mxu0 %v1033
  %1808 = vmatprep.subr.mxu0 %v1038
  %1809 = vmatpush1.msra.mxu0 %v1037
  %1810 = vmatprep.mubr.f32.mxu0 %v1186
  %1811 = vmatmul.mubr.f32.gmra.mrb[0].mxu0 %v1185
  %v1812 = vpop.f32.mrb[0].mxu0
  %v1813 = vadd.f32 %v1736, %v1812
  %v1814 = vpop.f32.mrb[0].mxu0
  %v1815 = vadd.f32 %v1738, %v1814
  %1816 = vmatprep.mubr.f32.mxu0 %v1204
  %1817 = vmatmul.mubr.f32.gmra.mrb[0].mxu0 %v1203
  %v1818 = vpop.f32.mrb[0].mxu0
  %v1819 = vadd.f32 %v1742, %v1818
  %v1820 = vpop.f32.mrb[0].mxu0
  %v1821 = vadd.f32 %v1744, %v1820
  %1822 = vdwg.mxu0
  %1823 = vmatprep.subr.mxu0 %v1042
  %1824 = vmatpush1.msra.mxu0 %v1041
  %1825 = vmatprep.subr.mxu0 %v1046
  %1826 = vmatpush1.msra.mxu0 %v1045
  %1827 = vmatprep.subr.mxu0 %v1050
  %1828 = vmatpush1.msra.mxu0 %v1049
  %1829 = vmatprep.subr.mxu0 %v1054
  %1830 = vmatpush1.msra.mxu0 %v1053
  %1831 = vmatprep.subr.mxu0 %v1058
  %1832 = vmatpush1.msra.mxu0 %v1057
  %1833 = vmatprep.subr.mxu0 %v1062
  %1834 = vmatpush1.msra.mxu0 %v1061
  %1835 = vmatprep.subr.mxu0 %v1066
  %1836 = vmatpush1.msra.mxu0 %v1065
  %1837 = vmatprep.subr.mxu0 %v1070
  %1838 = vmatpush1.msra.mxu0 %v1069
  %1839 = vmatprep.subr.mxu0 %v1074
  %1840 = vmatpush1.msra.mxu0 %v1073
  %1841 = vmatprep.subr.mxu0 %v1078
  %1842 = vmatpush1.msra.mxu0 %v1077
  %1843 = vmatprep.subr.mxu0 %v1082
  %1844 = vmatpush1.msra.mxu0 %v1081
  %1845 = vmatprep.subr.mxu0 %v1086
  %1846 = vmatpush1.msra.mxu0 %v1085
  %1847 = vmatprep.subr.mxu0 %v1090
  %1848 = vmatpush1.msra.mxu0 %v1089
  %1849 = vmatprep.subr.mxu0 %v1094
  %1850 = vmatpush1.msra.mxu0 %v1093
  %1851 = vmatprep.subr.mxu0 %v1098
  %1852 = vmatpush1.msra.mxu0 %v1097
  %1853 = vmatprep.subr.mxu0 %v1102
  %1854 = vmatpush1.msra.mxu0 %v1101
  %1855 = vmatprep.subr.mxu0 %v1106
  %1856 = vmatpush1.msra.mxu0 %v1105
  %1857 = vmatprep.subr.mxu0 %v1110
  %1858 = vmatpush1.msra.mxu0 %v1109
  %1859 = vmatprep.subr.mxu0 %v1114
  %1860 = vmatpush1.msra.mxu0 %v1113
  %1861 = vmatprep.subr.mxu0 %v1118
  %1862 = vmatpush1.msra.mxu0 %v1117
  %1863 = vmatprep.subr.mxu0 %v1122
  %1864 = vmatpush1.msra.mxu0 %v1121
  %1865 = vmatprep.subr.mxu0 %v1126
  %1866 = vmatpush1.msra.mxu0 %v1125
  %1867 = vmatprep.subr.mxu0 %v1130
  %1868 = vmatpush1.msra.mxu0 %v1129
  %1869 = vmatprep.subr.mxu0 %v1134
  %1870 = vmatpush1.msra.mxu0 %v1133
  %1871 = vmatprep.subr.mxu0 %v1138
  %1872 = vmatpush1.msra.mxu0 %v1137
  %1873 = vmatprep.subr.mxu0 %v1142
  %1874 = vmatpush1.msra.mxu0 %v1141
  %1875 = vmatprep.subr.mxu0 %v1146
  %1876 = vmatpush1.msra.mxu0 %v1145
  %1877 = vmatprep.subr.mxu0 %v1150
  %1878 = vmatpush1.msra.mxu0 %v1149
  %1879 = vmatprep.subr.mxu0 %v1154
  %1880 = vmatpush1.msra.mxu0 %v1153
  %1881 = vmatprep.subr.mxu0 %v1158
  %1882 = vmatpush1.msra.mxu0 %v1157
  %1883 = vmatprep.subr.mxu0 %v1162
  %1884 = vmatpush1.msra.mxu0 %v1161
  %1885 = vmatprep.subr.mxu0 %v1166
  %1886 = vmatpush1.msra.mxu0 %v1165
  %1887 = vmatprep.mubr.f32.mxu0 %v1188
  %1888 = vmatmul.mubr.f32.gmra.mrb[0].mxu0 %v1187
  %v1889 = vpop.f32.mrb[0].mxu0
  %v1890 = vadd.f32 %v1813, %v1889
  %v1891 = vpop.f32.mrb[0].mxu0
  %v1892 = vadd.f32 %v1815, %v1891
  %1893 = vmatprep.mubr.f32.mxu0 %v1206
  %1894 = vmatmul.mubr.f32.gmra.mrb[0].mxu0 %v1205
  %v1895 = vpop.f32.mrb[0].mxu0
  %v1896 = vadd.f32 %v1819, %v1895
  %v1897 = vpop.f32.mrb[0].mxu0
  %v1898 = vadd.f32 %v1821, %v1897
  %1899 = vdwg.mxu0
  %1900 = vmatprep.subr.mxu0 %v20
  %1901 = vmatpush1.msra.mxu0 %v19
  %1902 = vmatprep.subr.mxu0 %v24
  %1903 = vmatpush1.msra.mxu0 %v23
  %1904 = vmatprep.subr.mxu0 %v28
  %1905 = vmatpush1.msra.mxu0 %v27
  %1906 = vmatprep.subr.mxu0 %v32
  %1907 = vmatpush1.msra.mxu0 %v31
  %1908 = vmatprep.subr.mxu0 %v36
  %1909 = vmatpush1.msra.mxu0 %v35
  %1910 = vmatprep.subr.mxu0 %v40
  %1911 = vmatpush1.msra.mxu0 %v39
  %1912 = vmatprep.subr.mxu0 %v44
  %1913 = vmatpush1.msra.mxu0 %v43
  %1914 = vmatprep.subr.mxu0 %v48
  %1915 = vmatpush1.msra.mxu0 %v47
  %1916 = vmatprep.subr.mxu0 %v52
  %1917 = vmatpush1.msra.mxu0 %v51
  %1918 = vmatprep.subr.mxu0 %v56
  %1919 = vmatpush1.msra.mxu0 %v55
  %1920 = vmatprep.subr.mxu0 %v60
  %1921 = vmatpush1.msra.mxu0 %v59
  %1922 = vmatprep.subr.mxu0 %v64
  %1923 = vmatpush1.msra.mxu0 %v63
  %1924 = vmatprep.subr.mxu0 %v68
  %1925 = vmatpush1.msra.mxu0 %v67
  %1926 = vmatprep.subr.mxu0 %v72
  %1927 = vmatpush1.msra.mxu0 %v71
  %1928 = vmatprep.subr.mxu0 %v76
  %1929 = vmatpush1.msra.mxu0 %v75
  %1930 = vmatprep.subr.mxu0 %v80
  %1931 = vmatpush1.msra.mxu0 %v79
  %1932 = vmatprep.subr.mxu0 %v84
  %1933 = vmatpush1.msra.mxu0 %v83
  %1934 = vmatprep.subr.mxu0 %v88
  %1935 = vmatpush1.msra.mxu0 %v87
  %1936 = vmatprep.subr.mxu0 %v92
  %1937 = vmatpush1.msra.mxu0 %v91
  %1938 = vmatprep.subr.mxu0 %v96
  %1939 = vmatpush1.msra.mxu0 %v95
  %1940 = vmatprep.subr.mxu0 %v100
  %1941 = vmatpush1.msra.mxu0 %v99
  %1942 = vmatprep.subr.mxu0 %v104
  %1943 = vmatpush1.msra.mxu0 %v103
  %1944 = vmatprep.subr.mxu0 %v108
  %1945 = vmatpush1.msra.mxu0 %v107
  %1946 = vmatprep.subr.mxu0 %v112
  %1947 = vmatpush1.msra.mxu0 %v111
  %1948 = vmatprep.subr.mxu0 %v116
  %1949 = vmatpush1.msra.mxu0 %v115
  %1950 = vmatprep.subr.mxu0 %v120
  %1951 = vmatpush1.msra.mxu0 %v119
  %1952 = vmatprep.subr.mxu0 %v124
  %1953 = vmatpush1.msra.mxu0 %v123
  %1954 = vmatprep.subr.mxu0 %v128
  %1955 = vmatpush1.msra.mxu0 %v127
  %1956 = vmatprep.subr.mxu0 %v132
  %1957 = vmatpush1.msra.mxu0 %v131
  %1958 = vmatprep.subr.mxu0 %v136
  %1959 = vmatpush1.msra.mxu0 %v135
  %1960 = vmatprep.subr.mxu0 %v140
  %1961 = vmatpush1.msra.mxu0 %v139
  %1962 = vmatprep.subr.mxu0 %v144
  %1963 = vmatpush1.msra.mxu0 %v143
  %1964 = vmatprep.mubr.f32.mxu0 %v1172
  %1965 = vmatmul.mubr.f32.gmra.mrb[0].mxu0 %v1171
  %v1966 = vpop.f32.mrb[0].mxu0
  %v1967 = vadd.f32 0.0, %v1966
  %v1968 = vpop.f32.mrb[0].mxu0
  %v1969 = vadd.f32 0.0, %v1968
  %1970 = vmatprep.mubr.f32.mxu0 %v1190
  %1971 = vmatmul.mubr.f32.gmra.mrb[0].mxu0 %v1189
  %v1972 = vpop.f32.mrb[0].mxu0
  %v1973 = vadd.f32 0.0, %v1972
  %v1974 = vpop.f32.mrb[0].mxu0
  %v1975 = vadd.f32 0.0, %v1974
  %1976 = vdwg.mxu0
  %1977 = vmatprep.subr.mxu0 %v148
  %1978 = vmatpush1.msra.mxu0 %v147
  %1979 = vmatprep.subr.mxu0 %v152
  %1980 = vmatpush1.msra.mxu0 %v151
  %1981 = vmatprep.subr.mxu0 %v156
  %1982 = vmatpush1.msra.mxu0 %v155
  %1983 = vmatprep.subr.mxu0 %v160
  %1984 = vmatpush1.msra.mxu0 %v159
  %1985 = vmatprep.subr.mxu0 %v164
  %1986 = vmatpush1.msra.mxu0 %v163
  %1987 = vmatprep.subr.mxu0 %v168
  %1988 = vmatpush1.msra.mxu0 %v167
  %1989 = vmatprep.subr.mxu0 %v172
  %1990 = vmatpush1.msra.mxu0 %v171
  %1991 = vmatprep.subr.mxu0 %v176
  %1992 = vmatpush1.msra.mxu0 %v175
  %1993 = vmatprep.subr.mxu0 %v180
  %1994 = vmatpush1.msra.mxu0 %v179
  %1995 = vmatprep.subr.mxu0 %v184
  %1996 = vmatpush1.msra.mxu0 %v183
  %1997 = vmatprep.subr.mxu0 %v188
  %1998 = vmatpush1.msra.mxu0 %v187
  %1999 = vmatprep.subr.mxu0 %v192
  %2000 = vmatpush1.msra.mxu0 %v191
  %2001 = vmatprep.subr.mxu0 %v196
  %2002 = vmatpush1.msra.mxu0 %v195
  %2003 = vmatprep.subr.mxu0 %v200
  %2004 = vmatpush1.msra.mxu0 %v199
  %2005 = vmatprep.subr.mxu0 %v204
  %2006 = vmatpush1.msra.mxu0 %v203
  %2007 = vmatprep.subr.mxu0 %v208
  %2008 = vmatpush1.msra.mxu0 %v207
  %2009 = vmatprep.subr.mxu0 %v212
  %2010 = vmatpush1.msra.mxu0 %v211
  %2011 = vmatprep.subr.mxu0 %v216
  %2012 = vmatpush1.msra.mxu0 %v215
  %2013 = vmatprep.subr.mxu0 %v220
  %2014 = vmatpush1.msra.mxu0 %v219
  %2015 = vmatprep.subr.mxu0 %v224
  %2016 = vmatpush1.msra.mxu0 %v223
  %2017 = vmatprep.subr.mxu0 %v228
  %2018 = vmatpush1.msra.mxu0 %v227
  %2019 = vmatprep.subr.mxu0 %v232
  %2020 = vmatpush1.msra.mxu0 %v231
  %2021 = vmatprep.subr.mxu0 %v236
  %2022 = vmatpush1.msra.mxu0 %v235
  %2023 = vmatprep.subr.mxu0 %v240
  %2024 = vmatpush1.msra.mxu0 %v239
  %2025 = vmatprep.subr.mxu0 %v244
  %2026 = vmatpush1.msra.mxu0 %v243
  %2027 = vmatprep.subr.mxu0 %v248
  %2028 = vmatpush1.msra.mxu0 %v247
  %2029 = vmatprep.subr.mxu0 %v252
  %2030 = vmatpush1.msra.mxu0 %v251
  %2031 = vmatprep.subr.mxu0 %v256
  %2032 = vmatpush1.msra.mxu0 %v255
  %2033 = vmatprep.subr.mxu0 %v260
  %2034 = vmatpush1.msra.mxu0 %v259
  %2035 = vmatprep.subr.mxu0 %v264
  %2036 = vmatpush1.msra.mxu0 %v263
  %2037 = vmatprep.subr.mxu0 %v268
  %2038 = vmatpush1.msra.mxu0 %v267
  %2039 = vmatprep.subr.mxu0 %v272
  %2040 = vmatpush1.msra.mxu0 %v271
  %2041 = vmatprep.mubr.f32.mxu0 %v1174
  %2042 = vmatmul.mubr.f32.gmra.mrb[0].mxu0 %v1173
  %v2043 = vpop.f32.mrb[0].mxu0
  %v2044 = vadd.f32 %v1967, %v2043
  %v2045 = vpop.f32.mrb[0].mxu0
  %v2046 = vadd.f32 %v1969, %v2045
  %2047 = vmatprep.mubr.f32.mxu0 %v1192
  %2048 = vmatmul.mubr.f32.gmra.mrb[0].mxu0 %v1191
  %v2049 = vpop.f32.mrb[0].mxu0
  %v2050 = vadd.f32 %v1973, %v2049
  %v2051 = vpop.f32.mrb[0].mxu0
  %v2052 = vadd.f32 %v1975, %v2051
  %2053 = vdwg.mxu0
  %2054 = vmatprep.subr.mxu0 %v276
  %2055 = vmatpush1.msra.mxu0 %v275
  %2056 = vmatprep.subr.mxu0 %v280
  %2057 = vmatpush1.msra.mxu0 %v279
  %2058 = vmatprep.subr.mxu0 %v284
  %2059 = vmatpush1.msra.mxu0 %v283
  %2060 = vmatprep.subr.mxu0 %v288
  %2061 = vmatpush1.msra.mxu0 %v287
  %2062 = vmatprep.subr.mxu0 %v292
  %2063 = vmatpush1.msra.mxu0 %v291
  %2064 = vmatprep.subr.mxu0 %v296
  %2065 = vmatpush1.msra.mxu0 %v295
  %2066 = vmatprep.subr.mxu0 %v300
  %2067 = vmatpush1.msra.mxu0 %v299
  %2068 = vmatprep.subr.mxu0 %v304
  %2069 = vmatpush1.msra.mxu0 %v303
  %2070 = vmatprep.subr.mxu0 %v308
  %2071 = vmatpush1.msra.mxu0 %v307
  %2072 = vmatprep.subr.mxu0 %v312
  %2073 = vmatpush1.msra.mxu0 %v311
  %2074 = vmatprep.subr.mxu0 %v316
  %2075 = vmatpush1.msra.mxu0 %v315
  %2076 = vmatprep.subr.mxu0 %v320
  %2077 = vmatpush1.msra.mxu0 %v319
  %2078 = vmatprep.subr.mxu0 %v324
  %2079 = vmatpush1.msra.mxu0 %v323
  %2080 = vmatprep.subr.mxu0 %v328
  %2081 = vmatpush1.msra.mxu0 %v327
  %2082 = vmatprep.subr.mxu0 %v332
  %2083 = vmatpush1.msra.mxu0 %v331
  %2084 = vmatprep.subr.mxu0 %v336
  %2085 = vmatpush1.msra.mxu0 %v335
  %2086 = vmatprep.subr.mxu0 %v340
  %2087 = vmatpush1.msra.mxu0 %v339
  %2088 = vmatprep.subr.mxu0 %v344
  %2089 = vmatpush1.msra.mxu0 %v343
  %2090 = vmatprep.subr.mxu0 %v348
  %2091 = vmatpush1.msra.mxu0 %v347
  %2092 = vmatprep.subr.mxu0 %v352
  %2093 = vmatpush1.msra.mxu0 %v351
  %2094 = vmatprep.subr.mxu0 %v356
  %2095 = vmatpush1.msra.mxu0 %v355
  %2096 = vmatprep.subr.mxu0 %v360
  %2097 = vmatpush1.msra.mxu0 %v359
  %2098 = vmatprep.subr.mxu0 %v364
  %2099 = vmatpush1.msra.mxu0 %v363
  %2100 = vmatprep.subr.mxu0 %v368
  %2101 = vmatpush1.msra.mxu0 %v367
  %2102 = vmatprep.subr.mxu0 %v372
  %2103 = vmatpush1.msra.mxu0 %v371
  %2104 = vmatprep.subr.mxu0 %v376
  %2105 = vmatpush1.msra.mxu0 %v375
  %2106 = vmatprep.subr.mxu0 %v380
  %2107 = vmatpush1.msra.mxu0 %v379
  %2108 = vmatprep.subr.mxu0 %v384
  %2109 = vmatpush1.msra.mxu0 %v383
  %2110 = vmatprep.subr.mxu0 %v388
  %2111 = vmatpush1.msra.mxu0 %v387
  %2112 = vmatprep.subr.mxu0 %v392
  %2113 = vmatpush1.msra.mxu0 %v391
  %2114 = vmatprep.subr.mxu0 %v396
  %2115 = vmatpush1.msra.mxu0 %v395
  %2116 = vmatprep.subr.mxu0 %v400
  %2117 = vmatpush1.msra.mxu0 %v399
  %2118 = vmatprep.mubr.f32.mxu0 %v1176
  %2119 = vmatmul.mubr.f32.gmra.mrb[0].mxu0 %v1175
  %v2120 = vpop.f32.mrb[0].mxu0
  %v2121 = vadd.f32 %v2044, %v2120
  %v2122 = vpop.f32.mrb[0].mxu0
  %v2123 = vadd.f32 %v2046, %v2122
  %2124 = vmatprep.mubr.f32.mxu0 %v1194
  %2125 = vmatmul.mubr.f32.gmra.mrb[0].mxu0 %v1193
  %v2126 = vpop.f32.mrb[0].mxu0
  %v2127 = vadd.f32 %v2050, %v2126
  %v2128 = vpop.f32.mrb[0].mxu0
  %v2129 = vadd.f32 %v2052, %v2128
  %2130 = vdwg.mxu0
  %2131 = vmatprep.subr.mxu0 %v404
  %2132 = vmatpush1.msra.mxu0 %v403
  %2133 = vmatprep.subr.mxu0 %v408
  %2134 = vmatpush1.msra.mxu0 %v407
  %2135 = vmatprep.subr.mxu0 %v412
  %2136 = vmatpush1.msra.mxu0 %v411
  %2137 = vmatprep.subr.mxu0 %v416
  %2138 = vmatpush1.msra.mxu0 %v415
  %2139 = vmatprep.subr.mxu0 %v420
  %2140 = vmatpush1.msra.mxu0 %v419
  %2141 = vmatprep.subr.mxu0 %v424
  %2142 = vmatpush1.msra.mxu0 %v423
  %2143 = vmatprep.subr.mxu0 %v428
  %2144 = vmatpush1.msra.mxu0 %v427
  %2145 = vmatprep.subr.mxu0 %v432
  %2146 = vmatpush1.msra.mxu0 %v431
  %2147 = vmatprep.subr.mxu0 %v436
  %2148 = vmatpush1.msra.mxu0 %v435
  %2149 = vmatprep.subr.mxu0 %v440
  %2150 = vmatpush1.msra.mxu0 %v439
  %2151 = vmatprep.subr.mxu0 %v444
  %2152 = vmatpush1.msra.mxu0 %v443
  %2153 = vmatprep.subr.mxu0 %v448
  %2154 = vmatpush1.msra.mxu0 %v447
  %2155 = vmatprep.subr.mxu0 %v452
  %2156 = vmatpush1.msra.mxu0 %v451
  %2157 = vmatprep.subr.mxu0 %v456
  %2158 = vmatpush1.msra.mxu0 %v455
  %2159 = vmatprep.subr.mxu0 %v460
  %2160 = vmatpush1.msra.mxu0 %v459
  %2161 = vmatprep.subr.mxu0 %v464
  %2162 = vmatpush1.msra.mxu0 %v463
  %2163 = vmatprep.subr.mxu0 %v468
  %2164 = vmatpush1.msra.mxu0 %v467
  %2165 = vmatprep.subr.mxu0 %v472
  %2166 = vmatpush1.msra.mxu0 %v471
  %2167 = vmatprep.subr.mxu0 %v476
  %2168 = vmatpush1.msra.mxu0 %v475
  %2169 = vmatprep.subr.mxu0 %v480
  %2170 = vmatpush1.msra.mxu0 %v479
  %2171 = vmatprep.subr.mxu0 %v484
  %2172 = vmatpush1.msra.mxu0 %v483
  %2173 = vmatprep.subr.mxu0 %v488
  %2174 = vmatpush1.msra.mxu0 %v487
  %2175 = vmatprep.subr.mxu0 %v492
  %2176 = vmatpush1.msra.mxu0 %v491
  %2177 = vmatprep.subr.mxu0 %v496
  %2178 = vmatpush1.msra.mxu0 %v495
  %2179 = vmatprep.subr.mxu0 %v500
  %2180 = vmatpush1.msra.mxu0 %v499
  %2181 = vmatprep.subr.mxu0 %v504
  %2182 = vmatpush1.msra.mxu0 %v503
  %2183 = vmatprep.subr.mxu0 %v508
  %2184 = vmatpush1.msra.mxu0 %v507
  %2185 = vmatprep.subr.mxu0 %v512
  %2186 = vmatpush1.msra.mxu0 %v511
  %2187 = vmatprep.subr.mxu0 %v516
  %2188 = vmatpush1.msra.mxu0 %v515
  %2189 = vmatprep.subr.mxu0 %v520
  %2190 = vmatpush1.msra.mxu0 %v519
  %2191 = vmatprep.subr.mxu0 %v524
  %2192 = vmatpush1.msra.mxu0 %v523
  %2193 = vmatprep.subr.mxu0 %v528
  %2194 = vmatpush1.msra.mxu0 %v527
  %2195 = vmatprep.mubr.f32.mxu0 %v1178
  %2196 = vmatmul.mubr.f32.gmra.mrb[0].mxu0 %v1177
  %v2197 = vpop.f32.mrb[0].mxu0
  %v2198 = vadd.f32 %v2121, %v2197
  %v2199 = vpop.f32.mrb[0].mxu0
  %v2200 = vadd.f32 %v2123, %v2199
  %2201 = vmatprep.mubr.f32.mxu0 %v1196
  %2202 = vmatmul.mubr.f32.gmra.mrb[0].mxu0 %v1195
  %v2203 = vpop.f32.mrb[0].mxu0
  %v2204 = vadd.f32 %v2127, %v2203
  %v2205 = vpop.f32.mrb[0].mxu0
  %v2206 = vadd.f32 %v2129, %v2205
  %2207 = vdwg.mxu0
  %2208 = vmatprep.subr.mxu0 %v532
  %2209 = vmatpush1.msra.mxu0 %v531
  %2210 = vmatprep.subr.mxu0 %v536
  %2211 = vmatpush1.msra.mxu0 %v535
  %2212 = vmatprep.subr.mxu0 %v540
  %2213 = vmatpush1.msra.mxu0 %v539
  %2214 = vmatprep.subr.mxu0 %v544
  %2215 = vmatpush1.msra.mxu0 %v543
  %2216 = vmatprep.subr.mxu0 %v548
  %2217 = vmatpush1.msra.mxu0 %v547
  %2218 = vmatprep.subr.mxu0 %v552
  %2219 = vmatpush1.msra.mxu0 %v551
  %2220 = vmatprep.subr.mxu0 %v556
  %2221 = vmatpush1.msra.mxu0 %v555
  %2222 = vmatprep.subr.mxu0 %v560
  %2223 = vmatpush1.msra.mxu0 %v559
  %2224 = vmatprep.subr.mxu0 %v564
  %2225 = vmatpush1.msra.mxu0 %v563
  %2226 = vmatprep.subr.mxu0 %v568
  %2227 = vmatpush1.msra.mxu0 %v567
  %2228 = vmatprep.subr.mxu0 %v572
  %2229 = vmatpush1.msra.mxu0 %v571
  %2230 = vmatprep.subr.mxu0 %v576
  %2231 = vmatpush1.msra.mxu0 %v575
  %2232 = vmatprep.subr.mxu0 %v580
  %2233 = vmatpush1.msra.mxu0 %v579
  %2234 = vmatprep.subr.mxu0 %v584
  %2235 = vmatpush1.msra.mxu0 %v583
  %2236 = vmatprep.subr.mxu0 %v588
  %2237 = vmatpush1.msra.mxu0 %v587
  %2238 = vmatprep.subr.mxu0 %v592
  %2239 = vmatpush1.msra.mxu0 %v591
  %2240 = vmatprep.subr.mxu0 %v596
  %2241 = vmatpush1.msra.mxu0 %v595
  %2242 = vmatprep.subr.mxu0 %v600
  %2243 = vmatpush1.msra.mxu0 %v599
  %2244 = vmatprep.subr.mxu0 %v604
  %2245 = vmatpush1.msra.mxu0 %v603
  %2246 = vmatprep.subr.mxu0 %v608
  %2247 = vmatpush1.msra.mxu0 %v607
  %2248 = vmatprep.subr.mxu0 %v612
  %2249 = vmatpush1.msra.mxu0 %v611
  %2250 = vmatprep.subr.mxu0 %v616
  %2251 = vmatpush1.msra.mxu0 %v615
  %2252 = vmatprep.subr.mxu0 %v620
  %2253 = vmatpush1.msra.mxu0 %v619
  %2254 = vmatprep.subr.mxu0 %v624
  %2255 = vmatpush1.msra.mxu0 %v623
  %2256 = vmatprep.subr.mxu0 %v628
  %2257 = vmatpush1.msra.mxu0 %v627
  %2258 = vmatprep.subr.mxu0 %v632
  %2259 = vmatpush1.msra.mxu0 %v631
  %2260 = vmatprep.subr.mxu0 %v636
  %2261 = vmatpush1.msra.mxu0 %v635
  %2262 = vmatprep.subr.mxu0 %v640
  %2263 = vmatpush1.msra.mxu0 %v639
  %2264 = vmatprep.subr.mxu0 %v644
  %2265 = vmatpush1.msra.mxu0 %v643
  %2266 = vmatprep.subr.mxu0 %v648
  %2267 = vmatpush1.msra.mxu0 %v647
  %2268 = vmatprep.subr.mxu0 %v652
  %2269 = vmatpush1.msra.mxu0 %v651
  %2270 = vmatprep.subr.mxu0 %v656
  %2271 = vmatpush1.msra.mxu0 %v655
  %2272 = vmatprep.mubr.f32.mxu0 %v1180
  %2273 = vmatmul.mubr.f32.gmra.mrb[0].mxu0 %v1179
  %v2274 = vpop.f32.mrb[0].mxu0
  %v2275 = vadd.f32 %v2198, %v2274
  %v2276 = vpop.f32.mrb[0].mxu0
  %v2277 = vadd.f32 %v2200, %v2276
  %2278 = vmatprep.mubr.f32.mxu0 %v1198
  %2279 = vmatmul.mubr.f32.gmra.mrb[0].mxu0 %v1197
  %v2280 = vpop.f32.mrb[0].mxu0
  %v2281 = vadd.f32 %v2204, %v2280
  %v2282 = vpop.f32.mrb[0].mxu0
  %v2283 = vadd.f32 %v2206, %v2282
  %2284 = vdwg.mxu0
  %2285 = vmatprep.subr.mxu0 %v660
  %2286 = vmatpush1.msra.mxu0 %v659
  %2287 = vmatprep.subr.mxu0 %v664
  %2288 = vmatpush1.msra.mxu0 %v663
  %2289 = vmatprep.subr.mxu0 %v668
  %2290 = vmatpush1.msra.mxu0 %v667
  %2291 = vmatprep.subr.mxu0 %v672
  %2292 = vmatpush1.msra.mxu0 %v671
  %2293 = vmatprep.subr.mxu0 %v676
  %2294 = vmatpush1.msra.mxu0 %v675
  %2295 = vmatprep.subr.mxu0 %v680
  %2296 = vmatpush1.msra.mxu0 %v679
  %2297 = vmatprep.subr.mxu0 %v684
  %2298 = vmatpush1.msra.mxu0 %v683
  %2299 = vmatprep.subr.mxu0 %v688
  %2300 = vmatpush1.msra.mxu0 %v687
  %2301 = vmatprep.subr.mxu0 %v692
  %2302 = vmatpush1.msra.mxu0 %v691
  %2303 = vmatprep.subr.mxu0 %v696
  %2304 = vmatpush1.msra.mxu0 %v695
  %2305 = vmatprep.subr.mxu0 %v700
  %2306 = vmatpush1.msra.mxu0 %v699
  %2307 = vmatprep.subr.mxu0 %v704
  %2308 = vmatpush1.msra.mxu0 %v703
  %2309 = vmatprep.subr.mxu0 %v708
  %2310 = vmatpush1.msra.mxu0 %v707
  %2311 = vmatprep.subr.mxu0 %v712
  %2312 = vmatpush1.msra.mxu0 %v711
  %2313 = vmatprep.subr.mxu0 %v716
  %2314 = vmatpush1.msra.mxu0 %v715
  %2315 = vmatprep.subr.mxu0 %v720
  %2316 = vmatpush1.msra.mxu0 %v719
  %2317 = vmatprep.subr.mxu0 %v724
  %2318 = vmatpush1.msra.mxu0 %v723
  %2319 = vmatprep.subr.mxu0 %v728
  %2320 = vmatpush1.msra.mxu0 %v727
  %2321 = vmatprep.subr.mxu0 %v732
  %2322 = vmatpush1.msra.mxu0 %v731
  %2323 = vmatprep.subr.mxu0 %v736
  %2324 = vmatpush1.msra.mxu0 %v735
  %2325 = vmatprep.subr.mxu0 %v740
  %2326 = vmatpush1.msra.mxu0 %v739
  %2327 = vmatprep.subr.mxu0 %v744
  %2328 = vmatpush1.msra.mxu0 %v743
  %2329 = vmatprep.subr.mxu0 %v748
  %2330 = vmatpush1.msra.mxu0 %v747
  %2331 = vmatprep.subr.mxu0 %v752
  %2332 = vmatpush1.msra.mxu0 %v751
  %2333 = vmatprep.subr.mxu0 %v756
  %2334 = vmatpush1.msra.mxu0 %v755
  %2335 = vmatprep.subr.mxu0 %v760
  %2336 = vmatpush1.msra.mxu0 %v759
  %2337 = vmatprep.subr.mxu0 %v764
  %2338 = vmatpush1.msra.mxu0 %v763
  %2339 = vmatprep.subr.mxu0 %v768
  %2340 = vmatpush1.msra.mxu0 %v767
  %2341 = vmatprep.subr.mxu0 %v772
  %2342 = vmatpush1.msra.mxu0 %v771
  %2343 = vmatprep.subr.mxu0 %v776
  %2344 = vmatpush1.msra.mxu0 %v775
  %2345 = vmatprep.subr.mxu0 %v780
  %2346 = vmatpush1.msra.mxu0 %v779
  %2347 = vmatprep.subr.mxu0 %v784
  %2348 = vmatpush1.msra.mxu0 %v783
  %2349 = vmatprep.mubr.f32.mxu0 %v1182
  %2350 = vmatmul.mubr.f32.gmra.mrb[0].mxu0 %v1181
  %v2351 = vpop.f32.mrb[0].mxu0
  %v2352 = vadd.f32 %v2275, %v2351
  %v2353 = vpop.f32.mrb[0].mxu0
  %v2354 = vadd.f32 %v2277, %v2353
  %2355 = vmatprep.mubr.f32.mxu0 %v1200
  %2356 = vmatmul.mubr.f32.gmra.mrb[0].mxu0 %v1199
  %v2357 = vpop.f32.mrb[0].mxu0
  %v2358 = vadd.f32 %v2281, %v2357
  %v2359 = vpop.f32.mrb[0].mxu0
  %v2360 = vadd.f32 %v2283, %v2359
  %2361 = vdwg.mxu0
  %2362 = vmatprep.subr.mxu0 %v788
  %2363 = vmatpush1.msra.mxu0 %v787
  %2364 = vmatprep.subr.mxu0 %v792
  %2365 = vmatpush1.msra.mxu0 %v791
  %2366 = vmatprep.subr.mxu0 %v796
  %2367 = vmatpush1.msra.mxu0 %v795
  %2368 = vmatprep.subr.mxu0 %v800
  %2369 = vmatpush1.msra.mxu0 %v799
  %2370 = vmatprep.subr.mxu0 %v804
  %2371 = vmatpush1.msra.mxu0 %v803
  %2372 = vmatprep.subr.mxu0 %v808
  %2373 = vmatpush1.msra.mxu0 %v807
  %2374 = vmatprep.subr.mxu0 %v812
  %2375 = vmatpush1.msra.mxu0 %v811
  %2376 = vmatprep.subr.mxu0 %v816
  %2377 = vmatpush1.msra.mxu0 %v815
  %2378 = vmatprep.subr.mxu0 %v820
  %2379 = vmatpush1.msra.mxu0 %v819
  %2380 = vmatprep.subr.mxu0 %v824
  %2381 = vmatpush1.msra.mxu0 %v823
  %2382 = vmatprep.subr.mxu0 %v828
  %2383 = vmatpush1.msra.mxu0 %v827
  %2384 = vmatprep.subr.mxu0 %v832
  %2385 = vmatpush1.msra.mxu0 %v831
  %2386 = vmatprep.subr.mxu0 %v836
  %2387 = vmatpush1.msra.mxu0 %v835
  %2388 = vmatprep.subr.mxu0 %v840
  %2389 = vmatpush1.msra.mxu0 %v839
  %2390 = vmatprep.subr.mxu0 %v844
  %2391 = vmatpush1.msra.mxu0 %v843
  %2392 = vmatprep.subr.mxu0 %v848
  %2393 = vmatpush1.msra.mxu0 %v847
  %2394 = vmatprep.subr.mxu0 %v852
  %2395 = vmatpush1.msra.mxu0 %v851
  %2396 = vmatprep.subr.mxu0 %v856
  %2397 = vmatpush1.msra.mxu0 %v855
  %2398 = vmatprep.subr.mxu0 %v860
  %2399 = vmatpush1.msra.mxu0 %v859
  %2400 = vmatprep.subr.mxu0 %v864
  %2401 = vmatpush1.msra.mxu0 %v863
  %2402 = vmatprep.subr.mxu0 %v868
  %2403 = vmatpush1.msra.mxu0 %v867
  %2404 = vmatprep.subr.mxu0 %v872
  %2405 = vmatpush1.msra.mxu0 %v871
  %2406 = vmatprep.subr.mxu0 %v876
  %2407 = vmatpush1.msra.mxu0 %v875
  %2408 = vmatprep.subr.mxu0 %v880
  %2409 = vmatpush1.msra.mxu0 %v879
  %2410 = vmatprep.subr.mxu0 %v884
  %2411 = vmatpush1.msra.mxu0 %v883
  %2412 = vmatprep.subr.mxu0 %v888
  %2413 = vmatpush1.msra.mxu0 %v887
  %2414 = vmatprep.subr.mxu0 %v892
  %2415 = vmatpush1.msra.mxu0 %v891
  %2416 = vmatprep.subr.mxu0 %v896
  %2417 = vmatpush1.msra.mxu0 %v895
  %2418 = vmatprep.subr.mxu0 %v900
  %2419 = vmatpush1.msra.mxu0 %v899
  %2420 = vmatprep.subr.mxu0 %v904
  %2421 = vmatpush1.msra.mxu0 %v903
  %2422 = vmatprep.subr.mxu0 %v908
  %2423 = vmatpush1.msra.mxu0 %v907
  %2424 = vmatprep.subr.mxu0 %v912
  %2425 = vmatpush1.msra.mxu0 %v911
  %2426 = vmatprep.mubr.f32.mxu0 %v1184
  %2427 = vmatmul.mubr.f32.gmra.mrb[0].mxu0 %v1183
  %v2428 = vpop.f32.mrb[0].mxu0
  %v2429 = vadd.f32 %v2352, %v2428
  %v2430 = vpop.f32.mrb[0].mxu0
  %v2431 = vadd.f32 %v2354, %v2430
  %2432 = vmatprep.mubr.f32.mxu0 %v1202
  %2433 = vmatmul.mubr.f32.gmra.mrb[0].mxu0 %v1201
  %v2434 = vpop.f32.mrb[0].mxu0
  %v2435 = vadd.f32 %v2358, %v2434
  %v2436 = vpop.f32.mrb[0].mxu0
  %v2437 = vadd.f32 %v2360, %v2436
  %2438 = vdwg.mxu0
  %2439 = vmatprep.subr.mxu0 %v916
  %2440 = vmatpush1.msra.mxu0 %v915
  %2441 = vmatprep.subr.mxu0 %v920
  %2442 = vmatpush1.msra.mxu0 %v919
  %2443 = vmatprep.subr.mxu0 %v924
  %2444 = vmatpush1.msra.mxu0 %v923
  %2445 = vmatprep.subr.mxu0 %v928
  %2446 = vmatpush1.msra.mxu0 %v927
  %2447 = vmatprep.subr.mxu0 %v932
  %2448 = vmatpush1.msra.mxu0 %v931
  %2449 = vmatprep.subr.mxu0 %v936
  %2450 = vmatpush1.msra.mxu0 %v935
  %2451 = vmatprep.subr.mxu0 %v940
  %2452 = vmatpush1.msra.mxu0 %v939
  %2453 = vmatprep.subr.mxu0 %v944
  %2454 = vmatpush1.msra.mxu0 %v943
  %2455 = vmatprep.subr.mxu0 %v948
  %2456 = vmatpush1.msra.mxu0 %v947
  %2457 = vmatprep.subr.mxu0 %v952
  %2458 = vmatpush1.msra.mxu0 %v951
  %2459 = vmatprep.subr.mxu0 %v956
  %2460 = vmatpush1.msra.mxu0 %v955
  %2461 = vmatprep.subr.mxu0 %v960
  %2462 = vmatpush1.msra.mxu0 %v959
  %2463 = vmatprep.subr.mxu0 %v964
  %2464 = vmatpush1.msra.mxu0 %v963
  %2465 = vmatprep.subr.mxu0 %v968
  %2466 = vmatpush1.msra.mxu0 %v967
  %2467 = vmatprep.subr.mxu0 %v972
  %2468 = vmatpush1.msra.mxu0 %v971
  %2469 = vmatprep.subr.mxu0 %v976
  %2470 = vmatpush1.msra.mxu0 %v975
  %2471 = vmatprep.subr.mxu0 %v980
  %2472 = vmatpush1.msra.mxu0 %v979
  %2473 = vmatprep.subr.mxu0 %v984
  %2474 = vmatpush1.msra.mxu0 %v983
  %2475 = vmatprep.subr.mxu0 %v988
  %2476 = vmatpush1.msra.mxu0 %v987
  %2477 = vmatprep.subr.mxu0 %v992
  %2478 = vmatpush1.msra.mxu0 %v991
  %2479 = vmatprep.subr.mxu0 %v996
  %2480 = vmatpush1.msra.mxu0 %v995
  %2481 = vmatprep.subr.mxu0 %v1000
  %2482 = vmatpush1.msra.mxu0 %v999
  %2483 = vmatprep.subr.mxu0 %v1004
  %2484 = vmatpush1.msra.mxu0 %v1003
  %2485 = vmatprep.subr.mxu0 %v1008
  %2486 = vmatpush1.msra.mxu0 %v1007
  %2487 = vmatprep.subr.mxu0 %v1012
  %2488 = vmatpush1.msra.mxu0 %v1011
  %2489 = vmatprep.subr.mxu0 %v1016
  %2490 = vmatpush1.msra.mxu0 %v1015
  %2491 = vmatprep.subr.mxu0 %v1020
  %2492 = vmatpush1.msra.mxu0 %v1019
  %2493 = vmatprep.subr.mxu0 %v1024
  %2494 = vmatpush1.msra.mxu0 %v1023
  %2495 = vmatprep.subr.mxu0 %v1028
  %2496 = vmatpush1.msra.mxu0 %v1027
  %2497 = vmatprep.subr.mxu0 %v1032
  %2498 = vmatpush1.msra.mxu0 %v1031
  %2499 = vmatprep.subr.mxu0 %v1036
  %2500 = vmatpush1.msra.mxu0 %v1035
  %2501 = vmatprep.subr.mxu0 %v1040
  %2502 = vmatpush1.msra.mxu0 %v1039
  %2503 = vmatprep.mubr.f32.mxu0 %v1186
  %2504 = vmatmul.mubr.f32.gmra.mrb[0].mxu0 %v1185
  %v2505 = vpop.f32.mrb[0].mxu0
  %v2506 = vadd.f32 %v2429, %v2505
  %v2507 = vpop.f32.mrb[0].mxu0
  %v2508 = vadd.f32 %v2431, %v2507
  %2509 = vmatprep.mubr.f32.mxu0 %v1204
  %2510 = vmatmul.mubr.f32.gmra.mrb[0].mxu0 %v1203
  %v2511 = vpop.f32.mrb[0].mxu0
  %v2512 = vadd.f32 %v2435, %v2511
  %v2513 = vpop.f32.mrb[0].mxu0
  %v2514 = vadd.f32 %v2437, %v2513
  %2515 = vdwg.mxu0
  %2516 = vmatprep.subr.mxu0 %v1044
  %2517 = vmatpush1.msra.mxu0 %v1043
  %2518 = vmatprep.subr.mxu0 %v1048
  %2519 = vmatpush1.msra.mxu0 %v1047
  %2520 = vmatprep.subr.mxu0 %v1052
  %2521 = vmatpush1.msra.mxu0 %v1051
  %2522 = vmatprep.subr.mxu0 %v1056
  %2523 = vmatpush1.msra.mxu0 %v1055
  %2524 = vmatprep.subr.mxu0 %v1060
  %2525 = vmatpush1.msra.mxu0 %v1059
  %2526 = vmatprep.subr.mxu0 %v1064
  %2527 = vmatpush1.msra.mxu0 %v1063
  %2528 = vmatprep.subr.mxu0 %v1068
  %2529 = vmatpush1.msra.mxu0 %v1067
  %2530 = vmatprep.subr.mxu0 %v1072
  %2531 = vmatpush1.msra.mxu0 %v1071
  %2532 = vmatprep.subr.mxu0 %v1076
  %2533 = vmatpush1.msra.mxu0 %v1075
  %2534 = vmatprep.subr.mxu0 %v1080
  %2535 = vmatpush1.msra.mxu0 %v1079
  %2536 = vmatprep.subr.mxu0 %v1084
  %2537 = vmatpush1.msra.mxu0 %v1083
  %2538 = vmatprep.subr.mxu0 %v1088
  %2539 = vmatpush1.msra.mxu0 %v1087
  %2540 = vmatprep.subr.mxu0 %v1092
  %2541 = vmatpush1.msra.mxu0 %v1091
  %2542 = vmatprep.subr.mxu0 %v1096
  %2543 = vmatpush1.msra.mxu0 %v1095
  %2544 = vmatprep.subr.mxu0 %v1100
  %2545 = vmatpush1.msra.mxu0 %v1099
  %2546 = vmatprep.subr.mxu0 %v1104
  %2547 = vmatpush1.msra.mxu0 %v1103
  %2548 = vmatprep.subr.mxu0 %v1108
  %2549 = vmatpush1.msra.mxu0 %v1107
  %2550 = vmatprep.subr.mxu0 %v1112
  %2551 = vmatpush1.msra.mxu0 %v1111
  %2552 = vmatprep.subr.mxu0 %v1116
  %2553 = vmatpush1.msra.mxu0 %v1115
  %2554 = vmatprep.subr.mxu0 %v1120
  %2555 = vmatpush1.msra.mxu0 %v1119
  %2556 = vmatprep.subr.mxu0 %v1124
  %2557 = vmatpush1.msra.mxu0 %v1123
  %2558 = vmatprep.subr.mxu0 %v1128
  %2559 = vmatpush1.msra.mxu0 %v1127
  %2560 = vmatprep.subr.mxu0 %v1132
  %2561 = vmatpush1.msra.mxu0 %v1131
  %2562 = vmatprep.subr.mxu0 %v1136
  %2563 = vmatpush1.msra.mxu0 %v1135
  %2564 = vmatprep.subr.mxu0 %v1140
  %2565 = vmatpush1.msra.mxu0 %v1139
  %2566 = vmatprep.subr.mxu0 %v1144
  %2567 = vmatpush1.msra.mxu0 %v1143
  %2568 = vmatprep.subr.mxu0 %v1148
  %2569 = vmatpush1.msra.mxu0 %v1147
  %2570 = vmatprep.subr.mxu0 %v1152
  %2571 = vmatpush1.msra.mxu0 %v1151
  %2572 = vmatprep.subr.mxu0 %v1156
  %2573 = vmatpush1.msra.mxu0 %v1155
  %2574 = vmatprep.subr.mxu0 %v1160
  %2575 = vmatpush1.msra.mxu0 %v1159
  %2576 = vmatprep.subr.mxu0 %v1164
  %2577 = vmatpush1.msra.mxu0 %v1163
  %2578 = vmatprep.subr.mxu0 %v1168
  %2579 = vmatpush1.msra.mxu0 %v1167
  %2580 = vmatprep.mubr.f32.mxu0 %v1188
  %2581 = vmatmul.mubr.f32.gmra.mrb[0].mxu0 %v1187
  %v2582 = vpop.f32.mrb[0].mxu0
  %v2583 = vadd.f32 %v2506, %v2582
  %v2584 = vpop.f32.mrb[0].mxu0
  %v2585 = vadd.f32 %v2508, %v2584
  %2586 = vmatprep.mubr.f32.mxu0 %v1206
  %2587 = vmatmul.mubr.f32.gmra.mrb[0].mxu0 %v1205
  %v2588 = vpop.f32.mrb[0].mxu0
  %v2589 = vadd.f32 %v2512, %v2588
  %v2590 = vpop.f32.mrb[0].mxu0
  %v2591 = vadd.f32 %v2514, %v2590
  %2592 = vdwg.mxu0
  %v2594 = vlaneseq
  %v2595 = vshrl.u32 %v2594, 7
  %v2596 = vsub.s32 0, %v2595
  %v2597 = vrot.slane %v1169, %v2596
  %v2598 = vlaneseq
  %v2599 = vshrl.u32 %v2598, 7
  %v2600 = vsub.s32 1, %v2599
  %v2601 = vrot.slane %v1169, %v2600
  %v2602 = vlaneseq
  %v2603 = vshrl.u32 %v2602, 7
  %v2604 = vsub.s32 2, %v2603
  %v2605 = vrot.slane %v1169, %v2604
  %v2606 = vlaneseq
  %v2607 = vshrl.u32 %v2606, 7
  %v2608 = vsub.s32 3, %v2607
  %v2609 = vrot.slane %v1169, %v2608
  %v2614 = vmul.f32 %v1890, %v2597
  %v2615 = vmul.f32 %v1892, %v2601
  %v2616 = vmul.f32 %v2583, %v2605
  %v2617 = vmul.f32 %v2585, %v2609
  %v2618 = vmul.f32 %v1896, %v2597
  %v2619 = vmul.f32 %v1898, %v2601
  %v2620 = vmul.f32 %v2589, %v2605
  %v2621 = vmul.f32 %v2591, %v2609
  %v2623 = vlaneseq
  %v2624 = vshrl.u32 %v2623, 7
  %v2625 = vsub.s32 0, %v2624
  %v2626 = vrot.slane %v1170, %v2625
  %v2627 = vlaneseq
  %v2628 = vshrl.u32 %v2627, 7
  %v2629 = vsub.s32 1, %v2628
  %v2630 = vrot.slane %v1170, %v2629
  %v2631 = vlaneseq
  %v2632 = vshrl.u32 %v2631, 7
  %v2633 = vsub.s32 2, %v2632
  %v2634 = vrot.slane %v1170, %v2633
  %v2635 = vlaneseq
  %v2636 = vshrl.u32 %v2635, 7
  %v2637 = vsub.s32 3, %v2636
  %v2638 = vrot.slane %v1170, %v2637
  %v2643 = vadd.f32 %v2614, %v2626
  %v2644 = vadd.f32 %v2615, %v2630
  %v2645 = vadd.f32 %v2616, %v2634
  %v2646 = vadd.f32 %v2617, %v2638
  %v2647 = vadd.f32 %v2618, %v2626
  %v2648 = vadd.f32 %v2619, %v2630
  %v2649 = vadd.f32 %v2620, %v2634
  %v2650 = vadd.f32 %v2621, %v2638
  %s2651 = scalar_lea.vmem %s0, 288
  %v2652 = vld [vmem:[%s2651] sm:$0xff]
  %v2653 = vld [vmem:[%s2651 + $0x8] sm:$0xff]
  %v2654 = vld [vmem:[%s2651 + $0x10] sm:$0xff]
  %v2655 = vld [vmem:[%s2651 + $0x18] sm:$0xff]
  %v2656 = vld [vmem:[%s2651 + $0x20] sm:$0xff]
  %v2657 = vld [vmem:[%s2651 + $0x28] sm:$0xff]
  %v2658 = vld [vmem:[%s2651 + $0x30] sm:$0xff]
  %v2659 = vld [vmem:[%s2651 + $0x38] sm:$0xff]
  %v2660 = vld [vmem:[%s2651 + $0x40] sm:$0xff]
  %v2661 = vld [vmem:[%s2651 + $0x48] sm:$0xff]
  %v2662 = vld [vmem:[%s2651 + $0x50] sm:$0xff]
  %v2663 = vld [vmem:[%s2651 + $0x58] sm:$0xff]
  %v2664 = vld [vmem:[%s2651 + $0x60] sm:$0xff]
  %v2665 = vld [vmem:[%s2651 + $0x68] sm:$0xff]
  %v2666 = vld [vmem:[%s2651 + $0x70] sm:$0xff]
  %v2667 = vld [vmem:[%s2651 + $0x78] sm:$0xff]
  %v2668 = vld [vmem:[%s2651 + $0x80] sm:$0xff]
  %v2669 = vld [vmem:[%s2651 + $0x88] sm:$0xff]
  %v2670 = vld [vmem:[%s2651 + $0x90] sm:$0xff]
  %v2671 = vld [vmem:[%s2651 + $0x98] sm:$0xff]
  %v2672 = vld [vmem:[%s2651 + $0xa0] sm:$0xff]
  %v2673 = vld [vmem:[%s2651 + $0xa8] sm:$0xff]
  %v2674 = vld [vmem:[%s2651 + $0xb0] sm:$0xff]
  %v2675 = vld [vmem:[%s2651 + $0xb8] sm:$0xff]
  %v2676 = vld [vmem:[%s2651 + $0xc0] sm:$0xff]
  %v2677 = vld [vmem:[%s2651 + $0xc8] sm:$0xff]
  %v2678 = vld [vmem:[%s2651 + $0xd0] sm:$0xff]
  %v2679 = vld [vmem:[%s2651 + $0xd8] sm:$0xff]
  %v2680 = vld [vmem:[%s2651 + $0xe0] sm:$0xff]
  %v2681 = vld [vmem:[%s2651 + $0xe8] sm:$0xff]
  %v2682 = vld [vmem:[%s2651 + $0xf0] sm:$0xff]
  %v2683 = vld [vmem:[%s2651 + $0xf8] sm:$0xff]
  %v2684 = vld [vmem:[%s2651 + $0x100] sm:$0xff]
  %v2685 = vld [vmem:[%s2651 + $0x108] sm:$0xff]
  %v2686 = vld [vmem:[%s2651 + $0x110] sm:$0xff]
  %v2687 = vld [vmem:[%s2651 + $0x118] sm:$0xff]
  %2688 = vmatprep.subr.mxu0 %v18
  %2689 = vmatpush1.msra.mxu0 %v17
  %2690 = vmatprep.subr.mxu0 %v22
  %2691 = vmatpush1.msra.mxu0 %v21
  %2692 = vmatprep.subr.mxu0 %v26
  %2693 = vmatpush1.msra.mxu0 %v25
  %2694 = vmatprep.subr.mxu0 %v30
  %2695 = vmatpush1.msra.mxu0 %v29
  %2696 = vmatprep.subr.mxu0 %v34
  %2697 = vmatpush1.msra.mxu0 %v33
  %2698 = vmatprep.subr.mxu0 %v38
  %2699 = vmatpush1.msra.mxu0 %v37
  %2700 = vmatprep.subr.mxu0 %v42
  %2701 = vmatpush1.msra.mxu0 %v41
  %2702 = vmatprep.subr.mxu0 %v46
  %2703 = vmatpush1.msra.mxu0 %v45
  %2704 = vmatprep.subr.mxu0 %v50
  %2705 = vmatpush1.msra.mxu0 %v49
  %2706 = vmatprep.subr.mxu0 %v54
  %2707 = vmatpush1.msra.mxu0 %v53
  %2708 = vmatprep.subr.mxu0 %v58
  %2709 = vmatpush1.msra.mxu0 %v57
  %2710 = vmatprep.subr.mxu0 %v62
  %2711 = vmatpush1.msra.mxu0 %v61
  %2712 = vmatprep.subr.mxu0 %v66
  %2713 = vmatpush1.msra.mxu0 %v65
  %2714 = vmatprep.subr.mxu0 %v70
  %2715 = vmatpush1.msra.mxu0 %v69
  %2716 = vmatprep.subr.mxu0 %v74
  %2717 = vmatpush1.msra.mxu0 %v73
  %2718 = vmatprep.subr.mxu0 %v78
  %2719 = vmatpush1.msra.mxu0 %v77
  %2720 = vmatprep.subr.mxu0 %v82
  %2721 = vmatpush1.msra.mxu0 %v81
  %2722 = vmatprep.subr.mxu0 %v86
  %2723 = vmatpush1.msra.mxu0 %v85
  %2724 = vmatprep.subr.mxu0 %v90
  %2725 = vmatpush1.msra.mxu0 %v89
  %2726 = vmatprep.subr.mxu0 %v94
  %2727 = vmatpush1.msra.mxu0 %v93
  %2728 = vmatprep.subr.mxu0 %v98
  %2729 = vmatpush1.msra.mxu0 %v97
  %2730 = vmatprep.subr.mxu0 %v102
  %2731 = vmatpush1.msra.mxu0 %v101
  %2732 = vmatprep.subr.mxu0 %v106
  %2733 = vmatpush1.msra.mxu0 %v105
  %2734 = vmatprep.subr.mxu0 %v110
  %2735 = vmatpush1.msra.mxu0 %v109
  %2736 = vmatprep.subr.mxu0 %v114
  %2737 = vmatpush1.msra.mxu0 %v113
  %2738 = vmatprep.subr.mxu0 %v118
  %2739 = vmatpush1.msra.mxu0 %v117
  %2740 = vmatprep.subr.mxu0 %v122
  %2741 = vmatpush1.msra.mxu0 %v121
  %2742 = vmatprep.subr.mxu0 %v126
  %2743 = vmatpush1.msra.mxu0 %v125
  %2744 = vmatprep.subr.mxu0 %v130
  %2745 = vmatpush1.msra.mxu0 %v129
  %2746 = vmatprep.subr.mxu0 %v134
  %2747 = vmatpush1.msra.mxu0 %v133
  %2748 = vmatprep.subr.mxu0 %v138
  %2749 = vmatpush1.msra.mxu0 %v137
  %2750 = vmatprep.subr.mxu0 %v142
  %2751 = vmatpush1.msra.mxu0 %v141
  %2752 = vmatprep.mubr.f32.mxu0 %v2653
  %2753 = vmatmul.mubr.f32.gmra.mrb[0].mxu0 %v2652
  %v2754 = vpop.f32.mrb[0].mxu0
  %v2755 = vadd.f32 0.0, %v2754
  %v2756 = vpop.f32.mrb[0].mxu0
  %v2757 = vadd.f32 0.0, %v2756
  %2758 = vmatprep.mubr.f32.mxu0 %v2671
  %2759 = vmatmul.mubr.f32.gmra.mrb[0].mxu0 %v2670
  %v2760 = vpop.f32.mrb[0].mxu0
  %v2761 = vadd.f32 0.0, %v2760
  %v2762 = vpop.f32.mrb[0].mxu0
  %v2763 = vadd.f32 0.0, %v2762
  %2764 = vdwg.mxu0
  %2765 = vmatprep.subr.mxu0 %v146
  %2766 = vmatpush1.msra.mxu0 %v145
  %2767 = vmatprep.subr.mxu0 %v150
  %2768 = vmatpush1.msra.mxu0 %v149
  %2769 = vmatprep.subr.mxu0 %v154
  %2770 = vmatpush1.msra.mxu0 %v153
  %2771 = vmatprep.subr.mxu0 %v158
  %2772 = vmatpush1.msra.mxu0 %v157
  %2773 = vmatprep.subr.mxu0 %v162
  %2774 = vmatpush1.msra.mxu0 %v161
  %2775 = vmatprep.subr.mxu0 %v166
  %2776 = vmatpush1.msra.mxu0 %v165
  %2777 = vmatprep.subr.mxu0 %v170
  %2778 = vmatpush1.msra.mxu0 %v169
  %2779 = vmatprep.subr.mxu0 %v174
  %2780 = vmatpush1.msra.mxu0 %v173
  %2781 = vmatprep.subr.mxu0 %v178
  %2782 = vmatpush1.msra.mxu0 %v177
  %2783 = vmatprep.subr.mxu0 %v182
  %2784 = vmatpush1.msra.mxu0 %v181
  %2785 = vmatprep.subr.mxu0 %v186
  %2786 = vmatpush1.msra.mxu0 %v185
  %2787 = vmatprep.subr.mxu0 %v190
  %2788 = vmatpush1.msra.mxu0 %v189
  %2789 = vmatprep.subr.mxu0 %v194
  %2790 = vmatpush1.msra.mxu0 %v193
  %2791 = vmatprep.subr.mxu0 %v198
  %2792 = vmatpush1.msra.mxu0 %v197
  %2793 = vmatprep.subr.mxu0 %v202
  %2794 = vmatpush1.msra.mxu0 %v201
  %2795 = vmatprep.subr.mxu0 %v206
  %2796 = vmatpush1.msra.mxu0 %v205
  %2797 = vmatprep.subr.mxu0 %v210
  %2798 = vmatpush1.msra.mxu0 %v209
  %2799 = vmatprep.subr.mxu0 %v214
  %2800 = vmatpush1.msra.mxu0 %v213
  %2801 = vmatprep.subr.mxu0 %v218
  %2802 = vmatpush1.msra.mxu0 %v217
  %2803 = vmatprep.subr.mxu0 %v222
  %2804 = vmatpush1.msra.mxu0 %v221
  %2805 = vmatprep.subr.mxu0 %v226
  %2806 = vmatpush1.msra.mxu0 %v225
  %2807 = vmatprep.subr.mxu0 %v230
  %2808 = vmatpush1.msra.mxu0 %v229
  %2809 = vmatprep.subr.mxu0 %v234
  %2810 = vmatpush1.msra.mxu0 %v233
  %2811 = vmatprep.subr.mxu0 %v238
  %2812 = vmatpush1.msra.mxu0 %v237
  %2813 = vmatprep.subr.mxu0 %v242
  %2814 = vmatpush1.msra.mxu0 %v241
  %2815 = vmatprep.subr.mxu0 %v246
  %2816 = vmatpush1.msra.mxu0 %v245
  %2817 = vmatprep.subr.mxu0 %v250
  %2818 = vmatpush1.msra.mxu0 %v249
  %2819 = vmatprep.subr.mxu0 %v254
  %2820 = vmatpush1.msra.mxu0 %v253
  %2821 = vmatprep.subr.mxu0 %v258
  %2822 = vmatpush1.msra.mxu0 %v257
  %2823 = vmatprep.subr.mxu0 %v262
  %2824 = vmatpush1.msra.mxu0 %v261
  %2825 = vmatprep.subr.mxu0 %v266
  %2826 = vmatpush1.msra.mxu0 %v265
  %2827 = vmatprep.subr.mxu0 %v270
  %2828 = vmatpush1.msra.mxu0 %v269
  %2829 = vmatprep.mubr.f32.mxu0 %v2655
  %2830 = vmatmul.mubr.f32.gmra.mrb[0].mxu0 %v2654
  %v2831 = vpop.f32.mrb[0].mxu0
  %v2832 = vadd.f32 %v2755, %v2831
  %v2833 = vpop.f32.mrb[0].mxu0
  %v2834 = vadd.f32 %v2757, %v2833
  %2835 = vmatprep.mubr.f32.mxu0 %v2673
  %2836 = vmatmul.mubr.f32.gmra.mrb[0].mxu0 %v2672
  %v2837 = vpop.f32.mrb[0].mxu0
  %v2838 = vadd.f32 %v2761, %v2837
  %v2839 = vpop.f32.mrb[0].mxu0
  %v2840 = vadd.f32 %v2763, %v2839
  %2841 = vdwg.mxu0
  %2842 = vmatprep.subr.mxu0 %v274
  %2843 = vmatpush1.msra.mxu0 %v273
  %2844 = vmatprep.subr.mxu0 %v278
  %2845 = vmatpush1.msra.mxu0 %v277
  %2846 = vmatprep.subr.mxu0 %v282
  %2847 = vmatpush1.msra.mxu0 %v281
  %2848 = vmatprep.subr.mxu0 %v286
  %2849 = vmatpush1.msra.mxu0 %v285
  %2850 = vmatprep.subr.mxu0 %v290
  %2851 = vmatpush1.msra.mxu0 %v289
  %2852 = vmatprep.subr.mxu0 %v294
  %2853 = vmatpush1.msra.mxu0 %v293
  %2854 = vmatprep.subr.mxu0 %v298
  %2855 = vmatpush1.msra.mxu0 %v297
  %2856 = vmatprep.subr.mxu0 %v302
  %2857 = vmatpush1.msra.mxu0 %v301
  %2858 = vmatprep.subr.mxu0 %v306
  %2859 = vmatpush1.msra.mxu0 %v305
  %2860 = vmatprep.subr.mxu0 %v310
  %2861 = vmatpush1.msra.mxu0 %v309
  %2862 = vmatprep.subr.mxu0 %v314
  %2863 = vmatpush1.msra.mxu0 %v313
  %2864 = vmatprep.subr.mxu0 %v318
  %2865 = vmatpush1.msra.mxu0 %v317
  %2866 = vmatprep.subr.mxu0 %v322
  %2867 = vmatpush1.msra.mxu0 %v321
  %2868 = vmatprep.subr.mxu0 %v326
  %2869 = vmatpush1.msra.mxu0 %v325
  %2870 = vmatprep.subr.mxu0 %v330
  %2871 = vmatpush1.msra.mxu0 %v329
  %2872 = vmatprep.subr.mxu0 %v334
  %2873 = vmatpush1.msra.mxu0 %v333
  %2874 = vmatprep.subr.mxu0 %v338
  %2875 = vmatpush1.msra.mxu0 %v337
  %2876 = vmatprep.subr.mxu0 %v342
  %2877 = vmatpush1.msra.mxu0 %v341
  %2878 = vmatprep.subr.mxu0 %v346
  %2879 = vmatpush1.msra.mxu0 %v345
  %2880 = vmatprep.subr.mxu0 %v350
  %2881 = vmatpush1.msra.mxu0 %v349
  %2882 = vmatprep.subr.mxu0 %v354
  %2883 = vmatpush1.msra.mxu0 %v353
  %2884 = vmatprep.subr.mxu0 %v358
  %2885 = vmatpush1.msra.mxu0 %v357
  %2886 = vmatprep.subr.mxu0 %v362
  %2887 = vmatpush1.msra.mxu0 %v361
  %2888 = vmatprep.subr.mxu0 %v366
  %2889 = vmatpush1.msra.mxu0 %v365
  %2890 = vmatprep.subr.mxu0 %v370
  %2891 = vmatpush1.msra.mxu0 %v369
  %2892 = vmatprep.subr.mxu0 %v374
  %2893 = vmatpush1.msra.mxu0 %v373
  %2894 = vmatprep.subr.mxu0 %v378
  %2895 = vmatpush1.msra.mxu0 %v377
  %2896 = vmatprep.subr.mxu0 %v382
  %2897 = vmatpush1.msra.mxu0 %v381
  %2898 = vmatprep.subr.mxu0 %v386
  %2899 = vmatpush1.msra.mxu0 %v385
  %2900 = vmatprep.subr.mxu0 %v390
  %2901 = vmatpush1.msra.mxu0 %v389
  %2902 = vmatprep.subr.mxu0 %v394
  %2903 = vmatpush1.msra.mxu0 %v393
  %2904 = vmatprep.subr.mxu0 %v398
  %2905 = vmatpush1.msra.mxu0 %v397
  %2906 = vmatprep.mubr.f32.mxu0 %v2657
  %2907 = vmatmul.mubr.f32.gmra.mrb[0].mxu0 %v2656
  %v2908 = vpop.f32.mrb[0].mxu0
  %v2909 = vadd.f32 %v2832, %v2908
  %v2910 = vpop.f32.mrb[0].mxu0
  %v2911 = vadd.f32 %v2834, %v2910
  %2912 = vmatprep.mubr.f32.mxu0 %v2675
  %2913 = vmatmul.mubr.f32.gmra.mrb[0].mxu0 %v2674
  %v2914 = vpop.f32.mrb[0].mxu0
  %v2915 = vadd.f32 %v2838, %v2914
  %v2916 = vpop.f32.mrb[0].mxu0
  %v2917 = vadd.f32 %v2840, %v2916
  %2918 = vdwg.mxu0
  %2919 = vmatprep.subr.mxu0 %v402
  %2920 = vmatpush1.msra.mxu0 %v401
  %2921 = vmatprep.subr.mxu0 %v406
  %2922 = vmatpush1.msra.mxu0 %v405
  %2923 = vmatprep.subr.mxu0 %v410
  %2924 = vmatpush1.msra.mxu0 %v409
  %2925 = vmatprep.subr.mxu0 %v414
  %2926 = vmatpush1.msra.mxu0 %v413
  %2927 = vmatprep.subr.mxu0 %v418
  %2928 = vmatpush1.msra.mxu0 %v417
  %2929 = vmatprep.subr.mxu0 %v422
  %2930 = vmatpush1.msra.mxu0 %v421
  %2931 = vmatprep.subr.mxu0 %v426
  %2932 = vmatpush1.msra.mxu0 %v425
  %2933 = vmatprep.subr.mxu0 %v430
  %2934 = vmatpush1.msra.mxu0 %v429
  %2935 = vmatprep.subr.mxu0 %v434
  %2936 = vmatpush1.msra.mxu0 %v433
  %2937 = vmatprep.subr.mxu0 %v438
  %2938 = vmatpush1.msra.mxu0 %v437
  %2939 = vmatprep.subr.mxu0 %v442
  %2940 = vmatpush1.msra.mxu0 %v441
  %2941 = vmatprep.subr.mxu0 %v446
  %2942 = vmatpush1.msra.mxu0 %v445
  %2943 = vmatprep.subr.mxu0 %v450
  %2944 = vmatpush1.msra.mxu0 %v449
  %2945 = vmatprep.subr.mxu0 %v454
  %2946 = vmatpush1.msra.mxu0 %v453
  %2947 = vmatprep.subr.mxu0 %v458
  %2948 = vmatpush1.msra.mxu0 %v457
  %2949 = vmatprep.subr.mxu0 %v462
  %2950 = vmatpush1.msra.mxu0 %v461
  %2951 = vmatprep.subr.mxu0 %v466
  %2952 = vmatpush1.msra.mxu0 %v465
  %2953 = vmatprep.subr.mxu0 %v470
  %2954 = vmatpush1.msra.mxu0 %v469
  %2955 = vmatprep.subr.mxu0 %v474
  %2956 = vmatpush1.msra.mxu0 %v473
  %2957 = vmatprep.subr.mxu0 %v478
  %2958 = vmatpush1.msra.mxu0 %v477
  %2959 = vmatprep.subr.mxu0 %v482
  %2960 = vmatpush1.msra.mxu0 %v481
  %2961 = vmatprep.subr.mxu0 %v486
  %2962 = vmatpush1.msra.mxu0 %v485
  %2963 = vmatprep.subr.mxu0 %v490
  %2964 = vmatpush1.msra.mxu0 %v489
  %2965 = vmatprep.subr.mxu0 %v494
  %2966 = vmatpush1.msra.mxu0 %v493
  %2967 = vmatprep.subr.mxu0 %v498
  %2968 = vmatpush1.msra.mxu0 %v497
  %2969 = vmatprep.subr.mxu0 %v502
  %2970 = vmatpush1.msra.mxu0 %v501
  %2971 = vmatprep.subr.mxu0 %v506
  %2972 = vmatpush1.msra.mxu0 %v505
  %2973 = vmatprep.subr.mxu0 %v510
  %2974 = vmatpush1.msra.mxu0 %v509
  %2975 = vmatprep.subr.mxu0 %v514
  %2976 = vmatpush1.msra.mxu0 %v513
  %2977 = vmatprep.subr.mxu0 %v518
  %2978 = vmatpush1.msra.mxu0 %v517
  %2979 = vmatprep.subr.mxu0 %v522
  %2980 = vmatpush1.msra.mxu0 %v521
  %2981 = vmatprep.subr.mxu0 %v526
  %2982 = vmatpush1.msra.mxu0 %v525
  %2983 = vmatprep.mubr.f32.mxu0 %v2659
  %2984 = vmatmul.mubr.f32.gmra.mrb[0].mxu0 %v2658
  %v2985 = vpop.f32.mrb[0].mxu0
  %v2986 = vadd.f32 %v2909, %v2985
  %v2987 = vpop.f32.mrb[0].mxu0
  %v2988 = vadd.f32 %v2911, %v2987
  %2989 = vmatprep.mubr.f32.mxu0 %v2677
  %2990 = vmatmul.mubr.f32.gmra.mrb[0].mxu0 %v2676
  %v2991 = vpop.f32.mrb[0].mxu0
  %v2992 = vadd.f32 %v2915, %v2991
  %v2993 = vpop.f32.mrb[0].mxu0
  %v2994 = vadd.f32 %v2917, %v2993
  %2995 = vdwg.mxu0
  %2996 = vmatprep.subr.mxu0 %v530
  %2997 = vmatpush1.msra.mxu0 %v529
  %2998 = vmatprep.subr.mxu0 %v534
  %2999 = vmatpush1.msra.mxu0 %v533
  %3000 = vmatprep.subr.mxu0 %v538
  %3001 = vmatpush1.msra.mxu0 %v537
  %3002 = vmatprep.subr.mxu0 %v542
  %3003 = vmatpush1.msra.mxu0 %v541
  %3004 = vmatprep.subr.mxu0 %v546
  %3005 = vmatpush1.msra.mxu0 %v545
  %3006 = vmatprep.subr.mxu0 %v550
  %3007 = vmatpush1.msra.mxu0 %v549
  %3008 = vmatprep.subr.mxu0 %v554
  %3009 = vmatpush1.msra.mxu0 %v553
  %3010 = vmatprep.subr.mxu0 %v558
  %3011 = vmatpush1.msra.mxu0 %v557
  %3012 = vmatprep.subr.mxu0 %v562
  %3013 = vmatpush1.msra.mxu0 %v561
  %3014 = vmatprep.subr.mxu0 %v566
  %3015 = vmatpush1.msra.mxu0 %v565
  %3016 = vmatprep.subr.mxu0 %v570
  %3017 = vmatpush1.msra.mxu0 %v569
  %3018 = vmatprep.subr.mxu0 %v574
  %3019 = vmatpush1.msra.mxu0 %v573
  %3020 = vmatprep.subr.mxu0 %v578
  %3021 = vmatpush1.msra.mxu0 %v577
  %3022 = vmatprep.subr.mxu0 %v582
  %3023 = vmatpush1.msra.mxu0 %v581
  %3024 = vmatprep.subr.mxu0 %v586
  %3025 = vmatpush1.msra.mxu0 %v585
  %3026 = vmatprep.subr.mxu0 %v590
  %3027 = vmatpush1.msra.mxu0 %v589
  %3028 = vmatprep.subr.mxu0 %v594
  %3029 = vmatpush1.msra.mxu0 %v593
  %3030 = vmatprep.subr.mxu0 %v598
  %3031 = vmatpush1.msra.mxu0 %v597
  %3032 = vmatprep.subr.mxu0 %v602
  %3033 = vmatpush1.msra.mxu0 %v601
  %3034 = vmatprep.subr.mxu0 %v606
  %3035 = vmatpush1.msra.mxu0 %v605
  %3036 = vmatprep.subr.mxu0 %v610
  %3037 = vmatpush1.msra.mxu0 %v609
  %3038 = vmatprep.subr.mxu0 %v614
  %3039 = vmatpush1.msra.mxu0 %v613
  %3040 = vmatprep.subr.mxu0 %v618
  %3041 = vmatpush1.msra.mxu0 %v617
  %3042 = vmatprep.subr.mxu0 %v622
  %3043 = vmatpush1.msra.mxu0 %v621
  %3044 = vmatprep.subr.mxu0 %v626
  %3045 = vmatpush1.msra.mxu0 %v625
  %3046 = vmatprep.subr.mxu0 %v630
  %3047 = vmatpush1.msra.mxu0 %v629
  %3048 = vmatprep.subr.mxu0 %v634
  %3049 = vmatpush1.msra.mxu0 %v633
  %3050 = vmatprep.subr.mxu0 %v638
  %3051 = vmatpush1.msra.mxu0 %v637
  %3052 = vmatprep.subr.mxu0 %v642
  %3053 = vmatpush1.msra.mxu0 %v641
  %3054 = vmatprep.subr.mxu0 %v646
  %3055 = vmatpush1.msra.mxu0 %v645
  %3056 = vmatprep.subr.mxu0 %v650
  %3057 = vmatpush1.msra.mxu0 %v649
  %3058 = vmatprep.subr.mxu0 %v654
  %3059 = vmatpush1.msra.mxu0 %v653
  %3060 = vmatprep.mubr.f32.mxu0 %v2661
  %3061 = vmatmul.mubr.f32.gmra.mrb[0].mxu0 %v2660
  %v3062 = vpop.f32.mrb[0].mxu0
  %v3063 = vadd.f32 %v2986, %v3062
  %v3064 = vpop.f32.mrb[0].mxu0
  %v3065 = vadd.f32 %v2988, %v3064
  %3066 = vmatprep.mubr.f32.mxu0 %v2679
  %3067 = vmatmul.mubr.f32.gmra.mrb[0].mxu0 %v2678
  %v3068 = vpop.f32.mrb[0].mxu0
  %v3069 = vadd.f32 %v2992, %v3068
  %v3070 = vpop.f32.mrb[0].mxu0
  %v3071 = vadd.f32 %v2994, %v3070
  %3072 = vdwg.mxu0
  %3073 = vmatprep.subr.mxu0 %v658
  %3074 = vmatpush1.msra.mxu0 %v657
  %3075 = vmatprep.subr.mxu0 %v662
  %3076 = vmatpush1.msra.mxu0 %v661
  %3077 = vmatprep.subr.mxu0 %v666
  %3078 = vmatpush1.msra.mxu0 %v665
  %3079 = vmatprep.subr.mxu0 %v670
  %3080 = vmatpush1.msra.mxu0 %v669
  %3081 = vmatprep.subr.mxu0 %v674
  %3082 = vmatpush1.msra.mxu0 %v673
  %3083 = vmatprep.subr.mxu0 %v678
  %3084 = vmatpush1.msra.mxu0 %v677
  %3085 = vmatprep.subr.mxu0 %v682
  %3086 = vmatpush1.msra.mxu0 %v681
  %3087 = vmatprep.subr.mxu0 %v686
  %3088 = vmatpush1.msra.mxu0 %v685
  %3089 = vmatprep.subr.mxu0 %v690
  %3090 = vmatpush1.msra.mxu0 %v689
  %3091 = vmatprep.subr.mxu0 %v694
  %3092 = vmatpush1.msra.mxu0 %v693
  %3093 = vmatprep.subr.mxu0 %v698
  %3094 = vmatpush1.msra.mxu0 %v697
  %3095 = vmatprep.subr.mxu0 %v702
  %3096 = vmatpush1.msra.mxu0 %v701
  %3097 = vmatprep.subr.mxu0 %v706
  %3098 = vmatpush1.msra.mxu0 %v705
  %3099 = vmatprep.subr.mxu0 %v710
  %3100 = vmatpush1.msra.mxu0 %v709
  %3101 = vmatprep.subr.mxu0 %v714
  %3102 = vmatpush1.msra.mxu0 %v713
  %3103 = vmatprep.subr.mxu0 %v718
  %3104 = vmatpush1.msra.mxu0 %v717
  %3105 = vmatprep.subr.mxu0 %v722
  %3106 = vmatpush1.msra.mxu0 %v721
  %3107 = vmatprep.subr.mxu0 %v726
  %3108 = vmatpush1.msra.mxu0 %v725
  %3109 = vmatprep.subr.mxu0 %v730
  %3110 = vmatpush1.msra.mxu0 %v729
  %3111 = vmatprep.subr.mxu0 %v734
  %3112 = vmatpush1.msra.mxu0 %v733
  %3113 = vmatprep.subr.mxu0 %v738
  %3114 = vmatpush1.msra.mxu0 %v737
  %3115 = vmatprep.subr.mxu0 %v742
  %3116 = vmatpush1.msra.mxu0 %v741
  %3117 = vmatprep.subr.mxu0 %v746
  %3118 = vmatpush1.msra.mxu0 %v745
  %3119 = vmatprep.subr.mxu0 %v750
  %3120 = vmatpush1.msra.mxu0 %v749
  %3121 = vmatprep.subr.mxu0 %v754
  %3122 = vmatpush1.msra.mxu0 %v753
  %3123 = vmatprep.subr.mxu0 %v758
  %3124 = vmatpush1.msra.mxu0 %v757
  %3125 = vmatprep.subr.mxu0 %v762
  %3126 = vmatpush1.msra.mxu0 %v761
  %3127 = vmatprep.subr.mxu0 %v766
  %3128 = vmatpush1.msra.mxu0 %v765
  %3129 = vmatprep.subr.mxu0 %v770
  %3130 = vmatpush1.msra.mxu0 %v769
  %3131 = vmatprep.subr.mxu0 %v774
  %3132 = vmatpush1.msra.mxu0 %v773
  %3133 = vmatprep.subr.mxu0 %v778
  %3134 = vmatpush1.msra.mxu0 %v777
  %3135 = vmatprep.subr.mxu0 %v782
  %3136 = vmatpush1.msra.mxu0 %v781
  %3137 = vmatprep.mubr.f32.mxu0 %v2663
  %3138 = vmatmul.mubr.f32.gmra.mrb[0].mxu0 %v2662
  %v3139 = vpop.f32.mrb[0].mxu0
  %v3140 = vadd.f32 %v3063, %v3139
  %v3141 = vpop.f32.mrb[0].mxu0
  %v3142 = vadd.f32 %v3065, %v3141
  %3143 = vmatprep.mubr.f32.mxu0 %v2681
  %3144 = vmatmul.mubr.f32.gmra.mrb[0].mxu0 %v2680
  %v3145 = vpop.f32.mrb[0].mxu0
  %v3146 = vadd.f32 %v3069, %v3145
  %v3147 = vpop.f32.mrb[0].mxu0
  %v3148 = vadd.f32 %v3071, %v3147
  %3149 = vdwg.mxu0
  %3150 = vmatprep.subr.mxu0 %v786
  %3151 = vmatpush1.msra.mxu0 %v785
  %3152 = vmatprep.subr.mxu0 %v790
  %3153 = vmatpush1.msra.mxu0 %v789
  %3154 = vmatprep.subr.mxu0 %v794
  %3155 = vmatpush1.msra.mxu0 %v793
  %3156 = vmatprep.subr.mxu0 %v798
  %3157 = vmatpush1.msra.mxu0 %v797
  %3158 = vmatprep.subr.mxu0 %v802
  %3159 = vmatpush1.msra.mxu0 %v801
  %3160 = vmatprep.subr.mxu0 %v806
  %3161 = vmatpush1.msra.mxu0 %v805
  %3162 = vmatprep.subr.mxu0 %v810
  %3163 = vmatpush1.msra.mxu0 %v809
  %3164 = vmatprep.subr.mxu0 %v814
  %3165 = vmatpush1.msra.mxu0 %v813
  %3166 = vmatprep.subr.mxu0 %v818
  %3167 = vmatpush1.msra.mxu0 %v817
  %3168 = vmatprep.subr.mxu0 %v822
  %3169 = vmatpush1.msra.mxu0 %v821
  %3170 = vmatprep.subr.mxu0 %v826
  %3171 = vmatpush1.msra.mxu0 %v825
  %3172 = vmatprep.subr.mxu0 %v830
  %3173 = vmatpush1.msra.mxu0 %v829
  %3174 = vmatprep.subr.mxu0 %v834
  %3175 = vmatpush1.msra.mxu0 %v833
  %3176 = vmatprep.subr.mxu0 %v838
  %3177 = vmatpush1.msra.mxu0 %v837
  %3178 = vmatprep.subr.mxu0 %v842
  %3179 = vmatpush1.msra.mxu0 %v841
  %3180 = vmatprep.subr.mxu0 %v846
  %3181 = vmatpush1.msra.mxu0 %v845
  %3182 = vmatprep.subr.mxu0 %v850
  %3183 = vmatpush1.msra.mxu0 %v849
  %3184 = vmatprep.subr.mxu0 %v854
  %3185 = vmatpush1.msra.mxu0 %v853
  %3186 = vmatprep.subr.mxu0 %v858
  %3187 = vmatpush1.msra.mxu0 %v857
  %3188 = vmatprep.subr.mxu0 %v862
  %3189 = vmatpush1.msra.mxu0 %v861
  %3190 = vmatprep.subr.mxu0 %v866
  %3191 = vmatpush1.msra.mxu0 %v865
  %3192 = vmatprep.subr.mxu0 %v870
  %3193 = vmatpush1.msra.mxu0 %v869
  %3194 = vmatprep.subr.mxu0 %v874
  %3195 = vmatpush1.msra.mxu0 %v873
  %3196 = vmatprep.subr.mxu0 %v878
  %3197 = vmatpush1.msra.mxu0 %v877
  %3198 = vmatprep.subr.mxu0 %v882
  %3199 = vmatpush1.msra.mxu0 %v881
  %3200 = vmatprep.subr.mxu0 %v886
  %3201 = vmatpush1.msra.mxu0 %v885
  %3202 = vmatprep.subr.mxu0 %v890
  %3203 = vmatpush1.msra.mxu0 %v889
  %3204 = vmatprep.subr.mxu0 %v894
  %3205 = vmatpush1.msra.mxu0 %v893
  %3206 = vmatprep.subr.mxu0 %v898
  %3207 = vmatpush1.msra.mxu0 %v897
  %3208 = vmatprep.subr.mxu0 %v902
  %3209 = vmatpush1.msra.mxu0 %v901
  %3210 = vmatprep.subr.mxu0 %v906
  %3211 = vmatpush1.msra.mxu0 %v905
  %3212 = vmatprep.subr.mxu0 %v910
  %3213 = vmatpush1.msra.mxu0 %v909
  %3214 = vmatprep.mubr.f32.mxu0 %v2665
  %3215 = vmatmul.mubr.f32.gmra.mrb[0].mxu0 %v2664
  %v3216 = vpop.f32.mrb[0].mxu0
  %v3217 = vadd.f32 %v3140, %v3216
  %v3218 = vpop.f32.mrb[0].mxu0
  %v3219 = vadd.f32 %v3142, %v3218
  %3220 = vmatprep.mubr.f32.mxu0 %v2683
  %3221 = vmatmul.mubr.f32.gmra.mrb[0].mxu0 %v2682
  %v3222 = vpop.f32.mrb[0].mxu0
  %v3223 = vadd.f32 %v3146, %v3222
  %v3224 = vpop.f32.mrb[0].mxu0
  %v3225 = vadd.f32 %v3148, %v3224
  %3226 = vdwg.mxu0
  %3227 = vmatprep.subr.mxu0 %v914
  %3228 = vmatpush1.msra.mxu0 %v913
  %3229 = vmatprep.subr.mxu0 %v918
  %3230 = vmatpush1.msra.mxu0 %v917
  %3231 = vmatprep.subr.mxu0 %v922
  %3232 = vmatpush1.msra.mxu0 %v921
  %3233 = vmatprep.subr.mxu0 %v926
  %3234 = vmatpush1.msra.mxu0 %v925
  %3235 = vmatprep.subr.mxu0 %v930
  %3236 = vmatpush1.msra.mxu0 %v929
  %3237 = vmatprep.subr.mxu0 %v934
  %3238 = vmatpush1.msra.mxu0 %v933
  %3239 = vmatprep.subr.mxu0 %v938
  %3240 = vmatpush1.msra.mxu0 %v937
  %3241 = vmatprep.subr.mxu0 %v942
  %3242 = vmatpush1.msra.mxu0 %v941
  %3243 = vmatprep.subr.mxu0 %v946
  %3244 = vmatpush1.msra.mxu0 %v945
  %3245 = vmatprep.subr.mxu0 %v950
  %3246 = vmatpush1.msra.mxu0 %v949
  %3247 = vmatprep.subr.mxu0 %v954
  %3248 = vmatpush1.msra.mxu0 %v953
  %3249 = vmatprep.subr.mxu0 %v958
  %3250 = vmatpush1.msra.mxu0 %v957
  %3251 = vmatprep.subr.mxu0 %v962
  %3252 = vmatpush1.msra.mxu0 %v961
  %3253 = vmatprep.subr.mxu0 %v966
  %3254 = vmatpush1.msra.mxu0 %v965
  %3255 = vmatprep.subr.mxu0 %v970
  %3256 = vmatpush1.msra.mxu0 %v969
  %3257 = vmatprep.subr.mxu0 %v974
  %3258 = vmatpush1.msra.mxu0 %v973
  %3259 = vmatprep.subr.mxu0 %v978
  %3260 = vmatpush1.msra.mxu0 %v977
  %3261 = vmatprep.subr.mxu0 %v982
  %3262 = vmatpush1.msra.mxu0 %v981
  %3263 = vmatprep.subr.mxu0 %v986
  %3264 = vmatpush1.msra.mxu0 %v985
  %3265 = vmatprep.subr.mxu0 %v990
  %3266 = vmatpush1.msra.mxu0 %v989
  %3267 = vmatprep.subr.mxu0 %v994
  %3268 = vmatpush1.msra.mxu0 %v993
  %3269 = vmatprep.subr.mxu0 %v998
  %3270 = vmatpush1.msra.mxu0 %v997
  %3271 = vmatprep.subr.mxu0 %v1002
  %3272 = vmatpush1.msra.mxu0 %v1001
  %3273 = vmatprep.subr.mxu0 %v1006
  %3274 = vmatpush1.msra.mxu0 %v1005
  %3275 = vmatprep.subr.mxu0 %v1010
  %3276 = vmatpush1.msra.mxu0 %v1009
  %3277 = vmatprep.subr.mxu0 %v1014
  %3278 = vmatpush1.msra.mxu0 %v1013
  %3279 = vmatprep.subr.mxu0 %v1018
  %3280 = vmatpush1.msra.mxu0 %v1017
  %3281 = vmatprep.subr.mxu0 %v1022
  %3282 = vmatpush1.msra.mxu0 %v1021
  %3283 = vmatprep.subr.mxu0 %v1026
  %3284 = vmatpush1.msra.mxu0 %v1025
  %3285 = vmatprep.subr.mxu0 %v1030
  %3286 = vmatpush1.msra.mxu0 %v1029
  %3287 = vmatprep.subr.mxu0 %v1034
  %3288 = vmatpush1.msra.mxu0 %v1033
  %3289 = vmatprep.subr.mxu0 %v1038
  %3290 = vmatpush1.msra.mxu0 %v1037
  %3291 = vmatprep.mubr.f32.mxu0 %v2667
  %3292 = vmatmul.mubr.f32.gmra.mrb[0].mxu0 %v2666
  %v3293 = vpop.f32.mrb[0].mxu0
  %v3294 = vadd.f32 %v3217, %v3293
  %v3295 = vpop.f32.mrb[0].mxu0
  %v3296 = vadd.f32 %v3219, %v3295
  %3297 = vmatprep.mubr.f32.mxu0 %v2685
  %3298 = vmatmul.mubr.f32.gmra.mrb[0].mxu0 %v2684
  %v3299 = vpop.f32.mrb[0].mxu0
  %v3300 = vadd.f32 %v3223, %v3299
  %v3301 = vpop.f32.mrb[0].mxu0
  %v3302 = vadd.f32 %v3225, %v3301
  %3303 = vdwg.mxu0
  %3304 = vmatprep.subr.mxu0 %v1042
  %3305 = vmatpush1.msra.mxu0 %v1041
  %3306 = vmatprep.subr.mxu0 %v1046
  %3307 = vmatpush1.msra.mxu0 %v1045
  %3308 = vmatprep.subr.mxu0 %v1050
  %3309 = vmatpush1.msra.mxu0 %v1049
  %3310 = vmatprep.subr.mxu0 %v1054
  %3311 = vmatpush1.msra.mxu0 %v1053
  %3312 = vmatprep.subr.mxu0 %v1058
  %3313 = vmatpush1.msra.mxu0 %v1057
  %3314 = vmatprep.subr.mxu0 %v1062
  %3315 = vmatpush1.msra.mxu0 %v1061
  %3316 = vmatprep.subr.mxu0 %v1066
  %3317 = vmatpush1.msra.mxu0 %v1065
  %3318 = vmatprep.subr.mxu0 %v1070
  %3319 = vmatpush1.msra.mxu0 %v1069
  %3320 = vmatprep.subr.mxu0 %v1074
  %3321 = vmatpush1.msra.mxu0 %v1073
  %3322 = vmatprep.subr.mxu0 %v1078
  %3323 = vmatpush1.msra.mxu0 %v1077
  %3324 = vmatprep.subr.mxu0 %v1082
  %3325 = vmatpush1.msra.mxu0 %v1081
  %3326 = vmatprep.subr.mxu0 %v1086
  %3327 = vmatpush1.msra.mxu0 %v1085
  %3328 = vmatprep.subr.mxu0 %v1090
  %3329 = vmatpush1.msra.mxu0 %v1089
  %3330 = vmatprep.subr.mxu0 %v1094
  %3331 = vmatpush1.msra.mxu0 %v1093
  %3332 = vmatprep.subr.mxu0 %v1098
  %3333 = vmatpush1.msra.mxu0 %v1097
  %3334 = vmatprep.subr.mxu0 %v1102
  %3335 = vmatpush1.msra.mxu0 %v1101
  %3336 = vmatprep.subr.mxu0 %v1106
  %3337 = vmatpush1.msra.mxu0 %v1105
  %3338 = vmatprep.subr.mxu0 %v1110
  %3339 = vmatpush1.msra.mxu0 %v1109
  %3340 = vmatprep.subr.mxu0 %v1114
  %3341 = vmatpush1.msra.mxu0 %v1113
  %3342 = vmatprep.subr.mxu0 %v1118
  %3343 = vmatpush1.msra.mxu0 %v1117
  %3344 = vmatprep.subr.mxu0 %v1122
  %3345 = vmatpush1.msra.mxu0 %v1121
  %3346 = vmatprep.subr.mxu0 %v1126
  %3347 = vmatpush1.msra.mxu0 %v1125
  %3348 = vmatprep.subr.mxu0 %v1130
  %3349 = vmatpush1.msra.mxu0 %v1129
  %3350 = vmatprep.subr.mxu0 %v1134
  %3351 = vmatpush1.msra.mxu0 %v1133
  %3352 = vmatprep.subr.mxu0 %v1138
  %3353 = vmatpush1.msra.mxu0 %v1137
  %3354 = vmatprep.subr.mxu0 %v1142
  %3355 = vmatpush1.msra.mxu0 %v1141
  %3356 = vmatprep.subr.mxu0 %v1146
  %3357 = vmatpush1.msra.mxu0 %v1145
  %3358 = vmatprep.subr.mxu0 %v1150
  %3359 = vmatpush1.msra.mxu0 %v1149
  %3360 = vmatprep.subr.mxu0 %v1154
  %3361 = vmatpush1.msra.mxu0 %v1153
  %3362 = vmatprep.subr.mxu0 %v1158
  %3363 = vmatpush1.msra.mxu0 %v1157
  %3364 = vmatprep.subr.mxu0 %v1162
  %3365 = vmatpush1.msra.mxu0 %v1161
  %3366 = vmatprep.subr.mxu0 %v1166
  %3367 = vmatpush1.msra.mxu0 %v1165
  %3368 = vmatprep.mubr.f32.mxu0 %v2669
  %3369 = vmatmul.mubr.f32.gmra.mrb[0].mxu0 %v2668
  %v3370 = vpop.f32.mrb[0].mxu0
  %v3371 = vadd.f32 %v3294, %v3370
  %v3372 = vpop.f32.mrb[0].mxu0
  %v3373 = vadd.f32 %v3296, %v3372
  %3374 = vmatprep.mubr.f32.mxu0 %v2687
  %3375 = vmatmul.mubr.f32.gmra.mrb[0].mxu0 %v2686
  %v3376 = vpop.f32.mrb[0].mxu0
  %v3377 = vadd.f32 %v3300, %v3376
  %v3378 = vpop.f32.mrb[0].mxu0
  %v3379 = vadd.f32 %v3302, %v3378
  %3380 = vdwg.mxu0
  %3381 = vmatprep.subr.mxu0 %v20
  %3382 = vmatpush1.msra.mxu0 %v19
  %3383 = vmatprep.subr.mxu0 %v24
  %3384 = vmatpush1.msra.mxu0 %v23
  %3385 = vmatprep.subr.mxu0 %v28
  %3386 = vmatpush1.msra.mxu0 %v27
  %3387 = vmatprep.subr.mxu0 %v32
  %3388 = vmatpush1.msra.mxu0 %v31
  %3389 = vmatprep.subr.mxu0 %v36
  %3390 = vmatpush1.msra.mxu0 %v35
  %3391 = vmatprep.subr.mxu0 %v40
  %3392 = vmatpush1.msra.mxu0 %v39
  %3393 = vmatprep.subr.mxu0 %v44
  %3394 = vmatpush1.msra.mxu0 %v43
  %3395 = vmatprep.subr.mxu0 %v48
  %3396 = vmatpush1.msra.mxu0 %v47
  %3397 = vmatprep.subr.mxu0 %v52
  %3398 = vmatpush1.msra.mxu0 %v51
  %3399 = vmatprep.subr.mxu0 %v56
  %3400 = vmatpush1.msra.mxu0 %v55
  %3401 = vmatprep.subr.mxu0 %v60
  %3402 = vmatpush1.msra.mxu0 %v59
  %3403 = vmatprep.subr.mxu0 %v64
  %3404 = vmatpush1.msra.mxu0 %v63
  %3405 = vmatprep.subr.mxu0 %v68
  %3406 = vmatpush1.msra.mxu0 %v67
  %3407 = vmatprep.subr.mxu0 %v72
  %3408 = vmatpush1.msra.mxu0 %v71
  %3409 = vmatprep.subr.mxu0 %v76
  %3410 = vmatpush1.msra.mxu0 %v75
  %3411 = vmatprep.subr.mxu0 %v80
  %3412 = vmatpush1.msra.mxu0 %v79
  %3413 = vmatprep.subr.mxu0 %v84
  %3414 = vmatpush1.msra.mxu0 %v83
  %3415 = vmatprep.subr.mxu0 %v88
  %3416 = vmatpush1.msra.mxu0 %v87
  %3417 = vmatprep.subr.mxu0 %v92
  %3418 = vmatpush1.msra.mxu0 %v91
  %3419 = vmatprep.subr.mxu0 %v96
  %3420 = vmatpush1.msra.mxu0 %v95
  %3421 = vmatprep.subr.mxu0 %v100
  %3422 = vmatpush1.msra.mxu0 %v99
  %3423 = vmatprep.subr.mxu0 %v104
  %3424 = vmatpush1.msra.mxu0 %v103
  %3425 = vmatprep.subr.mxu0 %v108
  %3426 = vmatpush1.msra.mxu0 %v107
  %3427 = vmatprep.subr.mxu0 %v112
  %3428 = vmatpush1.msra.mxu0 %v111
  %3429 = vmatprep.subr.mxu0 %v116
  %3430 = vmatpush1.msra.mxu0 %v115
  %3431 = vmatprep.subr.mxu0 %v120
  %3432 = vmatpush1.msra.mxu0 %v119
  %3433 = vmatprep.subr.mxu0 %v124
  %3434 = vmatpush1.msra.mxu0 %v123
  %3435 = vmatprep.subr.mxu0 %v128
  %3436 = vmatpush1.msra.mxu0 %v127
  %3437 = vmatprep.subr.mxu0 %v132
  %3438 = vmatpush1.msra.mxu0 %v131
  %3439 = vmatprep.subr.mxu0 %v136
  %3440 = vmatpush1.msra.mxu0 %v135
  %3441 = vmatprep.subr.mxu0 %v140
  %3442 = vmatpush1.msra.mxu0 %v139
  %3443 = vmatprep.subr.mxu0 %v144
  %3444 = vmatpush1.msra.mxu0 %v143
  %3445 = vmatprep.mubr.f32.mxu0 %v2653
  %3446 = vmatmul.mubr.f32.gmra.mrb[0].mxu0 %v2652
  %v3447 = vpop.f32.mrb[0].mxu0
  %v3448 = vadd.f32 0.0, %v3447
  %v3449 = vpop.f32.mrb[0].mxu0
  %v3450 = vadd.f32 0.0, %v3449
  %3451 = vmatprep.mubr.f32.mxu0 %v2671
  %3452 = vmatmul.mubr.f32.gmra.mrb[0].mxu0 %v2670
  %v3453 = vpop.f32.mrb[0].mxu0
  %v3454 = vadd.f32 0.0, %v3453
  %v3455 = vpop.f32.mrb[0].mxu0
  %v3456 = vadd.f32 0.0, %v3455
  %3457 = vdwg.mxu0
  %3458 = vmatprep.subr.mxu0 %v148
  %3459 = vmatpush1.msra.mxu0 %v147
  %3460 = vmatprep.subr.mxu0 %v152
  %3461 = vmatpush1.msra.mxu0 %v151
  %3462 = vmatprep.subr.mxu0 %v156
  %3463 = vmatpush1.msra.mxu0 %v155
  %3464 = vmatprep.subr.mxu0 %v160
  %3465 = vmatpush1.msra.mxu0 %v159
  %3466 = vmatprep.subr.mxu0 %v164
  %3467 = vmatpush1.msra.mxu0 %v163
  %3468 = vmatprep.subr.mxu0 %v168
  %3469 = vmatpush1.msra.mxu0 %v167
  %3470 = vmatprep.subr.mxu0 %v172
  %3471 = vmatpush1.msra.mxu0 %v171
  %3472 = vmatprep.subr.mxu0 %v176
  %3473 = vmatpush1.msra.mxu0 %v175
  %3474 = vmatprep.subr.mxu0 %v180
  %3475 = vmatpush1.msra.mxu0 %v179
  %3476 = vmatprep.subr.mxu0 %v184
  %3477 = vmatpush1.msra.mxu0 %v183
  %3478 = vmatprep.subr.mxu0 %v188
  %3479 = vmatpush1.msra.mxu0 %v187
  %3480 = vmatprep.subr.mxu0 %v192
  %3481 = vmatpush1.msra.mxu0 %v191
  %3482 = vmatprep.subr.mxu0 %v196
  %3483 = vmatpush1.msra.mxu0 %v195
  %3484 = vmatprep.subr.mxu0 %v200
  %3485 = vmatpush1.msra.mxu0 %v199
  %3486 = vmatprep.subr.mxu0 %v204
  %3487 = vmatpush1.msra.mxu0 %v203
  %3488 = vmatprep.subr.mxu0 %v208
  %3489 = vmatpush1.msra.mxu0 %v207
  %3490 = vmatprep.subr.mxu0 %v212
  %3491 = vmatpush1.msra.mxu0 %v211
  %3492 = vmatprep.subr.mxu0 %v216
  %3493 = vmatpush1.msra.mxu0 %v215
  %3494 = vmatprep.subr.mxu0 %v220
  %3495 = vmatpush1.msra.mxu0 %v219
  %3496 = vmatprep.subr.mxu0 %v224
  %3497 = vmatpush1.msra.mxu0 %v223
  %3498 = vmatprep.subr.mxu0 %v228
  %3499 = vmatpush1.msra.mxu0 %v227
  %3500 = vmatprep.subr.mxu0 %v232
  %3501 = vmatpush1.msra.mxu0 %v231
  %3502 = vmatprep.subr.mxu0 %v236
  %3503 = vmatpush1.msra.mxu0 %v235
  %3504 = vmatprep.subr.mxu0 %v240
  %3505 = vmatpush1.msra.mxu0 %v239
  %3506 = vmatprep.subr.mxu0 %v244
  %3507 = vmatpush1.msra.mxu0 %v243
  %3508 = vmatprep.subr.mxu0 %v248
  %3509 = vmatpush1.msra.mxu0 %v247
  %3510 = vmatprep.subr.mxu0 %v252
  %3511 = vmatpush1.msra.mxu0 %v251
  %3512 = vmatprep.subr.mxu0 %v256
  %3513 = vmatpush1.msra.mxu0 %v255
  %3514 = vmatprep.subr.mxu0 %v260
  %3515 = vmatpush1.msra.mxu0 %v259
  %3516 = vmatprep.subr.mxu0 %v264
  %3517 = vmatpush1.msra.mxu0 %v263
  %3518 = vmatprep.subr.mxu0 %v268
  %3519 = vmatpush1.msra.mxu0 %v267
  %3520 = vmatprep.subr.mxu0 %v272
  %3521 = vmatpush1.msra.mxu0 %v271
  %3522 = vmatprep.mubr.f32.mxu0 %v2655
  %3523 = vmatmul.mubr.f32.gmra.mrb[0].mxu0 %v2654
  %v3524 = vpop.f32.mrb[0].mxu0
  %v3525 = vadd.f32 %v3448, %v3524
  %v3526 = vpop.f32.mrb[0].mxu0
  %v3527 = vadd.f32 %v3450, %v3526
  %3528 = vmatprep.mubr.f32.mxu0 %v2673
  %3529 = vmatmul.mubr.f32.gmra.mrb[0].mxu0 %v2672
  %v3530 = vpop.f32.mrb[0].mxu0
  %v3531 = vadd.f32 %v3454, %v3530
  %v3532 = vpop.f32.mrb[0].mxu0
  %v3533 = vadd.f32 %v3456, %v3532
  %3534 = vdwg.mxu0
  %3535 = vmatprep.subr.mxu0 %v276
  %3536 = vmatpush1.msra.mxu0 %v275
  %3537 = vmatprep.subr.mxu0 %v280
  %3538 = vmatpush1.msra.mxu0 %v279
  %3539 = vmatprep.subr.mxu0 %v284
  %3540 = vmatpush1.msra.mxu0 %v283
  %3541 = vmatprep.subr.mxu0 %v288
  %3542 = vmatpush1.msra.mxu0 %v287
  %3543 = vmatprep.subr.mxu0 %v292
  %3544 = vmatpush1.msra.mxu0 %v291
  %3545 = vmatprep.subr.mxu0 %v296
  %3546 = vmatpush1.msra.mxu0 %v295
  %3547 = vmatprep.subr.mxu0 %v300
  %3548 = vmatpush1.msra.mxu0 %v299
  %3549 = vmatprep.subr.mxu0 %v304
  %3550 = vmatpush1.msra.mxu0 %v303
  %3551 = vmatprep.subr.mxu0 %v308
  %3552 = vmatpush1.msra.mxu0 %v307
  %3553 = vmatprep.subr.mxu0 %v312
  %3554 = vmatpush1.msra.mxu0 %v311
  %3555 = vmatprep.subr.mxu0 %v316
  %3556 = vmatpush1.msra.mxu0 %v315
  %3557 = vmatprep.subr.mxu0 %v320
  %3558 = vmatpush1.msra.mxu0 %v319
  %3559 = vmatprep.subr.mxu0 %v324
  %3560 = vmatpush1.msra.mxu0 %v323
  %3561 = vmatprep.subr.mxu0 %v328
  %3562 = vmatpush1.msra.mxu0 %v327
  %3563 = vmatprep.subr.mxu0 %v332
  %3564 = vmatpush1.msra.mxu0 %v331
  %3565 = vmatprep.subr.mxu0 %v336
  %3566 = vmatpush1.msra.mxu0 %v335
  %3567 = vmatprep.subr.mxu0 %v340
  %3568 = vmatpush1.msra.mxu0 %v339
  %3569 = vmatprep.subr.mxu0 %v344
  %3570 = vmatpush1.msra.mxu0 %v343
  %3571 = vmatprep.subr.mxu0 %v348
  %3572 = vmatpush1.msra.mxu0 %v347
  %3573 = vmatprep.subr.mxu0 %v352
  %3574 = vmatpush1.msra.mxu0 %v351
  %3575 = vmatprep.subr.mxu0 %v356
  %3576 = vmatpush1.msra.mxu0 %v355
  %3577 = vmatprep.subr.mxu0 %v360
  %3578 = vmatpush1.msra.mxu0 %v359
  %3579 = vmatprep.subr.mxu0 %v364
  %3580 = vmatpush1.msra.mxu0 %v363
  %3581 = vmatprep.subr.mxu0 %v368
  %3582 = vmatpush1.msra.mxu0 %v367
  %3583 = vmatprep.subr.mxu0 %v372
  %3584 = vmatpush1.msra.mxu0 %v371
  %3585 = vmatprep.subr.mxu0 %v376
  %3586 = vmatpush1.msra.mxu0 %v375
  %3587 = vmatprep.subr.mxu0 %v380
  %3588 = vmatpush1.msra.mxu0 %v379
  %3589 = vmatprep.subr.mxu0 %v384
  %3590 = vmatpush1.msra.mxu0 %v383
  %3591 = vmatprep.subr.mxu0 %v388
  %3592 = vmatpush1.msra.mxu0 %v387
  %3593 = vmatprep.subr.mxu0 %v392
  %3594 = vmatpush1.msra.mxu0 %v391
  %3595 = vmatprep.subr.mxu0 %v396
  %3596 = vmatpush1.msra.mxu0 %v395
  %3597 = vmatprep.subr.mxu0 %v400
  %3598 = vmatpush1.msra.mxu0 %v399
  %3599 = vmatprep.mubr.f32.mxu0 %v2657
  %3600 = vmatmul.mubr.f32.gmra.mrb[0].mxu0 %v2656
  %v3601 = vpop.f32.mrb[0].mxu0
  %v3602 = vadd.f32 %v3525, %v3601
  %v3603 = vpop.f32.mrb[0].mxu0
  %v3604 = vadd.f32 %v3527, %v3603
  %3605 = vmatprep.mubr.f32.mxu0 %v2675
  %3606 = vmatmul.mubr.f32.gmra.mrb[0].mxu0 %v2674
  %v3607 = vpop.f32.mrb[0].mxu0
  %v3608 = vadd.f32 %v3531, %v3607
  %v3609 = vpop.f32.mrb[0].mxu0
  %v3610 = vadd.f32 %v3533, %v3609
  %3611 = vdwg.mxu0
  %3612 = vmatprep.subr.mxu0 %v404
  %3613 = vmatpush1.msra.mxu0 %v403
  %3614 = vmatprep.subr.mxu0 %v408
  %3615 = vmatpush1.msra.mxu0 %v407
  %3616 = vmatprep.subr.mxu0 %v412
  %3617 = vmatpush1.msra.mxu0 %v411
  %3618 = vmatprep.subr.mxu0 %v416
  %3619 = vmatpush1.msra.mxu0 %v415
  %3620 = vmatprep.subr.mxu0 %v420
  %3621 = vmatpush1.msra.mxu0 %v419
  %3622 = vmatprep.subr.mxu0 %v424
  %3623 = vmatpush1.msra.mxu0 %v423
  %3624 = vmatprep.subr.mxu0 %v428
  %3625 = vmatpush1.msra.mxu0 %v427
  %3626 = vmatprep.subr.mxu0 %v432
  %3627 = vmatpush1.msra.mxu0 %v431
  %3628 = vmatprep.subr.mxu0 %v436
  %3629 = vmatpush1.msra.mxu0 %v435
  %3630 = vmatprep.subr.mxu0 %v440
  %3631 = vmatpush1.msra.mxu0 %v439
  %3632 = vmatprep.subr.mxu0 %v444
  %3633 = vmatpush1.msra.mxu0 %v443
  %3634 = vmatprep.subr.mxu0 %v448
  %3635 = vmatpush1.msra.mxu0 %v447
  %3636 = vmatprep.subr.mxu0 %v452
  %3637 = vmatpush1.msra.mxu0 %v451
  %3638 = vmatprep.subr.mxu0 %v456
  %3639 = vmatpush1.msra.mxu0 %v455
  %3640 = vmatprep.subr.mxu0 %v460
  %3641 = vmatpush1.msra.mxu0 %v459
  %3642 = vmatprep.subr.mxu0 %v464
  %3643 = vmatpush1.msra.mxu0 %v463
  %3644 = vmatprep.subr.mxu0 %v468
  %3645 = vmatpush1.msra.mxu0 %v467
  %3646 = vmatprep.subr.mxu0 %v472
  %3647 = vmatpush1.msra.mxu0 %v471
  %3648 = vmatprep.subr.mxu0 %v476
  %3649 = vmatpush1.msra.mxu0 %v475
  %3650 = vmatprep.subr.mxu0 %v480
  %3651 = vmatpush1.msra.mxu0 %v479
  %3652 = vmatprep.subr.mxu0 %v484
  %3653 = vmatpush1.msra.mxu0 %v483
  %3654 = vmatprep.subr.mxu0 %v488
  %3655 = vmatpush1.msra.mxu0 %v487
  %3656 = vmatprep.subr.mxu0 %v492
  %3657 = vmatpush1.msra.mxu0 %v491
  %3658 = vmatprep.subr.mxu0 %v496
  %3659 = vmatpush1.msra.mxu0 %v495
  %3660 = vmatprep.subr.mxu0 %v500
  %3661 = vmatpush1.msra.mxu0 %v499
  %3662 = vmatprep.subr.mxu0 %v504
  %3663 = vmatpush1.msra.mxu0 %v503
  %3664 = vmatprep.subr.mxu0 %v508
  %3665 = vmatpush1.msra.mxu0 %v507
  %3666 = vmatprep.subr.mxu0 %v512
  %3667 = vmatpush1.msra.mxu0 %v511
  %3668 = vmatprep.subr.mxu0 %v516
  %3669 = vmatpush1.msra.mxu0 %v515
  %3670 = vmatprep.subr.mxu0 %v520
  %3671 = vmatpush1.msra.mxu0 %v519
  %3672 = vmatprep.subr.mxu0 %v524
  %3673 = vmatpush1.msra.mxu0 %v523
  %3674 = vmatprep.subr.mxu0 %v528
  %3675 = vmatpush1.msra.mxu0 %v527
  %3676 = vmatprep.mubr.f32.mxu0 %v2659
  %3677 = vmatmul.mubr.f32.gmra.mrb[0].mxu0 %v2658
  %v3678 = vpop.f32.mrb[0].mxu0
  %v3679 = vadd.f32 %v3602, %v3678
  %v3680 = vpop.f32.mrb[0].mxu0
  %v3681 = vadd.f32 %v3604, %v3680
  %3682 = vmatprep.mubr.f32.mxu0 %v2677
  %3683 = vmatmul.mubr.f32.gmra.mrb[0].mxu0 %v2676
  %v3684 = vpop.f32.mrb[0].mxu0
  %v3685 = vadd.f32 %v3608, %v3684
  %v3686 = vpop.f32.mrb[0].mxu0
  %v3687 = vadd.f32 %v3610, %v3686
  %3688 = vdwg.mxu0
  %3689 = vmatprep.subr.mxu0 %v532
  %3690 = vmatpush1.msra.mxu0 %v531
  %3691 = vmatprep.subr.mxu0 %v536
  %3692 = vmatpush1.msra.mxu0 %v535
  %3693 = vmatprep.subr.mxu0 %v540
  %3694 = vmatpush1.msra.mxu0 %v539
  %3695 = vmatprep.subr.mxu0 %v544
  %3696 = vmatpush1.msra.mxu0 %v543
  %3697 = vmatprep.subr.mxu0 %v548
  %3698 = vmatpush1.msra.mxu0 %v547
  %3699 = vmatprep.subr.mxu0 %v552
  %3700 = vmatpush1.msra.mxu0 %v551
  %3701 = vmatprep.subr.mxu0 %v556
  %3702 = vmatpush1.msra.mxu0 %v555
  %3703 = vmatprep.subr.mxu0 %v560
  %3704 = vmatpush1.msra.mxu0 %v559
  %3705 = vmatprep.subr.mxu0 %v564
  %3706 = vmatpush1.msra.mxu0 %v563
  %3707 = vmatprep.subr.mxu0 %v568
  %3708 = vmatpush1.msra.mxu0 %v567
  %3709 = vmatprep.subr.mxu0 %v572
  %3710 = vmatpush1.msra.mxu0 %v571
  %3711 = vmatprep.subr.mxu0 %v576
  %3712 = vmatpush1.msra.mxu0 %v575
  %3713 = vmatprep.subr.mxu0 %v580
  %3714 = vmatpush1.msra.mxu0 %v579
  %3715 = vmatprep.subr.mxu0 %v584
  %3716 = vmatpush1.msra.mxu0 %v583
  %3717 = vmatprep.subr.mxu0 %v588
  %3718 = vmatpush1.msra.mxu0 %v587
  %3719 = vmatprep.subr.mxu0 %v592
  %3720 = vmatpush1.msra.mxu0 %v591
  %3721 = vmatprep.subr.mxu0 %v596
  %3722 = vmatpush1.msra.mxu0 %v595
  %3723 = vmatprep.subr.mxu0 %v600
  %3724 = vmatpush1.msra.mxu0 %v599
  %3725 = vmatprep.subr.mxu0 %v604
  %3726 = vmatpush1.msra.mxu0 %v603
  %3727 = vmatprep.subr.mxu0 %v608
  %3728 = vmatpush1.msra.mxu0 %v607
  %3729 = vmatprep.subr.mxu0 %v612
  %3730 = vmatpush1.msra.mxu0 %v611
  %3731 = vmatprep.subr.mxu0 %v616
  %3732 = vmatpush1.msra.mxu0 %v615
  %3733 = vmatprep.subr.mxu0 %v620
  %3734 = vmatpush1.msra.mxu0 %v619
  %3735 = vmatprep.subr.mxu0 %v624
  %3736 = vmatpush1.msra.mxu0 %v623
  %3737 = vmatprep.subr.mxu0 %v628
  %3738 = vmatpush1.msra.mxu0 %v627
  %3739 = vmatprep.subr.mxu0 %v632
  %3740 = vmatpush1.msra.mxu0 %v631
  %3741 = vmatprep.subr.mxu0 %v636
  %3742 = vmatpush1.msra.mxu0 %v635
  %3743 = vmatprep.subr.mxu0 %v640
  %3744 = vmatpush1.msra.mxu0 %v639
  %3745 = vmatprep.subr.mxu0 %v644
  %3746 = vmatpush1.msra.mxu0 %v643
  %3747 = vmatprep.subr.mxu0 %v648
  %3748 = vmatpush1.msra.mxu0 %v647
  %3749 = vmatprep.subr.mxu0 %v652
  %3750 = vmatpush1.msra.mxu0 %v651
  %3751 = vmatprep.subr.mxu0 %v656
  %3752 = vmatpush1.msra.mxu0 %v655
  %3753 = vmatprep.mubr.f32.mxu0 %v2661
  %3754 = vmatmul.mubr.f32.gmra.mrb[0].mxu0 %v2660
  %v3755 = vpop.f32.mrb[0].mxu0
  %v3756 = vadd.f32 %v3679, %v3755
  %v3757 = vpop.f32.mrb[0].mxu0
  %v3758 = vadd.f32 %v3681, %v3757
  %3759 = vmatprep.mubr.f32.mxu0 %v2679
  %3760 = vmatmul.mubr.f32.gmra.mrb[0].mxu0 %v2678
  %v3761 = vpop.f32.mrb[0].mxu0
  %v3762 = vadd.f32 %v3685, %v3761
  %v3763 = vpop.f32.mrb[0].mxu0
  %v3764 = vadd.f32 %v3687, %v3763
  %3765 = vdwg.mxu0
  %3766 = vmatprep.subr.mxu0 %v660
  %3767 = vmatpush1.msra.mxu0 %v659
  %3768 = vmatprep.subr.mxu0 %v664
  %3769 = vmatpush1.msra.mxu0 %v663
  %3770 = vmatprep.subr.mxu0 %v668
  %3771 = vmatpush1.msra.mxu0 %v667
  %3772 = vmatprep.subr.mxu0 %v672
  %3773 = vmatpush1.msra.mxu0 %v671
  %3774 = vmatprep.subr.mxu0 %v676
  %3775 = vmatpush1.msra.mxu0 %v675
  %3776 = vmatprep.subr.mxu0 %v680
  %3777 = vmatpush1.msra.mxu0 %v679
  %3778 = vmatprep.subr.mxu0 %v684
  %3779 = vmatpush1.msra.mxu0 %v683
  %3780 = vmatprep.subr.mxu0 %v688
  %3781 = vmatpush1.msra.mxu0 %v687
  %3782 = vmatprep.subr.mxu0 %v692
  %3783 = vmatpush1.msra.mxu0 %v691
  %3784 = vmatprep.subr.mxu0 %v696
  %3785 = vmatpush1.msra.mxu0 %v695
  %3786 = vmatprep.subr.mxu0 %v700
  %3787 = vmatpush1.msra.mxu0 %v699
  %3788 = vmatprep.subr.mxu0 %v704
  %3789 = vmatpush1.msra.mxu0 %v703
  %3790 = vmatprep.subr.mxu0 %v708
  %3791 = vmatpush1.msra.mxu0 %v707
  %3792 = vmatprep.subr.mxu0 %v712
  %3793 = vmatpush1.msra.mxu0 %v711
  %3794 = vmatprep.subr.mxu0 %v716
  %3795 = vmatpush1.msra.mxu0 %v715
  %3796 = vmatprep.subr.mxu0 %v720
  %3797 = vmatpush1.msra.mxu0 %v719
  %3798 = vmatprep.subr.mxu0 %v724
  %3799 = vmatpush1.msra.mxu0 %v723
  %3800 = vmatprep.subr.mxu0 %v728
  %3801 = vmatpush1.msra.mxu0 %v727
  %3802 = vmatprep.subr.mxu0 %v732
  %3803 = vmatpush1.msra.mxu0 %v731
  %3804 = vmatprep.subr.mxu0 %v736
  %3805 = vmatpush1.msra.mxu0 %v735
  %3806 = vmatprep.subr.mxu0 %v740
  %3807 = vmatpush1.msra.mxu0 %v739
  %3808 = vmatprep.subr.mxu0 %v744
  %3809 = vmatpush1.msra.mxu0 %v743
  %3810 = vmatprep.subr.mxu0 %v748
  %3811 = vmatpush1.msra.mxu0 %v747
  %3812 = vmatprep.subr.mxu0 %v752
  %3813 = vmatpush1.msra.mxu0 %v751
  %3814 = vmatprep.subr.mxu0 %v756
  %3815 = vmatpush1.msra.mxu0 %v755
  %3816 = vmatprep.subr.mxu0 %v760
  %3817 = vmatpush1.msra.mxu0 %v759
  %3818 = vmatprep.subr.mxu0 %v764
  %3819 = vmatpush1.msra.mxu0 %v763
  %3820 = vmatprep.subr.mxu0 %v768
  %3821 = vmatpush1.msra.mxu0 %v767
  %3822 = vmatprep.subr.mxu0 %v772
  %3823 = vmatpush1.msra.mxu0 %v771
  %3824 = vmatprep.subr.mxu0 %v776
  %3825 = vmatpush1.msra.mxu0 %v775
  %3826 = vmatprep.subr.mxu0 %v780
  %3827 = vmatpush1.msra.mxu0 %v779
  %3828 = vmatprep.subr.mxu0 %v784
  %3829 = vmatpush1.msra.mxu0 %v783
  %3830 = vmatprep.mubr.f32.mxu0 %v2663
  %3831 = vmatmul.mubr.f32.gmra.mrb[0].mxu0 %v2662
  %v3832 = vpop.f32.mrb[0].mxu0
  %v3833 = vadd.f32 %v3756, %v3832
  %v3834 = vpop.f32.mrb[0].mxu0
  %v3835 = vadd.f32 %v3758, %v3834
  %3836 = vmatprep.mubr.f32.mxu0 %v2681
  %3837 = vmatmul.mubr.f32.gmra.mrb[0].mxu0 %v2680
  %v3838 = vpop.f32.mrb[0].mxu0
  %v3839 = vadd.f32 %v3762, %v3838
  %v3840 = vpop.f32.mrb[0].mxu0
  %v3841 = vadd.f32 %v3764, %v3840
  %3842 = vdwg.mxu0
  %3843 = vmatprep.subr.mxu0 %v788
  %3844 = vmatpush1.msra.mxu0 %v787
  %3845 = vmatprep.subr.mxu0 %v792
  %3846 = vmatpush1.msra.mxu0 %v791
  %3847 = vmatprep.subr.mxu0 %v796
  %3848 = vmatpush1.msra.mxu0 %v795
  %3849 = vmatprep.subr.mxu0 %v800
  %3850 = vmatpush1.msra.mxu0 %v799
  %3851 = vmatprep.subr.mxu0 %v804
  %3852 = vmatpush1.msra.mxu0 %v803
  %3853 = vmatprep.subr.mxu0 %v808
  %3854 = vmatpush1.msra.mxu0 %v807
  %3855 = vmatprep.subr.mxu0 %v812
  %3856 = vmatpush1.msra.mxu0 %v811
  %3857 = vmatprep.subr.mxu0 %v816
  %3858 = vmatpush1.msra.mxu0 %v815
  %3859 = vmatprep.subr.mxu0 %v820
  %3860 = vmatpush1.msra.mxu0 %v819
  %3861 = vmatprep.subr.mxu0 %v824
  %3862 = vmatpush1.msra.mxu0 %v823
  %3863 = vmatprep.subr.mxu0 %v828
  %3864 = vmatpush1.msra.mxu0 %v827
  %3865 = vmatprep.subr.mxu0 %v832
  %3866 = vmatpush1.msra.mxu0 %v831
  %3867 = vmatprep.subr.mxu0 %v836
  %3868 = vmatpush1.msra.mxu0 %v835
  %3869 = vmatprep.subr.mxu0 %v840
  %3870 = vmatpush1.msra.mxu0 %v839
  %3871 = vmatprep.subr.mxu0 %v844
  %3872 = vmatpush1.msra.mxu0 %v843
  %3873 = vmatprep.subr.mxu0 %v848
  %3874 = vmatpush1.msra.mxu0 %v847
  %3875 = vmatprep.subr.mxu0 %v852
  %3876 = vmatpush1.msra.mxu0 %v851
  %3877 = vmatprep.subr.mxu0 %v856
  %3878 = vmatpush1.msra.mxu0 %v855
  %3879 = vmatprep.subr.mxu0 %v860
  %3880 = vmatpush1.msra.mxu0 %v859
  %3881 = vmatprep.subr.mxu0 %v864
  %3882 = vmatpush1.msra.mxu0 %v863
  %3883 = vmatprep.subr.mxu0 %v868
  %3884 = vmatpush1.msra.mxu0 %v867
  %3885 = vmatprep.subr.mxu0 %v872
  %3886 = vmatpush1.msra.mxu0 %v871
  %3887 = vmatprep.subr.mxu0 %v876
  %3888 = vmatpush1.msra.mxu0 %v875
  %3889 = vmatprep.subr.mxu0 %v880
  %3890 = vmatpush1.msra.mxu0 %v879
  %3891 = vmatprep.subr.mxu0 %v884
  %3892 = vmatpush1.msra.mxu0 %v883
  %3893 = vmatprep.subr.mxu0 %v888
  %3894 = vmatpush1.msra.mxu0 %v887
  %3895 = vmatprep.subr.mxu0 %v892
  %3896 = vmatpush1.msra.mxu0 %v891
  %3897 = vmatprep.subr.mxu0 %v896
  %3898 = vmatpush1.msra.mxu0 %v895
  %3899 = vmatprep.subr.mxu0 %v900
  %3900 = vmatpush1.msra.mxu0 %v899
  %3901 = vmatprep.subr.mxu0 %v904
  %3902 = vmatpush1.msra.mxu0 %v903
  %3903 = vmatprep.subr.mxu0 %v908
  %3904 = vmatpush1.msra.mxu0 %v907
  %3905 = vmatprep.subr.mxu0 %v912
  %3906 = vmatpush1.msra.mxu0 %v911
  %3907 = vmatprep.mubr.f32.mxu0 %v2665
  %3908 = vmatmul.mubr.f32.gmra.mrb[0].mxu0 %v2664
  %v3909 = vpop.f32.mrb[0].mxu0
  %v3910 = vadd.f32 %v3833, %v3909
  %v3911 = vpop.f32.mrb[0].mxu0
  %v3912 = vadd.f32 %v3835, %v3911
  %3913 = vmatprep.mubr.f32.mxu0 %v2683
  %3914 = vmatmul.mubr.f32.gmra.mrb[0].mxu0 %v2682
  %v3915 = vpop.f32.mrb[0].mxu0
  %v3916 = vadd.f32 %v3839, %v3915
  %v3917 = vpop.f32.mrb[0].mxu0
  %v3918 = vadd.f32 %v3841, %v3917
  %3919 = vdwg.mxu0
  %3920 = vmatprep.subr.mxu0 %v916
  %3921 = vmatpush1.msra.mxu0 %v915
  %3922 = vmatprep.subr.mxu0 %v920
  %3923 = vmatpush1.msra.mxu0 %v919
  %3924 = vmatprep.subr.mxu0 %v924
  %3925 = vmatpush1.msra.mxu0 %v923
  %3926 = vmatprep.subr.mxu0 %v928
  %3927 = vmatpush1.msra.mxu0 %v927
  %3928 = vmatprep.subr.mxu0 %v932
  %3929 = vmatpush1.msra.mxu0 %v931
  %3930 = vmatprep.subr.mxu0 %v936
  %3931 = vmatpush1.msra.mxu0 %v935
  %3932 = vmatprep.subr.mxu0 %v940
  %3933 = vmatpush1.msra.mxu0 %v939
  %3934 = vmatprep.subr.mxu0 %v944
  %3935 = vmatpush1.msra.mxu0 %v943
  %3936 = vmatprep.subr.mxu0 %v948
  %3937 = vmatpush1.msra.mxu0 %v947
  %3938 = vmatprep.subr.mxu0 %v952
  %3939 = vmatpush1.msra.mxu0 %v951
  %3940 = vmatprep.subr.mxu0 %v956
  %3941 = vmatpush1.msra.mxu0 %v955
  %3942 = vmatprep.subr.mxu0 %v960
  %3943 = vmatpush1.msra.mxu0 %v959
  %3944 = vmatprep.subr.mxu0 %v964
  %3945 = vmatpush1.msra.mxu0 %v963
  %3946 = vmatprep.subr.mxu0 %v968
  %3947 = vmatpush1.msra.mxu0 %v967
  %3948 = vmatprep.subr.mxu0 %v972
  %3949 = vmatpush1.msra.mxu0 %v971
  %3950 = vmatprep.subr.mxu0 %v976
  %3951 = vmatpush1.msra.mxu0 %v975
  %3952 = vmatprep.subr.mxu0 %v980
  %3953 = vmatpush1.msra.mxu0 %v979
  %3954 = vmatprep.subr.mxu0 %v984
  %3955 = vmatpush1.msra.mxu0 %v983
  %3956 = vmatprep.subr.mxu0 %v988
  %3957 = vmatpush1.msra.mxu0 %v987
  %3958 = vmatprep.subr.mxu0 %v992
  %3959 = vmatpush1.msra.mxu0 %v991
  %3960 = vmatprep.subr.mxu0 %v996
  %3961 = vmatpush1.msra.mxu0 %v995
  %3962 = vmatprep.subr.mxu0 %v1000
  %3963 = vmatpush1.msra.mxu0 %v999
  %3964 = vmatprep.subr.mxu0 %v1004
  %3965 = vmatpush1.msra.mxu0 %v1003
  %3966 = vmatprep.subr.mxu0 %v1008
  %3967 = vmatpush1.msra.mxu0 %v1007
  %3968 = vmatprep.subr.mxu0 %v1012
  %3969 = vmatpush1.msra.mxu0 %v1011
  %3970 = vmatprep.subr.mxu0 %v1016
  %3971 = vmatpush1.msra.mxu0 %v1015
  %3972 = vmatprep.subr.mxu0 %v1020
  %3973 = vmatpush1.msra.mxu0 %v1019
  %3974 = vmatprep.subr.mxu0 %v1024
  %3975 = vmatpush1.msra.mxu0 %v1023
  %3976 = vmatprep.subr.mxu0 %v1028
  %3977 = vmatpush1.msra.mxu0 %v1027
  %3978 = vmatprep.subr.mxu0 %v1032
  %3979 = vmatpush1.msra.mxu0 %v1031
  %3980 = vmatprep.subr.mxu0 %v1036
  %3981 = vmatpush1.msra.mxu0 %v1035
  %3982 = vmatprep.subr.mxu0 %v1040
  %3983 = vmatpush1.msra.mxu0 %v1039
  %3984 = vmatprep.mubr.f32.mxu0 %v2667
  %3985 = vmatmul.mubr.f32.gmra.mrb[0].mxu0 %v2666
  %v3986 = vpop.f32.mrb[0].mxu0
  %v3987 = vadd.f32 %v3910, %v3986
  %v3988 = vpop.f32.mrb[0].mxu0
  %v3989 = vadd.f32 %v3912, %v3988
  %3990 = vmatprep.mubr.f32.mxu0 %v2685
  %3991 = vmatmul.mubr.f32.gmra.mrb[0].mxu0 %v2684
  %v3992 = vpop.f32.mrb[0].mxu0
  %v3993 = vadd.f32 %v3916, %v3992
  %v3994 = vpop.f32.mrb[0].mxu0
  %v3995 = vadd.f32 %v3918, %v3994
  %3996 = vdwg.mxu0
  %3997 = vmatprep.subr.mxu0 %v1044
  %3998 = vmatpush1.msra.mxu0 %v1043
  %3999 = vmatprep.subr.mxu0 %v1048
  %4000 = vmatpush1.msra.mxu0 %v1047
  %4001 = vmatprep.subr.mxu0 %v1052
  %4002 = vmatpush1.msra.mxu0 %v1051
  %4003 = vmatprep.subr.mxu0 %v1056
  %4004 = vmatpush1.msra.mxu0 %v1055
  %4005 = vmatprep.subr.mxu0 %v1060
  %4006 = vmatpush1.msra.mxu0 %v1059
  %4007 = vmatprep.subr.mxu0 %v1064
  %4008 = vmatpush1.msra.mxu0 %v1063
  %4009 = vmatprep.subr.mxu0 %v1068
  %4010 = vmatpush1.msra.mxu0 %v1067
  %4011 = vmatprep.subr.mxu0 %v1072
  %4012 = vmatpush1.msra.mxu0 %v1071
  %4013 = vmatprep.subr.mxu0 %v1076
  %4014 = vmatpush1.msra.mxu0 %v1075
  %4015 = vmatprep.subr.mxu0 %v1080
  %4016 = vmatpush1.msra.mxu0 %v1079
  %4017 = vmatprep.subr.mxu0 %v1084
  %4018 = vmatpush1.msra.mxu0 %v1083
  %4019 = vmatprep.subr.mxu0 %v1088
  %4020 = vmatpush1.msra.mxu0 %v1087
  %4021 = vmatprep.subr.mxu0 %v1092
  %4022 = vmatpush1.msra.mxu0 %v1091
  %4023 = vmatprep.subr.mxu0 %v1096
  %4024 = vmatpush1.msra.mxu0 %v1095
  %4025 = vmatprep.subr.mxu0 %v1100
  %4026 = vmatpush1.msra.mxu0 %v1099
  %4027 = vmatprep.subr.mxu0 %v1104
  %4028 = vmatpush1.msra.mxu0 %v1103
  %4029 = vmatprep.subr.mxu0 %v1108
  %4030 = vmatpush1.msra.mxu0 %v1107
  %4031 = vmatprep.subr.mxu0 %v1112
  %4032 = vmatpush1.msra.mxu0 %v1111
  %4033 = vmatprep.subr.mxu0 %v1116
  %4034 = vmatpush1.msra.mxu0 %v1115
  %4035 = vmatprep.subr.mxu0 %v1120
  %4036 = vmatpush1.msra.mxu0 %v1119
  %4037 = vmatprep.subr.mxu0 %v1124
  %4038 = vmatpush1.msra.mxu0 %v1123
  %4039 = vmatprep.subr.mxu0 %v1128
  %4040 = vmatpush1.msra.mxu0 %v1127
  %4041 = vmatprep.subr.mxu0 %v1132
  %4042 = vmatpush1.msra.mxu0 %v1131
  %4043 = vmatprep.subr.mxu0 %v1136
  %4044 = vmatpush1.msra.mxu0 %v1135
  %4045 = vmatprep.subr.mxu0 %v1140
  %4046 = vmatpush1.msra.mxu0 %v1139
  %4047 = vmatprep.subr.mxu0 %v1144
  %4048 = vmatpush1.msra.mxu0 %v1143
  %4049 = vmatprep.subr.mxu0 %v1148
  %4050 = vmatpush1.msra.mxu0 %v1147
  %4051 = vmatprep.subr.mxu0 %v1152
  %4052 = vmatpush1.msra.mxu0 %v1151
  %4053 = vmatprep.subr.mxu0 %v1156
  %4054 = vmatpush1.msra.mxu0 %v1155
  %4055 = vmatprep.subr.mxu0 %v1160
  %4056 = vmatpush1.msra.mxu0 %v1159
  %4057 = vmatprep.subr.mxu0 %v1164
  %4058 = vmatpush1.msra.mxu0 %v1163
  %4059 = vmatprep.subr.mxu0 %v1168
  %4060 = vmatpush1.msra.mxu0 %v1167
  %4061 = vmatprep.mubr.f32.mxu0 %v2669
  %4062 = vmatmul.mubr.f32.gmra.mrb[0].mxu0 %v2668
  %v4063 = vpop.f32.mrb[0].mxu0
  %v4064 = vadd.f32 %v3987, %v4063
  %v4065 = vpop.f32.mrb[0].mxu0
  %v4066 = vadd.f32 %v3989, %v4065
  %4067 = vmatprep.mubr.f32.mxu0 %v2687
  %4068 = vmatmul.mubr.f32.gmra.mrb[0].mxu0 %v2686
  %v4069 = vpop.f32.mrb[0].mxu0
  %v4070 = vadd.f32 %v3993, %v4069
  %v4071 = vpop.f32.mrb[0].mxu0
  %v4072 = vadd.f32 %v3995, %v4071
  %4073 = vdwg.mxu0
  %v4074 = vmul.f32 %v3371, %v2597
  %v4075 = vmul.f32 %v3373, %v2601
  %v4076 = vmul.f32 %v4064, %v2605
  %v4077 = vmul.f32 %v4066, %v2609
  %v4078 = vmul.f32 %v3377, %v2597
  %v4079 = vmul.f32 %v3379, %v2601
  %v4080 = vmul.f32 %v4070, %v2605
  %v4081 = vmul.f32 %v4072, %v2609
  %v4082 = vadd.f32 %v4074, %v2626
  %v4083 = vadd.f32 %v4075, %v2630
  %v4084 = vadd.f32 %v4076, %v2634
  %v4085 = vadd.f32 %v4077, %v2638
  %v4086 = vadd.f32 %v4078, %v2626
  %v4087 = vadd.f32 %v4079, %v2630
  %v4088 = vadd.f32 %v4080, %v2634
  %v4089 = vadd.f32 %v4081, %v2638
  %v4090 = vmax.f32 %v2643, %v4082
  %v4091 = vmax.f32 %v2644, %v4083
  %v4092 = vmax.f32 %v2645, %v4084
  %v4093 = vmax.f32 %v2646, %v4085
  %v4094 = vmax.f32 %v2647, %v4086
  %v4095 = vmax.f32 %v2648, %v4087
  %v4096 = vmax.f32 %v2649, %v4088
  %v4097 = vmax.f32 %v2650, %v4089
  %v4098 = vmax.f32 %v4090, 0.0
  %v4099 = vmax.f32 %v4091, 0.0
  %v4100 = vmax.f32 %v4092, 0.0
  %v4101 = vmax.f32 %v4093, 0.0
  %v4102 = vmax.f32 %v4094, 0.0
  %v4103 = vmax.f32 %v4095, 0.0
  %v4104 = vmax.f32 %v4096, 0.0
  %v4105 = vmax.f32 %v4097, 0.0
  %4106 = vst [vmem:[%s4] sm:$0xff] %v4098
  %4107 = vst [vmem:[%s4 + $0x8] sm:$0xff] %v4099
  %4108 = vst [vmem:[%s4 + $0x10] sm:$0xff] %v4100
  %4109 = vst [vmem:[%s4 + $0x18] sm:$0xff] %v4101
  %4110 = vst [vmem:[%s4 + $0x20] sm:$0xff] %v4102
  %4111 = vst [vmem:[%s4 + $0x28] sm:$0xff] %v4103
  %4112 = vst [vmem:[%s4 + $0x30] sm:$0xff] %v4104
  %4113 = vst [vmem:[%s4 + $0x38] sm:$0xff] %v4105
  // Predicated region
  $region18: #{crnn_forward.12} parent=0 // pred_check
    _
  $region19: #{crnn_forward.12} parent=0 // pred_check_branch
    %4115 = sbr.rel (0) target = $region21
  $region20: #{crnn_forward.12} parent=0 // pred_region
    _
  $region21: #{crnn_forward.12} parent=0 // pred_fallthru
    _
  // Predicated region
  $region22: #{crnn_forward.12} parent=0 // pred_check
    _
  $region23: #{crnn_forward.12} parent=0 // pred_check_branch
    %4117 = sbr.rel (0) target = $region25
  $region24: #{crnn_forward.12} parent=0 // pred_region
    _
  $region25: #{crnn_forward.12} parent=0 // pred_fallthru
    _

</llo_original>
